<compile_context>
chip_gen: v7x
topology: tpu7x:2x2x1
jax: 0.10.0
libtpu: 0.0.40
codegen_flags: <defaults>
</compile_context>

<pallas_src>
import math
import functools

import jax
import jax.numpy as jnp
from jax import lax
from jax.experimental import pallas as pl
from jax.experimental.pallas import tpu as pltpu


_PER_LAYER = 20
_PARAM_ORDER = (
    "qkv_w", "qkv_b", "o1_w", "o1_b", "ln1_a", "ln1_b",
    "q2_w", "q2_b", "kv2_w", "kv2_b", "o2_w", "o2_b", "ln2_a", "ln2_b",
    "ff1_w", "ff1_b", "ff2_w", "ff2_b", "ln3_a", "ln3_b",
)


# ----------------------------- fused decoder kernel -----------------------------

def _decoder_kernel(*refs, n_layers, head_n, B, Sq, Sk, eps):
    x_ref, mem_ref = refs[0], refs[1]
    out_ref = refs[-1]
    wrefs = refs[2:-1]                      # 20 weight refs per layer, all in VMEM

    x = x_ref[...]                          # (B*Sq, D) activations, resident in vregs/VMEM
    mem = mem_ref[...]                      # (B*Sk, D)
    D = x.shape[-1]
    Dh = D // head_n

    # Causal mask computed ONCE per kernel (hoisted out of layer/batch/head loops).
    row = lax.broadcasted_iota(jnp.int32, (Sq, Sq), 0)
    col = lax.broadcasted_iota(jnp.int32, (Sq, Sq), 1)
    future = col > row

    def softmax(s):
        # Exact softmax: no approx reciprocal (its error compounded across the
        # residual stream and broke the previous correctness check).
        s = s - jnp.max(s, axis=-1, keepdims=True)
        p = jnp.exp(s)
        return p / jnp.sum(p, axis=-1, keepdims=True)

    def ln_residual(x_in, y, a_vec, b_vec):
        # x_in + LayerNorm(y); torch-style unbiased std (/(D-1)), eps added to std.
        mean = jnp.mean(y, axis=-1, keepdims=True)
        d = y - mean
        std = jnp.sqrt(jnp.sum(d * d, axis=-1, keepdims=True) / (D - 1))
        return x_in + a_vec * d / (std + eps) + b_vec

    def mha(q_all, k_all, v_all, wo, bo, S_kv, causal):
        # q_all:(B*Sq,D)  k_all/v_all:(B*S_kv,D); Q already pre-scaled host-side.
        # All heads of all batch elements handled here; per-head contexts are
        # concatenated so the output projection is ONE (B*Sq,D)@(D,D) matmul.
        ctx_rows = []
        for b in range(B):
            qb = q_all[b * Sq:(b + 1) * Sq, :]
            kbT = k_all[b * S_kv:(b + 1) * S_kv, :].T      # one transpose per (layer, batch)
            vb = v_all[b * S_kv:(b + 1) * S_kv, :]
            heads = []
            for h in range(head_n):   # TODO(synk): switch to lax.fori_loop at large head_n
                qh = qb[:, h * Dh:(h + 1) * Dh]
                kTh = kbT[h * Dh:(h + 1) * Dh, :]          # sublane-aligned head slice
                vh = vb[:, h * Dh:(h + 1) * Dh]
                s = jnp.dot(qh, kTh, preferred_element_type=jnp.float32)
                if causal:
                    s = jnp.where(future, jnp.float32(-1e9), s)
                p = softmax(s)
                heads.append(jnp.dot(p, vh, preferred_element_type=jnp.float32))
            ctx_rows.append(jnp.concatenate(heads, axis=1))       # (Sq, D)
        ctx = jnp.concatenate(ctx_rows, axis=0)                   # (B*Sq, D)
        return jnp.dot(ctx, wo, preferred_element_type=jnp.float32) + bo

    for layer in range(n_layers):
        (qkv_w, qkv_b, o1_w, o1_b, ln1_a, ln1_b,
         q2_w, q2_b, kv2_w, kv2_b, o2_w, o2_b, ln2_a, ln2_b,
         ff1_w, ff1_b, ff2_w, ff2_b, ln3_a, ln3_b) = [
            wrefs[layer * _PER_LAYER + i][...] for i in range(_PER_LAYER)]

        # (1) masked self-attention sub-layer: x + LN(Wo(attn(x @ Wqkv)))
        qkv = jnp.dot(x, qkv_w, preferred_element_type=jnp.float32) + qkv_b
        y = mha(qkv[:, 0:D], qkv[:, D:2 * D], qkv[:, 2 * D:3 * D],
                o1_w, o1_b, Sq, causal=True)
        x = ln_residual(x, y, ln1_a, ln1_b)

        # (2) cross-attention sub-layer: x + LN(Wo(attn(x @ Wq, mem @ Wkv)))
        q = jnp.dot(x, q2_w, preferred_element_type=jnp.float32) + q2_b
        kv = jnp.dot(mem, kv2_w, preferred_element_type=jnp.float32) + kv2_b
        y = mha(q, kv[:, 0:D], kv[:, D:2 * D], o2_w, o2_b, Sk, causal=False)
        x = ln_residual(x, y, ln2_a, ln2_b)

        # (3) feed-forward sub-layer: x + LN(relu(x @ W1 + b1) @ W2 + b2)
        hid = jnp.maximum(jnp.dot(x, ff1_w, preferred_element_type=jnp.float32) + ff1_b, 0.0)
        y = jnp.dot(hid, ff2_w, preferred_element_type=jnp.float32) + ff2_b
        x = ln_residual(x, y, ln3_a, ln3_b)

    # Single final store (last dim 32 -> masked vst, but it happens exactly once).
    out_ref[...] = x.astype(out_ref.dtype)


def decoder_forward(x, memory, fused_params, head_n, eps=1e-6):
    """x:(B,Sq,D) memory:(B,Sk,D) -> (B,Sq,D). One pallas_call for all N layers."""
    B, Sq, D = x.shape
    Bm, Sk, Dm = memory.shape
    assert B == Bm and D == Dm and D % head_n == 0
    n_layers = len(fused_params)
    flat = [p[name] for p in fused_params for name in _PARAM_ORDER]

    kernel = functools.partial(_decoder_kernel, n_layers=n_layers, head_n=head_n,
                               B=B, Sq=Sq, Sk=Sk, eps=eps)
    # No grid: a single invocation, whole arrays as VMEM blocks (everything is tiny).
    # On v7x one could re-introduce a batch grid marked "parallel" to use both TCs,
    # but at these dims per-step overhead exceeds per-step compute.
    out = pl.pallas_call(
        kernel,
        out_shape=jax.ShapeDtypeStruct((B * Sq, D), jnp.float32),
    )(x.reshape(B * Sq, D), memory.reshape(B * Sk, D), *flat)
    return out.reshape(B, Sq, D)


# ----------------------------- deterministic init -----------------------------

def _init_linear(key, in_dim, out_dim):
    k1, k2 = jax.random.split(key)
    bound = 1.0 / math.sqrt(in_dim)
    w = jax.random.uniform(k1, (in_dim, out_dim), jnp.float32, -bound, bound)
    b = jax.random.uniform(k2, (1, out_dim), jnp.float32, -bound, bound)
    return w, b


def init_decoder_params(seed, N, dim_word, d_ff):
    key = jax.random.PRNGKey(seed)

    def nxt():
        nonlocal key
        key, sub = jax.random.split(key)
        return sub

    ln = lambda: (jnp.ones((1, dim_word), jnp.float32),
                  jnp.zeros((1, dim_word), jnp.float32))
    blocks = []
    for _ in range(N):
        blocks.append({
            "mha1": [_init_linear(nxt(), dim_word, dim_word) for _ in range(4)],
            "ln1": ln(),
            "mha2": [_init_linear(nxt(), dim_word, dim_word) for _ in range(4)],
            "ln2": ln(),
            "ff1": _init_linear(nxt(), dim_word, d_ff),
            "ff2": _init_linear(nxt(), d_ff, dim_word),
            "ln3": ln(),
        })
    return blocks


def fuse_params(blocks, head_n):
    """Host-side fusion: concatenate Q|K|V (and K|V) along N and fold the
    1/sqrt(Dh) attention scale into the Q weights/biases."""
    fused = []
    for p in blocks:
        (wq1, bq1), (wk1, bk1), (wv1, bv1), (wo1, bo1) = p["mha1"]
        (wq2, bq2), (wk2, bk2), (wv2, bv2), (wo2, bo2) = p["mha2"]
        dim_word = wq1.shape[0]
        scale = 1.0 / math.sqrt(dim_word // head_n)
        fused.append({
            "qkv_w": jnp.concatenate([wq1 * scale, wk1, wv1], axis=1),
            "qkv_b": jnp.concatenate([bq1 * scale, bk1, bv1], axis=1),
            "o1_w": wo1, "o1_b": bo1,
            "ln1_a": p["ln1"][0], "ln1_b": p["ln1"][1],
            "q2_w": wq2 * scale, "q2_b": bq2 * scale,
            "kv2_w": jnp.concatenate([wk2, wv2], axis=1),
            "kv2_b": jnp.concatenate([bk2, bv2], axis=1),
            "o2_w": wo2, "o2_b": bo2,
            "ln2_a": p["ln2"][0], "ln2_b": p["ln2"][1],
            "ff1_w": p["ff1"][0], "ff1_b": p["ff1"][1],
            "ff2_w": p["ff2"][0], "ff2_b": p["ff2"][1],
            "ln3_a": p["ln3"][0], "ln3_b": p["ln3"][1],
        })
    return fused


# ----------------------------- pure-JAX reference -----------------------------

def _ref_layernorm(x, a, b, eps=1e-6):
    mean = jnp.mean(x, axis=-1, keepdims=True)
    d = x - mean
    std = jnp.sqrt(jnp.sum(d * d, axis=-1, keepdims=True) / (x.shape[-1] - 1))
    return a.reshape(-1) * d / (std + eps) + b.reshape(-1)


def _ref_mha(q_in, k_in, v_in, p, head_n, causal):
    B, Sq, D = q_in.shape
    Sk = k_in.shape[1]
    Dh = D // head_n

    def proj(x, wb, S):
        w, b = wb
        return (x @ w + b.reshape(-1)).reshape(B, S, head_n, Dh).transpose(0, 2, 1, 3)

    q, k, v = proj(q_in, p[0], Sq), proj(k_in, p[1], Sk), proj(v_in, p[2], Sk)
    s = jnp.einsum("bhqd,bhkd->bhqk", q, k) / math.sqrt(Dh)
    if causal:
        row = jnp.arange(Sq)[:, None]
        col = jnp.arange(Sk)[None, :]
        s = jnp.where(col > row, -1e9, s)
    p_attn = jax.nn.softmax(s, axis=-1)
    o = jnp.einsum("bhqk,bhkd->bhqd", p_attn, v).transpose(0, 2, 1, 3).reshape(B, Sq, D)
    wo, bo = p[3]
    return o @ wo + bo.reshape(-1)


def _ref_decoder(x, memory, params, head_n, eps=1e-6):
    for p in params:
        x = x + _ref_layernorm(_ref_mha(x, x, x, p["mha1"], head_n, True), *p["ln1"], eps)
        x = x + _ref_layernorm(_ref_mha(x, memory, memory, p["mha2"], head_n, False), *p["ln2"], eps)
        w1, b1 = p["ff1"]; w2, b2 = p["ff2"]
        h = jnp.maximum(x @ w1 + b1.reshape(-1), 0.0) @ w2 + b2.reshape(-1)
        x = x + _ref_layernorm(h, *p["ln3"], eps)
    return x


# ----------------------------- main -----------------------------

if __name__ == "__main__":
    N_LAYERS, DIM_WORD, HEAD_N, D_FF = 2, 32, 4, 64
    B, S = 2, 8

    key = jax.random.PRNGKey(0)
    kx, km = jax.random.split(key)
    x = jax.random.normal(kx, (B, S, DIM_WORD), jnp.float32)
    memory = jax.random.normal(km, (B, S, DIM_WORD), jnp.float32)

    params = init_decoder_params(0, N_LAYERS, DIM_WORD, D_FF)
    fused = fuse_params(params, HEAD_N)

    out = jax.block_until_ready(decoder_forward(x, memory, fused, HEAD_N))

    # Reference at true-f32 matmul precision (default TPU precision truncates to bf16,
    # which would itself introduce ~1e-3-level noise into the "reference").
    with jax.default_matmul_precision("highest"):
        ref = jax.block_until_ready(_ref_decoder(x, memory, params, HEAD_N))

    assert out.shape == (B, S, DIM_WORD)
    err = float(jnp.max(jnp.abs(out - ref)))
    assert jnp.allclose(out, ref, rtol=2e-2, atol=2e-2), \
        f"mismatch vs pure-JAX reference (max abs err {err})"

    # TODO(synk): dropout layers are identity (inference mode); no stochastic path.
    print("KERNEL_OK")
</pallas_src>

<mosaic_0001>
module attributes {stable_mosaic.version = 11 : i64} {
  func.func @_decoder_kernel(%arg0: memref<16x32xf32, #tpu.memory_space<vmem>>, %arg1: memref<16x32xf32, #tpu.memory_space<vmem>>, %arg2: memref<32x96xf32, #tpu.memory_space<vmem>>, %arg3: memref<1x96xf32, #tpu.memory_space<vmem>>, %arg4: memref<32x32xf32, #tpu.memory_space<vmem>>, %arg5: memref<1x32xf32, #tpu.memory_space<vmem>>, %arg6: memref<1x32xf32, #tpu.memory_space<vmem>>, %arg7: memref<1x32xf32, #tpu.memory_space<vmem>>, %arg8: memref<32x32xf32, #tpu.memory_space<vmem>>, %arg9: memref<1x32xf32, #tpu.memory_space<vmem>>, %arg10: memref<32x64xf32, #tpu.memory_space<vmem>>, %arg11: memref<1x64xf32, #tpu.memory_space<vmem>>, %arg12: memref<32x32xf32, #tpu.memory_space<vmem>>, %arg13: memref<1x32xf32, #tpu.memory_space<vmem>>, %arg14: memref<1x32xf32, #tpu.memory_space<vmem>>, %arg15: memref<1x32xf32, #tpu.memory_space<vmem>>, %arg16: memref<32x64xf32, #tpu.memory_space<vmem>>, %arg17: memref<1x64xf32, #tpu.memory_space<vmem>>, %arg18: memref<64x32xf32, #tpu.memory_space<vmem>>, %arg19: memref<1x32xf32, #tpu.memory_space<vmem>>, %arg20: memref<1x32xf32, #tpu.memory_space<vmem>>, %arg21: memref<1x32xf32, #tpu.memory_space<vmem>>, %arg22: memref<32x96xf32, #tpu.memory_space<vmem>>, %arg23: memref<1x96xf32, #tpu.memory_space<vmem>>, %arg24: memref<32x32xf32, #tpu.memory_space<vmem>>, %arg25: memref<1x32xf32, #tpu.memory_space<vmem>>, %arg26: memref<1x32xf32, #tpu.memory_space<vmem>>, %arg27: memref<1x32xf32, #tpu.memory_space<vmem>>, %arg28: memref<32x32xf32, #tpu.memory_space<vmem>>, %arg29: memref<1x32xf32, #tpu.memory_space<vmem>>, %arg30: memref<32x64xf32, #tpu.memory_space<vmem>>, %arg31: memref<1x64xf32, #tpu.memory_space<vmem>>, %arg32: memref<32x32xf32, #tpu.memory_space<vmem>>, %arg33: memref<1x32xf32, #tpu.memory_space<vmem>>, %arg34: memref<1x32xf32, #tpu.memory_space<vmem>>, %arg35: memref<1x32xf32, #tpu.memory_space<vmem>>, %arg36: memref<32x64xf32, #tpu.memory_space<vmem>>, %arg37: memref<1x64xf32, #tpu.memory_space<vmem>>, %arg38: memref<64x32xf32, #tpu.memory_space<vmem>>, %arg39: memref<1x32xf32, #tpu.memory_space<vmem>>, %arg40: memref<1x32xf32, #tpu.memory_space<vmem>>, %arg41: memref<1x32xf32, #tpu.memory_space<vmem>>, %arg42: memref<16x32xf32, #tpu.memory_space<vmem>>) attributes {dimension_semantics = [], scalar_prefetch = 0 : i64, scratch_operands = 0 : i64, tpu.core_type = #tpu.core_type<tc>} {
    %c0 = arith.constant 0 : index
    %c0_0 = arith.constant 0 : index
    %0 = vector.load %arg0[%c0, %c0_0] : memref<16x32xf32, #tpu.memory_space<vmem>>, vector<16x32xf32>
    %c0_1 = arith.constant 0 : index
    %c0_2 = arith.constant 0 : index
    %1 = vector.load %arg1[%c0_1, %c0_2] : memref<16x32xf32, #tpu.memory_space<vmem>>, vector<16x32xf32>
    %2 = tpu.iota {dimensions = array<i32: 0>} : vector<8x8xi32>
    %3 = tpu.iota {dimensions = array<i32: 1>} : vector<8x8xi32>
    %4 = arith.cmpi sgt, %3, %2 : vector<8x8xi32>
    %c0_3 = arith.constant 0 : index
    %c0_4 = arith.constant 0 : index
    %5 = vector.load %arg2[%c0_3, %c0_4] : memref<32x96xf32, #tpu.memory_space<vmem>>, vector<32x96xf32>
    %c0_5 = arith.constant 0 : index
    %c0_6 = arith.constant 0 : index
    %6 = vector.load %arg3[%c0_5, %c0_6] : memref<1x96xf32, #tpu.memory_space<vmem>>, vector<1x96xf32>
    %c0_7 = arith.constant 0 : index
    %c0_8 = arith.constant 0 : index
    %7 = vector.load %arg4[%c0_7, %c0_8] : memref<32x32xf32, #tpu.memory_space<vmem>>, vector<32x32xf32>
    %c0_9 = arith.constant 0 : index
    %c0_10 = arith.constant 0 : index
    %8 = vector.load %arg5[%c0_9, %c0_10] : memref<1x32xf32, #tpu.memory_space<vmem>>, vector<1x32xf32>
    %c0_11 = arith.constant 0 : index
    %c0_12 = arith.constant 0 : index
    %9 = vector.load %arg6[%c0_11, %c0_12] : memref<1x32xf32, #tpu.memory_space<vmem>>, vector<1x32xf32>
    %c0_13 = arith.constant 0 : index
    %c0_14 = arith.constant 0 : index
    %10 = vector.load %arg7[%c0_13, %c0_14] : memref<1x32xf32, #tpu.memory_space<vmem>>, vector<1x32xf32>
    %c0_15 = arith.constant 0 : index
    %c0_16 = arith.constant 0 : index
    %11 = vector.load %arg8[%c0_15, %c0_16] : memref<32x32xf32, #tpu.memory_space<vmem>>, vector<32x32xf32>
    %c0_17 = arith.constant 0 : index
    %c0_18 = arith.constant 0 : index
    %12 = vector.load %arg9[%c0_17, %c0_18] : memref<1x32xf32, #tpu.memory_space<vmem>>, vector<1x32xf32>
    %c0_19 = arith.constant 0 : index
    %c0_20 = arith.constant 0 : index
    %13 = vector.load %arg10[%c0_19, %c0_20] : memref<32x64xf32, #tpu.memory_space<vmem>>, vector<32x64xf32>
    %c0_21 = arith.constant 0 : index
    %c0_22 = arith.constant 0 : index
    %14 = vector.load %arg11[%c0_21, %c0_22] : memref<1x64xf32, #tpu.memory_space<vmem>>, vector<1x64xf32>
    %c0_23 = arith.constant 0 : index
    %c0_24 = arith.constant 0 : index
    %15 = vector.load %arg12[%c0_23, %c0_24] : memref<32x32xf32, #tpu.memory_space<vmem>>, vector<32x32xf32>
    %c0_25 = arith.constant 0 : index
    %c0_26 = arith.constant 0 : index
    %16 = vector.load %arg13[%c0_25, %c0_26] : memref<1x32xf32, #tpu.memory_space<vmem>>, vector<1x32xf32>
    %c0_27 = arith.constant 0 : index
    %c0_28 = arith.constant 0 : index
    %17 = vector.load %arg14[%c0_27, %c0_28] : memref<1x32xf32, #tpu.memory_space<vmem>>, vector<1x32xf32>
    %c0_29 = arith.constant 0 : index
    %c0_30 = arith.constant 0 : index
    %18 = vector.load %arg15[%c0_29, %c0_30] : memref<1x32xf32, #tpu.memory_space<vmem>>, vector<1x32xf32>
    %c0_31 = arith.constant 0 : index
    %c0_32 = arith.constant 0 : index
    %19 = vector.load %arg16[%c0_31, %c0_32] : memref<32x64xf32, #tpu.memory_space<vmem>>, vector<32x64xf32>
    %c0_33 = arith.constant 0 : index
    %c0_34 = arith.constant 0 : index
    %20 = vector.load %arg17[%c0_33, %c0_34] : memref<1x64xf32, #tpu.memory_space<vmem>>, vector<1x64xf32>
    %c0_35 = arith.constant 0 : index
    %c0_36 = arith.constant 0 : index
    %21 = vector.load %arg18[%c0_35, %c0_36] : memref<64x32xf32, #tpu.memory_space<vmem>>, vector<64x32xf32>
    %c0_37 = arith.constant 0 : index
    %c0_38 = arith.constant 0 : index
    %22 = vector.load %arg19[%c0_37, %c0_38] : memref<1x32xf32, #tpu.memory_space<vmem>>, vector<1x32xf32>
    %c0_39 = arith.constant 0 : index
    %c0_40 = arith.constant 0 : index
    %23 = vector.load %arg20[%c0_39, %c0_40] : memref<1x32xf32, #tpu.memory_space<vmem>>, vector<1x32xf32>
    %c0_41 = arith.constant 0 : index
    %c0_42 = arith.constant 0 : index
    %24 = vector.load %arg21[%c0_41, %c0_42] : memref<1x32xf32, #tpu.memory_space<vmem>>, vector<1x32xf32>
    %cst = arith.constant dense<0.000000e+00> : vector<16x96xf32>
    %25 = tpu.matmul %0, %5, %cst {dimension_numbers = #tpu.dot_dimension_numbers<[1], [0], [0], [1], [0, 0, 1, 1], [], []>} : vector<16x32xf32>, vector<32x96xf32>, vector<16x96xf32> -> vector<16x96xf32>
    %26 = vector.broadcast %6 : vector<1x96xf32> to vector<16x96xf32>
    %27 = arith.addf %25, %26 : vector<16x96xf32>
    %28 = vector.extract_strided_slice %27 {offsets = [0, 0], sizes = [16, 32], strides = [1, 1]} : vector<16x96xf32> to vector<16x32xf32>
    %29 = vector.extract_strided_slice %27 {offsets = [0, 32], sizes = [16, 32], strides = [1, 1]} : vector<16x96xf32> to vector<16x32xf32>
    %30 = vector.extract_strided_slice %27 {offsets = [0, 64], sizes = [16, 32], strides = [1, 1]} : vector<16x96xf32> to vector<16x32xf32>
    %31 = vector.extract_strided_slice %28 {offsets = [0, 0], sizes = [8, 32], strides = [1, 1]} : vector<16x32xf32> to vector<8x32xf32>
    %32 = vector.extract_strided_slice %29 {offsets = [0, 0], sizes = [8, 32], strides = [1, 1]} : vector<16x32xf32> to vector<8x32xf32>
    %33 = tpu.transpose %32, [1, 0] : vector<8x32xf32> -> vector<32x8xf32>
    %34 = vector.extract_strided_slice %30 {offsets = [0, 0], sizes = [8, 32], strides = [1, 1]} : vector<16x32xf32> to vector<8x32xf32>
    %35 = vector.extract_strided_slice %31 {offsets = [0, 0], sizes = [8, 8], strides = [1, 1]} : vector<8x32xf32> to vector<8x8xf32>
    %36 = vector.extract_strided_slice %33 {offsets = [0, 0], sizes = [8, 8], strides = [1, 1]} : vector<32x8xf32> to vector<8x8xf32>
    %37 = vector.extract_strided_slice %34 {offsets = [0, 0], sizes = [8, 8], strides = [1, 1]} : vector<8x32xf32> to vector<8x8xf32>
    %cst_43 = arith.constant dense<0.000000e+00> : vector<8x8xf32>
    %38 = tpu.matmul %35, %36, %cst_43 {dimension_numbers = #tpu.dot_dimension_numbers<[1], [0], [0], [1], [0, 0, 1, 1], [], []>} : vector<8x8xf32>, vector<8x8xf32>, vector<8x8xf32> -> vector<8x8xf32>
    %cst_44 = arith.constant -1.000000e+09 : f32
    %39 = vector.broadcast %cst_44 : f32 to vector<8x8xf32>
    %40 = arith.select %4, %39, %38 : vector<8x8xi1>, vector<8x8xf32>
    %cst_45 = arith.constant dense<0xFF800000> : vector<8xf32>
    %41 = vector.multi_reduction <maximumf>, %40, %cst_45 [1] : vector<8x8xf32> to vector<8xf32>
    %42 = vector.shape_cast %41 : vector<8xf32> to vector<8x1xf32>
    %43 = vector.broadcast %42 : vector<8x1xf32> to vector<8x8xf32>
    %44 = arith.subf %40, %43 : vector<8x8xf32>
    %45 = math.exp %44 : vector<8x8xf32>
    %cst_46 = arith.constant dense<0.000000e+00> : vector<8xf32>
    %46 = vector.multi_reduction <add>, %45, %cst_46 [1] : vector<8x8xf32> to vector<8xf32>
    %47 = vector.shape_cast %46 : vector<8xf32> to vector<8x1xf32>
    %48 = vector.broadcast %47 : vector<8x1xf32> to vector<8x8xf32>
    %49 = arith.divf %45, %48 : vector<8x8xf32>
    %cst_47 = arith.constant dense<0.000000e+00> : vector<8x8xf32>
    %50 = tpu.matmul %49, %37, %cst_47 {dimension_numbers = #tpu.dot_dimension_numbers<[1], [0], [0], [1], [0, 0, 1, 1], [], []>} : vector<8x8xf32>, vector<8x8xf32>, vector<8x8xf32> -> vector<8x8xf32>
    %51 = vector.extract_strided_slice %31 {offsets = [0, 8], sizes = [8, 8], strides = [1, 1]} : vector<8x32xf32> to vector<8x8xf32>
    %52 = vector.extract_strided_slice %33 {offsets = [8, 0], sizes = [8, 8], strides = [1, 1]} : vector<32x8xf32> to vector<8x8xf32>
    %53 = vector.extract_strided_slice %34 {offsets = [0, 8], sizes = [8, 8], strides = [1, 1]} : vector<8x32xf32> to vector<8x8xf32>
    %cst_48 = arith.constant dense<0.000000e+00> : vector<8x8xf32>
    %54 = tpu.matmul %51, %52, %cst_48 {dimension_numbers = #tpu.dot_dimension_numbers<[1], [0], [0], [1], [0, 0, 1, 1], [], []>} : vector<8x8xf32>, vector<8x8xf32>, vector<8x8xf32> -> vector<8x8xf32>
    %cst_49 = arith.constant -1.000000e+09 : f32
    %55 = vector.broadcast %cst_49 : f32 to vector<8x8xf32>
    %56 = arith.select %4, %55, %54 : vector<8x8xi1>, vector<8x8xf32>
    %cst_50 = arith.constant dense<0xFF800000> : vector<8xf32>
    %57 = vector.multi_reduction <maximumf>, %56, %cst_50 [1] : vector<8x8xf32> to vector<8xf32>
    %58 = vector.shape_cast %57 : vector<8xf32> to vector<8x1xf32>
    %59 = vector.broadcast %58 : vector<8x1xf32> to vector<8x8xf32>
    %60 = arith.subf %56, %59 : vector<8x8xf32>
    %61 = math.exp %60 : vector<8x8xf32>
    %cst_51 = arith.constant dense<0.000000e+00> : vector<8xf32>
    %62 = vector.multi_reduction <add>, %61, %cst_51 [1] : vector<8x8xf32> to vector<8xf32>
    %63 = vector.shape_cast %62 : vector<8xf32> to vector<8x1xf32>
    %64 = vector.broadcast %63 : vector<8x1xf32> to vector<8x8xf32>
    %65 = arith.divf %61, %64 : vector<8x8xf32>
    %cst_52 = arith.constant dense<0.000000e+00> : vector<8x8xf32>
    %66 = tpu.matmul %65, %53, %cst_52 {dimension_numbers = #tpu.dot_dimension_numbers<[1], [0], [0], [1], [0, 0, 1, 1], [], []>} : vector<8x8xf32>, vector<8x8xf32>, vector<8x8xf32> -> vector<8x8xf32>
    %67 = vector.extract_strided_slice %31 {offsets = [0, 16], sizes = [8, 8], strides = [1, 1]} : vector<8x32xf32> to vector<8x8xf32>
    %68 = vector.extract_strided_slice %33 {offsets = [16, 0], sizes = [8, 8], strides = [1, 1]} : vector<32x8xf32> to vector<8x8xf32>
    %69 = vector.extract_strided_slice %34 {offsets = [0, 16], sizes = [8, 8], strides = [1, 1]} : vector<8x32xf32> to vector<8x8xf32>
    %cst_53 = arith.constant dense<0.000000e+00> : vector<8x8xf32>
    %70 = tpu.matmul %67, %68, %cst_53 {dimension_numbers = #tpu.dot_dimension_numbers<[1], [0], [0], [1], [0, 0, 1, 1], [], []>} : vector<8x8xf32>, vector<8x8xf32>, vector<8x8xf32> -> vector<8x8xf32>
    %cst_54 = arith.constant -1.000000e+09 : f32
    %71 = vector.broadcast %cst_54 : f32 to vector<8x8xf32>
    %72 = arith.select %4, %71, %70 : vector<8x8xi1>, vector<8x8xf32>
    %cst_55 = arith.constant dense<0xFF800000> : vector<8xf32>
    %73 = vector.multi_reduction <maximumf>, %72, %cst_55 [1] : vector<8x8xf32> to vector<8xf32>
    %74 = vector.shape_cast %73 : vector<8xf32> to vector<8x1xf32>
    %75 = vector.broadcast %74 : vector<8x1xf32> to vector<8x8xf32>
    %76 = arith.subf %72, %75 : vector<8x8xf32>
    %77 = math.exp %76 : vector<8x8xf32>
    %cst_56 = arith.constant dense<0.000000e+00> : vector<8xf32>
    %78 = vector.multi_reduction <add>, %77, %cst_56 [1] : vector<8x8xf32> to vector<8xf32>
    %79 = vector.shape_cast %78 : vector<8xf32> to vector<8x1xf32>
    %80 = vector.broadcast %79 : vector<8x1xf32> to vector<8x8xf32>
    %81 = arith.divf %77, %80 : vector<8x8xf32>
    %cst_57 = arith.constant dense<0.000000e+00> : vector<8x8xf32>
    %82 = tpu.matmul %81, %69, %cst_57 {dimension_numbers = #tpu.dot_dimension_numbers<[1], [0], [0], [1], [0, 0, 1, 1], [], []>} : vector<8x8xf32>, vector<8x8xf32>, vector<8x8xf32> -> vector<8x8xf32>
    %83 = vector.extract_strided_slice %31 {offsets = [0, 24], sizes = [8, 8], strides = [1, 1]} : vector<8x32xf32> to vector<8x8xf32>
    %84 = vector.extract_strided_slice %33 {offsets = [24, 0], sizes = [8, 8], strides = [1, 1]} : vector<32x8xf32> to vector<8x8xf32>
    %85 = vector.extract_strided_slice %34 {offsets = [0, 24], sizes = [8, 8], strides = [1, 1]} : vector<8x32xf32> to vector<8x8xf32>
    %cst_58 = arith.constant dense<0.000000e+00> : vector<8x8xf32>
    %86 = tpu.matmul %83, %84, %cst_58 {dimension_numbers = #tpu.dot_dimension_numbers<[1], [0], [0], [1], [0, 0, 1, 1], [], []>} : vector<8x8xf32>, vector<8x8xf32>, vector<8x8xf32> -> vector<8x8xf32>
    %cst_59 = arith.constant -1.000000e+09 : f32
    %87 = vector.broadcast %cst_59 : f32 to vector<8x8xf32>
    %88 = arith.select %4, %87, %86 : vector<8x8xi1>, vector<8x8xf32>
    %cst_60 = arith.constant dense<0xFF800000> : vector<8xf32>
    %89 = vector.multi_reduction <maximumf>, %88, %cst_60 [1] : vector<8x8xf32> to vector<8xf32>
    %90 = vector.shape_cast %89 : vector<8xf32> to vector<8x1xf32>
    %91 = vector.broadcast %90 : vector<8x1xf32> to vector<8x8xf32>
    %92 = arith.subf %88, %91 : vector<8x8xf32>
    %93 = math.exp %92 : vector<8x8xf32>
    %cst_61 = arith.constant dense<0.000000e+00> : vector<8xf32>
    %94 = vector.multi_reduction <add>, %93, %cst_61 [1] : vector<8x8xf32> to vector<8xf32>
    %95 = vector.shape_cast %94 : vector<8xf32> to vector<8x1xf32>
    %96 = vector.broadcast %95 : vector<8x1xf32> to vector<8x8xf32>
    %97 = arith.divf %93, %96 : vector<8x8xf32>
    %cst_62 = arith.constant dense<0.000000e+00> : vector<8x8xf32>
    %98 = tpu.matmul %97, %85, %cst_62 {dimension_numbers = #tpu.dot_dimension_numbers<[1], [0], [0], [1], [0, 0, 1, 1], [], []>} : vector<8x8xf32>, vector<8x8xf32>, vector<8x8xf32> -> vector<8x8xf32>
    %99 = tpu.concatenate %50, %66, %82, %98 in 1 : vector<8x8xf32>, vector<8x8xf32>, vector<8x8xf32>, vector<8x8xf32> -> vector<8x32xf32>
    %100 = vector.extract_strided_slice %28 {offsets = [8, 0], sizes = [8, 32], strides = [1, 1]} : vector<16x32xf32> to vector<8x32xf32>
    %101 = vector.extract_strided_slice %29 {offsets = [8, 0], sizes = [8, 32], strides = [1, 1]} : vector<16x32xf32> to vector<8x32xf32>
    %102 = tpu.transpose %101, [1, 0] : vector<8x32xf32> -> vector<32x8xf32>
    %103 = vector.extract_strided_slice %30 {offsets = [8, 0], sizes = [8, 32], strides = [1, 1]} : vector<16x32xf32> to vector<8x32xf32>
    %104 = vector.extract_strided_slice %100 {offsets = [0, 0], sizes = [8, 8], strides = [1, 1]} : vector<8x32xf32> to vector<8x8xf32>
    %105 = vector.extract_strided_slice %102 {offsets = [0, 0], sizes = [8, 8], strides = [1, 1]} : vector<32x8xf32> to vector<8x8xf32>
    %106 = vector.extract_strided_slice %103 {offsets = [0, 0], sizes = [8, 8], strides = [1, 1]} : vector<8x32xf32> to vector<8x8xf32>
    %cst_63 = arith.constant dense<0.000000e+00> : vector<8x8xf32>
    %107 = tpu.matmul %104, %105, %cst_63 {dimension_numbers = #tpu.dot_dimension_numbers<[1], [0], [0], [1], [0, 0, 1, 1], [], []>} : vector<8x8xf32>, vector<8x8xf32>, vector<8x8xf32> -> vector<8x8xf32>
    %cst_64 = arith.constant -1.000000e+09 : f32
    %108 = vector.broadcast %cst_64 : f32 to vector<8x8xf32>
    %109 = arith.select %4, %108, %107 : vector<8x8xi1>, vector<8x8xf32>
    %cst_65 = arith.constant dense<0xFF800000> : vector<8xf32>
    %110 = vector.multi_reduction <maximumf>, %109, %cst_65 [1] : vector<8x8xf32> to vector<8xf32>
    %111 = vector.shape_cast %110 : vector<8xf32> to vector<8x1xf32>
    %112 = vector.broadcast %111 : vector<8x1xf32> to vector<8x8xf32>
    %113 = arith.subf %109, %112 : vector<8x8xf32>
    %114 = math.exp %113 : vector<8x8xf32>
    %cst_66 = arith.constant dense<0.000000e+00> : vector<8xf32>
    %115 = vector.multi_reduction <add>, %114, %cst_66 [1] : vector<8x8xf32> to vector<8xf32>
    %116 = vector.shape_cast %115 : vector<8xf32> to vector<8x1xf32>
    %117 = vector.broadcast %116 : vector<8x1xf32> to vector<8x8xf32>
    %118 = arith.divf %114, %117 : vector<8x8xf32>
    %cst_67 = arith.constant dense<0.000000e+00> : vector<8x8xf32>
    %119 = tpu.matmul %118, %106, %cst_67 {dimension_numbers = #tpu.dot_dimension_numbers<[1], [0], [0], [1], [0, 0, 1, 1], [], []>} : vector<8x8xf32>, vector<8x8xf32>, vector<8x8xf32> -> vector<8x8xf32>
    %120 = vector.extract_strided_slice %100 {offsets = [0, 8], sizes = [8, 8], strides = [1, 1]} : vector<8x32xf32> to vector<8x8xf32>
    %121 = vector.extract_strided_slice %102 {offsets = [8, 0], sizes = [8, 8], strides = [1, 1]} : vector<32x8xf32> to vector<8x8xf32>
    %122 = vector.extract_strided_slice %103 {offsets = [0, 8], sizes = [8, 8], strides = [1, 1]} : vector<8x32xf32> to vector<8x8xf32>
    %cst_68 = arith.constant dense<0.000000e+00> : vector<8x8xf32>
    %123 = tpu.matmul %120, %121, %cst_68 {dimension_numbers = #tpu.dot_dimension_numbers<[1], [0], [0], [1], [0, 0, 1, 1], [], []>} : vector<8x8xf32>, vector<8x8xf32>, vector<8x8xf32> -> vector<8x8xf32>
    %cst_69 = arith.constant -1.000000e+09 : f32
    %124 = vector.broadcast %cst_69 : f32 to vector<8x8xf32>
    %125 = arith.select %4, %124, %123 : vector<8x8xi1>, vector<8x8xf32>
    %cst_70 = arith.constant dense<0xFF800000> : vector<8xf32>
    %126 = vector.multi_reduction <maximumf>, %125, %cst_70 [1] : vector<8x8xf32> to vector<8xf32>
    %127 = vector.shape_cast %126 : vector<8xf32> to vector<8x1xf32>
    %128 = vector.broadcast %127 : vector<8x1xf32> to vector<8x8xf32>
    %129 = arith.subf %125, %128 : vector<8x8xf32>
    %130 = math.exp %129 : vector<8x8xf32>
    %cst_71 = arith.constant dense<0.000000e+00> : vector<8xf32>
    %131 = vector.multi_reduction <add>, %130, %cst_71 [1] : vector<8x8xf32> to vector<8xf32>
    %132 = vector.shape_cast %131 : vector<8xf32> to vector<8x1xf32>
    %133 = vector.broadcast %132 : vector<8x1xf32> to vector<8x8xf32>
    %134 = arith.divf %130, %133 : vector<8x8xf32>
    %cst_72 = arith.constant dense<0.000000e+00> : vector<8x8xf32>
    %135 = tpu.matmul %134, %122, %cst_72 {dimension_numbers = #tpu.dot_dimension_numbers<[1], [0], [0], [1], [0, 0, 1, 1], [], []>} : vector<8x8xf32>, vector<8x8xf32>, vector<8x8xf32> -> vector<8x8xf32>
    %136 = vector.extract_strided_slice %100 {offsets = [0, 16], sizes = [8, 8], strides = [1, 1]} : vector<8x32xf32> to vector<8x8xf32>
    %137 = vector.extract_strided_slice %102 {offsets = [16, 0], sizes = [8, 8], strides = [1, 1]} : vector<32x8xf32> to vector<8x8xf32>
    %138 = vector.extract_strided_slice %103 {offsets = [0, 16], sizes = [8, 8], strides = [1, 1]} : vector<8x32xf32> to vector<8x8xf32>
    %cst_73 = arith.constant dense<0.000000e+00> : vector<8x8xf32>
    %139 = tpu.matmul %136, %137, %cst_73 {dimension_numbers = #tpu.dot_dimension_numbers<[1], [0], [0], [1], [0, 0, 1, 1], [], []>} : vector<8x8xf32>, vector<8x8xf32>, vector<8x8xf32> -> vector<8x8xf32>
    %cst_74 = arith.constant -1.000000e+09 : f32
    %140 = vector.broadcast %cst_74 : f32 to vector<8x8xf32>
    %141 = arith.select %4, %140, %139 : vector<8x8xi1>, vector<8x8xf32>
    %cst_75 = arith.constant dense<0xFF800000> : vector<8xf32>
    %142 = vector.multi_reduction <maximumf>, %141, %cst_75 [1] : vector<8x8xf32> to vector<8xf32>
    %143 = vector.shape_cast %142 : vector<8xf32> to vector<8x1xf32>
    %144 = vector.broadcast %143 : vector<8x1xf32> to vector<8x8xf32>
    %145 = arith.subf %141, %144 : vector<8x8xf32>
    %146 = math.exp %145 : vector<8x8xf32>
    %cst_76 = arith.constant dense<0.000000e+00> : vector<8xf32>
    %147 = vector.multi_reduction <add>, %146, %cst_76 [1] : vector<8x8xf32> to vector<8xf32>
    %148 = vector.shape_cast %147 : vector<8xf32> to vector<8x1xf32>
    %149 = vector.broadcast %148 : vector<8x1xf32> to vector<8x8xf32>
    %150 = arith.divf %146, %149 : vector<8x8xf32>
    %cst_77 = arith.constant dense<0.000000e+00> : vector<8x8xf32>
    %151 = tpu.matmul %150, %138, %cst_77 {dimension_numbers = #tpu.dot_dimension_numbers<[1], [0], [0], [1], [0, 0, 1, 1], [], []>} : vector<8x8xf32>, vector<8x8xf32>, vector<8x8xf32> -> vector<8x8xf32>
    %152 = vector.extract_strided_slice %100 {offsets = [0, 24], sizes = [8, 8], strides = [1, 1]} : vector<8x32xf32> to vector<8x8xf32>
    %153 = vector.extract_strided_slice %102 {offsets = [24, 0], sizes = [8, 8], strides = [1, 1]} : vector<32x8xf32> to vector<8x8xf32>
    %154 = vector.extract_strided_slice %103 {offsets = [0, 24], sizes = [8, 8], strides = [1, 1]} : vector<8x32xf32> to vector<8x8xf32>
    %cst_78 = arith.constant dense<0.000000e+00> : vector<8x8xf32>
    %155 = tpu.matmul %152, %153, %cst_78 {dimension_numbers = #tpu.dot_dimension_numbers<[1], [0], [0], [1], [0, 0, 1, 1], [], []>} : vector<8x8xf32>, vector<8x8xf32>, vector<8x8xf32> -> vector<8x8xf32>
    %cst_79 = arith.constant -1.000000e+09 : f32
    %156 = vector.broadcast %cst_79 : f32 to vector<8x8xf32>
    %157 = arith.select %4, %156, %155 : vector<8x8xi1>, vector<8x8xf32>
    %cst_80 = arith.constant dense<0xFF800000> : vector<8xf32>
    %158 = vector.multi_reduction <maximumf>, %157, %cst_80 [1] : vector<8x8xf32> to vector<8xf32>
    %159 = vector.shape_cast %158 : vector<8xf32> to vector<8x1xf32>
    %160 = vector.broadcast %159 : vector<8x1xf32> to vector<8x8xf32>
    %161 = arith.subf %157, %160 : vector<8x8xf32>
    %162 = math.exp %161 : vector<8x8xf32>
    %cst_81 = arith.constant dense<0.000000e+00> : vector<8xf32>
    %163 = vector.multi_reduction <add>, %162, %cst_81 [1] : vector<8x8xf32> to vector<8xf32>
    %164 = vector.shape_cast %163 : vector<8xf32> to vector<8x1xf32>
    %165 = vector.broadcast %164 : vector<8x1xf32> to vector<8x8xf32>
    %166 = arith.divf %162, %165 : vector<8x8xf32>
    %cst_82 = arith.constant dense<0.000000e+00> : vector<8x8xf32>
    %167 = tpu.matmul %166, %154, %cst_82 {dimension_numbers = #tpu.dot_dimension_numbers<[1], [0], [0], [1], [0, 0, 1, 1], [], []>} : vector<8x8xf32>, vector<8x8xf32>, vector<8x8xf32> -> vector<8x8xf32>
    %168 = tpu.concatenate %119, %135, %151, %167 in 1 : vector<8x8xf32>, vector<8x8xf32>, vector<8x8xf32>, vector<8x8xf32> -> vector<8x32xf32>
    %169 = tpu.concatenate %99, %168 in 0 : vector<8x32xf32>, vector<8x32xf32> -> vector<16x32xf32>
    %cst_83 = arith.constant dense<0.000000e+00> : vector<16x32xf32>
    %170 = tpu.matmul %169, %7, %cst_83 {dimension_numbers = #tpu.dot_dimension_numbers<[1], [0], [0], [1], [0, 0, 1, 1], [], []>} : vector<16x32xf32>, vector<32x32xf32>, vector<16x32xf32> -> vector<16x32xf32>
    %171 = vector.broadcast %8 : vector<1x32xf32> to vector<16x32xf32>
    %172 = arith.addf %170, %171 : vector<16x32xf32>
    %cst_84 = arith.constant dense<0.000000e+00> : vector<16xf32>
    %173 = vector.multi_reduction <add>, %172, %cst_84 [1] : vector<16x32xf32> to vector<16xf32>
    %174 = vector.shape_cast %173 : vector<16xf32> to vector<16x1xf32>
    %cst_85 = arith.constant 3.200000e+01 : f32
    %175 = vector.broadcast %cst_85 : f32 to vector<16x1xf32>
    %176 = arith.divf %174, %175 : vector<16x1xf32>
    %177 = vector.broadcast %176 : vector<16x1xf32> to vector<16x32xf32>
    %178 = arith.subf %172, %177 : vector<16x32xf32>
    %179 = arith.mulf %178, %178 : vector<16x32xf32>
    %cst_86 = arith.constant dense<0.000000e+00> : vector<16xf32>
    %180 = vector.multi_reduction <add>, %179, %cst_86 [1] : vector<16x32xf32> to vector<16xf32>
    %181 = vector.shape_cast %180 : vector<16xf32> to vector<16x1xf32>
    %cst_87 = arith.constant 3.100000e+01 : f32
    %182 = vector.broadcast %cst_87 : f32 to vector<16x1xf32>
    %183 = arith.divf %181, %182 : vector<16x1xf32>
    %184 = math.sqrt %183 : vector<16x1xf32>
    %185 = vector.broadcast %9 : vector<1x32xf32> to vector<16x32xf32>
    %186 = arith.mulf %185, %178 : vector<16x32xf32>
    %cst_88 = arith.constant 9.99999997E-7 : f32
    %187 = vector.broadcast %cst_88 : f32 to vector<16x1xf32>
    %188 = arith.addf %184, %187 : vector<16x1xf32>
    %189 = vector.broadcast %188 : vector<16x1xf32> to vector<16x32xf32>
    %190 = arith.divf %186, %189 : vector<16x32xf32>
    %191 = arith.addf %0, %190 : vector<16x32xf32>
    %192 = vector.broadcast %10 : vector<1x32xf32> to vector<16x32xf32>
    %193 = arith.addf %191, %192 : vector<16x32xf32>
    %cst_89 = arith.constant dense<0.000000e+00> : vector<16x32xf32>
    %194 = tpu.matmul %193, %11, %cst_89 {dimension_numbers = #tpu.dot_dimension_numbers<[1], [0], [0], [1], [0, 0, 1, 1], [], []>} : vector<16x32xf32>, vector<32x32xf32>, vector<16x32xf32> -> vector<16x32xf32>
    %195 = vector.broadcast %12 : vector<1x32xf32> to vector<16x32xf32>
    %196 = arith.addf %194, %195 : vector<16x32xf32>
    %cst_90 = arith.constant dense<0.000000e+00> : vector<16x64xf32>
    %197 = tpu.matmul %1, %13, %cst_90 {dimension_numbers = #tpu.dot_dimension_numbers<[1], [0], [0], [1], [0, 0, 1, 1], [], []>} : vector<16x32xf32>, vector<32x64xf32>, vector<16x64xf32> -> vector<16x64xf32>
    %198 = vector.broadcast %14 : vector<1x64xf32> to vector<16x64xf32>
    %199 = arith.addf %197, %198 : vector<16x64xf32>
    %200 = vector.extract_strided_slice %199 {offsets = [0, 0], sizes = [16, 32], strides = [1, 1]} : vector<16x64xf32> to vector<16x32xf32>
    %201 = vector.extract_strided_slice %199 {offsets = [0, 32], sizes = [16, 32], strides = [1, 1]} : vector<16x64xf32> to vector<16x32xf32>
    %202 = vector.extract_strided_slice %196 {offsets = [0, 0], sizes = [8, 32], strides = [1, 1]} : vector<16x32xf32> to vector<8x32xf32>
    %203 = vector.extract_strided_slice %200 {offsets = [0, 0], sizes = [8, 32], strides = [1, 1]} : vector<16x32xf32> to vector<8x32xf32>
    %204 = tpu.transpose %203, [1, 0] : vector<8x32xf32> -> vector<32x8xf32>
    %205 = vector.extract_strided_slice %201 {offsets = [0, 0], sizes = [8, 32], strides = [1, 1]} : vector<16x32xf32> to vector<8x32xf32>
    %206 = vector.extract_strided_slice %202 {offsets = [0, 0], sizes = [8, 8], strides = [1, 1]} : vector<8x32xf32> to vector<8x8xf32>
    %207 = vector.extract_strided_slice %204 {offsets = [0, 0], sizes = [8, 8], strides = [1, 1]} : vector<32x8xf32> to vector<8x8xf32>
    %208 = vector.extract_strided_slice %205 {offsets = [0, 0], sizes = [8, 8], strides = [1, 1]} : vector<8x32xf32> to vector<8x8xf32>
    %cst_91 = arith.constant dense<0.000000e+00> : vector<8x8xf32>
    %209 = tpu.matmul %206, %207, %cst_91 {dimension_numbers = #tpu.dot_dimension_numbers<[1], [0], [0], [1], [0, 0, 1, 1], [], []>} : vector<8x8xf32>, vector<8x8xf32>, vector<8x8xf32> -> vector<8x8xf32>
    %cst_92 = arith.constant dense<0xFF800000> : vector<8xf32>
    %210 = vector.multi_reduction <maximumf>, %209, %cst_92 [1] : vector<8x8xf32> to vector<8xf32>
    %211 = vector.shape_cast %210 : vector<8xf32> to vector<8x1xf32>
    %212 = vector.broadcast %211 : vector<8x1xf32> to vector<8x8xf32>
    %213 = arith.subf %209, %212 : vector<8x8xf32>
    %214 = math.exp %213 : vector<8x8xf32>
    %cst_93 = arith.constant dense<0.000000e+00> : vector<8xf32>
    %215 = vector.multi_reduction <add>, %214, %cst_93 [1] : vector<8x8xf32> to vector<8xf32>
    %216 = vector.shape_cast %215 : vector<8xf32> to vector<8x1xf32>
    %217 = vector.broadcast %216 : vector<8x1xf32> to vector<8x8xf32>
    %218 = arith.divf %214, %217 : vector<8x8xf32>
    %cst_94 = arith.constant dense<0.000000e+00> : vector<8x8xf32>
    %219 = tpu.matmul %218, %208, %cst_94 {dimension_numbers = #tpu.dot_dimension_numbers<[1], [0], [0], [1], [0, 0, 1, 1], [], []>} : vector<8x8xf32>, vector<8x8xf32>, vector<8x8xf32> -> vector<8x8xf32>
    %220 = vector.extract_strided_slice %202 {offsets = [0, 8], sizes = [8, 8], strides = [1, 1]} : vector<8x32xf32> to vector<8x8xf32>
    %221 = vector.extract_strided_slice %204 {offsets = [8, 0], sizes = [8, 8], strides = [1, 1]} : vector<32x8xf32> to vector<8x8xf32>
    %222 = vector.extract_strided_slice %205 {offsets = [0, 8], sizes = [8, 8], strides = [1, 1]} : vector<8x32xf32> to vector<8x8xf32>
    %cst_95 = arith.constant dense<0.000000e+00> : vector<8x8xf32>
    %223 = tpu.matmul %220, %221, %cst_95 {dimension_numbers = #tpu.dot_dimension_numbers<[1], [0], [0], [1], [0, 0, 1, 1], [], []>} : vector<8x8xf32>, vector<8x8xf32>, vector<8x8xf32> -> vector<8x8xf32>
    %cst_96 = arith.constant dense<0xFF800000> : vector<8xf32>
    %224 = vector.multi_reduction <maximumf>, %223, %cst_96 [1] : vector<8x8xf32> to vector<8xf32>
    %225 = vector.shape_cast %224 : vector<8xf32> to vector<8x1xf32>
    %226 = vector.broadcast %225 : vector<8x1xf32> to vector<8x8xf32>
    %227 = arith.subf %223, %226 : vector<8x8xf32>
    %228 = math.exp %227 : vector<8x8xf32>
    %cst_97 = arith.constant dense<0.000000e+00> : vector<8xf32>
    %229 = vector.multi_reduction <add>, %228, %cst_97 [1] : vector<8x8xf32> to vector<8xf32>
    %230 = vector.shape_cast %229 : vector<8xf32> to vector<8x1xf32>
    %231 = vector.broadcast %230 : vector<8x1xf32> to vector<8x8xf32>
    %232 = arith.divf %228, %231 : vector<8x8xf32>
    %cst_98 = arith.constant dense<0.000000e+00> : vector<8x8xf32>
    %233 = tpu.matmul %232, %222, %cst_98 {dimension_numbers = #tpu.dot_dimension_numbers<[1], [0], [0], [1], [0, 0, 1, 1], [], []>} : vector<8x8xf32>, vector<8x8xf32>, vector<8x8xf32> -> vector<8x8xf32>
    %234 = vector.extract_strided_slice %202 {offsets = [0, 16], sizes = [8, 8], strides = [1, 1]} : vector<8x32xf32> to vector<8x8xf32>
    %235 = vector.extract_strided_slice %204 {offsets = [16, 0], sizes = [8, 8], strides = [1, 1]} : vector<32x8xf32> to vector<8x8xf32>
    %236 = vector.extract_strided_slice %205 {offsets = [0, 16], sizes = [8, 8], strides = [1, 1]} : vector<8x32xf32> to vector<8x8xf32>
    %cst_99 = arith.constant dense<0.000000e+00> : vector<8x8xf32>
    %237 = tpu.matmul %234, %235, %cst_99 {dimension_numbers = #tpu.dot_dimension_numbers<[1], [0], [0], [1], [0, 0, 1, 1], [], []>} : vector<8x8xf32>, vector<8x8xf32>, vector<8x8xf32> -> vector<8x8xf32>
    %cst_100 = arith.constant dense<0xFF800000> : vector<8xf32>
    %238 = vector.multi_reduction <maximumf>, %237, %cst_100 [1] : vector<8x8xf32> to vector<8xf32>
    %239 = vector.shape_cast %238 : vector<8xf32> to vector<8x1xf32>
    %240 = vector.broadcast %239 : vector<8x1xf32> to vector<8x8xf32>
    %241 = arith.subf %237, %240 : vector<8x8xf32>
    %242 = math.exp %241 : vector<8x8xf32>
    %cst_101 = arith.constant dense<0.000000e+00> : vector<8xf32>
    %243 = vector.multi_reduction <add>, %242, %cst_101 [1] : vector<8x8xf32> to vector<8xf32>
    %244 = vector.shape_cast %243 : vector<8xf32> to vector<8x1xf32>
    %245 = vector.broadcast %244 : vector<8x1xf32> to vector<8x8xf32>
    %246 = arith.divf %242, %245 : vector<8x8xf32>
    %cst_102 = arith.constant dense<0.000000e+00> : vector<8x8xf32>
    %247 = tpu.matmul %246, %236, %cst_102 {dimension_numbers = #tpu.dot_dimension_numbers<[1], [0], [0], [1], [0, 0, 1, 1], [], []>} : vector<8x8xf32>, vector<8x8xf32>, vector<8x8xf32> -> vector<8x8xf32>
    %248 = vector.extract_strided_slice %202 {offsets = [0, 24], sizes = [8, 8], strides = [1, 1]} : vector<8x32xf32> to vector<8x8xf32>
    %249 = vector.extract_strided_slice %204 {offsets = [24, 0], sizes = [8, 8], strides = [1, 1]} : vector<32x8xf32> to vector<8x8xf32>
    %250 = vector.extract_strided_slice %205 {offsets = [0, 24], sizes = [8, 8], strides = [1, 1]} : vector<8x32xf32> to vector<8x8xf32>
    %cst_103 = arith.constant dense<0.000000e+00> : vector<8x8xf32>
    %251 = tpu.matmul %248, %249, %cst_103 {dimension_numbers = #tpu.dot_dimension_numbers<[1], [0], [0], [1], [0, 0, 1, 1], [], []>} : vector<8x8xf32>, vector<8x8xf32>, vector<8x8xf32> -> vector<8x8xf32>
    %cst_104 = arith.constant dense<0xFF800000> : vector<8xf32>
    %252 = vector.multi_reduction <maximumf>, %251, %cst_104 [1] : vector<8x8xf32> to vector<8xf32>
    %253 = vector.shape_cast %252 : vector<8xf32> to vector<8x1xf32>
    %254 = vector.broadcast %253 : vector<8x1xf32> to vector<8x8xf32>
    %255 = arith.subf %251, %254 : vector<8x8xf32>
    %256 = math.exp %255 : vector<8x8xf32>
    %cst_105 = arith.constant dense<0.000000e+00> : vector<8xf32>
    %257 = vector.multi_reduction <add>, %256, %cst_105 [1] : vector<8x8xf32> to vector<8xf32>
    %258 = vector.shape_cast %257 : vector<8xf32> to vector<8x1xf32>
    %259 = vector.broadcast %258 : vector<8x1xf32> to vector<8x8xf32>
    %260 = arith.divf %256, %259 : vector<8x8xf32>
    %cst_106 = arith.constant dense<0.000000e+00> : vector<8x8xf32>
    %261 = tpu.matmul %260, %250, %cst_106 {dimension_numbers = #tpu.dot_dimension_numbers<[1], [0], [0], [1], [0, 0, 1, 1], [], []>} : vector<8x8xf32>, vector<8x8xf32>, vector<8x8xf32> -> vector<8x8xf32>
    %262 = tpu.concatenate %219, %233, %247, %261 in 1 : vector<8x8xf32>, vector<8x8xf32>, vector<8x8xf32>, vector<8x8xf32> -> vector<8x32xf32>
    %263 = vector.extract_strided_slice %196 {offsets = [8, 0], sizes = [8, 32], strides = [1, 1]} : vector<16x32xf32> to vector<8x32xf32>
    %264 = vector.extract_strided_slice %200 {offsets = [8, 0], sizes = [8, 32], strides = [1, 1]} : vector<16x32xf32> to vector<8x32xf32>
    %265 = tpu.transpose %264, [1, 0] : vector<8x32xf32> -> vector<32x8xf32>
    %266 = vector.extract_strided_slice %201 {offsets = [8, 0], sizes = [8, 32], strides = [1, 1]} : vector<16x32xf32> to vector<8x32xf32>
    %267 = vector.extract_strided_slice %263 {offsets = [0, 0], sizes = [8, 8], strides = [1, 1]} : vector<8x32xf32> to vector<8x8xf32>
    %268 = vector.extract_strided_slice %265 {offsets = [0, 0], sizes = [8, 8], strides = [1, 1]} : vector<32x8xf32> to vector<8x8xf32>
    %269 = vector.extract_strided_slice %266 {offsets = [0, 0], sizes = [8, 8], strides = [1, 1]} : vector<8x32xf32> to vector<8x8xf32>
    %cst_107 = arith.constant dense<0.000000e+00> : vector<8x8xf32>
    %270 = tpu.matmul %267, %268, %cst_107 {dimension_numbers = #tpu.dot_dimension_numbers<[1], [0], [0], [1], [0, 0, 1, 1], [], []>} : vector<8x8xf32>, vector<8x8xf32>, vector<8x8xf32> -> vector<8x8xf32>
    %cst_108 = arith.constant dense<0xFF800000> : vector<8xf32>
    %271 = vector.multi_reduction <maximumf>, %270, %cst_108 [1] : vector<8x8xf32> to vector<8xf32>
    %272 = vector.shape_cast %271 : vector<8xf32> to vector<8x1xf32>
    %273 = vector.broadcast %272 : vector<8x1xf32> to vector<8x8xf32>
    %274 = arith.subf %270, %273 : vector<8x8xf32>
    %275 = math.exp %274 : vector<8x8xf32>
    %cst_109 = arith.constant dense<0.000000e+00> : vector<8xf32>
    %276 = vector.multi_reduction <add>, %275, %cst_109 [1] : vector<8x8xf32> to vector<8xf32>
    %277 = vector.shape_cast %276 : vector<8xf32> to vector<8x1xf32>
    %278 = vector.broadcast %277 : vector<8x1xf32> to vector<8x8xf32>
    %279 = arith.divf %275, %278 : vector<8x8xf32>
    %cst_110 = arith.constant dense<0.000000e+00> : vector<8x8xf32>
    %280 = tpu.matmul %279, %269, %cst_110 {dimension_numbers = #tpu.dot_dimension_numbers<[1], [0], [0], [1], [0, 0, 1, 1], [], []>} : vector<8x8xf32>, vector<8x8xf32>, vector<8x8xf32> -> vector<8x8xf32>
    %281 = vector.extract_strided_slice %263 {offsets = [0, 8], sizes = [8, 8], strides = [1, 1]} : vector<8x32xf32> to vector<8x8xf32>
    %282 = vector.extract_strided_slice %265 {offsets = [8, 0], sizes = [8, 8], strides = [1, 1]} : vector<32x8xf32> to vector<8x8xf32>
    %283 = vector.extract_strided_slice %266 {offsets = [0, 8], sizes = [8, 8], strides = [1, 1]} : vector<8x32xf32> to vector<8x8xf32>
    %cst_111 = arith.constant dense<0.000000e+00> : vector<8x8xf32>
    %284 = tpu.matmul %281, %282, %cst_111 {dimension_numbers = #tpu.dot_dimension_numbers<[1], [0], [0], [1], [0, 0, 1, 1], [], []>} : vector<8x8xf32>, vector<8x8xf32>, vector<8x8xf32> -> vector<8x8xf32>
    %cst_112 = arith.constant dense<0xFF800000> : vector<8xf32>
    %285 = vector.multi_reduction <maximumf>, %284, %cst_112 [1] : vector<8x8xf32> to vector<8xf32>
    %286 = vector.shape_cast %285 : vector<8xf32> to vector<8x1xf32>
    %287 = vector.broadcast %286 : vector<8x1xf32> to vector<8x8xf32>
    %288 = arith.subf %284, %287 : vector<8x8xf32>
    %289 = math.exp %288 : vector<8x8xf32>
    %cst_113 = arith.constant dense<0.000000e+00> : vector<8xf32>
    %290 = vector.multi_reduction <add>, %289, %cst_113 [1] : vector<8x8xf32> to vector<8xf32>
    %291 = vector.shape_cast %290 : vector<8xf32> to vector<8x1xf32>
    %292 = vector.broadcast %291 : vector<8x1xf32> to vector<8x8xf32>
    %293 = arith.divf %289, %292 : vector<8x8xf32>
    %cst_114 = arith.constant dense<0.000000e+00> : vector<8x8xf32>
    %294 = tpu.matmul %293, %283, %cst_114 {dimension_numbers = #tpu.dot_dimension_numbers<[1], [0], [0], [1], [0, 0, 1, 1], [], []>} : vector<8x8xf32>, vector<8x8xf32>, vector<8x8xf32> -> vector<8x8xf32>
    %295 = vector.extract_strided_slice %263 {offsets = [0, 16], sizes = [8, 8], strides = [1, 1]} : vector<8x32xf32> to vector<8x8xf32>
    %296 = vector.extract_strided_slice %265 {offsets = [16, 0], sizes = [8, 8], strides = [1, 1]} : vector<32x8xf32> to vector<8x8xf32>
    %297 = vector.extract_strided_slice %266 {offsets = [0, 16], sizes = [8, 8], strides = [1, 1]} : vector<8x32xf32> to vector<8x8xf32>
    %cst_115 = arith.constant dense<0.000000e+00> : vector<8x8xf32>
    %298 = tpu.matmul %295, %296, %cst_115 {dimension_numbers = #tpu.dot_dimension_numbers<[1], [0], [0], [1], [0, 0, 1, 1], [], []>} : vector<8x8xf32>, vector<8x8xf32>, vector<8x8xf32> -> vector<8x8xf32>
    %cst_116 = arith.constant dense<0xFF800000> : vector<8xf32>
    %299 = vector.multi_reduction <maximumf>, %298, %cst_116 [1] : vector<8x8xf32> to vector<8xf32>
    %300 = vector.shape_cast %299 : vector<8xf32> to vector<8x1xf32>
    %301 = vector.broadcast %300 : vector<8x1xf32> to vector<8x8xf32>
    %302 = arith.subf %298, %301 : vector<8x8xf32>
    %303 = math.exp %302 : vector<8x8xf32>
    %cst_117 = arith.constant dense<0.000000e+00> : vector<8xf32>
    %304 = vector.multi_reduction <add>, %303, %cst_117 [1] : vector<8x8xf32> to vector<8xf32>
    %305 = vector.shape_cast %304 : vector<8xf32> to vector<8x1xf32>
    %306 = vector.broadcast %305 : vector<8x1xf32> to vector<8x8xf32>
    %307 = arith.divf %303, %306 : vector<8x8xf32>
    %cst_118 = arith.constant dense<0.000000e+00> : vector<8x8xf32>
    %308 = tpu.matmul %307, %297, %cst_118 {dimension_numbers = #tpu.dot_dimension_numbers<[1], [0], [0], [1], [0, 0, 1, 1], [], []>} : vector<8x8xf32>, vector<8x8xf32>, vector<8x8xf32> -> vector<8x8xf32>
    %309 = vector.extract_strided_slice %263 {offsets = [0, 24], sizes = [8, 8], strides = [1, 1]} : vector<8x32xf32> to vector<8x8xf32>
    %310 = vector.extract_strided_slice %265 {offsets = [24, 0], sizes = [8, 8], strides = [1, 1]} : vector<32x8xf32> to vector<8x8xf32>
    %311 = vector.extract_strided_slice %266 {offsets = [0, 24], sizes = [8, 8], strides = [1, 1]} : vector<8x32xf32> to vector<8x8xf32>
    %cst_119 = arith.constant dense<0.000000e+00> : vector<8x8xf32>
    %312 = tpu.matmul %309, %310, %cst_119 {dimension_numbers = #tpu.dot_dimension_numbers<[1], [0], [0], [1], [0, 0, 1, 1], [], []>} : vector<8x8xf32>, vector<8x8xf32>, vector<8x8xf32> -> vector<8x8xf32>
    %cst_120 = arith.constant dense<0xFF800000> : vector<8xf32>
    %313 = vector.multi_reduction <maximumf>, %312, %cst_120 [1] : vector<8x8xf32> to vector<8xf32>
    %314 = vector.shape_cast %313 : vector<8xf32> to vector<8x1xf32>
    %315 = vector.broadcast %314 : vector<8x1xf32> to vector<8x8xf32>
    %316 = arith.subf %312, %315 : vector<8x8xf32>
    %317 = math.exp %316 : vector<8x8xf32>
    %cst_121 = arith.constant dense<0.000000e+00> : vector<8xf32>
    %318 = vector.multi_reduction <add>, %317, %cst_121 [1] : vector<8x8xf32> to vector<8xf32>
    %319 = vector.shape_cast %318 : vector<8xf32> to vector<8x1xf32>
    %320 = vector.broadcast %319 : vector<8x1xf32> to vector<8x8xf32>
    %321 = arith.divf %317, %320 : vector<8x8xf32>
    %cst_122 = arith.constant dense<0.000000e+00> : vector<8x8xf32>
    %322 = tpu.matmul %321, %311, %cst_122 {dimension_numbers = #tpu.dot_dimension_numbers<[1], [0], [0], [1], [0, 0, 1, 1], [], []>} : vector<8x8xf32>, vector<8x8xf32>, vector<8x8xf32> -> vector<8x8xf32>
    %323 = tpu.concatenate %280, %294, %308, %322 in 1 : vector<8x8xf32>, vector<8x8xf32>, vector<8x8xf32>, vector<8x8xf32> -> vector<8x32xf32>
    %324 = tpu.concatenate %262, %323 in 0 : vector<8x32xf32>, vector<8x32xf32> -> vector<16x32xf32>
    %cst_123 = arith.constant dense<0.000000e+00> : vector<16x32xf32>
    %325 = tpu.matmul %324, %15, %cst_123 {dimension_numbers = #tpu.dot_dimension_numbers<[1], [0], [0], [1], [0, 0, 1, 1], [], []>} : vector<16x32xf32>, vector<32x32xf32>, vector<16x32xf32> -> vector<16x32xf32>
    %326 = vector.broadcast %16 : vector<1x32xf32> to vector<16x32xf32>
    %327 = arith.addf %325, %326 : vector<16x32xf32>
    %cst_124 = arith.constant dense<0.000000e+00> : vector<16xf32>
    %328 = vector.multi_reduction <add>, %327, %cst_124 [1] : vector<16x32xf32> to vector<16xf32>
    %329 = vector.shape_cast %328 : vector<16xf32> to vector<16x1xf32>
    %cst_125 = arith.constant 3.200000e+01 : f32
    %330 = vector.broadcast %cst_125 : f32 to vector<16x1xf32>
    %331 = arith.divf %329, %330 : vector<16x1xf32>
    %332 = vector.broadcast %331 : vector<16x1xf32> to vector<16x32xf32>
    %333 = arith.subf %327, %332 : vector<16x32xf32>
    %334 = arith.mulf %333, %333 : vector<16x32xf32>
    %cst_126 = arith.constant dense<0.000000e+00> : vector<16xf32>
    %335 = vector.multi_reduction <add>, %334, %cst_126 [1] : vector<16x32xf32> to vector<16xf32>
    %336 = vector.shape_cast %335 : vector<16xf32> to vector<16x1xf32>
    %cst_127 = arith.constant 3.100000e+01 : f32
    %337 = vector.broadcast %cst_127 : f32 to vector<16x1xf32>
    %338 = arith.divf %336, %337 : vector<16x1xf32>
    %339 = math.sqrt %338 : vector<16x1xf32>
    %340 = vector.broadcast %17 : vector<1x32xf32> to vector<16x32xf32>
    %341 = arith.mulf %340, %333 : vector<16x32xf32>
    %cst_128 = arith.constant 9.99999997E-7 : f32
    %342 = vector.broadcast %cst_128 : f32 to vector<16x1xf32>
    %343 = arith.addf %339, %342 : vector<16x1xf32>
    %344 = vector.broadcast %343 : vector<16x1xf32> to vector<16x32xf32>
    %345 = arith.divf %341, %344 : vector<16x32xf32>
    %346 = arith.addf %193, %345 : vector<16x32xf32>
    %347 = vector.broadcast %18 : vector<1x32xf32> to vector<16x32xf32>
    %348 = arith.addf %346, %347 : vector<16x32xf32>
    %cst_129 = arith.constant dense<0.000000e+00> : vector<16x64xf32>
    %349 = tpu.matmul %348, %19, %cst_129 {dimension_numbers = #tpu.dot_dimension_numbers<[1], [0], [0], [1], [0, 0, 1, 1], [], []>} : vector<16x32xf32>, vector<32x64xf32>, vector<16x64xf32> -> vector<16x64xf32>
    %350 = vector.broadcast %20 : vector<1x64xf32> to vector<16x64xf32>
    %351 = arith.addf %349, %350 : vector<16x64xf32>
    %cst_130 = arith.constant 0.000000e+00 : f32
    %352 = vector.broadcast %cst_130 : f32 to vector<16x64xf32>
    %353 = arith.maximumf %351, %352 : vector<16x64xf32>
    %cst_131 = arith.constant dense<0.000000e+00> : vector<16x32xf32>
    %354 = tpu.matmul %353, %21, %cst_131 {dimension_numbers = #tpu.dot_dimension_numbers<[1], [0], [0], [1], [0, 0, 1, 1], [], []>} : vector<16x64xf32>, vector<64x32xf32>, vector<16x32xf32> -> vector<16x32xf32>
    %355 = vector.broadcast %22 : vector<1x32xf32> to vector<16x32xf32>
    %356 = arith.addf %354, %355 : vector<16x32xf32>
    %cst_132 = arith.constant dense<0.000000e+00> : vector<16xf32>
    %357 = vector.multi_reduction <add>, %356, %cst_132 [1] : vector<16x32xf32> to vector<16xf32>
    %358 = vector.shape_cast %357 : vector<16xf32> to vector<16x1xf32>
    %cst_133 = arith.constant 3.200000e+01 : f32
    %359 = vector.broadcast %cst_133 : f32 to vector<16x1xf32>
    %360 = arith.divf %358, %359 : vector<16x1xf32>
    %361 = vector.broadcast %360 : vector<16x1xf32> to vector<16x32xf32>
    %362 = arith.subf %356, %361 : vector<16x32xf32>
    %363 = arith.mulf %362, %362 : vector<16x32xf32>
    %cst_134 = arith.constant dense<0.000000e+00> : vector<16xf32>
    %364 = vector.multi_reduction <add>, %363, %cst_134 [1] : vector<16x32xf32> to vector<16xf32>
    %365 = vector.shape_cast %364 : vector<16xf32> to vector<16x1xf32>
    %cst_135 = arith.constant 3.100000e+01 : f32
    %366 = vector.broadcast %cst_135 : f32 to vector<16x1xf32>
    %367 = arith.divf %365, %366 : vector<16x1xf32>
    %368 = math.sqrt %367 : vector<16x1xf32>
    %369 = vector.broadcast %23 : vector<1x32xf32> to vector<16x32xf32>
    %370 = arith.mulf %369, %362 : vector<16x32xf32>
    %cst_136 = arith.constant 9.99999997E-7 : f32
    %371 = vector.broadcast %cst_136 : f32 to vector<16x1xf32>
    %372 = arith.addf %368, %371 : vector<16x1xf32>
    %373 = vector.broadcast %372 : vector<16x1xf32> to vector<16x32xf32>
    %374 = arith.divf %370, %373 : vector<16x32xf32>
    %375 = arith.addf %348, %374 : vector<16x32xf32>
    %376 = vector.broadcast %24 : vector<1x32xf32> to vector<16x32xf32>
    %377 = arith.addf %375, %376 : vector<16x32xf32>
    %c0_137 = arith.constant 0 : index
    %c0_138 = arith.constant 0 : index
    %378 = vector.load %arg22[%c0_137, %c0_138] : memref<32x96xf32, #tpu.memory_space<vmem>>, vector<32x96xf32>
    %c0_139 = arith.constant 0 : index
    %c0_140 = arith.constant 0 : index
    %379 = vector.load %arg23[%c0_139, %c0_140] : memref<1x96xf32, #tpu.memory_space<vmem>>, vector<1x96xf32>
    %c0_141 = arith.constant 0 : index
    %c0_142 = arith.constant 0 : index
    %380 = vector.load %arg24[%c0_141, %c0_142] : memref<32x32xf32, #tpu.memory_space<vmem>>, vector<32x32xf32>
    %c0_143 = arith.constant 0 : index
    %c0_144 = arith.constant 0 : index
    %381 = vector.load %arg25[%c0_143, %c0_144] : memref<1x32xf32, #tpu.memory_space<vmem>>, vector<1x32xf32>
    %c0_145 = arith.constant 0 : index
    %c0_146 = arith.constant 0 : index
    %382 = vector.load %arg26[%c0_145, %c0_146] : memref<1x32xf32, #tpu.memory_space<vmem>>, vector<1x32xf32>
    %c0_147 = arith.constant 0 : index
    %c0_148 = arith.constant 0 : index
    %383 = vector.load %arg27[%c0_147, %c0_148] : memref<1x32xf32, #tpu.memory_space<vmem>>, vector<1x32xf32>
    %c0_149 = arith.constant 0 : index
    %c0_150 = arith.constant 0 : index
    %384 = vector.load %arg28[%c0_149, %c0_150] : memref<32x32xf32, #tpu.memory_space<vmem>>, vector<32x32xf32>
    %c0_151 = arith.constant 0 : index
    %c0_152 = arith.constant 0 : index
    %385 = vector.load %arg29[%c0_151, %c0_152] : memref<1x32xf32, #tpu.memory_space<vmem>>, vector<1x32xf32>
    %c0_153 = arith.constant 0 : index
    %c0_154 = arith.constant 0 : index
    %386 = vector.load %arg30[%c0_153, %c0_154] : memref<32x64xf32, #tpu.memory_space<vmem>>, vector<32x64xf32>
    %c0_155 = arith.constant 0 : index
    %c0_156 = arith.constant 0 : index
    %387 = vector.load %arg31[%c0_155, %c0_156] : memref<1x64xf32, #tpu.memory_space<vmem>>, vector<1x64xf32>
    %c0_157 = arith.constant 0 : index
    %c0_158 = arith.constant 0 : index
    %388 = vector.load %arg32[%c0_157, %c0_158] : memref<32x32xf32, #tpu.memory_space<vmem>>, vector<32x32xf32>
    %c0_159 = arith.constant 0 : index
    %c0_160 = arith.constant 0 : index
    %389 = vector.load %arg33[%c0_159, %c0_160] : memref<1x32xf32, #tpu.memory_space<vmem>>, vector<1x32xf32>
    %c0_161 = arith.constant 0 : index
    %c0_162 = arith.constant 0 : index
    %390 = vector.load %arg34[%c0_161, %c0_162] : memref<1x32xf32, #tpu.memory_space<vmem>>, vector<1x32xf32>
    %c0_163 = arith.constant 0 : index
    %c0_164 = arith.constant 0 : index
    %391 = vector.load %arg35[%c0_163, %c0_164] : memref<1x32xf32, #tpu.memory_space<vmem>>, vector<1x32xf32>
    %c0_165 = arith.constant 0 : index
    %c0_166 = arith.constant 0 : index
    %392 = vector.load %arg36[%c0_165, %c0_166] : memref<32x64xf32, #tpu.memory_space<vmem>>, vector<32x64xf32>
    %c0_167 = arith.constant 0 : index
    %c0_168 = arith.constant 0 : index
    %393 = vector.load %arg37[%c0_167, %c0_168] : memref<1x64xf32, #tpu.memory_space<vmem>>, vector<1x64xf32>
    %c0_169 = arith.constant 0 : index
    %c0_170 = arith.constant 0 : index
    %394 = vector.load %arg38[%c0_169, %c0_170] : memref<64x32xf32, #tpu.memory_space<vmem>>, vector<64x32xf32>
    %c0_171 = arith.constant 0 : index
    %c0_172 = arith.constant 0 : index
    %395 = vector.load %arg39[%c0_171, %c0_172] : memref<1x32xf32, #tpu.memory_space<vmem>>, vector<1x32xf32>
    %c0_173 = arith.constant 0 : index
    %c0_174 = arith.constant 0 : index
    %396 = vector.load %arg40[%c0_173, %c0_174] : memref<1x32xf32, #tpu.memory_space<vmem>>, vector<1x32xf32>
    %c0_175 = arith.constant 0 : index
    %c0_176 = arith.constant 0 : index
    %397 = vector.load %arg41[%c0_175, %c0_176] : memref<1x32xf32, #tpu.memory_space<vmem>>, vector<1x32xf32>
    %cst_177 = arith.constant dense<0.000000e+00> : vector<16x96xf32>
    %398 = tpu.matmul %377, %378, %cst_177 {dimension_numbers = #tpu.dot_dimension_numbers<[1], [0], [0], [1], [0, 0, 1, 1], [], []>} : vector<16x32xf32>, vector<32x96xf32>, vector<16x96xf32> -> vector<16x96xf32>
    %399 = vector.broadcast %379 : vector<1x96xf32> to vector<16x96xf32>
    %400 = arith.addf %398, %399 : vector<16x96xf32>
    %401 = vector.extract_strided_slice %400 {offsets = [0, 0], sizes = [16, 32], strides = [1, 1]} : vector<16x96xf32> to vector<16x32xf32>
    %402 = vector.extract_strided_slice %400 {offsets = [0, 32], sizes = [16, 32], strides = [1, 1]} : vector<16x96xf32> to vector<16x32xf32>
    %403 = vector.extract_strided_slice %400 {offsets = [0, 64], sizes = [16, 32], strides = [1, 1]} : vector<16x96xf32> to vector<16x32xf32>
    %404 = vector.extract_strided_slice %401 {offsets = [0, 0], sizes = [8, 32], strides = [1, 1]} : vector<16x32xf32> to vector<8x32xf32>
    %405 = vector.extract_strided_slice %402 {offsets = [0, 0], sizes = [8, 32], strides = [1, 1]} : vector<16x32xf32> to vector<8x32xf32>
    %406 = tpu.transpose %405, [1, 0] : vector<8x32xf32> -> vector<32x8xf32>
    %407 = vector.extract_strided_slice %403 {offsets = [0, 0], sizes = [8, 32], strides = [1, 1]} : vector<16x32xf32> to vector<8x32xf32>
    %408 = vector.extract_strided_slice %404 {offsets = [0, 0], sizes = [8, 8], strides = [1, 1]} : vector<8x32xf32> to vector<8x8xf32>
    %409 = vector.extract_strided_slice %406 {offsets = [0, 0], sizes = [8, 8], strides = [1, 1]} : vector<32x8xf32> to vector<8x8xf32>
    %410 = vector.extract_strided_slice %407 {offsets = [0, 0], sizes = [8, 8], strides = [1, 1]} : vector<8x32xf32> to vector<8x8xf32>
    %cst_178 = arith.constant dense<0.000000e+00> : vector<8x8xf32>
    %411 = tpu.matmul %408, %409, %cst_178 {dimension_numbers = #tpu.dot_dimension_numbers<[1], [0], [0], [1], [0, 0, 1, 1], [], []>} : vector<8x8xf32>, vector<8x8xf32>, vector<8x8xf32> -> vector<8x8xf32>
    %cst_179 = arith.constant -1.000000e+09 : f32
    %412 = vector.broadcast %cst_179 : f32 to vector<8x8xf32>
    %413 = arith.select %4, %412, %411 : vector<8x8xi1>, vector<8x8xf32>
    %cst_180 = arith.constant dense<0xFF800000> : vector<8xf32>
    %414 = vector.multi_reduction <maximumf>, %413, %cst_180 [1] : vector<8x8xf32> to vector<8xf32>
    %415 = vector.shape_cast %414 : vector<8xf32> to vector<8x1xf32>
    %416 = vector.broadcast %415 : vector<8x1xf32> to vector<8x8xf32>
    %417 = arith.subf %413, %416 : vector<8x8xf32>
    %418 = math.exp %417 : vector<8x8xf32>
    %cst_181 = arith.constant dense<0.000000e+00> : vector<8xf32>
    %419 = vector.multi_reduction <add>, %418, %cst_181 [1] : vector<8x8xf32> to vector<8xf32>
    %420 = vector.shape_cast %419 : vector<8xf32> to vector<8x1xf32>
    %421 = vector.broadcast %420 : vector<8x1xf32> to vector<8x8xf32>
    %422 = arith.divf %418, %421 : vector<8x8xf32>
    %cst_182 = arith.constant dense<0.000000e+00> : vector<8x8xf32>
    %423 = tpu.matmul %422, %410, %cst_182 {dimension_numbers = #tpu.dot_dimension_numbers<[1], [0], [0], [1], [0, 0, 1, 1], [], []>} : vector<8x8xf32>, vector<8x8xf32>, vector<8x8xf32> -> vector<8x8xf32>
    %424 = vector.extract_strided_slice %404 {offsets = [0, 8], sizes = [8, 8], strides = [1, 1]} : vector<8x32xf32> to vector<8x8xf32>
    %425 = vector.extract_strided_slice %406 {offsets = [8, 0], sizes = [8, 8], strides = [1, 1]} : vector<32x8xf32> to vector<8x8xf32>
    %426 = vector.extract_strided_slice %407 {offsets = [0, 8], sizes = [8, 8], strides = [1, 1]} : vector<8x32xf32> to vector<8x8xf32>
    %cst_183 = arith.constant dense<0.000000e+00> : vector<8x8xf32>
    %427 = tpu.matmul %424, %425, %cst_183 {dimension_numbers = #tpu.dot_dimension_numbers<[1], [0], [0], [1], [0, 0, 1, 1], [], []>} : vector<8x8xf32>, vector<8x8xf32>, vector<8x8xf32> -> vector<8x8xf32>
    %cst_184 = arith.constant -1.000000e+09 : f32
    %428 = vector.broadcast %cst_184 : f32 to vector<8x8xf32>
    %429 = arith.select %4, %428, %427 : vector<8x8xi1>, vector<8x8xf32>
    %cst_185 = arith.constant dense<0xFF800000> : vector<8xf32>
    %430 = vector.multi_reduction <maximumf>, %429, %cst_185 [1] : vector<8x8xf32> to vector<8xf32>
    %431 = vector.shape_cast %430 : vector<8xf32> to vector<8x1xf32>
    %432 = vector.broadcast %431 : vector<8x1xf32> to vector<8x8xf32>
    %433 = arith.subf %429, %432 : vector<8x8xf32>
    %434 = math.exp %433 : vector<8x8xf32>
    %cst_186 = arith.constant dense<0.000000e+00> : vector<8xf32>
    %435 = vector.multi_reduction <add>, %434, %cst_186 [1] : vector<8x8xf32> to vector<8xf32>
    %436 = vector.shape_cast %435 : vector<8xf32> to vector<8x1xf32>
    %437 = vector.broadcast %436 : vector<8x1xf32> to vector<8x8xf32>
    %438 = arith.divf %434, %437 : vector<8x8xf32>
    %cst_187 = arith.constant dense<0.000000e+00> : vector<8x8xf32>
    %439 = tpu.matmul %438, %426, %cst_187 {dimension_numbers = #tpu.dot_dimension_numbers<[1], [0], [0], [1], [0, 0, 1, 1], [], []>} : vector<8x8xf32>, vector<8x8xf32>, vector<8x8xf32> -> vector<8x8xf32>
    %440 = vector.extract_strided_slice %404 {offsets = [0, 16], sizes = [8, 8], strides = [1, 1]} : vector<8x32xf32> to vector<8x8xf32>
    %441 = vector.extract_strided_slice %406 {offsets = [16, 0], sizes = [8, 8], strides = [1, 1]} : vector<32x8xf32> to vector<8x8xf32>
    %442 = vector.extract_strided_slice %407 {offsets = [0, 16], sizes = [8, 8], strides = [1, 1]} : vector<8x32xf32> to vector<8x8xf32>
    %cst_188 = arith.constant dense<0.000000e+00> : vector<8x8xf32>
    %443 = tpu.matmul %440, %441, %cst_188 {dimension_numbers = #tpu.dot_dimension_numbers<[1], [0], [0], [1], [0, 0, 1, 1], [], []>} : vector<8x8xf32>, vector<8x8xf32>, vector<8x8xf32> -> vector<8x8xf32>
    %cst_189 = arith.constant -1.000000e+09 : f32
    %444 = vector.broadcast %cst_189 : f32 to vector<8x8xf32>
    %445 = arith.select %4, %444, %443 : vector<8x8xi1>, vector<8x8xf32>
    %cst_190 = arith.constant dense<0xFF800000> : vector<8xf32>
    %446 = vector.multi_reduction <maximumf>, %445, %cst_190 [1] : vector<8x8xf32> to vector<8xf32>
    %447 = vector.shape_cast %446 : vector<8xf32> to vector<8x1xf32>
    %448 = vector.broadcast %447 : vector<8x1xf32> to vector<8x8xf32>
    %449 = arith.subf %445, %448 : vector<8x8xf32>
    %450 = math.exp %449 : vector<8x8xf32>
    %cst_191 = arith.constant dense<0.000000e+00> : vector<8xf32>
    %451 = vector.multi_reduction <add>, %450, %cst_191 [1] : vector<8x8xf32> to vector<8xf32>
    %452 = vector.shape_cast %451 : vector<8xf32> to vector<8x1xf32>
    %453 = vector.broadcast %452 : vector<8x1xf32> to vector<8x8xf32>
    %454 = arith.divf %450, %453 : vector<8x8xf32>
    %cst_192 = arith.constant dense<0.000000e+00> : vector<8x8xf32>
    %455 = tpu.matmul %454, %442, %cst_192 {dimension_numbers = #tpu.dot_dimension_numbers<[1], [0], [0], [1], [0, 0, 1, 1], [], []>} : vector<8x8xf32>, vector<8x8xf32>, vector<8x8xf32> -> vector<8x8xf32>
    %456 = vector.extract_strided_slice %404 {offsets = [0, 24], sizes = [8, 8], strides = [1, 1]} : vector<8x32xf32> to vector<8x8xf32>
    %457 = vector.extract_strided_slice %406 {offsets = [24, 0], sizes = [8, 8], strides = [1, 1]} : vector<32x8xf32> to vector<8x8xf32>
    %458 = vector.extract_strided_slice %407 {offsets = [0, 24], sizes = [8, 8], strides = [1, 1]} : vector<8x32xf32> to vector<8x8xf32>
    %cst_193 = arith.constant dense<0.000000e+00> : vector<8x8xf32>
    %459 = tpu.matmul %456, %457, %cst_193 {dimension_numbers = #tpu.dot_dimension_numbers<[1], [0], [0], [1], [0, 0, 1, 1], [], []>} : vector<8x8xf32>, vector<8x8xf32>, vector<8x8xf32> -> vector<8x8xf32>
    %cst_194 = arith.constant -1.000000e+09 : f32
    %460 = vector.broadcast %cst_194 : f32 to vector<8x8xf32>
    %461 = arith.select %4, %460, %459 : vector<8x8xi1>, vector<8x8xf32>
    %cst_195 = arith.constant dense<0xFF800000> : vector<8xf32>
    %462 = vector.multi_reduction <maximumf>, %461, %cst_195 [1] : vector<8x8xf32> to vector<8xf32>
    %463 = vector.shape_cast %462 : vector<8xf32> to vector<8x1xf32>
    %464 = vector.broadcast %463 : vector<8x1xf32> to vector<8x8xf32>
    %465 = arith.subf %461, %464 : vector<8x8xf32>
    %466 = math.exp %465 : vector<8x8xf32>
    %cst_196 = arith.constant dense<0.000000e+00> : vector<8xf32>
    %467 = vector.multi_reduction <add>, %466, %cst_196 [1] : vector<8x8xf32> to vector<8xf32>
    %468 = vector.shape_cast %467 : vector<8xf32> to vector<8x1xf32>
    %469 = vector.broadcast %468 : vector<8x1xf32> to vector<8x8xf32>
    %470 = arith.divf %466, %469 : vector<8x8xf32>
    %cst_197 = arith.constant dense<0.000000e+00> : vector<8x8xf32>
    %471 = tpu.matmul %470, %458, %cst_197 {dimension_numbers = #tpu.dot_dimension_numbers<[1], [0], [0], [1], [0, 0, 1, 1], [], []>} : vector<8x8xf32>, vector<8x8xf32>, vector<8x8xf32> -> vector<8x8xf32>
    %472 = tpu.concatenate %423, %439, %455, %471 in 1 : vector<8x8xf32>, vector<8x8xf32>, vector<8x8xf32>, vector<8x8xf32> -> vector<8x32xf32>
    %473 = vector.extract_strided_slice %401 {offsets = [8, 0], sizes = [8, 32], strides = [1, 1]} : vector<16x32xf32> to vector<8x32xf32>
    %474 = vector.extract_strided_slice %402 {offsets = [8, 0], sizes = [8, 32], strides = [1, 1]} : vector<16x32xf32> to vector<8x32xf32>
    %475 = tpu.transpose %474, [1, 0] : vector<8x32xf32> -> vector<32x8xf32>
    %476 = vector.extract_strided_slice %403 {offsets = [8, 0], sizes = [8, 32], strides = [1, 1]} : vector<16x32xf32> to vector<8x32xf32>
    %477 = vector.extract_strided_slice %473 {offsets = [0, 0], sizes = [8, 8], strides = [1, 1]} : vector<8x32xf32> to vector<8x8xf32>
    %478 = vector.extract_strided_slice %475 {offsets = [0, 0], sizes = [8, 8], strides = [1, 1]} : vector<32x8xf32> to vector<8x8xf32>
    %479 = vector.extract_strided_slice %476 {offsets = [0, 0], sizes = [8, 8], strides = [1, 1]} : vector<8x32xf32> to vector<8x8xf32>
    %cst_198 = arith.constant dense<0.000000e+00> : vector<8x8xf32>
    %480 = tpu.matmul %477, %478, %cst_198 {dimension_numbers = #tpu.dot_dimension_numbers<[1], [0], [0], [1], [0, 0, 1, 1], [], []>} : vector<8x8xf32>, vector<8x8xf32>, vector<8x8xf32> -> vector<8x8xf32>
    %cst_199 = arith.constant -1.000000e+09 : f32
    %481 = vector.broadcast %cst_199 : f32 to vector<8x8xf32>
    %482 = arith.select %4, %481, %480 : vector<8x8xi1>, vector<8x8xf32>
    %cst_200 = arith.constant dense<0xFF800000> : vector<8xf32>
    %483 = vector.multi_reduction <maximumf>, %482, %cst_200 [1] : vector<8x8xf32> to vector<8xf32>
    %484 = vector.shape_cast %483 : vector<8xf32> to vector<8x1xf32>
    %485 = vector.broadcast %484 : vector<8x1xf32> to vector<8x8xf32>
    %486 = arith.subf %482, %485 : vector<8x8xf32>
    %487 = math.exp %486 : vector<8x8xf32>
    %cst_201 = arith.constant dense<0.000000e+00> : vector<8xf32>
    %488 = vector.multi_reduction <add>, %487, %cst_201 [1] : vector<8x8xf32> to vector<8xf32>
    %489 = vector.shape_cast %488 : vector<8xf32> to vector<8x1xf32>
    %490 = vector.broadcast %489 : vector<8x1xf32> to vector<8x8xf32>
    %491 = arith.divf %487, %490 : vector<8x8xf32>
    %cst_202 = arith.constant dense<0.000000e+00> : vector<8x8xf32>
    %492 = tpu.matmul %491, %479, %cst_202 {dimension_numbers = #tpu.dot_dimension_numbers<[1], [0], [0], [1], [0, 0, 1, 1], [], []>} : vector<8x8xf32>, vector<8x8xf32>, vector<8x8xf32> -> vector<8x8xf32>
    %493 = vector.extract_strided_slice %473 {offsets = [0, 8], sizes = [8, 8], strides = [1, 1]} : vector<8x32xf32> to vector<8x8xf32>
    %494 = vector.extract_strided_slice %475 {offsets = [8, 0], sizes = [8, 8], strides = [1, 1]} : vector<32x8xf32> to vector<8x8xf32>
    %495 = vector.extract_strided_slice %476 {offsets = [0, 8], sizes = [8, 8], strides = [1, 1]} : vector<8x32xf32> to vector<8x8xf32>
    %cst_203 = arith.constant dense<0.000000e+00> : vector<8x8xf32>
    %496 = tpu.matmul %493, %494, %cst_203 {dimension_numbers = #tpu.dot_dimension_numbers<[1], [0], [0], [1], [0, 0, 1, 1], [], []>} : vector<8x8xf32>, vector<8x8xf32>, vector<8x8xf32> -> vector<8x8xf32>
    %cst_204 = arith.constant -1.000000e+09 : f32
    %497 = vector.broadcast %cst_204 : f32 to vector<8x8xf32>
    %498 = arith.select %4, %497, %496 : vector<8x8xi1>, vector<8x8xf32>
    %cst_205 = arith.constant dense<0xFF800000> : vector<8xf32>
    %499 = vector.multi_reduction <maximumf>, %498, %cst_205 [1] : vector<8x8xf32> to vector<8xf32>
    %500 = vector.shape_cast %499 : vector<8xf32> to vector<8x1xf32>
    %501 = vector.broadcast %500 : vector<8x1xf32> to vector<8x8xf32>
    %502 = arith.subf %498, %501 : vector<8x8xf32>
    %503 = math.exp %502 : vector<8x8xf32>
    %cst_206 = arith.constant dense<0.000000e+00> : vector<8xf32>
    %504 = vector.multi_reduction <add>, %503, %cst_206 [1] : vector<8x8xf32> to vector<8xf32>
    %505 = vector.shape_cast %504 : vector<8xf32> to vector<8x1xf32>
    %506 = vector.broadcast %505 : vector<8x1xf32> to vector<8x8xf32>
    %507 = arith.divf %503, %506 : vector<8x8xf32>
    %cst_207 = arith.constant dense<0.000000e+00> : vector<8x8xf32>
    %508 = tpu.matmul %507, %495, %cst_207 {dimension_numbers = #tpu.dot_dimension_numbers<[1], [0], [0], [1], [0, 0, 1, 1], [], []>} : vector<8x8xf32>, vector<8x8xf32>, vector<8x8xf32> -> vector<8x8xf32>
    %509 = vector.extract_strided_slice %473 {offsets = [0, 16], sizes = [8, 8], strides = [1, 1]} : vector<8x32xf32> to vector<8x8xf32>
    %510 = vector.extract_strided_slice %475 {offsets = [16, 0], sizes = [8, 8], strides = [1, 1]} : vector<32x8xf32> to vector<8x8xf32>
    %511 = vector.extract_strided_slice %476 {offsets = [0, 16], sizes = [8, 8], strides = [1, 1]} : vector<8x32xf32> to vector<8x8xf32>
    %cst_208 = arith.constant dense<0.000000e+00> : vector<8x8xf32>
    %512 = tpu.matmul %509, %510, %cst_208 {dimension_numbers = #tpu.dot_dimension_numbers<[1], [0], [0], [1], [0, 0, 1, 1], [], []>} : vector<8x8xf32>, vector<8x8xf32>, vector<8x8xf32> -> vector<8x8xf32>
    %cst_209 = arith.constant -1.000000e+09 : f32
    %513 = vector.broadcast %cst_209 : f32 to vector<8x8xf32>
    %514 = arith.select %4, %513, %512 : vector<8x8xi1>, vector<8x8xf32>
    %cst_210 = arith.constant dense<0xFF800000> : vector<8xf32>
    %515 = vector.multi_reduction <maximumf>, %514, %cst_210 [1] : vector<8x8xf32> to vector<8xf32>
    %516 = vector.shape_cast %515 : vector<8xf32> to vector<8x1xf32>
    %517 = vector.broadcast %516 : vector<8x1xf32> to vector<8x8xf32>
    %518 = arith.subf %514, %517 : vector<8x8xf32>
    %519 = math.exp %518 : vector<8x8xf32>
    %cst_211 = arith.constant dense<0.000000e+00> : vector<8xf32>
    %520 = vector.multi_reduction <add>, %519, %cst_211 [1] : vector<8x8xf32> to vector<8xf32>
    %521 = vector.shape_cast %520 : vector<8xf32> to vector<8x1xf32>
    %522 = vector.broadcast %521 : vector<8x1xf32> to vector<8x8xf32>
    %523 = arith.divf %519, %522 : vector<8x8xf32>
    %cst_212 = arith.constant dense<0.000000e+00> : vector<8x8xf32>
    %524 = tpu.matmul %523, %511, %cst_212 {dimension_numbers = #tpu.dot_dimension_numbers<[1], [0], [0], [1], [0, 0, 1, 1], [], []>} : vector<8x8xf32>, vector<8x8xf32>, vector<8x8xf32> -> vector<8x8xf32>
    %525 = vector.extract_strided_slice %473 {offsets = [0, 24], sizes = [8, 8], strides = [1, 1]} : vector<8x32xf32> to vector<8x8xf32>
    %526 = vector.extract_strided_slice %475 {offsets = [24, 0], sizes = [8, 8], strides = [1, 1]} : vector<32x8xf32> to vector<8x8xf32>
    %527 = vector.extract_strided_slice %476 {offsets = [0, 24], sizes = [8, 8], strides = [1, 1]} : vector<8x32xf32> to vector<8x8xf32>
    %cst_213 = arith.constant dense<0.000000e+00> : vector<8x8xf32>
    %528 = tpu.matmul %525, %526, %cst_213 {dimension_numbers = #tpu.dot_dimension_numbers<[1], [0], [0], [1], [0, 0, 1, 1], [], []>} : vector<8x8xf32>, vector<8x8xf32>, vector<8x8xf32> -> vector<8x8xf32>
    %cst_214 = arith.constant -1.000000e+09 : f32
    %529 = vector.broadcast %cst_214 : f32 to vector<8x8xf32>
    %530 = arith.select %4, %529, %528 : vector<8x8xi1>, vector<8x8xf32>
    %cst_215 = arith.constant dense<0xFF800000> : vector<8xf32>
    %531 = vector.multi_reduction <maximumf>, %530, %cst_215 [1] : vector<8x8xf32> to vector<8xf32>
    %532 = vector.shape_cast %531 : vector<8xf32> to vector<8x1xf32>
    %533 = vector.broadcast %532 : vector<8x1xf32> to vector<8x8xf32>
    %534 = arith.subf %530, %533 : vector<8x8xf32>
    %535 = math.exp %534 : vector<8x8xf32>
    %cst_216 = arith.constant dense<0.000000e+00> : vector<8xf32>
    %536 = vector.multi_reduction <add>, %535, %cst_216 [1] : vector<8x8xf32> to vector<8xf32>
    %537 = vector.shape_cast %536 : vector<8xf32> to vector<8x1xf32>
    %538 = vector.broadcast %537 : vector<8x1xf32> to vector<8x8xf32>
    %539 = arith.divf %535, %538 : vector<8x8xf32>
    %cst_217 = arith.constant dense<0.000000e+00> : vector<8x8xf32>
    %540 = tpu.matmul %539, %527, %cst_217 {dimension_numbers = #tpu.dot_dimension_numbers<[1], [0], [0], [1], [0, 0, 1, 1], [], []>} : vector<8x8xf32>, vector<8x8xf32>, vector<8x8xf32> -> vector<8x8xf32>
    %541 = tpu.concatenate %492, %508, %524, %540 in 1 : vector<8x8xf32>, vector<8x8xf32>, vector<8x8xf32>, vector<8x8xf32> -> vector<8x32xf32>
    %542 = tpu.concatenate %472, %541 in 0 : vector<8x32xf32>, vector<8x32xf32> -> vector<16x32xf32>
    %cst_218 = arith.constant dense<0.000000e+00> : vector<16x32xf32>
    %543 = tpu.matmul %542, %380, %cst_218 {dimension_numbers = #tpu.dot_dimension_numbers<[1], [0], [0], [1], [0, 0, 1, 1], [], []>} : vector<16x32xf32>, vector<32x32xf32>, vector<16x32xf32> -> vector<16x32xf32>
    %544 = vector.broadcast %381 : vector<1x32xf32> to vector<16x32xf32>
    %545 = arith.addf %543, %544 : vector<16x32xf32>
    %cst_219 = arith.constant dense<0.000000e+00> : vector<16xf32>
    %546 = vector.multi_reduction <add>, %545, %cst_219 [1] : vector<16x32xf32> to vector<16xf32>
    %547 = vector.shape_cast %546 : vector<16xf32> to vector<16x1xf32>
    %cst_220 = arith.constant 3.200000e+01 : f32
    %548 = vector.broadcast %cst_220 : f32 to vector<16x1xf32>
    %549 = arith.divf %547, %548 : vector<16x1xf32>
    %550 = vector.broadcast %549 : vector<16x1xf32> to vector<16x32xf32>
    %551 = arith.subf %545, %550 : vector<16x32xf32>
    %552 = arith.mulf %551, %551 : vector<16x32xf32>
    %cst_221 = arith.constant dense<0.000000e+00> : vector<16xf32>
    %553 = vector.multi_reduction <add>, %552, %cst_221 [1] : vector<16x32xf32> to vector<16xf32>
    %554 = vector.shape_cast %553 : vector<16xf32> to vector<16x1xf32>
    %cst_222 = arith.constant 3.100000e+01 : f32
    %555 = vector.broadcast %cst_222 : f32 to vector<16x1xf32>
    %556 = arith.divf %554, %555 : vector<16x1xf32>
    %557 = math.sqrt %556 : vector<16x1xf32>
    %558 = vector.broadcast %382 : vector<1x32xf32> to vector<16x32xf32>
    %559 = arith.mulf %558, %551 : vector<16x32xf32>
    %cst_223 = arith.constant 9.99999997E-7 : f32
    %560 = vector.broadcast %cst_223 : f32 to vector<16x1xf32>
    %561 = arith.addf %557, %560 : vector<16x1xf32>
    %562 = vector.broadcast %561 : vector<16x1xf32> to vector<16x32xf32>
    %563 = arith.divf %559, %562 : vector<16x32xf32>
    %564 = arith.addf %377, %563 : vector<16x32xf32>
    %565 = vector.broadcast %383 : vector<1x32xf32> to vector<16x32xf32>
    %566 = arith.addf %564, %565 : vector<16x32xf32>
    %cst_224 = arith.constant dense<0.000000e+00> : vector<16x32xf32>
    %567 = tpu.matmul %566, %384, %cst_224 {dimension_numbers = #tpu.dot_dimension_numbers<[1], [0], [0], [1], [0, 0, 1, 1], [], []>} : vector<16x32xf32>, vector<32x32xf32>, vector<16x32xf32> -> vector<16x32xf32>
    %568 = vector.broadcast %385 : vector<1x32xf32> to vector<16x32xf32>
    %569 = arith.addf %567, %568 : vector<16x32xf32>
    %cst_225 = arith.constant dense<0.000000e+00> : vector<16x64xf32>
    %570 = tpu.matmul %1, %386, %cst_225 {dimension_numbers = #tpu.dot_dimension_numbers<[1], [0], [0], [1], [0, 0, 1, 1], [], []>} : vector<16x32xf32>, vector<32x64xf32>, vector<16x64xf32> -> vector<16x64xf32>
    %571 = vector.broadcast %387 : vector<1x64xf32> to vector<16x64xf32>
    %572 = arith.addf %570, %571 : vector<16x64xf32>
    %573 = vector.extract_strided_slice %572 {offsets = [0, 0], sizes = [16, 32], strides = [1, 1]} : vector<16x64xf32> to vector<16x32xf32>
    %574 = vector.extract_strided_slice %572 {offsets = [0, 32], sizes = [16, 32], strides = [1, 1]} : vector<16x64xf32> to vector<16x32xf32>
    %575 = vector.extract_strided_slice %569 {offsets = [0, 0], sizes = [8, 32], strides = [1, 1]} : vector<16x32xf32> to vector<8x32xf32>
    %576 = vector.extract_strided_slice %573 {offsets = [0, 0], sizes = [8, 32], strides = [1, 1]} : vector<16x32xf32> to vector<8x32xf32>
    %577 = tpu.transpose %576, [1, 0] : vector<8x32xf32> -> vector<32x8xf32>
    %578 = vector.extract_strided_slice %574 {offsets = [0, 0], sizes = [8, 32], strides = [1, 1]} : vector<16x32xf32> to vector<8x32xf32>
    %579 = vector.extract_strided_slice %575 {offsets = [0, 0], sizes = [8, 8], strides = [1, 1]} : vector<8x32xf32> to vector<8x8xf32>
    %580 = vector.extract_strided_slice %577 {offsets = [0, 0], sizes = [8, 8], strides = [1, 1]} : vector<32x8xf32> to vector<8x8xf32>
    %581 = vector.extract_strided_slice %578 {offsets = [0, 0], sizes = [8, 8], strides = [1, 1]} : vector<8x32xf32> to vector<8x8xf32>
    %cst_226 = arith.constant dense<0.000000e+00> : vector<8x8xf32>
    %582 = tpu.matmul %579, %580, %cst_226 {dimension_numbers = #tpu.dot_dimension_numbers<[1], [0], [0], [1], [0, 0, 1, 1], [], []>} : vector<8x8xf32>, vector<8x8xf32>, vector<8x8xf32> -> vector<8x8xf32>
    %cst_227 = arith.constant dense<0xFF800000> : vector<8xf32>
    %583 = vector.multi_reduction <maximumf>, %582, %cst_227 [1] : vector<8x8xf32> to vector<8xf32>
    %584 = vector.shape_cast %583 : vector<8xf32> to vector<8x1xf32>
    %585 = vector.broadcast %584 : vector<8x1xf32> to vector<8x8xf32>
    %586 = arith.subf %582, %585 : vector<8x8xf32>
    %587 = math.exp %586 : vector<8x8xf32>
    %cst_228 = arith.constant dense<0.000000e+00> : vector<8xf32>
    %588 = vector.multi_reduction <add>, %587, %cst_228 [1] : vector<8x8xf32> to vector<8xf32>
    %589 = vector.shape_cast %588 : vector<8xf32> to vector<8x1xf32>
    %590 = vector.broadcast %589 : vector<8x1xf32> to vector<8x8xf32>
    %591 = arith.divf %587, %590 : vector<8x8xf32>
    %cst_229 = arith.constant dense<0.000000e+00> : vector<8x8xf32>
    %592 = tpu.matmul %591, %581, %cst_229 {dimension_numbers = #tpu.dot_dimension_numbers<[1], [0], [0], [1], [0, 0, 1, 1], [], []>} : vector<8x8xf32>, vector<8x8xf32>, vector<8x8xf32> -> vector<8x8xf32>
    %593 = vector.extract_strided_slice %575 {offsets = [0, 8], sizes = [8, 8], strides = [1, 1]} : vector<8x32xf32> to vector<8x8xf32>
    %594 = vector.extract_strided_slice %577 {offsets = [8, 0], sizes = [8, 8], strides = [1, 1]} : vector<32x8xf32> to vector<8x8xf32>
    %595 = vector.extract_strided_slice %578 {offsets = [0, 8], sizes = [8, 8], strides = [1, 1]} : vector<8x32xf32> to vector<8x8xf32>
    %cst_230 = arith.constant dense<0.000000e+00> : vector<8x8xf32>
    %596 = tpu.matmul %593, %594, %cst_230 {dimension_numbers = #tpu.dot_dimension_numbers<[1], [0], [0], [1], [0, 0, 1, 1], [], []>} : vector<8x8xf32>, vector<8x8xf32>, vector<8x8xf32> -> vector<8x8xf32>
    %cst_231 = arith.constant dense<0xFF800000> : vector<8xf32>
    %597 = vector.multi_reduction <maximumf>, %596, %cst_231 [1] : vector<8x8xf32> to vector<8xf32>
    %598 = vector.shape_cast %597 : vector<8xf32> to vector<8x1xf32>
    %599 = vector.broadcast %598 : vector<8x1xf32> to vector<8x8xf32>
    %600 = arith.subf %596, %599 : vector<8x8xf32>
    %601 = math.exp %600 : vector<8x8xf32>
    %cst_232 = arith.constant dense<0.000000e+00> : vector<8xf32>
    %602 = vector.multi_reduction <add>, %601, %cst_232 [1] : vector<8x8xf32> to vector<8xf32>
    %603 = vector.shape_cast %602 : vector<8xf32> to vector<8x1xf32>
    %604 = vector.broadcast %603 : vector<8x1xf32> to vector<8x8xf32>
    %605 = arith.divf %601, %604 : vector<8x8xf32>
    %cst_233 = arith.constant dense<0.000000e+00> : vector<8x8xf32>
    %606 = tpu.matmul %605, %595, %cst_233 {dimension_numbers = #tpu.dot_dimension_numbers<[1], [0], [0], [1], [0, 0, 1, 1], [], []>} : vector<8x8xf32>, vector<8x8xf32>, vector<8x8xf32> -> vector<8x8xf32>
    %607 = vector.extract_strided_slice %575 {offsets = [0, 16], sizes = [8, 8], strides = [1, 1]} : vector<8x32xf32> to vector<8x8xf32>
    %608 = vector.extract_strided_slice %577 {offsets = [16, 0], sizes = [8, 8], strides = [1, 1]} : vector<32x8xf32> to vector<8x8xf32>
    %609 = vector.extract_strided_slice %578 {offsets = [0, 16], sizes = [8, 8], strides = [1, 1]} : vector<8x32xf32> to vector<8x8xf32>
    %cst_234 = arith.constant dense<0.000000e+00> : vector<8x8xf32>
    %610 = tpu.matmul %607, %608, %cst_234 {dimension_numbers = #tpu.dot_dimension_numbers<[1], [0], [0], [1], [0, 0, 1, 1], [], []>} : vector<8x8xf32>, vector<8x8xf32>, vector<8x8xf32> -> vector<8x8xf32>
    %cst_235 = arith.constant dense<0xFF800000> : vector<8xf32>
    %611 = vector.multi_reduction <maximumf>, %610, %cst_235 [1] : vector<8x8xf32> to vector<8xf32>
    %612 = vector.shape_cast %611 : vector<8xf32> to vector<8x1xf32>
    %613 = vector.broadcast %612 : vector<8x1xf32> to vector<8x8xf32>
    %614 = arith.subf %610, %613 : vector<8x8xf32>
    %615 = math.exp %614 : vector<8x8xf32>
    %cst_236 = arith.constant dense<0.000000e+00> : vector<8xf32>
    %616 = vector.multi_reduction <add>, %615, %cst_236 [1] : vector<8x8xf32> to vector<8xf32>
    %617 = vector.shape_cast %616 : vector<8xf32> to vector<8x1xf32>
    %618 = vector.broadcast %617 : vector<8x1xf32> to vector<8x8xf32>
    %619 = arith.divf %615, %618 : vector<8x8xf32>
    %cst_237 = arith.constant dense<0.000000e+00> : vector<8x8xf32>
    %620 = tpu.matmul %619, %609, %cst_237 {dimension_numbers = #tpu.dot_dimension_numbers<[1], [0], [0], [1], [0, 0, 1, 1], [], []>} : vector<8x8xf32>, vector<8x8xf32>, vector<8x8xf32> -> vector<8x8xf32>
    %621 = vector.extract_strided_slice %575 {offsets = [0, 24], sizes = [8, 8], strides = [1, 1]} : vector<8x32xf32> to vector<8x8xf32>
    %622 = vector.extract_strided_slice %577 {offsets = [24, 0], sizes = [8, 8], strides = [1, 1]} : vector<32x8xf32> to vector<8x8xf32>
    %623 = vector.extract_strided_slice %578 {offsets = [0, 24], sizes = [8, 8], strides = [1, 1]} : vector<8x32xf32> to vector<8x8xf32>
    %cst_238 = arith.constant dense<0.000000e+00> : vector<8x8xf32>
    %624 = tpu.matmul %621, %622, %cst_238 {dimension_numbers = #tpu.dot_dimension_numbers<[1], [0], [0], [1], [0, 0, 1, 1], [], []>} : vector<8x8xf32>, vector<8x8xf32>, vector<8x8xf32> -> vector<8x8xf32>
    %cst_239 = arith.constant dense<0xFF800000> : vector<8xf32>
    %625 = vector.multi_reduction <maximumf>, %624, %cst_239 [1] : vector<8x8xf32> to vector<8xf32>
    %626 = vector.shape_cast %625 : vector<8xf32> to vector<8x1xf32>
    %627 = vector.broadcast %626 : vector<8x1xf32> to vector<8x8xf32>
    %628 = arith.subf %624, %627 : vector<8x8xf32>
    %629 = math.exp %628 : vector<8x8xf32>
    %cst_240 = arith.constant dense<0.000000e+00> : vector<8xf32>
    %630 = vector.multi_reduction <add>, %629, %cst_240 [1] : vector<8x8xf32> to vector<8xf32>
    %631 = vector.shape_cast %630 : vector<8xf32> to vector<8x1xf32>
    %632 = vector.broadcast %631 : vector<8x1xf32> to vector<8x8xf32>
    %633 = arith.divf %629, %632 : vector<8x8xf32>
    %cst_241 = arith.constant dense<0.000000e+00> : vector<8x8xf32>
    %634 = tpu.matmul %633, %623, %cst_241 {dimension_numbers = #tpu.dot_dimension_numbers<[1], [0], [0], [1], [0, 0, 1, 1], [], []>} : vector<8x8xf32>, vector<8x8xf32>, vector<8x8xf32> -> vector<8x8xf32>
    %635 = tpu.concatenate %592, %606, %620, %634 in 1 : vector<8x8xf32>, vector<8x8xf32>, vector<8x8xf32>, vector<8x8xf32> -> vector<8x32xf32>
    %636 = vector.extract_strided_slice %569 {offsets = [8, 0], sizes = [8, 32], strides = [1, 1]} : vector<16x32xf32> to vector<8x32xf32>
    %637 = vector.extract_strided_slice %573 {offsets = [8, 0], sizes = [8, 32], strides = [1, 1]} : vector<16x32xf32> to vector<8x32xf32>
    %638 = tpu.transpose %637, [1, 0] : vector<8x32xf32> -> vector<32x8xf32>
    %639 = vector.extract_strided_slice %574 {offsets = [8, 0], sizes = [8, 32], strides = [1, 1]} : vector<16x32xf32> to vector<8x32xf32>
    %640 = vector.extract_strided_slice %636 {offsets = [0, 0], sizes = [8, 8], strides = [1, 1]} : vector<8x32xf32> to vector<8x8xf32>
    %641 = vector.extract_strided_slice %638 {offsets = [0, 0], sizes = [8, 8], strides = [1, 1]} : vector<32x8xf32> to vector<8x8xf32>
    %642 = vector.extract_strided_slice %639 {offsets = [0, 0], sizes = [8, 8], strides = [1, 1]} : vector<8x32xf32> to vector<8x8xf32>
    %cst_242 = arith.constant dense<0.000000e+00> : vector<8x8xf32>
    %643 = tpu.matmul %640, %641, %cst_242 {dimension_numbers = #tpu.dot_dimension_numbers<[1], [0], [0], [1], [0, 0, 1, 1], [], []>} : vector<8x8xf32>, vector<8x8xf32>, vector<8x8xf32> -> vector<8x8xf32>
    %cst_243 = arith.constant dense<0xFF800000> : vector<8xf32>
    %644 = vector.multi_reduction <maximumf>, %643, %cst_243 [1] : vector<8x8xf32> to vector<8xf32>
    %645 = vector.shape_cast %644 : vector<8xf32> to vector<8x1xf32>
    %646 = vector.broadcast %645 : vector<8x1xf32> to vector<8x8xf32>
    %647 = arith.subf %643, %646 : vector<8x8xf32>
    %648 = math.exp %647 : vector<8x8xf32>
    %cst_244 = arith.constant dense<0.000000e+00> : vector<8xf32>
    %649 = vector.multi_reduction <add>, %648, %cst_244 [1] : vector<8x8xf32> to vector<8xf32>
    %650 = vector.shape_cast %649 : vector<8xf32> to vector<8x1xf32>
    %651 = vector.broadcast %650 : vector<8x1xf32> to vector<8x8xf32>
    %652 = arith.divf %648, %651 : vector<8x8xf32>
    %cst_245 = arith.constant dense<0.000000e+00> : vector<8x8xf32>
    %653 = tpu.matmul %652, %642, %cst_245 {dimension_numbers = #tpu.dot_dimension_numbers<[1], [0], [0], [1], [0, 0, 1, 1], [], []>} : vector<8x8xf32>, vector<8x8xf32>, vector<8x8xf32> -> vector<8x8xf32>
    %654 = vector.extract_strided_slice %636 {offsets = [0, 8], sizes = [8, 8], strides = [1, 1]} : vector<8x32xf32> to vector<8x8xf32>
    %655 = vector.extract_strided_slice %638 {offsets = [8, 0], sizes = [8, 8], strides = [1, 1]} : vector<32x8xf32> to vector<8x8xf32>
    %656 = vector.extract_strided_slice %639 {offsets = [0, 8], sizes = [8, 8], strides = [1, 1]} : vector<8x32xf32> to vector<8x8xf32>
    %cst_246 = arith.constant dense<0.000000e+00> : vector<8x8xf32>
    %657 = tpu.matmul %654, %655, %cst_246 {dimension_numbers = #tpu.dot_dimension_numbers<[1], [0], [0], [1], [0, 0, 1, 1], [], []>} : vector<8x8xf32>, vector<8x8xf32>, vector<8x8xf32> -> vector<8x8xf32>
    %cst_247 = arith.constant dense<0xFF800000> : vector<8xf32>
    %658 = vector.multi_reduction <maximumf>, %657, %cst_247 [1] : vector<8x8xf32> to vector<8xf32>
    %659 = vector.shape_cast %658 : vector<8xf32> to vector<8x1xf32>
    %660 = vector.broadcast %659 : vector<8x1xf32> to vector<8x8xf32>
    %661 = arith.subf %657, %660 : vector<8x8xf32>
    %662 = math.exp %661 : vector<8x8xf32>
    %cst_248 = arith.constant dense<0.000000e+00> : vector<8xf32>
    %663 = vector.multi_reduction <add>, %662, %cst_248 [1] : vector<8x8xf32> to vector<8xf32>
    %664 = vector.shape_cast %663 : vector<8xf32> to vector<8x1xf32>
    %665 = vector.broadcast %664 : vector<8x1xf32> to vector<8x8xf32>
    %666 = arith.divf %662, %665 : vector<8x8xf32>
    %cst_249 = arith.constant dense<0.000000e+00> : vector<8x8xf32>
    %667 = tpu.matmul %666, %656, %cst_249 {dimension_numbers = #tpu.dot_dimension_numbers<[1], [0], [0], [1], [0, 0, 1, 1], [], []>} : vector<8x8xf32>, vector<8x8xf32>, vector<8x8xf32> -> vector<8x8xf32>
    %668 = vector.extract_strided_slice %636 {offsets = [0, 16], sizes = [8, 8], strides = [1, 1]} : vector<8x32xf32> to vector<8x8xf32>
    %669 = vector.extract_strided_slice %638 {offsets = [16, 0], sizes = [8, 8], strides = [1, 1]} : vector<32x8xf32> to vector<8x8xf32>
    %670 = vector.extract_strided_slice %639 {offsets = [0, 16], sizes = [8, 8], strides = [1, 1]} : vector<8x32xf32> to vector<8x8xf32>
    %cst_250 = arith.constant dense<0.000000e+00> : vector<8x8xf32>
    %671 = tpu.matmul %668, %669, %cst_250 {dimension_numbers = #tpu.dot_dimension_numbers<[1], [0], [0], [1], [0, 0, 1, 1], [], []>} : vector<8x8xf32>, vector<8x8xf32>, vector<8x8xf32> -> vector<8x8xf32>
    %cst_251 = arith.constant dense<0xFF800000> : vector<8xf32>
    %672 = vector.multi_reduction <maximumf>, %671, %cst_251 [1] : vector<8x8xf32> to vector<8xf32>
    %673 = vector.shape_cast %672 : vector<8xf32> to vector<8x1xf32>
    %674 = vector.broadcast %673 : vector<8x1xf32> to vector<8x8xf32>
    %675 = arith.subf %671, %674 : vector<8x8xf32>
    %676 = math.exp %675 : vector<8x8xf32>
    %cst_252 = arith.constant dense<0.000000e+00> : vector<8xf32>
    %677 = vector.multi_reduction <add>, %676, %cst_252 [1] : vector<8x8xf32> to vector<8xf32>
    %678 = vector.shape_cast %677 : vector<8xf32> to vector<8x1xf32>
    %679 = vector.broadcast %678 : vector<8x1xf32> to vector<8x8xf32>
    %680 = arith.divf %676, %679 : vector<8x8xf32>
    %cst_253 = arith.constant dense<0.000000e+00> : vector<8x8xf32>
    %681 = tpu.matmul %680, %670, %cst_253 {dimension_numbers = #tpu.dot_dimension_numbers<[1], [0], [0], [1], [0, 0, 1, 1], [], []>} : vector<8x8xf32>, vector<8x8xf32>, vector<8x8xf32> -> vector<8x8xf32>
    %682 = vector.extract_strided_slice %636 {offsets = [0, 24], sizes = [8, 8], strides = [1, 1]} : vector<8x32xf32> to vector<8x8xf32>
    %683 = vector.extract_strided_slice %638 {offsets = [24, 0], sizes = [8, 8], strides = [1, 1]} : vector<32x8xf32> to vector<8x8xf32>
    %684 = vector.extract_strided_slice %639 {offsets = [0, 24], sizes = [8, 8], strides = [1, 1]} : vector<8x32xf32> to vector<8x8xf32>
    %cst_254 = arith.constant dense<0.000000e+00> : vector<8x8xf32>
    %685 = tpu.matmul %682, %683, %cst_254 {dimension_numbers = #tpu.dot_dimension_numbers<[1], [0], [0], [1], [0, 0, 1, 1], [], []>} : vector<8x8xf32>, vector<8x8xf32>, vector<8x8xf32> -> vector<8x8xf32>
    %cst_255 = arith.constant dense<0xFF800000> : vector<8xf32>
    %686 = vector.multi_reduction <maximumf>, %685, %cst_255 [1] : vector<8x8xf32> to vector<8xf32>
    %687 = vector.shape_cast %686 : vector<8xf32> to vector<8x1xf32>
    %688 = vector.broadcast %687 : vector<8x1xf32> to vector<8x8xf32>
    %689 = arith.subf %685, %688 : vector<8x8xf32>
    %690 = math.exp %689 : vector<8x8xf32>
    %cst_256 = arith.constant dense<0.000000e+00> : vector<8xf32>
    %691 = vector.multi_reduction <add>, %690, %cst_256 [1] : vector<8x8xf32> to vector<8xf32>
    %692 = vector.shape_cast %691 : vector<8xf32> to vector<8x1xf32>
    %693 = vector.broadcast %692 : vector<8x1xf32> to vector<8x8xf32>
    %694 = arith.divf %690, %693 : vector<8x8xf32>
    %cst_257 = arith.constant dense<0.000000e+00> : vector<8x8xf32>
    %695 = tpu.matmul %694, %684, %cst_257 {dimension_numbers = #tpu.dot_dimension_numbers<[1], [0], [0], [1], [0, 0, 1, 1], [], []>} : vector<8x8xf32>, vector<8x8xf32>, vector<8x8xf32> -> vector<8x8xf32>
    %696 = tpu.concatenate %653, %667, %681, %695 in 1 : vector<8x8xf32>, vector<8x8xf32>, vector<8x8xf32>, vector<8x8xf32> -> vector<8x32xf32>
    %697 = tpu.concatenate %635, %696 in 0 : vector<8x32xf32>, vector<8x32xf32> -> vector<16x32xf32>
    %cst_258 = arith.constant dense<0.000000e+00> : vector<16x32xf32>
    %698 = tpu.matmul %697, %388, %cst_258 {dimension_numbers = #tpu.dot_dimension_numbers<[1], [0], [0], [1], [0, 0, 1, 1], [], []>} : vector<16x32xf32>, vector<32x32xf32>, vector<16x32xf32> -> vector<16x32xf32>
    %699 = vector.broadcast %389 : vector<1x32xf32> to vector<16x32xf32>
    %700 = arith.addf %698, %699 : vector<16x32xf32>
    %cst_259 = arith.constant dense<0.000000e+00> : vector<16xf32>
    %701 = vector.multi_reduction <add>, %700, %cst_259 [1] : vector<16x32xf32> to vector<16xf32>
    %702 = vector.shape_cast %701 : vector<16xf32> to vector<16x1xf32>
    %cst_260 = arith.constant 3.200000e+01 : f32
    %703 = vector.broadcast %cst_260 : f32 to vector<16x1xf32>
    %704 = arith.divf %702, %703 : vector<16x1xf32>
    %705 = vector.broadcast %704 : vector<16x1xf32> to vector<16x32xf32>
    %706 = arith.subf %700, %705 : vector<16x32xf32>
    %707 = arith.mulf %706, %706 : vector<16x32xf32>
    %cst_261 = arith.constant dense<0.000000e+00> : vector<16xf32>
    %708 = vector.multi_reduction <add>, %707, %cst_261 [1] : vector<16x32xf32> to vector<16xf32>
    %709 = vector.shape_cast %708 : vector<16xf32> to vector<16x1xf32>
    %cst_262 = arith.constant 3.100000e+01 : f32
    %710 = vector.broadcast %cst_262 : f32 to vector<16x1xf32>
    %711 = arith.divf %709, %710 : vector<16x1xf32>
    %712 = math.sqrt %711 : vector<16x1xf32>
    %713 = vector.broadcast %390 : vector<1x32xf32> to vector<16x32xf32>
    %714 = arith.mulf %713, %706 : vector<16x32xf32>
    %cst_263 = arith.constant 9.99999997E-7 : f32
    %715 = vector.broadcast %cst_263 : f32 to vector<16x1xf32>
    %716 = arith.addf %712, %715 : vector<16x1xf32>
    %717 = vector.broadcast %716 : vector<16x1xf32> to vector<16x32xf32>
    %718 = arith.divf %714, %717 : vector<16x32xf32>
    %719 = arith.addf %566, %718 : vector<16x32xf32>
    %720 = vector.broadcast %391 : vector<1x32xf32> to vector<16x32xf32>
    %721 = arith.addf %719, %720 : vector<16x32xf32>
    %cst_264 = arith.constant dense<0.000000e+00> : vector<16x64xf32>
    %722 = tpu.matmul %721, %392, %cst_264 {dimension_numbers = #tpu.dot_dimension_numbers<[1], [0], [0], [1], [0, 0, 1, 1], [], []>} : vector<16x32xf32>, vector<32x64xf32>, vector<16x64xf32> -> vector<16x64xf32>
    %723 = vector.broadcast %393 : vector<1x64xf32> to vector<16x64xf32>
    %724 = arith.addf %722, %723 : vector<16x64xf32>
    %cst_265 = arith.constant 0.000000e+00 : f32
    %725 = vector.broadcast %cst_265 : f32 to vector<16x64xf32>
    %726 = arith.maximumf %724, %725 : vector<16x64xf32>
    %cst_266 = arith.constant dense<0.000000e+00> : vector<16x32xf32>
    %727 = tpu.matmul %726, %394, %cst_266 {dimension_numbers = #tpu.dot_dimension_numbers<[1], [0], [0], [1], [0, 0, 1, 1], [], []>} : vector<16x64xf32>, vector<64x32xf32>, vector<16x32xf32> -> vector<16x32xf32>
    %728 = vector.broadcast %395 : vector<1x32xf32> to vector<16x32xf32>
    %729 = arith.addf %727, %728 : vector<16x32xf32>
    %cst_267 = arith.constant dense<0.000000e+00> : vector<16xf32>
    %730 = vector.multi_reduction <add>, %729, %cst_267 [1] : vector<16x32xf32> to vector<16xf32>
    %731 = vector.shape_cast %730 : vector<16xf32> to vector<16x1xf32>
    %cst_268 = arith.constant 3.200000e+01 : f32
    %732 = vector.broadcast %cst_268 : f32 to vector<16x1xf32>
    %733 = arith.divf %731, %732 : vector<16x1xf32>
    %734 = vector.broadcast %733 : vector<16x1xf32> to vector<16x32xf32>
    %735 = arith.subf %729, %734 : vector<16x32xf32>
    %736 = arith.mulf %735, %735 : vector<16x32xf32>
    %cst_269 = arith.constant dense<0.000000e+00> : vector<16xf32>
    %737 = vector.multi_reduction <add>, %736, %cst_269 [1] : vector<16x32xf32> to vector<16xf32>
    %738 = vector.shape_cast %737 : vector<16xf32> to vector<16x1xf32>
    %cst_270 = arith.constant 3.100000e+01 : f32
    %739 = vector.broadcast %cst_270 : f32 to vector<16x1xf32>
    %740 = arith.divf %738, %739 : vector<16x1xf32>
    %741 = math.sqrt %740 : vector<16x1xf32>
    %742 = vector.broadcast %396 : vector<1x32xf32> to vector<16x32xf32>
    %743 = arith.mulf %742, %735 : vector<16x32xf32>
    %cst_271 = arith.constant 9.99999997E-7 : f32
    %744 = vector.broadcast %cst_271 : f32 to vector<16x1xf32>
    %745 = arith.addf %741, %744 : vector<16x1xf32>
    %746 = vector.broadcast %745 : vector<16x1xf32> to vector<16x32xf32>
    %747 = arith.divf %743, %746 : vector<16x32xf32>
    %748 = arith.addf %721, %747 : vector<16x32xf32>
    %749 = vector.broadcast %397 : vector<1x32xf32> to vector<16x32xf32>
    %750 = arith.addf %748, %749 : vector<16x32xf32>
    %c0_272 = arith.constant 0 : index
    %c0_273 = arith.constant 0 : index
    %751 = vector.load %arg42[%c0_272, %c0_273] : memref<16x32xf32, #tpu.memory_space<vmem>>, vector<16x32xf32>
    tpu.vector_store %arg42[%c0_272, %c0_273], %750 {strides = array<i32>} : memref<16x32xf32, #tpu.memory_space<vmem>>, vector<16x32xf32>,
    return
  }
}

</mosaic_0001>

<llo_original>
// kernel: tpu_custom_call.1
$region0: #{tpu_custom_call.1}
  #allocation0 [shape = 'u32[]', space=smem, size = 0x4, offset = 0x4, fixed_abs, tag = 'smem constant byte address 0x4 - core index']
  #allocation1 [shape = 'u32[144,128]{1,0:T(1,128)}', space=vmem, size = 0x12000, scoped, tag = 'internal scratch']
  %s0 = inlined_call_operand.smem [shape: u32[43], index: -1, kind: input, shape index: {}]
  %s1 = sld [smem:[%s0]]
  %s2 = scalar_lea.smem %s0, 1
  %s3 = sld [smem:[%s2]]
  %s4 = scalar_lea.smem %s0, 2
  %s5 = sld [smem:[%s4]]
  %s6 = scalar_lea.smem %s0, 3
  %s7 = sld [smem:[%s6]]
  %s8 = scalar_lea.smem %s0, 4
  %s9 = sld [smem:[%s8]]
  %s10 = scalar_lea.smem %s0, 5
  %s11 = sld [smem:[%s10]]
  %s12 = scalar_lea.smem %s0, 6
  %s13 = sld [smem:[%s12]]
  %s14 = scalar_lea.smem %s0, 7
  %s15 = sld [smem:[%s14]]
  %s16 = scalar_lea.smem %s0, 8
  %s17 = sld [smem:[%s16]]
  %s18 = scalar_lea.smem %s0, 9
  %s19 = sld [smem:[%s18]]
  %s20 = scalar_lea.smem %s0, 10
  %s21 = sld [smem:[%s20]]
  %s22 = scalar_lea.smem %s0, 11
  %s23 = sld [smem:[%s22]]
  %s24 = scalar_lea.smem %s0, 12
  %s25 = sld [smem:[%s24]]
  %s26 = scalar_lea.smem %s0, 13
  %s27 = sld [smem:[%s26]]
  %s28 = scalar_lea.smem %s0, 14
  %s29 = sld [smem:[%s28]]
  %s30 = scalar_lea.smem %s0, 15
  %s31 = sld [smem:[%s30]]
  %s32 = scalar_lea.smem %s0, 16
  %s33 = sld [smem:[%s32]]
  %s34 = scalar_lea.smem %s0, 17
  %s35 = sld [smem:[%s34]]
  %s36 = scalar_lea.smem %s0, 18
  %s37 = sld [smem:[%s36]]
  %s38 = scalar_lea.smem %s0, 19
  %s39 = sld [smem:[%s38]]
  %s40 = scalar_lea.smem %s0, 20
  %s41 = sld [smem:[%s40]]
  %s42 = scalar_lea.smem %s0, 21
  %s43 = sld [smem:[%s42]]
  %s44 = scalar_lea.smem %s0, 22
  %s45 = sld [smem:[%s44]]
  %s46 = scalar_lea.smem %s0, 23
  %s47 = sld [smem:[%s46]]
  %s48 = scalar_lea.smem %s0, 24
  %s49 = sld [smem:[%s48]]
  %s50 = scalar_lea.smem %s0, 25
  %s51 = sld [smem:[%s50]]
  %s52 = scalar_lea.smem %s0, 26
  %s53 = sld [smem:[%s52]]
  %s54 = scalar_lea.smem %s0, 27
  %s55 = sld [smem:[%s54]]
  %s56 = scalar_lea.smem %s0, 28
  %s57 = sld [smem:[%s56]]
  %s58 = scalar_lea.smem %s0, 29
  %s59 = sld [smem:[%s58]]
  %s60 = scalar_lea.smem %s0, 30
  %s61 = sld [smem:[%s60]]
  %s62 = scalar_lea.smem %s0, 31
  %s63 = sld [smem:[%s62]]
  %s64 = scalar_lea.smem %s0, 32
  %s65 = sld [smem:[%s64]]
  %s66 = scalar_lea.smem %s0, 33
  %s67 = sld [smem:[%s66]]
  %s68 = scalar_lea.smem %s0, 34
  %s69 = sld [smem:[%s68]]
  %s70 = scalar_lea.smem %s0, 35
  %s71 = sld [smem:[%s70]]
  %s72 = scalar_lea.smem %s0, 36
  %s73 = sld [smem:[%s72]]
  %s74 = scalar_lea.smem %s0, 37
  %s75 = sld [smem:[%s74]]
  %s76 = scalar_lea.smem %s0, 38
  %s77 = sld [smem:[%s76]]
  %s78 = scalar_lea.smem %s0, 39
  %s79 = sld [smem:[%s78]]
  %s80 = scalar_lea.smem %s0, 40
  %s81 = sld [smem:[%s80]]
  %s82 = scalar_lea.smem %s0, 41
  %s83 = sld [smem:[%s82]]
  %s84 = scalar_lea.smem %s0, 42
  %s85 = sld [smem:[%s84]]
  %s86 = sld [smem:[#allocation0]]
  $region286: #{tpu_custom_call.1} parent=0
    _
  %s88 = ssub.s32 1, %s86
  %s89 = scalar_select 0, %s88, %s86
  $region1: #{tpu_custom_call.1} parent=0
    #allocation2 [shape = 'u8[8192]{0}', space=vmem, size = 0x2000, scoped, tag = 'input window, operand 0, single buffered']
    #allocation3 [shape = 's32[1]{0}', space=sflag, size = 0x4, scoped, tag = 'scoped memory for tpu_custom_call.1']
    #allocation4 [shape = 's32[1]{0}', space=sflag, size = 0x4, scoped, tag = 'scoped memory for tpu_custom_call.1']
    #allocation5 [shape = 'u8[8192]{0}', space=vmem, size = 0x2000, scoped, tag = 'input window, operand 1, single buffered']
    #allocation6 [shape = 's32[1]{0}', space=sflag, size = 0x4, scoped, tag = 'scoped memory for tpu_custom_call.1']
    #allocation7 [shape = 'u8[512]{0}', space=vmem, size = 0x400, scoped, tag = 'input window, operand 3, single buffered']
    #allocation8 [shape = 'u8[512]{0}', space=vmem, size = 0x400, scoped, tag = 'input window, operand 5, single buffered']
    #allocation9 [shape = 's32[1]{0}', space=sflag, size = 0x4, scoped, tag = 'scoped memory for tpu_custom_call.1']
    #allocation10 [shape = 'u8[512]{0}', space=vmem, size = 0x400, scoped, tag = 'input window, operand 6, single buffered']
    #allocation11 [shape = 'u8[512]{0}', space=vmem, size = 0x400, scoped, tag = 'input window, operand 7, single buffered']
    #allocation12 [shape = 's32[1]{0}', space=sflag, size = 0x4, scoped, tag = 'scoped memory for tpu_custom_call.1']
    #allocation13 [shape = 'u8[512]{0}', space=vmem, size = 0x400, scoped, tag = 'input window, operand 9, single buffered']
    #allocation14 [shape = 'u8[512]{0}', space=vmem, size = 0x400, scoped, tag = 'input window, operand 11, single buffered']
    #allocation15 [shape = 's32[1]{0}', space=sflag, size = 0x4, scoped, tag = 'scoped memory for tpu_custom_call.1']
    #allocation16 [shape = 'u8[512]{0}', space=vmem, size = 0x400, scoped, tag = 'input window, operand 13, single buffered']
    #allocation17 [shape = 'u8[512]{0}', space=vmem, size = 0x400, scoped, tag = 'input window, operand 14, single buffered']
    #allocation18 [shape = 's32[1]{0}', space=sflag, size = 0x4, scoped, tag = 'scoped memory for tpu_custom_call.1']
    #allocation19 [shape = 'u8[512]{0}', space=vmem, size = 0x400, scoped, tag = 'input window, operand 15, single buffered']
    #allocation20 [shape = 'u8[512]{0}', space=vmem, size = 0x400, scoped, tag = 'input window, operand 17, single buffered']
    #allocation21 [shape = 's32[1]{0}', space=sflag, size = 0x4, scoped, tag = 'scoped memory for tpu_custom_call.1']
    #allocation22 [shape = 'u8[512]{0}', space=vmem, size = 0x400, scoped, tag = 'input window, operand 19, single buffered']
    #allocation23 [shape = 'u8[512]{0}', space=vmem, size = 0x400, scoped, tag = 'input window, operand 20, single buffered']
    #allocation24 [shape = 's32[1]{0}', space=sflag, size = 0x4, scoped, tag = 'scoped memory for tpu_custom_call.1']
    #allocation25 [shape = 'u8[512]{0}', space=vmem, size = 0x400, scoped, tag = 'input window, operand 21, single buffered']
    #allocation26 [shape = 'u8[16384]{0}', space=vmem, size = 0x4000, scoped, tag = 'input window, operand 22, single buffered']
    #allocation27 [shape = 's32[1]{0}', space=sflag, size = 0x4, scoped, tag = 'scoped memory for tpu_custom_call.1']
    #allocation28 [shape = 'u8[512]{0}', space=vmem, size = 0x400, scoped, tag = 'input window, operand 23, single buffered']
    #allocation29 [shape = 'u8[16384]{0}', space=vmem, size = 0x4000, scoped, tag = 'input window, operand 24, single buffered']
    #allocation30 [shape = 's32[1]{0}', space=sflag, size = 0x4, scoped, tag = 'scoped memory for tpu_custom_call.1']
    #allocation31 [shape = 'u8[512]{0}', space=vmem, size = 0x400, scoped, tag = 'input window, operand 25, single buffered']
    #allocation32 [shape = 'u8[512]{0}', space=vmem, size = 0x400, scoped, tag = 'input window, operand 26, single buffered']
    #allocation33 [shape = 's32[1]{0}', space=sflag, size = 0x4, scoped, tag = 'scoped memory for tpu_custom_call.1']
    #allocation34 [shape = 'u8[512]{0}', space=vmem, size = 0x400, scoped, tag = 'input window, operand 27, single buffered']
    #allocation35 [shape = 'u8[512]{0}', space=vmem, size = 0x400, scoped, tag = 'input window, operand 29, single buffered']
    #allocation36 [shape = 's32[1]{0}', space=sflag, size = 0x4, scoped, tag = 'scoped memory for tpu_custom_call.1']
    #allocation37 [shape = 'u8[16384]{0}', space=vmem, size = 0x4000, scoped, tag = 'input window, operand 30, single buffered']
    #allocation38 [shape = 'u8[512]{0}', space=vmem, size = 0x400, scoped, tag = 'input window, operand 31, single buffered']
    #allocation39 [shape = 's32[1]{0}', space=sflag, size = 0x4, scoped, tag = 'scoped memory for tpu_custom_call.1']
    #allocation40 [shape = 'u8[16384]{0}', space=vmem, size = 0x4000, scoped, tag = 'input window, operand 32, single buffered']
    #allocation41 [shape = 'u8[512]{0}', space=vmem, size = 0x400, scoped, tag = 'input window, operand 33, single buffered']
    #allocation42 [shape = 's32[1]{0}', space=sflag, size = 0x4, scoped, tag = 'scoped memory for tpu_custom_call.1']
    #allocation43 [shape = 'u8[512]{0}', space=vmem, size = 0x400, scoped, tag = 'input window, operand 34, single buffered']
    #allocation44 [shape = 'u8[8192]{0}', space=vmem, size = 0x2000, scoped, tag = 'output window, operand 0, single buffered']
    %90 = vsyncpa [#allocation3], 0
    %91 = vsyncpa [#allocation6], 0
    %92 = vsyncpa [#allocation9], 0
    %93 = vsyncpa [#allocation12], 0
    %94 = vsyncpa [#allocation15], 0
    %95 = vsyncpa [#allocation18], 0
    %96 = vsyncpa [#allocation21], 0
    %97 = vsyncpa [#allocation24], 0
    %98 = vsyncpa [#allocation27], 0
    %99 = vsyncpa [#allocation30], 0
    %100 = vsyncpa [#allocation33], 0
    %101 = vsyncpa [#allocation36], 0
    %102 = vsyncpa [#allocation39], 0
    %103 = vsyncpa [#allocation42], 0
    %104 = vsyncpa [#allocation4], 0
    // Predicated region
    $region2: #{tpu_custom_call.1} parent=1 // pred_check
      _
    $region3: #{tpu_custom_call.1} parent=1 // pred_check_branch
      %106 = sbr.rel (0) target = $region5
    $region4: #{tpu_custom_call.1} parent=1 // pred_region
      %s108 = ssub.s32 256, 256
      %109 = vsyncadd [#allocation3], %s108
      %s110 = sshll.u32 [#allocation2], 4
      %s111 = int_to_ptr.vmem [resolvable:$true] %s110
      %116 = dma.hbm_to_vmem [thread:$0]  %s1, 256, %s111, [#allocation3], 128, 128, 8
    $region5: #{tpu_custom_call.1} parent=1 // pred_fallthru
      _
    // Predicated region
    $region6: #{tpu_custom_call.1} parent=1 // pred_check
      _
    $region7: #{tpu_custom_call.1} parent=1 // pred_check_branch
      %118 = sbr.rel (0) target = $region9
    $region8: #{tpu_custom_call.1} parent=1 // pred_region
      %s120 = ssub.s32 256, 256
      %121 = vsyncadd [#allocation6], %s120
      %s122 = sshll.u32 [#allocation5], 4
      %s123 = int_to_ptr.vmem [resolvable:$true] %s122
      %128 = dma.hbm_to_vmem [thread:$0]  %s3, 256, %s123, [#allocation6], 128, 128, 8
    $region9: #{tpu_custom_call.1} parent=1 // pred_fallthru
      _
    // Predicated region
    $region10: #{tpu_custom_call.1} parent=1 // pred_check
      _
    $region11: #{tpu_custom_call.1} parent=1 // pred_check_branch
      %130 = sbr.rel (0) target = $region13
    $region12: #{tpu_custom_call.1} parent=1 // pred_region
      _
    $region13: #{tpu_custom_call.1} parent=1 // pred_fallthru
      _
    // Predicated region
    $region14: #{tpu_custom_call.1} parent=1 // pred_check
      _
    $region15: #{tpu_custom_call.1} parent=1 // pred_check_branch
      %132 = sbr.rel (0) target = $region17
    $region16: #{tpu_custom_call.1} parent=1 // pred_region
      %s134 = ssub.s32 16, 16
      %135 = vsyncadd [#allocation6], %s134
      %s137 = sshll.u32 [#allocation7], 4
      %s138 = int_to_ptr.vmem [resolvable:$true] %s137
      %140 = dma.hbm_to_vmem [thread:$0]  %s7, 16, %s138, [#allocation6]
    $region17: #{tpu_custom_call.1} parent=1 // pred_fallthru
      _
    // Predicated region
    $region18: #{tpu_custom_call.1} parent=1 // pred_check
      _
    $region19: #{tpu_custom_call.1} parent=1 // pred_check_branch
      %142 = sbr.rel (0) target = $region21
    $region20: #{tpu_custom_call.1} parent=1 // pred_region
      _
    $region21: #{tpu_custom_call.1} parent=1 // pred_fallthru
      _
    // Predicated region
    $region22: #{tpu_custom_call.1} parent=1 // pred_check
      _
    $region23: #{tpu_custom_call.1} parent=1 // pred_check_branch
      %144 = sbr.rel (0) target = $region25
    $region24: #{tpu_custom_call.1} parent=1 // pred_region
      %s146 = ssub.s32 16, 16
      %147 = vsyncadd [#allocation9], %s146
      %s149 = sshll.u32 [#allocation8], 4
      %s150 = int_to_ptr.vmem [resolvable:$true] %s149
      %152 = dma.hbm_to_vmem [thread:$0]  %s11, 16, %s150, [#allocation9]
    $region25: #{tpu_custom_call.1} parent=1 // pred_fallthru
      _
    // Predicated region
    $region26: #{tpu_custom_call.1} parent=1 // pred_check
      _
    $region27: #{tpu_custom_call.1} parent=1 // pred_check_branch
      %154 = sbr.rel (0) target = $region29
    $region28: #{tpu_custom_call.1} parent=1 // pred_region
      %s156 = ssub.s32 16, 16
      %157 = vsyncadd [#allocation9], %s156
      %s159 = sshll.u32 [#allocation10], 4
      %s160 = int_to_ptr.vmem [resolvable:$true] %s159
      %162 = dma.hbm_to_vmem [thread:$0]  %s13, 16, %s160, [#allocation9]
    $region29: #{tpu_custom_call.1} parent=1 // pred_fallthru
      _
    // Predicated region
    $region30: #{tpu_custom_call.1} parent=1 // pred_check
      _
    $region31: #{tpu_custom_call.1} parent=1 // pred_check_branch
      %164 = sbr.rel (0) target = $region33
    $region32: #{tpu_custom_call.1} parent=1 // pred_region
      %s166 = ssub.s32 16, 16
      %167 = vsyncadd [#allocation12], %s166
      %s169 = sshll.u32 [#allocation11], 4
      %s170 = int_to_ptr.vmem [resolvable:$true] %s169
      %172 = dma.hbm_to_vmem [thread:$0]  %s15, 16, %s170, [#allocation12]
    $region33: #{tpu_custom_call.1} parent=1 // pred_fallthru
      _
    // Predicated region
    $region34: #{tpu_custom_call.1} parent=1 // pred_check
      _
    $region35: #{tpu_custom_call.1} parent=1 // pred_check_branch
      %174 = sbr.rel (0) target = $region37
    $region36: #{tpu_custom_call.1} parent=1 // pred_region
      _
    $region37: #{tpu_custom_call.1} parent=1 // pred_fallthru
      _
    // Predicated region
    $region38: #{tpu_custom_call.1} parent=1 // pred_check
      _
    $region39: #{tpu_custom_call.1} parent=1 // pred_check_branch
      %176 = sbr.rel (0) target = $region41
    $region40: #{tpu_custom_call.1} parent=1 // pred_region
      %s178 = ssub.s32 16, 16
      %179 = vsyncadd [#allocation12], %s178
      %s181 = sshll.u32 [#allocation13], 4
      %s182 = int_to_ptr.vmem [resolvable:$true] %s181
      %184 = dma.hbm_to_vmem [thread:$0]  %s19, 16, %s182, [#allocation12]
    $region41: #{tpu_custom_call.1} parent=1 // pred_fallthru
      _
    // Predicated region
    $region42: #{tpu_custom_call.1} parent=1 // pred_check
      _
    $region43: #{tpu_custom_call.1} parent=1 // pred_check_branch
      %186 = sbr.rel (0) target = $region45
    $region44: #{tpu_custom_call.1} parent=1 // pred_region
      _
    $region45: #{tpu_custom_call.1} parent=1 // pred_fallthru
      _
    // Predicated region
    $region46: #{tpu_custom_call.1} parent=1 // pred_check
      _
    $region47: #{tpu_custom_call.1} parent=1 // pred_check_branch
      %188 = sbr.rel (0) target = $region49
    $region48: #{tpu_custom_call.1} parent=1 // pred_region
      %s190 = ssub.s32 16, 16
      %191 = vsyncadd [#allocation15], %s190
      %s193 = sshll.u32 [#allocation14], 4
      %s194 = int_to_ptr.vmem [resolvable:$true] %s193
      %196 = dma.hbm_to_vmem [thread:$0]  %s23, 16, %s194, [#allocation15]
    $region49: #{tpu_custom_call.1} parent=1 // pred_fallthru
      _
    // Predicated region
    $region50: #{tpu_custom_call.1} parent=1 // pred_check
      _
    $region51: #{tpu_custom_call.1} parent=1 // pred_check_branch
      %198 = sbr.rel (0) target = $region53
    $region52: #{tpu_custom_call.1} parent=1 // pred_region
      _
    $region53: #{tpu_custom_call.1} parent=1 // pred_fallthru
      _
    // Predicated region
    $region54: #{tpu_custom_call.1} parent=1 // pred_check
      _
    $region55: #{tpu_custom_call.1} parent=1 // pred_check_branch
      %200 = sbr.rel (0) target = $region57
    $region56: #{tpu_custom_call.1} parent=1 // pred_region
      %s202 = ssub.s32 16, 16
      %203 = vsyncadd [#allocation15], %s202
      %s205 = sshll.u32 [#allocation16], 4
      %s206 = int_to_ptr.vmem [resolvable:$true] %s205
      %208 = dma.hbm_to_vmem [thread:$0]  %s27, 16, %s206, [#allocation15]
    $region57: #{tpu_custom_call.1} parent=1 // pred_fallthru
      _
    // Predicated region
    $region58: #{tpu_custom_call.1} parent=1 // pred_check
      _
    $region59: #{tpu_custom_call.1} parent=1 // pred_check_branch
      %210 = sbr.rel (0) target = $region61
    $region60: #{tpu_custom_call.1} parent=1 // pred_region
      %s212 = ssub.s32 16, 16
      %213 = vsyncadd [#allocation18], %s212
      %s215 = sshll.u32 [#allocation17], 4
      %s216 = int_to_ptr.vmem [resolvable:$true] %s215
      %218 = dma.hbm_to_vmem [thread:$0]  %s29, 16, %s216, [#allocation18]
    $region61: #{tpu_custom_call.1} parent=1 // pred_fallthru
      _
    // Predicated region
    $region62: #{tpu_custom_call.1} parent=1 // pred_check
      _
    $region63: #{tpu_custom_call.1} parent=1 // pred_check_branch
      %220 = sbr.rel (0) target = $region65
    $region64: #{tpu_custom_call.1} parent=1 // pred_region
      %s222 = ssub.s32 16, 16
      %223 = vsyncadd [#allocation18], %s222
      %s225 = sshll.u32 [#allocation19], 4
      %s226 = int_to_ptr.vmem [resolvable:$true] %s225
      %228 = dma.hbm_to_vmem [thread:$0]  %s31, 16, %s226, [#allocation18]
    $region65: #{tpu_custom_call.1} parent=1 // pred_fallthru
      _
    // Predicated region
    $region66: #{tpu_custom_call.1} parent=1 // pred_check
      _
    $region67: #{tpu_custom_call.1} parent=1 // pred_check_branch
      %230 = sbr.rel (0) target = $region69
    $region68: #{tpu_custom_call.1} parent=1 // pred_region
      _
    $region69: #{tpu_custom_call.1} parent=1 // pred_fallthru
      _
    // Predicated region
    $region70: #{tpu_custom_call.1} parent=1 // pred_check
      _
    $region71: #{tpu_custom_call.1} parent=1 // pred_check_branch
      %232 = sbr.rel (0) target = $region73
    $region72: #{tpu_custom_call.1} parent=1 // pred_region
      %s234 = ssub.s32 16, 16
      %235 = vsyncadd [#allocation21], %s234
      %s237 = sshll.u32 [#allocation20], 4
      %s238 = int_to_ptr.vmem [resolvable:$true] %s237
      %240 = dma.hbm_to_vmem [thread:$0]  %s35, 16, %s238, [#allocation21]
    $region73: #{tpu_custom_call.1} parent=1 // pred_fallthru
      _
    // Predicated region
    $region74: #{tpu_custom_call.1} parent=1 // pred_check
      _
    $region75: #{tpu_custom_call.1} parent=1 // pred_check_branch
      %242 = sbr.rel (0) target = $region77
    $region76: #{tpu_custom_call.1} parent=1 // pred_region
      _
    $region77: #{tpu_custom_call.1} parent=1 // pred_fallthru
      _
    // Predicated region
    $region78: #{tpu_custom_call.1} parent=1 // pred_check
      _
    $region79: #{tpu_custom_call.1} parent=1 // pred_check_branch
      %244 = sbr.rel (0) target = $region81
    $region80: #{tpu_custom_call.1} parent=1 // pred_region
      %s246 = ssub.s32 16, 16
      %247 = vsyncadd [#allocation21], %s246
      %s249 = sshll.u32 [#allocation22], 4
      %s250 = int_to_ptr.vmem [resolvable:$true] %s249
      %252 = dma.hbm_to_vmem [thread:$0]  %s39, 16, %s250, [#allocation21]
    $region81: #{tpu_custom_call.1} parent=1 // pred_fallthru
      _
    // Predicated region
    $region82: #{tpu_custom_call.1} parent=1 // pred_check
      _
    $region83: #{tpu_custom_call.1} parent=1 // pred_check_branch
      %254 = sbr.rel (0) target = $region85
    $region84: #{tpu_custom_call.1} parent=1 // pred_region
      %s256 = ssub.s32 16, 16
      %257 = vsyncadd [#allocation24], %s256
      %s259 = sshll.u32 [#allocation23], 4
      %s260 = int_to_ptr.vmem [resolvable:$true] %s259
      %262 = dma.hbm_to_vmem [thread:$0]  %s41, 16, %s260, [#allocation24]
    $region85: #{tpu_custom_call.1} parent=1 // pred_fallthru
      _
    // Predicated region
    $region86: #{tpu_custom_call.1} parent=1 // pred_check
      _
    $region87: #{tpu_custom_call.1} parent=1 // pred_check_branch
      %264 = sbr.rel (0) target = $region89
    $region88: #{tpu_custom_call.1} parent=1 // pred_region
      %s266 = ssub.s32 16, 16
      %267 = vsyncadd [#allocation24], %s266
      %s269 = sshll.u32 [#allocation25], 4
      %s270 = int_to_ptr.vmem [resolvable:$true] %s269
      %272 = dma.hbm_to_vmem [thread:$0]  %s43, 16, %s270, [#allocation24]
    $region89: #{tpu_custom_call.1} parent=1 // pred_fallthru
      _
    // Predicated region
    $region90: #{tpu_custom_call.1} parent=1 // pred_check
      _
    $region91: #{tpu_custom_call.1} parent=1 // pred_check_branch
      %274 = sbr.rel (0) target = $region93
    $region92: #{tpu_custom_call.1} parent=1 // pred_region
      %s276 = ssub.s32 512, 512
      %277 = vsyncadd [#allocation27], %s276
      %s278 = sshll.u32 [#allocation26], 4
      %s279 = int_to_ptr.vmem [resolvable:$true] %s278
      %284 = dma.hbm_to_vmem [thread:$0]  %s45, 512, %s279, [#allocation27], 128, 128, 8
    $region93: #{tpu_custom_call.1} parent=1 // pred_fallthru
      _
    // Predicated region
    $region94: #{tpu_custom_call.1} parent=1 // pred_check
      _
    $region95: #{tpu_custom_call.1} parent=1 // pred_check_branch
      %286 = sbr.rel (0) target = $region97
    $region96: #{tpu_custom_call.1} parent=1 // pred_region
      %s288 = ssub.s32 16, 16
      %289 = vsyncadd [#allocation27], %s288
      %s291 = sshll.u32 [#allocation28], 4
      %s292 = int_to_ptr.vmem [resolvable:$true] %s291
      %294 = dma.hbm_to_vmem [thread:$0]  %s47, 16, %s292, [#allocation27]
    $region97: #{tpu_custom_call.1} parent=1 // pred_fallthru
      _
    // Predicated region
    $region98: #{tpu_custom_call.1} parent=1 // pred_check
      _
    $region99: #{tpu_custom_call.1} parent=1 // pred_check_branch
      %296 = sbr.rel (0) target = $region101
    $region100: #{tpu_custom_call.1} parent=1 // pred_region
      %s298 = ssub.s32 512, 512
      %299 = vsyncadd [#allocation30], %s298
      %s300 = sshll.u32 [#allocation29], 4
      %s301 = int_to_ptr.vmem [resolvable:$true] %s300
      %306 = dma.hbm_to_vmem [thread:$0]  %s49, 512, %s301, [#allocation30], 128, 128, 8
    $region101: #{tpu_custom_call.1} parent=1 // pred_fallthru
      _
    // Predicated region
    $region102: #{tpu_custom_call.1} parent=1 // pred_check
      _
    $region103: #{tpu_custom_call.1} parent=1 // pred_check_branch
      %308 = sbr.rel (0) target = $region105
    $region104: #{tpu_custom_call.1} parent=1 // pred_region
      %s310 = ssub.s32 16, 16
      %311 = vsyncadd [#allocation30], %s310
      %s313 = sshll.u32 [#allocation31], 4
      %s314 = int_to_ptr.vmem [resolvable:$true] %s313
      %316 = dma.hbm_to_vmem [thread:$0]  %s51, 16, %s314, [#allocation30]
    $region105: #{tpu_custom_call.1} parent=1 // pred_fallthru
      _
    // Predicated region
    $region106: #{tpu_custom_call.1} parent=1 // pred_check
      _
    $region107: #{tpu_custom_call.1} parent=1 // pred_check_branch
      %318 = sbr.rel (0) target = $region109
    $region108: #{tpu_custom_call.1} parent=1 // pred_region
      %s320 = ssub.s32 16, 16
      %321 = vsyncadd [#allocation33], %s320
      %s323 = sshll.u32 [#allocation32], 4
      %s324 = int_to_ptr.vmem [resolvable:$true] %s323
      %326 = dma.hbm_to_vmem [thread:$0]  %s53, 16, %s324, [#allocation33]
    $region109: #{tpu_custom_call.1} parent=1 // pred_fallthru
      _
    // Predicated region
    $region110: #{tpu_custom_call.1} parent=1 // pred_check
      _
    $region111: #{tpu_custom_call.1} parent=1 // pred_check_branch
      %328 = sbr.rel (0) target = $region113
    $region112: #{tpu_custom_call.1} parent=1 // pred_region
      %s330 = ssub.s32 16, 16
      %331 = vsyncadd [#allocation33], %s330
      %s333 = sshll.u32 [#allocation34], 4
      %s334 = int_to_ptr.vmem [resolvable:$true] %s333
      %336 = dma.hbm_to_vmem [thread:$0]  %s55, 16, %s334, [#allocation33]
    $region113: #{tpu_custom_call.1} parent=1 // pred_fallthru
      _
    // Predicated region
    $region114: #{tpu_custom_call.1} parent=1 // pred_check
      _
    $region115: #{tpu_custom_call.1} parent=1 // pred_check_branch
      %338 = sbr.rel (0) target = $region117
    $region116: #{tpu_custom_call.1} parent=1 // pred_region
      _
    $region117: #{tpu_custom_call.1} parent=1 // pred_fallthru
      _
    // Predicated region
    $region118: #{tpu_custom_call.1} parent=1 // pred_check
      _
    $region119: #{tpu_custom_call.1} parent=1 // pred_check_branch
      %340 = sbr.rel (0) target = $region121
    $region120: #{tpu_custom_call.1} parent=1 // pred_region
      %s342 = ssub.s32 16, 16
      %343 = vsyncadd [#allocation36], %s342
      %s345 = sshll.u32 [#allocation35], 4
      %s346 = int_to_ptr.vmem [resolvable:$true] %s345
      %348 = dma.hbm_to_vmem [thread:$0]  %s59, 16, %s346, [#allocation36]
    $region121: #{tpu_custom_call.1} parent=1 // pred_fallthru
      _
    // Predicated region
    $region122: #{tpu_custom_call.1} parent=1 // pred_check
      _
    $region123: #{tpu_custom_call.1} parent=1 // pred_check_branch
      %350 = sbr.rel (0) target = $region125
    $region124: #{tpu_custom_call.1} parent=1 // pred_region
      %s352 = ssub.s32 512, 512
      %353 = vsyncadd [#allocation36], %s352
      %s354 = sshll.u32 [#allocation37], 4
      %s355 = int_to_ptr.vmem [resolvable:$true] %s354
      %360 = dma.hbm_to_vmem [thread:$0]  %s61, 512, %s355, [#allocation36], 128, 128, 8
    $region125: #{tpu_custom_call.1} parent=1 // pred_fallthru
      _
    // Predicated region
    $region126: #{tpu_custom_call.1} parent=1 // pred_check
      _
    $region127: #{tpu_custom_call.1} parent=1 // pred_check_branch
      %362 = sbr.rel (0) target = $region129
    $region128: #{tpu_custom_call.1} parent=1 // pred_region
      %s364 = ssub.s32 16, 16
      %365 = vsyncadd [#allocation39], %s364
      %s367 = sshll.u32 [#allocation38], 4
      %s368 = int_to_ptr.vmem [resolvable:$true] %s367
      %370 = dma.hbm_to_vmem [thread:$0]  %s63, 16, %s368, [#allocation39]
    $region129: #{tpu_custom_call.1} parent=1 // pred_fallthru
      _
    // Predicated region
    $region130: #{tpu_custom_call.1} parent=1 // pred_check
      _
    $region131: #{tpu_custom_call.1} parent=1 // pred_check_branch
      %372 = sbr.rel (0) target = $region133
    $region132: #{tpu_custom_call.1} parent=1 // pred_region
      %s374 = ssub.s32 512, 512
      %375 = vsyncadd [#allocation39], %s374
      %s376 = sshll.u32 [#allocation40], 4
      %s377 = int_to_ptr.vmem [resolvable:$true] %s376
      %382 = dma.hbm_to_vmem [thread:$0]  %s65, 512, %s377, [#allocation39], 128, 128, 8
    $region133: #{tpu_custom_call.1} parent=1 // pred_fallthru
      _
    // Predicated region
    $region134: #{tpu_custom_call.1} parent=1 // pred_check
      _
    $region135: #{tpu_custom_call.1} parent=1 // pred_check_branch
      %384 = sbr.rel (0) target = $region137
    $region136: #{tpu_custom_call.1} parent=1 // pred_region
      %s386 = ssub.s32 16, 16
      %387 = vsyncadd [#allocation42], %s386
      %s389 = sshll.u32 [#allocation41], 4
      %s390 = int_to_ptr.vmem [resolvable:$true] %s389
      %392 = dma.hbm_to_vmem [thread:$0]  %s67, 16, %s390, [#allocation42]
    $region137: #{tpu_custom_call.1} parent=1 // pred_fallthru
      _
    // Predicated region
    $region138: #{tpu_custom_call.1} parent=1 // pred_check
      _
    $region139: #{tpu_custom_call.1} parent=1 // pred_check_branch
      %394 = sbr.rel (0) target = $region141
    $region140: #{tpu_custom_call.1} parent=1 // pred_region
      %s396 = ssub.s32 16, 16
      %397 = vsyncadd [#allocation42], %s396
      %s399 = sshll.u32 [#allocation43], 4
      %s400 = int_to_ptr.vmem [resolvable:$true] %s399
      %402 = dma.hbm_to_vmem [thread:$0]  %s69, 16, %s400, [#allocation42]
    $region141: #{tpu_custom_call.1} parent=1 // pred_fallthru
      _
    // Predicated region
    $region142: #{tpu_custom_call.1} parent=1 // pred_check
      _
    $region143: #{tpu_custom_call.1} parent=1 // pred_check_branch
      %404 = sbr.rel (0) target = $region145
    $region144: #{tpu_custom_call.1} parent=1 // pred_region
      _
    $region145: #{tpu_custom_call.1} parent=1 // pred_fallthru
      _
    // Predicated region
    $region146: #{tpu_custom_call.1} parent=1 // pred_check
      _
    $region147: #{tpu_custom_call.1} parent=1 // pred_check_branch
      %406 = sbr.rel (0) target = $region149
    $region148: #{tpu_custom_call.1} parent=1 // pred_region
      _
    $region149: #{tpu_custom_call.1} parent=1 // pred_fallthru
      _
    // Predicated region
    $region150: #{tpu_custom_call.1} parent=1 // pred_check
      _
    $region151: #{tpu_custom_call.1} parent=1 // pred_check_branch
      %408 = sbr.rel (0) target = $region153
    $region152: #{tpu_custom_call.1} parent=1 // pred_region
      _
    $region153: #{tpu_custom_call.1} parent=1 // pred_fallthru
      _
    // Predicated region
    $region154: #{tpu_custom_call.1} parent=1 // pred_check
      _
    $region155: #{tpu_custom_call.1} parent=1 // pred_check_branch
      %410 = sbr.rel (0) target = $region157
    $region156: #{tpu_custom_call.1} parent=1 // pred_region
      _
    $region157: #{tpu_custom_call.1} parent=1 // pred_fallthru
      _
    // Predicated region
    $region158: #{tpu_custom_call.1} parent=1 // pred_check
      _
    $region159: #{tpu_custom_call.1} parent=1 // pred_check_branch
      %412 = sbr.rel (0) target = $region161
    $region160: #{tpu_custom_call.1} parent=1 // pred_region
      _
    $region161: #{tpu_custom_call.1} parent=1 // pred_fallthru
      _
    // Predicated region
    $region162: #{tpu_custom_call.1} parent=1 // pred_check
      _
    $region163: #{tpu_custom_call.1} parent=1 // pred_check_branch
      %414 = sbr.rel (0) target = $region165
    $region164: #{tpu_custom_call.1} parent=1 // pred_region
      _
    $region165: #{tpu_custom_call.1} parent=1 // pred_fallthru
      _
    // Predicated region
    $region166: #{tpu_custom_call.1} parent=1 // pred_check
      _
    $region167: #{tpu_custom_call.1} parent=1 // pred_check_branch
      %416 = sbr.rel (0) target = $region169
    $region168: #{tpu_custom_call.1} parent=1 // pred_region
      _
    $region169: #{tpu_custom_call.1} parent=1 // pred_fallthru
      _
    // Predicated region
    $region170: #{tpu_custom_call.1} parent=1 // pred_check
      _
    $region171: #{tpu_custom_call.1} parent=1 // pred_check_branch
      %418 = sbr.rel (0) target = $region173
    $region172: #{tpu_custom_call.1} parent=1 // pred_region
      %419 = dma.done [#allocation3], 256
    $region173: #{tpu_custom_call.1} parent=1 // pred_fallthru
      _
    // Predicated region
    $region174: #{tpu_custom_call.1} parent=1 // pred_check
      _
    $region175: #{tpu_custom_call.1} parent=1 // pred_check_branch
      %421 = sbr.rel (0) target = $region177
    $region176: #{tpu_custom_call.1} parent=1 // pred_region
      %422 = dma.done [#allocation6], 256
    $region177: #{tpu_custom_call.1} parent=1 // pred_fallthru
      _
    // Predicated region
    $region178: #{tpu_custom_call.1} parent=1 // pred_check
      _
    $region179: #{tpu_custom_call.1} parent=1 // pred_check_branch
      %424 = sbr.rel (0) target = $region181
    $region180: #{tpu_custom_call.1} parent=1 // pred_region
      %425 = dma.done [#allocation6], 16
    $region181: #{tpu_custom_call.1} parent=1 // pred_fallthru
      _
    // Predicated region
    $region182: #{tpu_custom_call.1} parent=1 // pred_check
      _
    $region183: #{tpu_custom_call.1} parent=1 // pred_check_branch
      %427 = sbr.rel (0) target = $region185
    $region184: #{tpu_custom_call.1} parent=1 // pred_region
      %428 = dma.done [#allocation9], 16
    $region185: #{tpu_custom_call.1} parent=1 // pred_fallthru
      _
    // Predicated region
    $region186: #{tpu_custom_call.1} parent=1 // pred_check
      _
    $region187: #{tpu_custom_call.1} parent=1 // pred_check_branch
      %430 = sbr.rel (0) target = $region189
    $region188: #{tpu_custom_call.1} parent=1 // pred_region
      %431 = dma.done [#allocation9], 16
    $region189: #{tpu_custom_call.1} parent=1 // pred_fallthru
      _
    // Predicated region
    $region190: #{tpu_custom_call.1} parent=1 // pred_check
      _
    $region191: #{tpu_custom_call.1} parent=1 // pred_check_branch
      %433 = sbr.rel (0) target = $region193
    $region192: #{tpu_custom_call.1} parent=1 // pred_region
      %434 = dma.done [#allocation12], 16
    $region193: #{tpu_custom_call.1} parent=1 // pred_fallthru
      _
    // Predicated region
    $region194: #{tpu_custom_call.1} parent=1 // pred_check
      _
    $region195: #{tpu_custom_call.1} parent=1 // pred_check_branch
      %436 = sbr.rel (0) target = $region197
    $region196: #{tpu_custom_call.1} parent=1 // pred_region
      %437 = dma.done [#allocation12], 16
    $region197: #{tpu_custom_call.1} parent=1 // pred_fallthru
      _
    // Predicated region
    $region198: #{tpu_custom_call.1} parent=1 // pred_check
      _
    $region199: #{tpu_custom_call.1} parent=1 // pred_check_branch
      %439 = sbr.rel (0) target = $region201
    $region200: #{tpu_custom_call.1} parent=1 // pred_region
      %440 = dma.done [#allocation15], 16
    $region201: #{tpu_custom_call.1} parent=1 // pred_fallthru
      _
    // Predicated region
    $region202: #{tpu_custom_call.1} parent=1 // pred_check
      _
    $region203: #{tpu_custom_call.1} parent=1 // pred_check_branch
      %442 = sbr.rel (0) target = $region205
    $region204: #{tpu_custom_call.1} parent=1 // pred_region
      %443 = dma.done [#allocation15], 16
    $region205: #{tpu_custom_call.1} parent=1 // pred_fallthru
      _
    // Predicated region
    $region206: #{tpu_custom_call.1} parent=1 // pred_check
      _
    $region207: #{tpu_custom_call.1} parent=1 // pred_check_branch
      %445 = sbr.rel (0) target = $region209
    $region208: #{tpu_custom_call.1} parent=1 // pred_region
      %446 = dma.done [#allocation18], 16
    $region209: #{tpu_custom_call.1} parent=1 // pred_fallthru
      _
    // Predicated region
    $region210: #{tpu_custom_call.1} parent=1 // pred_check
      _
    $region211: #{tpu_custom_call.1} parent=1 // pred_check_branch
      %448 = sbr.rel (0) target = $region213
    $region212: #{tpu_custom_call.1} parent=1 // pred_region
      %449 = dma.done [#allocation18], 16
    $region213: #{tpu_custom_call.1} parent=1 // pred_fallthru
      _
    // Predicated region
    $region214: #{tpu_custom_call.1} parent=1 // pred_check
      _
    $region215: #{tpu_custom_call.1} parent=1 // pred_check_branch
      %451 = sbr.rel (0) target = $region217
    $region216: #{tpu_custom_call.1} parent=1 // pred_region
      %452 = dma.done [#allocation21], 16
    $region217: #{tpu_custom_call.1} parent=1 // pred_fallthru
      _
    // Predicated region
    $region218: #{tpu_custom_call.1} parent=1 // pred_check
      _
    $region219: #{tpu_custom_call.1} parent=1 // pred_check_branch
      %454 = sbr.rel (0) target = $region221
    $region220: #{tpu_custom_call.1} parent=1 // pred_region
      %455 = dma.done [#allocation21], 16
    $region221: #{tpu_custom_call.1} parent=1 // pred_fallthru
      _
    // Predicated region
    $region222: #{tpu_custom_call.1} parent=1 // pred_check
      _
    $region223: #{tpu_custom_call.1} parent=1 // pred_check_branch
      %457 = sbr.rel (0) target = $region225
    $region224: #{tpu_custom_call.1} parent=1 // pred_region
      %458 = dma.done [#allocation24], 16
    $region225: #{tpu_custom_call.1} parent=1 // pred_fallthru
      _
    // Predicated region
    $region226: #{tpu_custom_call.1} parent=1 // pred_check
      _
    $region227: #{tpu_custom_call.1} parent=1 // pred_check_branch
      %460 = sbr.rel (0) target = $region229
    $region228: #{tpu_custom_call.1} parent=1 // pred_region
      %461 = dma.done [#allocation24], 16
    $region229: #{tpu_custom_call.1} parent=1 // pred_fallthru
      _
    // Predicated region
    $region230: #{tpu_custom_call.1} parent=1 // pred_check
      _
    $region231: #{tpu_custom_call.1} parent=1 // pred_check_branch
      %463 = sbr.rel (0) target = $region233
    $region232: #{tpu_custom_call.1} parent=1 // pred_region
      %464 = dma.done [#allocation27], 512
    $region233: #{tpu_custom_call.1} parent=1 // pred_fallthru
      _
    // Predicated region
    $region234: #{tpu_custom_call.1} parent=1 // pred_check
      _
    $region235: #{tpu_custom_call.1} parent=1 // pred_check_branch
      %466 = sbr.rel (0) target = $region237
    $region236: #{tpu_custom_call.1} parent=1 // pred_region
      %467 = dma.done [#allocation27], 16
    $region237: #{tpu_custom_call.1} parent=1 // pred_fallthru
      _
    // Predicated region
    $region238: #{tpu_custom_call.1} parent=1 // pred_check
      _
    $region239: #{tpu_custom_call.1} parent=1 // pred_check_branch
      %469 = sbr.rel (0) target = $region241
    $region240: #{tpu_custom_call.1} parent=1 // pred_region
      %470 = dma.done [#allocation30], 512
    $region241: #{tpu_custom_call.1} parent=1 // pred_fallthru
      _
    // Predicated region
    $region242: #{tpu_custom_call.1} parent=1 // pred_check
      _
    $region243: #{tpu_custom_call.1} parent=1 // pred_check_branch
      %472 = sbr.rel (0) target = $region245
    $region244: #{tpu_custom_call.1} parent=1 // pred_region
      %473 = dma.done [#allocation30], 16
    $region245: #{tpu_custom_call.1} parent=1 // pred_fallthru
      _
    // Predicated region
    $region246: #{tpu_custom_call.1} parent=1 // pred_check
      _
    $region247: #{tpu_custom_call.1} parent=1 // pred_check_branch
      %475 = sbr.rel (0) target = $region249
    $region248: #{tpu_custom_call.1} parent=1 // pred_region
      %476 = dma.done [#allocation33], 16
    $region249: #{tpu_custom_call.1} parent=1 // pred_fallthru
      _
    // Predicated region
    $region250: #{tpu_custom_call.1} parent=1 // pred_check
      _
    $region251: #{tpu_custom_call.1} parent=1 // pred_check_branch
      %478 = sbr.rel (0) target = $region253
    $region252: #{tpu_custom_call.1} parent=1 // pred_region
      %479 = dma.done [#allocation33], 16
    $region253: #{tpu_custom_call.1} parent=1 // pred_fallthru
      _
    // Predicated region
    $region254: #{tpu_custom_call.1} parent=1 // pred_check
      _
    $region255: #{tpu_custom_call.1} parent=1 // pred_check_branch
      %481 = sbr.rel (0) target = $region257
    $region256: #{tpu_custom_call.1} parent=1 // pred_region
      %482 = dma.done [#allocation36], 16
    $region257: #{tpu_custom_call.1} parent=1 // pred_fallthru
      _
    // Predicated region
    $region258: #{tpu_custom_call.1} parent=1 // pred_check
      _
    $region259: #{tpu_custom_call.1} parent=1 // pred_check_branch
      %484 = sbr.rel (0) target = $region261
    $region260: #{tpu_custom_call.1} parent=1 // pred_region
      %485 = dma.done [#allocation36], 512
    $region261: #{tpu_custom_call.1} parent=1 // pred_fallthru
      _
    // Predicated region
    $region262: #{tpu_custom_call.1} parent=1 // pred_check
      _
    $region263: #{tpu_custom_call.1} parent=1 // pred_check_branch
      %487 = sbr.rel (0) target = $region265
    $region264: #{tpu_custom_call.1} parent=1 // pred_region
      %488 = dma.done [#allocation39], 16
    $region265: #{tpu_custom_call.1} parent=1 // pred_fallthru
      _
    // Predicated region
    $region266: #{tpu_custom_call.1} parent=1 // pred_check
      _
    $region267: #{tpu_custom_call.1} parent=1 // pred_check_branch
      %490 = sbr.rel (0) target = $region269
    $region268: #{tpu_custom_call.1} parent=1 // pred_region
      %491 = dma.done [#allocation39], 512
    $region269: #{tpu_custom_call.1} parent=1 // pred_fallthru
      _
    // Predicated region
    $region270: #{tpu_custom_call.1} parent=1 // pred_check
      _
    $region271: #{tpu_custom_call.1} parent=1 // pred_check_branch
      %493 = sbr.rel (0) target = $region273
    $region272: #{tpu_custom_call.1} parent=1 // pred_region
      %494 = dma.done [#allocation42], 16
    $region273: #{tpu_custom_call.1} parent=1 // pred_fallthru
      _
    // Predicated region
    $region274: #{tpu_custom_call.1} parent=1 // pred_check
      _
    $region275: #{tpu_custom_call.1} parent=1 // pred_check_branch
      %496 = sbr.rel (0) target = $region277
    $region276: #{tpu_custom_call.1} parent=1 // pred_region
      %497 = dma.done [#allocation42], 16
    $region277: #{tpu_custom_call.1} parent=1 // pred_fallthru
      _
    %v498 = vld [vmem:[#allocation2] sm:$0xff]
    %v499 = vld [vmem:[#allocation2 + $0x8] sm:$0xff]
    %v500 = vld [vmem:[#allocation5] sm:$0xff]
    %v501 = vld [vmem:[#allocation5 + $0x8] sm:$0xff]
    %v502 = vlaneseq
    %v503 = vshrl.u32 %v502, 7
    %v504 = vlaneseq
    %v505 = vand.u32 %v504, 127
    %vm506 = vcmp.gt.s32.totalorder %v505, %v503
    %v507 = vld [vmem:[%s5] sm:$0xff]
    %v508 = vld [vmem:[%s5 + $0x8] sm:$0xff]
    %v509 = vld [vmem:[%s5 + $0x10] sm:$0xff]
    %v510 = vld [vmem:[%s5 + $0x18] sm:$0xff]
    %v511 = vld [vmem:[#allocation7] sm:$0x1]
    %v512 = vld [vmem:[%s9] sm:$0xff]
    %v513 = vld [vmem:[%s9 + $0x8] sm:$0xff]
    %v514 = vld [vmem:[%s9 + $0x10] sm:$0xff]
    %v515 = vld [vmem:[%s9 + $0x18] sm:$0xff]
    %v516 = vld [vmem:[#allocation8] sm:$0x1]
    %v517 = vld [vmem:[#allocation10] sm:$0x1]
    %v518 = vld [vmem:[#allocation11] sm:$0x1]
    %v519 = vld [vmem:[%s17] sm:$0xff]
    %v520 = vld [vmem:[%s17 + $0x8] sm:$0xff]
    %v521 = vld [vmem:[%s17 + $0x10] sm:$0xff]
    %v522 = vld [vmem:[%s17 + $0x18] sm:$0xff]
    %v523 = vld [vmem:[#allocation13] sm:$0x1]
    %v524 = vld [vmem:[%s21] sm:$0xff]
    %v525 = vld [vmem:[%s21 + $0x8] sm:$0xff]
    %v526 = vld [vmem:[%s21 + $0x10] sm:$0xff]
    %v527 = vld [vmem:[%s21 + $0x18] sm:$0xff]
    %v528 = vld [vmem:[#allocation14] sm:$0x1]
    %v529 = vld [vmem:[%s25] sm:$0xff]
    %v530 = vld [vmem:[%s25 + $0x8] sm:$0xff]
    %v531 = vld [vmem:[%s25 + $0x10] sm:$0xff]
    %v532 = vld [vmem:[%s25 + $0x18] sm:$0xff]
    %v533 = vld [vmem:[#allocation16] sm:$0x1]
    %v534 = vld [vmem:[#allocation17] sm:$0x1]
    %v535 = vld [vmem:[#allocation19] sm:$0x1]
    %v536 = vld [vmem:[%s33] sm:$0xff]
    %v537 = vld [vmem:[%s33 + $0x8] sm:$0xff]
    %v538 = vld [vmem:[%s33 + $0x10] sm:$0xff]
    %v539 = vld [vmem:[%s33 + $0x18] sm:$0xff]
    %v540 = vld [vmem:[#allocation20] sm:$0x1]
    %v541 = vld [vmem:[%s37] sm:$0xff]
    %v542 = vld [vmem:[%s37 + $0x8] sm:$0xff]
    %v543 = vld [vmem:[%s37 + $0x10] sm:$0xff]
    %v544 = vld [vmem:[%s37 + $0x18] sm:$0xff]
    %v545 = vld [vmem:[%s37 + $0x20] sm:$0xff]
    %v546 = vld [vmem:[%s37 + $0x28] sm:$0xff]
    %v547 = vld [vmem:[%s37 + $0x30] sm:$0xff]
    %v548 = vld [vmem:[%s37 + $0x38] sm:$0xff]
    %v549 = vld [vmem:[#allocation22] sm:$0x1]
    %v550 = vld [vmem:[#allocation23] sm:$0x1]
    %v551 = vld [vmem:[#allocation25] sm:$0x1]
    %v553 = vlaneseq
    %v554 = vshrl.u32 %v553, 7
    %v555 = vsub.s32 0, %v554
    %v556 = vrot.slane %v511, %v555
    %vm558 = vcmask 261120
    %v560 = vsel %vm558, %v498, 0
    %v563 = vsel %vm558, %v499, 0
    %565 = vmatprep.subr.mxu0 0.0
    %566 = vmatpush1.msra.mxu0 %v507
    %567 = vmatprep.subr.mxu0 0.0
    %568 = vmatpush1.msra.mxu0 %v508
    %569 = vmatprep.subr.mxu0 0.0
    %570 = vmatpush1.msra.mxu0 %v509
    %571 = vmatprep.subr.mxu0 0.0
    %572 = vmatpush1.msra.mxu0 %v510
    %573 = vmatprep.subr.mxu0 0.0
    %574 = vmatpush1.msra.mxu0 0.0
    %575 = vmatprep.subr.mxu0 0.0
    %576 = vmatpush1.msra.mxu0 0.0
    %577 = vmatprep.subr.mxu0 0.0
    %578 = vmatpush1.msra.mxu0 0.0
    %579 = vmatprep.subr.mxu0 0.0
    %580 = vmatpush1.msra.mxu0 0.0
    %581 = vmatprep.subr.mxu0 0.0
    %582 = vmatpush1.msra.mxu0 0.0
    %583 = vmatprep.subr.mxu0 0.0
    %584 = vmatpush1.msra.mxu0 0.0
    %585 = vmatprep.subr.mxu0 0.0
    %586 = vmatpush1.msra.mxu0 0.0
    %587 = vmatprep.subr.mxu0 0.0
    %588 = vmatpush1.msra.mxu0 0.0
    %589 = vmatprep.subr.mxu0 0.0
    %590 = vmatpush1.msra.mxu0 0.0
    %591 = vmatprep.subr.mxu0 0.0
    %592 = vmatpush1.msra.mxu0 0.0
    %593 = vmatprep.subr.mxu0 0.0
    %594 = vmatpush1.msra.mxu0 0.0
    %595 = vmatprep.subr.mxu0 0.0
    %596 = vmatpush1.msra.mxu0 0.0
    %597 = vmatprep.subr.mxu0 0.0
    %598 = vmatpush1.msra.mxu0 0.0
    %599 = vmatprep.subr.mxu0 0.0
    %600 = vmatpush1.msra.mxu0 0.0
    %601 = vmatprep.subr.mxu0 0.0
    %602 = vmatpush1.msra.mxu0 0.0
    %603 = vmatprep.subr.mxu0 0.0
    %604 = vmatpush1.msra.mxu0 0.0
    %605 = vmatprep.subr.mxu0 0.0
    %606 = vmatpush1.msra.mxu0 0.0
    %607 = vmatprep.subr.mxu0 0.0
    %608 = vmatpush1.msra.mxu0 0.0
    %609 = vmatprep.subr.mxu0 0.0
    %610 = vmatpush1.msra.mxu0 0.0
    %611 = vmatprep.subr.mxu0 0.0
    %612 = vmatpush1.msra.mxu0 0.0
    %613 = vmatprep.subr.mxu0 0.0
    %614 = vmatpush1.msra.mxu0 0.0
    %615 = vmatprep.subr.mxu0 0.0
    %616 = vmatpush1.msra.mxu0 0.0
    %617 = vmatprep.subr.mxu0 0.0
    %618 = vmatpush1.msra.mxu0 0.0
    %619 = vmatprep.subr.mxu0 0.0
    %620 = vmatpush1.msra.mxu0 0.0
    %621 = vmatprep.subr.mxu0 0.0
    %622 = vmatpush1.msra.mxu0 0.0
    %623 = vmatprep.subr.mxu0 0.0
    %624 = vmatpush1.msra.mxu0 0.0
    %625 = vmatprep.subr.mxu0 0.0
    %626 = vmatpush1.msra.mxu0 0.0
    %627 = vmatprep.subr.mxu0 0.0
    %628 = vmatpush1.msra.mxu0 0.0
    %629 = vmatprep.mubr.f32.mxu0 0.0
    %630 = vmatmul.mubr.f32.gmra.mrb[0].mxu0 %v560
    %v631 = vpop.f32.mrb[0].mxu0
    %v632 = vadd.f32 %v556, %v631
    %v633 = vpop.f32.mrb[0].mxu0
    %634 = vmatprep.mubr.f32.mxu0 0.0
    %635 = vmatmul.mubr.f32.gmra.mrb[0].mxu0 %v563
    %v636 = vpop.f32.mrb[0].mxu0
    %v637 = vadd.f32 %v556, %v636
    %v638 = vpop.f32.mrb[0].mxu0
    %639 = vdwg.mxu0
    %641 = vrot.lane.b32.xlu0 %v632, 96
    %v642 = vpop.permute.xlu0 %641
    %vm643 = vcmask 64512
    %v644 = vsel %vm643, %v632, 0
    %v646 = vsel %vm643, %v642, 0
    %648 = vmatprep.subr.mxu0 0.0
    %649 = vmatpush1.xpose.msra.mxu0 %v646
    %650 = vmatprep.subr.mxu0 0.0
    %651 = vmatpush1.xpose.msra.mxu0 0.0
    %652 = vmatprep.subr.mxu0 0.0
    %653 = vmatpush1.xpose.msra.mxu0 0.0
    %654 = vmatprep.subr.mxu0 0.0
    %655 = vmatpush1.xpose.msra.mxu0 0.0
    %656 = vmatprep.subr.mxu0 0.0
    %657 = vmatpush1.xpose.msra.mxu0 0.0
    %658 = vmatprep.subr.mxu0 0.0
    %659 = vmatpush1.xpose.msra.mxu0 0.0
    %660 = vmatprep.subr.mxu0 0.0
    %661 = vmatpush1.xpose.msra.mxu0 0.0
    %662 = vmatprep.subr.mxu0 0.0
    %663 = vmatpush1.xpose.msra.mxu0 0.0
    %664 = vmatprep.subr.mxu0 0.0
    %665 = vmatpush1.xpose.msra.mxu0 0.0
    %666 = vmatprep.subr.mxu0 0.0
    %667 = vmatpush1.xpose.msra.mxu0 0.0
    %668 = vmatprep.subr.mxu0 0.0
    %669 = vmatpush1.xpose.msra.mxu0 0.0
    %670 = vmatprep.subr.mxu0 0.0
    %671 = vmatpush1.xpose.msra.mxu0 0.0
    %672 = vmatprep.subr.mxu0 0.0
    %673 = vmatpush1.xpose.msra.mxu0 0.0
    %674 = vmatprep.subr.mxu0 0.0
    %675 = vmatpush1.xpose.msra.mxu0 0.0
    %676 = vmatprep.subr.mxu0 0.0
    %677 = vmatpush1.xpose.msra.mxu0 0.0
    %678 = vmatprep.subr.mxu0 0.0
    %679 = vmatpush1.xpose.msra.mxu0 0.0
    %680 = vmatprep.subr.mxu0 0.0
    %681 = vmatpush1.xpose.msra.mxu0 0.0
    %682 = vmatprep.subr.mxu0 0.0
    %683 = vmatpush1.xpose.msra.mxu0 0.0
    %684 = vmatprep.subr.mxu0 0.0
    %685 = vmatpush1.xpose.msra.mxu0 0.0
    %686 = vmatprep.subr.mxu0 0.0
    %687 = vmatpush1.xpose.msra.mxu0 0.0
    %688 = vmatprep.subr.mxu0 0.0
    %689 = vmatpush1.xpose.msra.mxu0 0.0
    %690 = vmatprep.subr.mxu0 0.0
    %691 = vmatpush1.xpose.msra.mxu0 0.0
    %692 = vmatprep.subr.mxu0 0.0
    %693 = vmatpush1.xpose.msra.mxu0 0.0
    %694 = vmatprep.subr.mxu0 0.0
    %695 = vmatpush1.xpose.msra.mxu0 0.0
    %696 = vmatprep.subr.mxu0 0.0
    %697 = vmatpush1.xpose.msra.mxu0 0.0
    %698 = vmatprep.subr.mxu0 0.0
    %699 = vmatpush1.xpose.msra.mxu0 0.0
    %700 = vmatprep.subr.mxu0 0.0
    %701 = vmatpush1.xpose.msra.mxu0 0.0
    %702 = vmatprep.subr.mxu0 0.0
    %703 = vmatpush1.xpose.msra.mxu0 0.0
    %704 = vmatprep.subr.mxu0 0.0
    %705 = vmatpush1.xpose.msra.mxu0 0.0
    %706 = vmatprep.subr.mxu0 0.0
    %707 = vmatpush1.xpose.msra.mxu0 0.0
    %708 = vmatprep.subr.mxu0 0.0
    %709 = vmatpush1.xpose.msra.mxu0 0.0
    %710 = vmatprep.subr.mxu0 0.0
    %711 = vmatpush1.xpose.msra.mxu0 0.0
    %712 = vmatprep.mubr.f32.mxu0 0.0
    %713 = vmatmul.mubr.f32.gmra.mrb[0].mxu0 %v644
    %v714 = vpop.f32.mrb[0].mxu0
    %v715 = vadd.f32 0.0, %v714
    %v716 = vpop.f32.mrb[0].mxu0
    %717 = vdwg.mxu0
    %v718 = vsel %vm506, -1e+09, %v715
    %v719 = vsel %vm643, %v718, -inf
    %720 = vmax.xlane.f32.xlu0 %v719
    %v721 = vpop.xlane.xlu0 %720
    %v722 = vsub.f32 %v718, %v721
    %v723 = vmul.f32 %v722, 1.442695
    %v724 = vpow.pop %v723
    %v725 = vsel %vm643, %v724, 0.0
    %726 = vadd.xlane.f32.xlu0 %v725
    %v727 = vpop.xlane.xlu0 %726
    %v728 = vrcp.pop %v727
    %v729 = vmul.f32 %v724, %v728
    %730 = vrot.lane.b32.xlu0 %v632, 64
    %v731 = vpop.permute.xlu0 %730
    %v734 = vsel %vm643, %v729, 0
    %736 = vmatprep.subr.mxu0 0.0
    %737 = vmatpush1.msra.mxu0 %v731
    %738 = vmatprep.subr.mxu0 0.0
    %739 = vmatpush1.msra.mxu0 0.0
    %740 = vmatprep.subr.mxu0 0.0
    %741 = vmatpush1.msra.mxu0 0.0
    %742 = vmatprep.subr.mxu0 0.0
    %743 = vmatpush1.msra.mxu0 0.0
    %744 = vmatprep.subr.mxu0 0.0
    %745 = vmatpush1.msra.mxu0 0.0
    %746 = vmatprep.subr.mxu0 0.0
    %747 = vmatpush1.msra.mxu0 0.0
    %748 = vmatprep.subr.mxu0 0.0
    %749 = vmatpush1.msra.mxu0 0.0
    %750 = vmatprep.subr.mxu0 0.0
    %751 = vmatpush1.msra.mxu0 0.0
    %752 = vmatprep.subr.mxu0 0.0
    %753 = vmatpush1.msra.mxu0 0.0
    %754 = vmatprep.subr.mxu0 0.0
    %755 = vmatpush1.msra.mxu0 0.0
    %756 = vmatprep.subr.mxu0 0.0
    %757 = vmatpush1.msra.mxu0 0.0
    %758 = vmatprep.subr.mxu0 0.0
    %759 = vmatpush1.msra.mxu0 0.0
    %760 = vmatprep.subr.mxu0 0.0
    %761 = vmatpush1.msra.mxu0 0.0
    %762 = vmatprep.subr.mxu0 0.0
    %763 = vmatpush1.msra.mxu0 0.0
    %764 = vmatprep.subr.mxu0 0.0
    %765 = vmatpush1.msra.mxu0 0.0
    %766 = vmatprep.subr.mxu0 0.0
    %767 = vmatpush1.msra.mxu0 0.0
    %768 = vmatprep.subr.mxu0 0.0
    %769 = vmatpush1.msra.mxu0 0.0
    %770 = vmatprep.subr.mxu0 0.0
    %771 = vmatpush1.msra.mxu0 0.0
    %772 = vmatprep.subr.mxu0 0.0
    %773 = vmatpush1.msra.mxu0 0.0
    %774 = vmatprep.subr.mxu0 0.0
    %775 = vmatpush1.msra.mxu0 0.0
    %776 = vmatprep.subr.mxu0 0.0
    %777 = vmatpush1.msra.mxu0 0.0
    %778 = vmatprep.subr.mxu0 0.0
    %779 = vmatpush1.msra.mxu0 0.0
    %780 = vmatprep.subr.mxu0 0.0
    %781 = vmatpush1.msra.mxu0 0.0
    %782 = vmatprep.subr.mxu0 0.0
    %783 = vmatpush1.msra.mxu0 0.0
    %784 = vmatprep.subr.mxu0 0.0
    %785 = vmatpush1.msra.mxu0 0.0
    %786 = vmatprep.subr.mxu0 0.0
    %787 = vmatpush1.msra.mxu0 0.0
    %788 = vmatprep.subr.mxu0 0.0
    %789 = vmatpush1.msra.mxu0 0.0
    %790 = vmatprep.subr.mxu0 0.0
    %791 = vmatpush1.msra.mxu0 0.0
    %792 = vmatprep.subr.mxu0 0.0
    %793 = vmatpush1.msra.mxu0 0.0
    %794 = vmatprep.subr.mxu0 0.0
    %795 = vmatpush1.msra.mxu0 0.0
    %796 = vmatprep.subr.mxu0 0.0
    %797 = vmatpush1.msra.mxu0 0.0
    %798 = vmatprep.subr.mxu0 0.0
    %799 = vmatpush1.msra.mxu0 0.0
    %800 = vmatprep.mubr.f32.mxu0 0.0
    %801 = vmatmul.mubr.f32.gmra.mrb[0].mxu0 %v734
    %v802 = vpop.f32.mrb[0].mxu0
    %v803 = vadd.f32 0.0, %v802
    %v804 = vpop.f32.mrb[0].mxu0
    %805 = vdwg.mxu0
    %806 = vrot.lane.b32.xlu0 %v632, 120
    %v807 = vpop.permute.xlu0 %806
    %808 = vrot.lane.b32.xlu0 %v632, 88
    %v809 = vpop.permute.xlu0 %808
    %v810 = vsel %vm643, %v807, 0
    %v812 = vsel %vm643, %v809, 0
    %814 = vmatprep.subr.mxu0 0.0
    %815 = vmatpush1.xpose.msra.mxu0 %v812
    %816 = vmatprep.subr.mxu0 0.0
    %817 = vmatpush1.xpose.msra.mxu0 0.0
    %818 = vmatprep.subr.mxu0 0.0
    %819 = vmatpush1.xpose.msra.mxu0 0.0
    %820 = vmatprep.subr.mxu0 0.0
    %821 = vmatpush1.xpose.msra.mxu0 0.0
    %822 = vmatprep.subr.mxu0 0.0
    %823 = vmatpush1.xpose.msra.mxu0 0.0
    %824 = vmatprep.subr.mxu0 0.0
    %825 = vmatpush1.xpose.msra.mxu0 0.0
    %826 = vmatprep.subr.mxu0 0.0
    %827 = vmatpush1.xpose.msra.mxu0 0.0
    %828 = vmatprep.subr.mxu0 0.0
    %829 = vmatpush1.xpose.msra.mxu0 0.0
    %830 = vmatprep.subr.mxu0 0.0
    %831 = vmatpush1.xpose.msra.mxu0 0.0
    %832 = vmatprep.subr.mxu0 0.0
    %833 = vmatpush1.xpose.msra.mxu0 0.0
    %834 = vmatprep.subr.mxu0 0.0
    %835 = vmatpush1.xpose.msra.mxu0 0.0
    %836 = vmatprep.subr.mxu0 0.0
    %837 = vmatpush1.xpose.msra.mxu0 0.0
    %838 = vmatprep.subr.mxu0 0.0
    %839 = vmatpush1.xpose.msra.mxu0 0.0
    %840 = vmatprep.subr.mxu0 0.0
    %841 = vmatpush1.xpose.msra.mxu0 0.0
    %842 = vmatprep.subr.mxu0 0.0
    %843 = vmatpush1.xpose.msra.mxu0 0.0
    %844 = vmatprep.subr.mxu0 0.0
    %845 = vmatpush1.xpose.msra.mxu0 0.0
    %846 = vmatprep.subr.mxu0 0.0
    %847 = vmatpush1.xpose.msra.mxu0 0.0
    %848 = vmatprep.subr.mxu0 0.0
    %849 = vmatpush1.xpose.msra.mxu0 0.0
    %850 = vmatprep.subr.mxu0 0.0
    %851 = vmatpush1.xpose.msra.mxu0 0.0
    %852 = vmatprep.subr.mxu0 0.0
    %853 = vmatpush1.xpose.msra.mxu0 0.0
    %854 = vmatprep.subr.mxu0 0.0
    %855 = vmatpush1.xpose.msra.mxu0 0.0
    %856 = vmatprep.subr.mxu0 0.0
    %857 = vmatpush1.xpose.msra.mxu0 0.0
    %858 = vmatprep.subr.mxu0 0.0
    %859 = vmatpush1.xpose.msra.mxu0 0.0
    %860 = vmatprep.subr.mxu0 0.0
    %861 = vmatpush1.xpose.msra.mxu0 0.0
    %862 = vmatprep.subr.mxu0 0.0
    %863 = vmatpush1.xpose.msra.mxu0 0.0
    %864 = vmatprep.subr.mxu0 0.0
    %865 = vmatpush1.xpose.msra.mxu0 0.0
    %866 = vmatprep.subr.mxu0 0.0
    %867 = vmatpush1.xpose.msra.mxu0 0.0
    %868 = vmatprep.subr.mxu0 0.0
    %869 = vmatpush1.xpose.msra.mxu0 0.0
    %870 = vmatprep.subr.mxu0 0.0
    %871 = vmatpush1.xpose.msra.mxu0 0.0
    %872 = vmatprep.subr.mxu0 0.0
    %873 = vmatpush1.xpose.msra.mxu0 0.0
    %874 = vmatprep.subr.mxu0 0.0
    %875 = vmatpush1.xpose.msra.mxu0 0.0
    %876 = vmatprep.subr.mxu0 0.0
    %877 = vmatpush1.xpose.msra.mxu0 0.0
    %878 = vmatprep.mubr.f32.mxu0 0.0
    %879 = vmatmul.mubr.f32.gmra.mrb[0].mxu0 %v810
    %v880 = vpop.f32.mrb[0].mxu0
    %v881 = vadd.f32 0.0, %v880
    %v882 = vpop.f32.mrb[0].mxu0
    %883 = vdwg.mxu0
    %v884 = vsel %vm506, -1e+09, %v881
    %v885 = vsel %vm643, %v884, -inf
    %886 = vmax.xlane.f32.xlu0 %v885
    %v887 = vpop.xlane.xlu0 %886
    %v888 = vsub.f32 %v884, %v887
    %v889 = vmul.f32 %v888, 1.442695
    %v890 = vpow.pop %v889
    %v891 = vsel %vm643, %v890, 0.0
    %892 = vadd.xlane.f32.xlu0 %v891
    %v893 = vpop.xlane.xlu0 %892
    %v894 = vrcp.pop %v893
    %v895 = vmul.f32 %v890, %v894
    %896 = vrot.lane.b32.xlu0 %v632, 56
    %v897 = vpop.permute.xlu0 %896
    %v900 = vsel %vm643, %v895, 0
    %902 = vmatprep.subr.mxu0 0.0
    %903 = vmatpush1.msra.mxu0 %v897
    %904 = vmatprep.subr.mxu0 0.0
    %905 = vmatpush1.msra.mxu0 0.0
    %906 = vmatprep.subr.mxu0 0.0
    %907 = vmatpush1.msra.mxu0 0.0
    %908 = vmatprep.subr.mxu0 0.0
    %909 = vmatpush1.msra.mxu0 0.0
    %910 = vmatprep.subr.mxu0 0.0
    %911 = vmatpush1.msra.mxu0 0.0
    %912 = vmatprep.subr.mxu0 0.0
    %913 = vmatpush1.msra.mxu0 0.0
    %914 = vmatprep.subr.mxu0 0.0
    %915 = vmatpush1.msra.mxu0 0.0
    %916 = vmatprep.subr.mxu0 0.0
    %917 = vmatpush1.msra.mxu0 0.0
    %918 = vmatprep.subr.mxu0 0.0
    %919 = vmatpush1.msra.mxu0 0.0
    %920 = vmatprep.subr.mxu0 0.0
    %921 = vmatpush1.msra.mxu0 0.0
    %922 = vmatprep.subr.mxu0 0.0
    %923 = vmatpush1.msra.mxu0 0.0
    %924 = vmatprep.subr.mxu0 0.0
    %925 = vmatpush1.msra.mxu0 0.0
    %926 = vmatprep.subr.mxu0 0.0
    %927 = vmatpush1.msra.mxu0 0.0
    %928 = vmatprep.subr.mxu0 0.0
    %929 = vmatpush1.msra.mxu0 0.0
    %930 = vmatprep.subr.mxu0 0.0
    %931 = vmatpush1.msra.mxu0 0.0
    %932 = vmatprep.subr.mxu0 0.0
    %933 = vmatpush1.msra.mxu0 0.0
    %934 = vmatprep.subr.mxu0 0.0
    %935 = vmatpush1.msra.mxu0 0.0
    %936 = vmatprep.subr.mxu0 0.0
    %937 = vmatpush1.msra.mxu0 0.0
    %938 = vmatprep.subr.mxu0 0.0
    %939 = vmatpush1.msra.mxu0 0.0
    %940 = vmatprep.subr.mxu0 0.0
    %941 = vmatpush1.msra.mxu0 0.0
    %942 = vmatprep.subr.mxu0 0.0
    %943 = vmatpush1.msra.mxu0 0.0
    %944 = vmatprep.subr.mxu0 0.0
    %945 = vmatpush1.msra.mxu0 0.0
    %946 = vmatprep.subr.mxu0 0.0
    %947 = vmatpush1.msra.mxu0 0.0
    %948 = vmatprep.subr.mxu0 0.0
    %949 = vmatpush1.msra.mxu0 0.0
    %950 = vmatprep.subr.mxu0 0.0
    %951 = vmatpush1.msra.mxu0 0.0
    %952 = vmatprep.subr.mxu0 0.0
    %953 = vmatpush1.msra.mxu0 0.0
    %954 = vmatprep.subr.mxu0 0.0
    %955 = vmatpush1.msra.mxu0 0.0
    %956 = vmatprep.subr.mxu0 0.0
    %957 = vmatpush1.msra.mxu0 0.0
    %958 = vmatprep.subr.mxu0 0.0
    %959 = vmatpush1.msra.mxu0 0.0
    %960 = vmatprep.subr.mxu0 0.0
    %961 = vmatpush1.msra.mxu0 0.0
    %962 = vmatprep.subr.mxu0 0.0
    %963 = vmatpush1.msra.mxu0 0.0
    %964 = vmatprep.subr.mxu0 0.0
    %965 = vmatpush1.msra.mxu0 0.0
    %966 = vmatprep.mubr.f32.mxu0 0.0
    %967 = vmatmul.mubr.f32.gmra.mrb[0].mxu0 %v900
    %v968 = vpop.f32.mrb[0].mxu0
    %v969 = vadd.f32 0.0, %v968
    %v970 = vpop.f32.mrb[0].mxu0
    %971 = vdwg.mxu0
    %972 = vrot.lane.b32.xlu0 %v632, 112
    %v973 = vpop.permute.xlu0 %972
    %974 = vrot.lane.b32.xlu0 %v632, 80
    %v975 = vpop.permute.xlu0 %974
    %v976 = vsel %vm643, %v973, 0
    %v978 = vsel %vm643, %v975, 0
    %980 = vmatprep.subr.mxu0 0.0
    %981 = vmatpush1.xpose.msra.mxu0 %v978
    %982 = vmatprep.subr.mxu0 0.0
    %983 = vmatpush1.xpose.msra.mxu0 0.0
    %984 = vmatprep.subr.mxu0 0.0
    %985 = vmatpush1.xpose.msra.mxu0 0.0
    %986 = vmatprep.subr.mxu0 0.0
    %987 = vmatpush1.xpose.msra.mxu0 0.0
    %988 = vmatprep.subr.mxu0 0.0
    %989 = vmatpush1.xpose.msra.mxu0 0.0
    %990 = vmatprep.subr.mxu0 0.0
    %991 = vmatpush1.xpose.msra.mxu0 0.0
    %992 = vmatprep.subr.mxu0 0.0
    %993 = vmatpush1.xpose.msra.mxu0 0.0
    %994 = vmatprep.subr.mxu0 0.0
    %995 = vmatpush1.xpose.msra.mxu0 0.0
    %996 = vmatprep.subr.mxu0 0.0
    %997 = vmatpush1.xpose.msra.mxu0 0.0
    %998 = vmatprep.subr.mxu0 0.0
    %999 = vmatpush1.xpose.msra.mxu0 0.0
    %1000 = vmatprep.subr.mxu0 0.0
    %1001 = vmatpush1.xpose.msra.mxu0 0.0
    %1002 = vmatprep.subr.mxu0 0.0
    %1003 = vmatpush1.xpose.msra.mxu0 0.0
    %1004 = vmatprep.subr.mxu0 0.0
    %1005 = vmatpush1.xpose.msra.mxu0 0.0
    %1006 = vmatprep.subr.mxu0 0.0
    %1007 = vmatpush1.xpose.msra.mxu0 0.0
    %1008 = vmatprep.subr.mxu0 0.0
    %1009 = vmatpush1.xpose.msra.mxu0 0.0
    %1010 = vmatprep.subr.mxu0 0.0
    %1011 = vmatpush1.xpose.msra.mxu0 0.0
    %1012 = vmatprep.subr.mxu0 0.0
    %1013 = vmatpush1.xpose.msra.mxu0 0.0
    %1014 = vmatprep.subr.mxu0 0.0
    %1015 = vmatpush1.xpose.msra.mxu0 0.0
    %1016 = vmatprep.subr.mxu0 0.0
    %1017 = vmatpush1.xpose.msra.mxu0 0.0
    %1018 = vmatprep.subr.mxu0 0.0
    %1019 = vmatpush1.xpose.msra.mxu0 0.0
    %1020 = vmatprep.subr.mxu0 0.0
    %1021 = vmatpush1.xpose.msra.mxu0 0.0
    %1022 = vmatprep.subr.mxu0 0.0
    %1023 = vmatpush1.xpose.msra.mxu0 0.0
    %1024 = vmatprep.subr.mxu0 0.0
    %1025 = vmatpush1.xpose.msra.mxu0 0.0
    %1026 = vmatprep.subr.mxu0 0.0
    %1027 = vmatpush1.xpose.msra.mxu0 0.0
    %1028 = vmatprep.subr.mxu0 0.0
    %1029 = vmatpush1.xpose.msra.mxu0 0.0
    %1030 = vmatprep.subr.mxu0 0.0
    %1031 = vmatpush1.xpose.msra.mxu0 0.0
    %1032 = vmatprep.subr.mxu0 0.0
    %1033 = vmatpush1.xpose.msra.mxu0 0.0
    %1034 = vmatprep.subr.mxu0 0.0
    %1035 = vmatpush1.xpose.msra.mxu0 0.0
    %1036 = vmatprep.subr.mxu0 0.0
    %1037 = vmatpush1.xpose.msra.mxu0 0.0
    %1038 = vmatprep.subr.mxu0 0.0
    %1039 = vmatpush1.xpose.msra.mxu0 0.0
    %1040 = vmatprep.subr.mxu0 0.0
    %1041 = vmatpush1.xpose.msra.mxu0 0.0
    %1042 = vmatprep.subr.mxu0 0.0
    %1043 = vmatpush1.xpose.msra.mxu0 0.0
    %1044 = vmatprep.mubr.f32.mxu0 0.0
    %1045 = vmatmul.mubr.f32.gmra.mrb[0].mxu0 %v976
    %v1046 = vpop.f32.mrb[0].mxu0
    %v1047 = vadd.f32 0.0, %v1046
    %v1048 = vpop.f32.mrb[0].mxu0
    %1049 = vdwg.mxu0
    %v1050 = vsel %vm506, -1e+09, %v1047
    %v1051 = vsel %vm643, %v1050, -inf
    %1052 = vmax.xlane.f32.xlu0 %v1051
    %v1053 = vpop.xlane.xlu0 %1052
    %v1054 = vsub.f32 %v1050, %v1053
    %v1055 = vmul.f32 %v1054, 1.442695
    %v1056 = vpow.pop %v1055
    %v1057 = vsel %vm643, %v1056, 0.0
    %1058 = vadd.xlane.f32.xlu0 %v1057
    %v1059 = vpop.xlane.xlu0 %1058
    %v1060 = vrcp.pop %v1059
    %v1061 = vmul.f32 %v1056, %v1060
    %1062 = vrot.lane.b32.xlu0 %v632, 48
    %v1063 = vpop.permute.xlu0 %1062
    %v1066 = vsel %vm643, %v1061, 0
    %1068 = vmatprep.subr.mxu0 0.0
    %1069 = vmatpush1.msra.mxu0 %v1063
    %1070 = vmatprep.subr.mxu0 0.0
    %1071 = vmatpush1.msra.mxu0 0.0
    %1072 = vmatprep.subr.mxu0 0.0
    %1073 = vmatpush1.msra.mxu0 0.0
    %1074 = vmatprep.subr.mxu0 0.0
    %1075 = vmatpush1.msra.mxu0 0.0
    %1076 = vmatprep.subr.mxu0 0.0
    %1077 = vmatpush1.msra.mxu0 0.0
    %1078 = vmatprep.subr.mxu0 0.0
    %1079 = vmatpush1.msra.mxu0 0.0
    %1080 = vmatprep.subr.mxu0 0.0
    %1081 = vmatpush1.msra.mxu0 0.0
    %1082 = vmatprep.subr.mxu0 0.0
    %1083 = vmatpush1.msra.mxu0 0.0
    %1084 = vmatprep.subr.mxu0 0.0
    %1085 = vmatpush1.msra.mxu0 0.0
    %1086 = vmatprep.subr.mxu0 0.0
    %1087 = vmatpush1.msra.mxu0 0.0
    %1088 = vmatprep.subr.mxu0 0.0
    %1089 = vmatpush1.msra.mxu0 0.0
    %1090 = vmatprep.subr.mxu0 0.0
    %1091 = vmatpush1.msra.mxu0 0.0
    %1092 = vmatprep.subr.mxu0 0.0
    %1093 = vmatpush1.msra.mxu0 0.0
    %1094 = vmatprep.subr.mxu0 0.0
    %1095 = vmatpush1.msra.mxu0 0.0
    %1096 = vmatprep.subr.mxu0 0.0
    %1097 = vmatpush1.msra.mxu0 0.0
    %1098 = vmatprep.subr.mxu0 0.0
    %1099 = vmatpush1.msra.mxu0 0.0
    %1100 = vmatprep.subr.mxu0 0.0
    %1101 = vmatpush1.msra.mxu0 0.0
    %1102 = vmatprep.subr.mxu0 0.0
    %1103 = vmatpush1.msra.mxu0 0.0
    %1104 = vmatprep.subr.mxu0 0.0
    %1105 = vmatpush1.msra.mxu0 0.0
    %1106 = vmatprep.subr.mxu0 0.0
    %1107 = vmatpush1.msra.mxu0 0.0
    %1108 = vmatprep.subr.mxu0 0.0
    %1109 = vmatpush1.msra.mxu0 0.0
    %1110 = vmatprep.subr.mxu0 0.0
    %1111 = vmatpush1.msra.mxu0 0.0
    %1112 = vmatprep.subr.mxu0 0.0
    %1113 = vmatpush1.msra.mxu0 0.0
    %1114 = vmatprep.subr.mxu0 0.0
    %1115 = vmatpush1.msra.mxu0 0.0
    %1116 = vmatprep.subr.mxu0 0.0
    %1117 = vmatpush1.msra.mxu0 0.0
    %1118 = vmatprep.subr.mxu0 0.0
    %1119 = vmatpush1.msra.mxu0 0.0
    %1120 = vmatprep.subr.mxu0 0.0
    %1121 = vmatpush1.msra.mxu0 0.0
    %1122 = vmatprep.subr.mxu0 0.0
    %1123 = vmatpush1.msra.mxu0 0.0
    %1124 = vmatprep.subr.mxu0 0.0
    %1125 = vmatpush1.msra.mxu0 0.0
    %1126 = vmatprep.subr.mxu0 0.0
    %1127 = vmatpush1.msra.mxu0 0.0
    %1128 = vmatprep.subr.mxu0 0.0
    %1129 = vmatpush1.msra.mxu0 0.0
    %1130 = vmatprep.subr.mxu0 0.0
    %1131 = vmatpush1.msra.mxu0 0.0
    %1132 = vmatprep.mubr.f32.mxu0 0.0
    %1133 = vmatmul.mubr.f32.gmra.mrb[0].mxu0 %v1066
    %v1134 = vpop.f32.mrb[0].mxu0
    %v1135 = vadd.f32 0.0, %v1134
    %v1136 = vpop.f32.mrb[0].mxu0
    %1137 = vdwg.mxu0
    %1138 = vrot.lane.b32.xlu0 %v632, 104
    %v1139 = vpop.permute.xlu0 %1138
    %1140 = vrot.lane.b32.xlu0 %v632, 72
    %v1141 = vpop.permute.xlu0 %1140
    %v1142 = vsel %vm643, %v1139, 0
    %v1144 = vsel %vm643, %v1141, 0
    %1146 = vmatprep.subr.mxu0 0.0
    %1147 = vmatpush1.xpose.msra.mxu0 %v1144
    %1148 = vmatprep.subr.mxu0 0.0
    %1149 = vmatpush1.xpose.msra.mxu0 0.0
    %1150 = vmatprep.subr.mxu0 0.0
    %1151 = vmatpush1.xpose.msra.mxu0 0.0
    %1152 = vmatprep.subr.mxu0 0.0
    %1153 = vmatpush1.xpose.msra.mxu0 0.0
    %1154 = vmatprep.subr.mxu0 0.0
    %1155 = vmatpush1.xpose.msra.mxu0 0.0
    %1156 = vmatprep.subr.mxu0 0.0
    %1157 = vmatpush1.xpose.msra.mxu0 0.0
    %1158 = vmatprep.subr.mxu0 0.0
    %1159 = vmatpush1.xpose.msra.mxu0 0.0
    %1160 = vmatprep.subr.mxu0 0.0
    %1161 = vmatpush1.xpose.msra.mxu0 0.0
    %1162 = vmatprep.subr.mxu0 0.0
    %1163 = vmatpush1.xpose.msra.mxu0 0.0
    %1164 = vmatprep.subr.mxu0 0.0
    %1165 = vmatpush1.xpose.msra.mxu0 0.0
    %1166 = vmatprep.subr.mxu0 0.0
    %1167 = vmatpush1.xpose.msra.mxu0 0.0
    %1168 = vmatprep.subr.mxu0 0.0
    %1169 = vmatpush1.xpose.msra.mxu0 0.0
    %1170 = vmatprep.subr.mxu0 0.0
    %1171 = vmatpush1.xpose.msra.mxu0 0.0
    %1172 = vmatprep.subr.mxu0 0.0
    %1173 = vmatpush1.xpose.msra.mxu0 0.0
    %1174 = vmatprep.subr.mxu0 0.0
    %1175 = vmatpush1.xpose.msra.mxu0 0.0
    %1176 = vmatprep.subr.mxu0 0.0
    %1177 = vmatpush1.xpose.msra.mxu0 0.0
    %1178 = vmatprep.subr.mxu0 0.0
    %1179 = vmatpush1.xpose.msra.mxu0 0.0
    %1180 = vmatprep.subr.mxu0 0.0
    %1181 = vmatpush1.xpose.msra.mxu0 0.0
    %1182 = vmatprep.subr.mxu0 0.0
    %1183 = vmatpush1.xpose.msra.mxu0 0.0
    %1184 = vmatprep.subr.mxu0 0.0
    %1185 = vmatpush1.xpose.msra.mxu0 0.0
    %1186 = vmatprep.subr.mxu0 0.0
    %1187 = vmatpush1.xpose.msra.mxu0 0.0
    %1188 = vmatprep.subr.mxu0 0.0
    %1189 = vmatpush1.xpose.msra.mxu0 0.0
    %1190 = vmatprep.subr.mxu0 0.0
    %1191 = vmatpush1.xpose.msra.mxu0 0.0
    %1192 = vmatprep.subr.mxu0 0.0
    %1193 = vmatpush1.xpose.msra.mxu0 0.0
    %1194 = vmatprep.subr.mxu0 0.0
    %1195 = vmatpush1.xpose.msra.mxu0 0.0
    %1196 = vmatprep.subr.mxu0 0.0
    %1197 = vmatpush1.xpose.msra.mxu0 0.0
    %1198 = vmatprep.subr.mxu0 0.0
    %1199 = vmatpush1.xpose.msra.mxu0 0.0
    %1200 = vmatprep.subr.mxu0 0.0
    %1201 = vmatpush1.xpose.msra.mxu0 0.0
    %1202 = vmatprep.subr.mxu0 0.0
    %1203 = vmatpush1.xpose.msra.mxu0 0.0
    %1204 = vmatprep.subr.mxu0 0.0
    %1205 = vmatpush1.xpose.msra.mxu0 0.0
    %1206 = vmatprep.subr.mxu0 0.0
    %1207 = vmatpush1.xpose.msra.mxu0 0.0
    %1208 = vmatprep.subr.mxu0 0.0
    %1209 = vmatpush1.xpose.msra.mxu0 0.0
    %1210 = vmatprep.mubr.f32.mxu0 0.0
    %1211 = vmatmul.mubr.f32.gmra.mrb[0].mxu0 %v1142
    %v1212 = vpop.f32.mrb[0].mxu0
    %v1213 = vadd.f32 0.0, %v1212
    %v1214 = vpop.f32.mrb[0].mxu0
    %1215 = vdwg.mxu0
    %v1216 = vsel %vm506, -1e+09, %v1213
    %v1217 = vsel %vm643, %v1216, -inf
    %1218 = vmax.xlane.f32.xlu0 %v1217
    %v1219 = vpop.xlane.xlu0 %1218
    %v1220 = vsub.f32 %v1216, %v1219
    %v1221 = vmul.f32 %v1220, 1.442695
    %v1222 = vpow.pop %v1221
    %v1223 = vsel %vm643, %v1222, 0.0
    %1224 = vadd.xlane.f32.xlu0 %v1223
    %v1225 = vpop.xlane.xlu0 %1224
    %v1226 = vrcp.pop %v1225
    %v1227 = vmul.f32 %v1222, %v1226
    %1228 = vrot.lane.b32.xlu0 %v632, 40
    %v1229 = vpop.permute.xlu0 %1228
    %v1232 = vsel %vm643, %v1227, 0
    %1234 = vmatprep.subr.mxu0 0.0
    %1235 = vmatpush1.msra.mxu0 %v1229
    %1236 = vmatprep.subr.mxu0 0.0
    %1237 = vmatpush1.msra.mxu0 0.0
    %1238 = vmatprep.subr.mxu0 0.0
    %1239 = vmatpush1.msra.mxu0 0.0
    %1240 = vmatprep.subr.mxu0 0.0
    %1241 = vmatpush1.msra.mxu0 0.0
    %1242 = vmatprep.subr.mxu0 0.0
    %1243 = vmatpush1.msra.mxu0 0.0
    %1244 = vmatprep.subr.mxu0 0.0
    %1245 = vmatpush1.msra.mxu0 0.0
    %1246 = vmatprep.subr.mxu0 0.0
    %1247 = vmatpush1.msra.mxu0 0.0
    %1248 = vmatprep.subr.mxu0 0.0
    %1249 = vmatpush1.msra.mxu0 0.0
    %1250 = vmatprep.subr.mxu0 0.0
    %1251 = vmatpush1.msra.mxu0 0.0
    %1252 = vmatprep.subr.mxu0 0.0
    %1253 = vmatpush1.msra.mxu0 0.0
    %1254 = vmatprep.subr.mxu0 0.0
    %1255 = vmatpush1.msra.mxu0 0.0
    %1256 = vmatprep.subr.mxu0 0.0
    %1257 = vmatpush1.msra.mxu0 0.0
    %1258 = vmatprep.subr.mxu0 0.0
    %1259 = vmatpush1.msra.mxu0 0.0
    %1260 = vmatprep.subr.mxu0 0.0
    %1261 = vmatpush1.msra.mxu0 0.0
    %1262 = vmatprep.subr.mxu0 0.0
    %1263 = vmatpush1.msra.mxu0 0.0
    %1264 = vmatprep.subr.mxu0 0.0
    %1265 = vmatpush1.msra.mxu0 0.0
    %1266 = vmatprep.subr.mxu0 0.0
    %1267 = vmatpush1.msra.mxu0 0.0
    %1268 = vmatprep.subr.mxu0 0.0
    %1269 = vmatpush1.msra.mxu0 0.0
    %1270 = vmatprep.subr.mxu0 0.0
    %1271 = vmatpush1.msra.mxu0 0.0
    %1272 = vmatprep.subr.mxu0 0.0
    %1273 = vmatpush1.msra.mxu0 0.0
    %1274 = vmatprep.subr.mxu0 0.0
    %1275 = vmatpush1.msra.mxu0 0.0
    %1276 = vmatprep.subr.mxu0 0.0
    %1277 = vmatpush1.msra.mxu0 0.0
    %1278 = vmatprep.subr.mxu0 0.0
    %1279 = vmatpush1.msra.mxu0 0.0
    %1280 = vmatprep.subr.mxu0 0.0
    %1281 = vmatpush1.msra.mxu0 0.0
    %1282 = vmatprep.subr.mxu0 0.0
    %1283 = vmatpush1.msra.mxu0 0.0
    %1284 = vmatprep.subr.mxu0 0.0
    %1285 = vmatpush1.msra.mxu0 0.0
    %1286 = vmatprep.subr.mxu0 0.0
    %1287 = vmatpush1.msra.mxu0 0.0
    %1288 = vmatprep.subr.mxu0 0.0
    %1289 = vmatpush1.msra.mxu0 0.0
    %1290 = vmatprep.subr.mxu0 0.0
    %1291 = vmatpush1.msra.mxu0 0.0
    %1292 = vmatprep.subr.mxu0 0.0
    %1293 = vmatpush1.msra.mxu0 0.0
    %1294 = vmatprep.subr.mxu0 0.0
    %1295 = vmatpush1.msra.mxu0 0.0
    %1296 = vmatprep.subr.mxu0 0.0
    %1297 = vmatpush1.msra.mxu0 0.0
    %1298 = vmatprep.mubr.f32.mxu0 0.0
    %1299 = vmatmul.mubr.f32.gmra.mrb[0].mxu0 %v1232
    %v1300 = vpop.f32.mrb[0].mxu0
    %v1301 = vadd.f32 0.0, %v1300
    %v1302 = vpop.f32.mrb[0].mxu0
    %1303 = vdwg.mxu0
    %1305 = vrot.lane.b32.xlu0 %v969, 8
    %v1306 = vpop.permute.xlu0 %1305
    %1309 = vrot.lane.b32.xlu0 %v1135, 16
    %v1310 = vpop.permute.xlu0 %1309
    %1313 = vrot.lane.b32.xlu0 %v1301, 24
    %v1314 = vpop.permute.xlu0 %1313
    %v1316 = vsel %vm643, %v803, %v1306
    %vm1317 = vcmask 130048
    %v1318 = vsel %vm1317, %v1316, %v1310
    %vm1319 = vcmask 195584
    %v1320 = vsel %vm1319, %v1318, %v1314
    %1322 = vrot.lane.b32.xlu0 %v637, 96
    %v1323 = vpop.permute.xlu0 %1322
    %v1324 = vsel %vm643, %v637, 0
    %v1326 = vsel %vm643, %v1323, 0
    %1328 = vmatprep.subr.mxu0 0.0
    %1329 = vmatpush1.xpose.msra.mxu0 %v1326
    %1330 = vmatprep.subr.mxu0 0.0
    %1331 = vmatpush1.xpose.msra.mxu0 0.0
    %1332 = vmatprep.subr.mxu0 0.0
    %1333 = vmatpush1.xpose.msra.mxu0 0.0
    %1334 = vmatprep.subr.mxu0 0.0
    %1335 = vmatpush1.xpose.msra.mxu0 0.0
    %1336 = vmatprep.subr.mxu0 0.0
    %1337 = vmatpush1.xpose.msra.mxu0 0.0
    %1338 = vmatprep.subr.mxu0 0.0
    %1339 = vmatpush1.xpose.msra.mxu0 0.0
    %1340 = vmatprep.subr.mxu0 0.0
    %1341 = vmatpush1.xpose.msra.mxu0 0.0
    %1342 = vmatprep.subr.mxu0 0.0
    %1343 = vmatpush1.xpose.msra.mxu0 0.0
    %1344 = vmatprep.subr.mxu0 0.0
    %1345 = vmatpush1.xpose.msra.mxu0 0.0
    %1346 = vmatprep.subr.mxu0 0.0
    %1347 = vmatpush1.xpose.msra.mxu0 0.0
    %1348 = vmatprep.subr.mxu0 0.0
    %1349 = vmatpush1.xpose.msra.mxu0 0.0
    %1350 = vmatprep.subr.mxu0 0.0
    %1351 = vmatpush1.xpose.msra.mxu0 0.0
    %1352 = vmatprep.subr.mxu0 0.0
    %1353 = vmatpush1.xpose.msra.mxu0 0.0
    %1354 = vmatprep.subr.mxu0 0.0
    %1355 = vmatpush1.xpose.msra.mxu0 0.0
    %1356 = vmatprep.subr.mxu0 0.0
    %1357 = vmatpush1.xpose.msra.mxu0 0.0
    %1358 = vmatprep.subr.mxu0 0.0
    %1359 = vmatpush1.xpose.msra.mxu0 0.0
    %1360 = vmatprep.subr.mxu0 0.0
    %1361 = vmatpush1.xpose.msra.mxu0 0.0
    %1362 = vmatprep.subr.mxu0 0.0
    %1363 = vmatpush1.xpose.msra.mxu0 0.0
    %1364 = vmatprep.subr.mxu0 0.0
    %1365 = vmatpush1.xpose.msra.mxu0 0.0
    %1366 = vmatprep.subr.mxu0 0.0
    %1367 = vmatpush1.xpose.msra.mxu0 0.0
    %1368 = vmatprep.subr.mxu0 0.0
    %1369 = vmatpush1.xpose.msra.mxu0 0.0
    %1370 = vmatprep.subr.mxu0 0.0
    %1371 = vmatpush1.xpose.msra.mxu0 0.0
    %1372 = vmatprep.subr.mxu0 0.0
    %1373 = vmatpush1.xpose.msra.mxu0 0.0
    %1374 = vmatprep.subr.mxu0 0.0
    %1375 = vmatpush1.xpose.msra.mxu0 0.0
    %1376 = vmatprep.subr.mxu0 0.0
    %1377 = vmatpush1.xpose.msra.mxu0 0.0
    %1378 = vmatprep.subr.mxu0 0.0
    %1379 = vmatpush1.xpose.msra.mxu0 0.0
    %1380 = vmatprep.subr.mxu0 0.0
    %1381 = vmatpush1.xpose.msra.mxu0 0.0
    %1382 = vmatprep.subr.mxu0 0.0
    %1383 = vmatpush1.xpose.msra.mxu0 0.0
    %1384 = vmatprep.subr.mxu0 0.0
    %1385 = vmatpush1.xpose.msra.mxu0 0.0
    %1386 = vmatprep.subr.mxu0 0.0
    %1387 = vmatpush1.xpose.msra.mxu0 0.0
    %1388 = vmatprep.subr.mxu0 0.0
    %1389 = vmatpush1.xpose.msra.mxu0 0.0
    %1390 = vmatprep.subr.mxu0 0.0
    %1391 = vmatpush1.xpose.msra.mxu0 0.0
    %1392 = vmatprep.mubr.f32.mxu0 0.0
    %1393 = vmatmul.mubr.f32.gmra.mrb[0].mxu0 %v1324
    %v1394 = vpop.f32.mrb[0].mxu0
    %v1395 = vadd.f32 0.0, %v1394
    %v1396 = vpop.f32.mrb[0].mxu0
    %1397 = vdwg.mxu0
    %v1398 = vsel %vm506, -1e+09, %v1395
    %v1399 = vsel %vm643, %v1398, -inf
    %1400 = vmax.xlane.f32.xlu0 %v1399
    %v1401 = vpop.xlane.xlu0 %1400
    %v1402 = vsub.f32 %v1398, %v1401
    %v1403 = vmul.f32 %v1402, 1.442695
    %v1404 = vpow.pop %v1403
    %v1405 = vsel %vm643, %v1404, 0.0
    %1406 = vadd.xlane.f32.xlu0 %v1405
    %v1407 = vpop.xlane.xlu0 %1406
    %v1408 = vrcp.pop %v1407
    %v1409 = vmul.f32 %v1404, %v1408
    %1410 = vrot.lane.b32.xlu0 %v637, 64
    %v1411 = vpop.permute.xlu0 %1410
    %v1414 = vsel %vm643, %v1409, 0
    %1416 = vmatprep.subr.mxu0 0.0
    %1417 = vmatpush1.msra.mxu0 %v1411
    %1418 = vmatprep.subr.mxu0 0.0
    %1419 = vmatpush1.msra.mxu0 0.0
    %1420 = vmatprep.subr.mxu0 0.0
    %1421 = vmatpush1.msra.mxu0 0.0
    %1422 = vmatprep.subr.mxu0 0.0
    %1423 = vmatpush1.msra.mxu0 0.0
    %1424 = vmatprep.subr.mxu0 0.0
    %1425 = vmatpush1.msra.mxu0 0.0
    %1426 = vmatprep.subr.mxu0 0.0
    %1427 = vmatpush1.msra.mxu0 0.0
    %1428 = vmatprep.subr.mxu0 0.0
    %1429 = vmatpush1.msra.mxu0 0.0
    %1430 = vmatprep.subr.mxu0 0.0
    %1431 = vmatpush1.msra.mxu0 0.0
    %1432 = vmatprep.subr.mxu0 0.0
    %1433 = vmatpush1.msra.mxu0 0.0
    %1434 = vmatprep.subr.mxu0 0.0
    %1435 = vmatpush1.msra.mxu0 0.0
    %1436 = vmatprep.subr.mxu0 0.0
    %1437 = vmatpush1.msra.mxu0 0.0
    %1438 = vmatprep.subr.mxu0 0.0
    %1439 = vmatpush1.msra.mxu0 0.0
    %1440 = vmatprep.subr.mxu0 0.0
    %1441 = vmatpush1.msra.mxu0 0.0
    %1442 = vmatprep.subr.mxu0 0.0
    %1443 = vmatpush1.msra.mxu0 0.0
    %1444 = vmatprep.subr.mxu0 0.0
    %1445 = vmatpush1.msra.mxu0 0.0
    %1446 = vmatprep.subr.mxu0 0.0
    %1447 = vmatpush1.msra.mxu0 0.0
    %1448 = vmatprep.subr.mxu0 0.0
    %1449 = vmatpush1.msra.mxu0 0.0
    %1450 = vmatprep.subr.mxu0 0.0
    %1451 = vmatpush1.msra.mxu0 0.0
    %1452 = vmatprep.subr.mxu0 0.0
    %1453 = vmatpush1.msra.mxu0 0.0
    %1454 = vmatprep.subr.mxu0 0.0
    %1455 = vmatpush1.msra.mxu0 0.0
    %1456 = vmatprep.subr.mxu0 0.0
    %1457 = vmatpush1.msra.mxu0 0.0
    %1458 = vmatprep.subr.mxu0 0.0
    %1459 = vmatpush1.msra.mxu0 0.0
    %1460 = vmatprep.subr.mxu0 0.0
    %1461 = vmatpush1.msra.mxu0 0.0
    %1462 = vmatprep.subr.mxu0 0.0
    %1463 = vmatpush1.msra.mxu0 0.0
    %1464 = vmatprep.subr.mxu0 0.0
    %1465 = vmatpush1.msra.mxu0 0.0
    %1466 = vmatprep.subr.mxu0 0.0
    %1467 = vmatpush1.msra.mxu0 0.0
    %1468 = vmatprep.subr.mxu0 0.0
    %1469 = vmatpush1.msra.mxu0 0.0
    %1470 = vmatprep.subr.mxu0 0.0
    %1471 = vmatpush1.msra.mxu0 0.0
    %1472 = vmatprep.subr.mxu0 0.0
    %1473 = vmatpush1.msra.mxu0 0.0
    %1474 = vmatprep.subr.mxu0 0.0
    %1475 = vmatpush1.msra.mxu0 0.0
    %1476 = vmatprep.subr.mxu0 0.0
    %1477 = vmatpush1.msra.mxu0 0.0
    %1478 = vmatprep.subr.mxu0 0.0
    %1479 = vmatpush1.msra.mxu0 0.0
    %1480 = vmatprep.mubr.f32.mxu0 0.0
    %1481 = vmatmul.mubr.f32.gmra.mrb[0].mxu0 %v1414
    %v1482 = vpop.f32.mrb[0].mxu0
    %v1483 = vadd.f32 0.0, %v1482
    %v1484 = vpop.f32.mrb[0].mxu0
    %1485 = vdwg.mxu0
    %1486 = vrot.lane.b32.xlu0 %v637, 120
    %v1487 = vpop.permute.xlu0 %1486
    %1488 = vrot.lane.b32.xlu0 %v637, 88
    %v1489 = vpop.permute.xlu0 %1488
    %v1490 = vsel %vm643, %v1487, 0
    %v1492 = vsel %vm643, %v1489, 0
    %1494 = vmatprep.subr.mxu0 0.0
    %1495 = vmatpush1.xpose.msra.mxu0 %v1492
    %1496 = vmatprep.subr.mxu0 0.0
    %1497 = vmatpush1.xpose.msra.mxu0 0.0
    %1498 = vmatprep.subr.mxu0 0.0
    %1499 = vmatpush1.xpose.msra.mxu0 0.0
    %1500 = vmatprep.subr.mxu0 0.0
    %1501 = vmatpush1.xpose.msra.mxu0 0.0
    %1502 = vmatprep.subr.mxu0 0.0
    %1503 = vmatpush1.xpose.msra.mxu0 0.0
    %1504 = vmatprep.subr.mxu0 0.0
    %1505 = vmatpush1.xpose.msra.mxu0 0.0
    %1506 = vmatprep.subr.mxu0 0.0
    %1507 = vmatpush1.xpose.msra.mxu0 0.0
    %1508 = vmatprep.subr.mxu0 0.0
    %1509 = vmatpush1.xpose.msra.mxu0 0.0
    %1510 = vmatprep.subr.mxu0 0.0
    %1511 = vmatpush1.xpose.msra.mxu0 0.0
    %1512 = vmatprep.subr.mxu0 0.0
    %1513 = vmatpush1.xpose.msra.mxu0 0.0
    %1514 = vmatprep.subr.mxu0 0.0
    %1515 = vmatpush1.xpose.msra.mxu0 0.0
    %1516 = vmatprep.subr.mxu0 0.0
    %1517 = vmatpush1.xpose.msra.mxu0 0.0
    %1518 = vmatprep.subr.mxu0 0.0
    %1519 = vmatpush1.xpose.msra.mxu0 0.0
    %1520 = vmatprep.subr.mxu0 0.0
    %1521 = vmatpush1.xpose.msra.mxu0 0.0
    %1522 = vmatprep.subr.mxu0 0.0
    %1523 = vmatpush1.xpose.msra.mxu0 0.0
    %1524 = vmatprep.subr.mxu0 0.0
    %1525 = vmatpush1.xpose.msra.mxu0 0.0
    %1526 = vmatprep.subr.mxu0 0.0
    %1527 = vmatpush1.xpose.msra.mxu0 0.0
    %1528 = vmatprep.subr.mxu0 0.0
    %1529 = vmatpush1.xpose.msra.mxu0 0.0
    %1530 = vmatprep.subr.mxu0 0.0
    %1531 = vmatpush1.xpose.msra.mxu0 0.0
    %1532 = vmatprep.subr.mxu0 0.0
    %1533 = vmatpush1.xpose.msra.mxu0 0.0
    %1534 = vmatprep.subr.mxu0 0.0
    %1535 = vmatpush1.xpose.msra.mxu0 0.0
    %1536 = vmatprep.subr.mxu0 0.0
    %1537 = vmatpush1.xpose.msra.mxu0 0.0
    %1538 = vmatprep.subr.mxu0 0.0
    %1539 = vmatpush1.xpose.msra.mxu0 0.0
    %1540 = vmatprep.subr.mxu0 0.0
    %1541 = vmatpush1.xpose.msra.mxu0 0.0
    %1542 = vmatprep.subr.mxu0 0.0
    %1543 = vmatpush1.xpose.msra.mxu0 0.0
    %1544 = vmatprep.subr.mxu0 0.0
    %1545 = vmatpush1.xpose.msra.mxu0 0.0
    %1546 = vmatprep.subr.mxu0 0.0
    %1547 = vmatpush1.xpose.msra.mxu0 0.0
    %1548 = vmatprep.subr.mxu0 0.0
    %1549 = vmatpush1.xpose.msra.mxu0 0.0
    %1550 = vmatprep.subr.mxu0 0.0
    %1551 = vmatpush1.xpose.msra.mxu0 0.0
    %1552 = vmatprep.subr.mxu0 0.0
    %1553 = vmatpush1.xpose.msra.mxu0 0.0
    %1554 = vmatprep.subr.mxu0 0.0
    %1555 = vmatpush1.xpose.msra.mxu0 0.0
    %1556 = vmatprep.subr.mxu0 0.0
    %1557 = vmatpush1.xpose.msra.mxu0 0.0
    %1558 = vmatprep.mubr.f32.mxu0 0.0
    %1559 = vmatmul.mubr.f32.gmra.mrb[0].mxu0 %v1490
    %v1560 = vpop.f32.mrb[0].mxu0
    %v1561 = vadd.f32 0.0, %v1560
    %v1562 = vpop.f32.mrb[0].mxu0
    %1563 = vdwg.mxu0
    %v1564 = vsel %vm506, -1e+09, %v1561
    %v1565 = vsel %vm643, %v1564, -inf
    %1566 = vmax.xlane.f32.xlu0 %v1565
    %v1567 = vpop.xlane.xlu0 %1566
    %v1568 = vsub.f32 %v1564, %v1567
    %v1569 = vmul.f32 %v1568, 1.442695
    %v1570 = vpow.pop %v1569
    %v1571 = vsel %vm643, %v1570, 0.0
    %1572 = vadd.xlane.f32.xlu0 %v1571
    %v1573 = vpop.xlane.xlu0 %1572
    %v1574 = vrcp.pop %v1573
    %v1575 = vmul.f32 %v1570, %v1574
    %1576 = vrot.lane.b32.xlu0 %v637, 56
    %v1577 = vpop.permute.xlu0 %1576
    %v1580 = vsel %vm643, %v1575, 0
    %1582 = vmatprep.subr.mxu0 0.0
    %1583 = vmatpush1.msra.mxu0 %v1577
    %1584 = vmatprep.subr.mxu0 0.0
    %1585 = vmatpush1.msra.mxu0 0.0
    %1586 = vmatprep.subr.mxu0 0.0
    %1587 = vmatpush1.msra.mxu0 0.0
    %1588 = vmatprep.subr.mxu0 0.0
    %1589 = vmatpush1.msra.mxu0 0.0
    %1590 = vmatprep.subr.mxu0 0.0
    %1591 = vmatpush1.msra.mxu0 0.0
    %1592 = vmatprep.subr.mxu0 0.0
    %1593 = vmatpush1.msra.mxu0 0.0
    %1594 = vmatprep.subr.mxu0 0.0
    %1595 = vmatpush1.msra.mxu0 0.0
    %1596 = vmatprep.subr.mxu0 0.0
    %1597 = vmatpush1.msra.mxu0 0.0
    %1598 = vmatprep.subr.mxu0 0.0
    %1599 = vmatpush1.msra.mxu0 0.0
    %1600 = vmatprep.subr.mxu0 0.0
    %1601 = vmatpush1.msra.mxu0 0.0
    %1602 = vmatprep.subr.mxu0 0.0
    %1603 = vmatpush1.msra.mxu0 0.0
    %1604 = vmatprep.subr.mxu0 0.0
    %1605 = vmatpush1.msra.mxu0 0.0
    %1606 = vmatprep.subr.mxu0 0.0
    %1607 = vmatpush1.msra.mxu0 0.0
    %1608 = vmatprep.subr.mxu0 0.0
    %1609 = vmatpush1.msra.mxu0 0.0
    %1610 = vmatprep.subr.mxu0 0.0
    %1611 = vmatpush1.msra.mxu0 0.0
    %1612 = vmatprep.subr.mxu0 0.0
    %1613 = vmatpush1.msra.mxu0 0.0
    %1614 = vmatprep.subr.mxu0 0.0
    %1615 = vmatpush1.msra.mxu0 0.0
    %1616 = vmatprep.subr.mxu0 0.0
    %1617 = vmatpush1.msra.mxu0 0.0
    %1618 = vmatprep.subr.mxu0 0.0
    %1619 = vmatpush1.msra.mxu0 0.0
    %1620 = vmatprep.subr.mxu0 0.0
    %1621 = vmatpush1.msra.mxu0 0.0
    %1622 = vmatprep.subr.mxu0 0.0
    %1623 = vmatpush1.msra.mxu0 0.0
    %1624 = vmatprep.subr.mxu0 0.0
    %1625 = vmatpush1.msra.mxu0 0.0
    %1626 = vmatprep.subr.mxu0 0.0
    %1627 = vmatpush1.msra.mxu0 0.0
    %1628 = vmatprep.subr.mxu0 0.0
    %1629 = vmatpush1.msra.mxu0 0.0
    %1630 = vmatprep.subr.mxu0 0.0
    %1631 = vmatpush1.msra.mxu0 0.0
    %1632 = vmatprep.subr.mxu0 0.0
    %1633 = vmatpush1.msra.mxu0 0.0
    %1634 = vmatprep.subr.mxu0 0.0
    %1635 = vmatpush1.msra.mxu0 0.0
    %1636 = vmatprep.subr.mxu0 0.0
    %1637 = vmatpush1.msra.mxu0 0.0
    %1638 = vmatprep.subr.mxu0 0.0
    %1639 = vmatpush1.msra.mxu0 0.0
    %1640 = vmatprep.subr.mxu0 0.0
    %1641 = vmatpush1.msra.mxu0 0.0
    %1642 = vmatprep.subr.mxu0 0.0
    %1643 = vmatpush1.msra.mxu0 0.0
    %1644 = vmatprep.subr.mxu0 0.0
    %1645 = vmatpush1.msra.mxu0 0.0
    %1646 = vmatprep.mubr.f32.mxu0 0.0
    %1647 = vmatmul.mubr.f32.gmra.mrb[0].mxu0 %v1580
    %v1648 = vpop.f32.mrb[0].mxu0
    %v1649 = vadd.f32 0.0, %v1648
    %v1650 = vpop.f32.mrb[0].mxu0
    %1651 = vdwg.mxu0
    %1652 = vrot.lane.b32.xlu0 %v637, 112
    %v1653 = vpop.permute.xlu0 %1652
    %1654 = vrot.lane.b32.xlu0 %v637, 80
    %v1655 = vpop.permute.xlu0 %1654
    %v1656 = vsel %vm643, %v1653, 0
    %v1658 = vsel %vm643, %v1655, 0
    %1660 = vmatprep.subr.mxu0 0.0
    %1661 = vmatpush1.xpose.msra.mxu0 %v1658
    %1662 = vmatprep.subr.mxu0 0.0
    %1663 = vmatpush1.xpose.msra.mxu0 0.0
    %1664 = vmatprep.subr.mxu0 0.0
    %1665 = vmatpush1.xpose.msra.mxu0 0.0
    %1666 = vmatprep.subr.mxu0 0.0
    %1667 = vmatpush1.xpose.msra.mxu0 0.0
    %1668 = vmatprep.subr.mxu0 0.0
    %1669 = vmatpush1.xpose.msra.mxu0 0.0
    %1670 = vmatprep.subr.mxu0 0.0
    %1671 = vmatpush1.xpose.msra.mxu0 0.0
    %1672 = vmatprep.subr.mxu0 0.0
    %1673 = vmatpush1.xpose.msra.mxu0 0.0
    %1674 = vmatprep.subr.mxu0 0.0
    %1675 = vmatpush1.xpose.msra.mxu0 0.0
    %1676 = vmatprep.subr.mxu0 0.0
    %1677 = vmatpush1.xpose.msra.mxu0 0.0
    %1678 = vmatprep.subr.mxu0 0.0
    %1679 = vmatpush1.xpose.msra.mxu0 0.0
    %1680 = vmatprep.subr.mxu0 0.0
    %1681 = vmatpush1.xpose.msra.mxu0 0.0
    %1682 = vmatprep.subr.mxu0 0.0
    %1683 = vmatpush1.xpose.msra.mxu0 0.0
    %1684 = vmatprep.subr.mxu0 0.0
    %1685 = vmatpush1.xpose.msra.mxu0 0.0
    %1686 = vmatprep.subr.mxu0 0.0
    %1687 = vmatpush1.xpose.msra.mxu0 0.0
    %1688 = vmatprep.subr.mxu0 0.0
    %1689 = vmatpush1.xpose.msra.mxu0 0.0
    %1690 = vmatprep.subr.mxu0 0.0
    %1691 = vmatpush1.xpose.msra.mxu0 0.0
    %1692 = vmatprep.subr.mxu0 0.0
    %1693 = vmatpush1.xpose.msra.mxu0 0.0
    %1694 = vmatprep.subr.mxu0 0.0
    %1695 = vmatpush1.xpose.msra.mxu0 0.0
    %1696 = vmatprep.subr.mxu0 0.0
    %1697 = vmatpush1.xpose.msra.mxu0 0.0
    %1698 = vmatprep.subr.mxu0 0.0
    %1699 = vmatpush1.xpose.msra.mxu0 0.0
    %1700 = vmatprep.subr.mxu0 0.0
    %1701 = vmatpush1.xpose.msra.mxu0 0.0
    %1702 = vmatprep.subr.mxu0 0.0
    %1703 = vmatpush1.xpose.msra.mxu0 0.0
    %1704 = vmatprep.subr.mxu0 0.0
    %1705 = vmatpush1.xpose.msra.mxu0 0.0
    %1706 = vmatprep.subr.mxu0 0.0
    %1707 = vmatpush1.xpose.msra.mxu0 0.0
    %1708 = vmatprep.subr.mxu0 0.0
    %1709 = vmatpush1.xpose.msra.mxu0 0.0
    %1710 = vmatprep.subr.mxu0 0.0
    %1711 = vmatpush1.xpose.msra.mxu0 0.0
    %1712 = vmatprep.subr.mxu0 0.0
    %1713 = vmatpush1.xpose.msra.mxu0 0.0
    %1714 = vmatprep.subr.mxu0 0.0
    %1715 = vmatpush1.xpose.msra.mxu0 0.0
    %1716 = vmatprep.subr.mxu0 0.0
    %1717 = vmatpush1.xpose.msra.mxu0 0.0
    %1718 = vmatprep.subr.mxu0 0.0
    %1719 = vmatpush1.xpose.msra.mxu0 0.0
    %1720 = vmatprep.subr.mxu0 0.0
    %1721 = vmatpush1.xpose.msra.mxu0 0.0
    %1722 = vmatprep.subr.mxu0 0.0
    %1723 = vmatpush1.xpose.msra.mxu0 0.0
    %1724 = vmatprep.mubr.f32.mxu0 0.0
    %1725 = vmatmul.mubr.f32.gmra.mrb[0].mxu0 %v1656
    %v1726 = vpop.f32.mrb[0].mxu0
    %v1727 = vadd.f32 0.0, %v1726
    %v1728 = vpop.f32.mrb[0].mxu0
    %1729 = vdwg.mxu0
    %v1730 = vsel %vm506, -1e+09, %v1727
    %v1731 = vsel %vm643, %v1730, -inf
    %1732 = vmax.xlane.f32.xlu0 %v1731
    %v1733 = vpop.xlane.xlu0 %1732
    %v1734 = vsub.f32 %v1730, %v1733
    %v1735 = vmul.f32 %v1734, 1.442695
    %v1736 = vpow.pop %v1735
    %v1737 = vsel %vm643, %v1736, 0.0
    %1738 = vadd.xlane.f32.xlu0 %v1737
    %v1739 = vpop.xlane.xlu0 %1738
    %v1740 = vrcp.pop %v1739
    %v1741 = vmul.f32 %v1736, %v1740
    %1742 = vrot.lane.b32.xlu0 %v637, 48
    %v1743 = vpop.permute.xlu0 %1742
    %v1746 = vsel %vm643, %v1741, 0
    %1748 = vmatprep.subr.mxu0 0.0
    %1749 = vmatpush1.msra.mxu0 %v1743
    %1750 = vmatprep.subr.mxu0 0.0
    %1751 = vmatpush1.msra.mxu0 0.0
    %1752 = vmatprep.subr.mxu0 0.0
    %1753 = vmatpush1.msra.mxu0 0.0
    %1754 = vmatprep.subr.mxu0 0.0
    %1755 = vmatpush1.msra.mxu0 0.0
    %1756 = vmatprep.subr.mxu0 0.0
    %1757 = vmatpush1.msra.mxu0 0.0
    %1758 = vmatprep.subr.mxu0 0.0
    %1759 = vmatpush1.msra.mxu0 0.0
    %1760 = vmatprep.subr.mxu0 0.0
    %1761 = vmatpush1.msra.mxu0 0.0
    %1762 = vmatprep.subr.mxu0 0.0
    %1763 = vmatpush1.msra.mxu0 0.0
    %1764 = vmatprep.subr.mxu0 0.0
    %1765 = vmatpush1.msra.mxu0 0.0
    %1766 = vmatprep.subr.mxu0 0.0
    %1767 = vmatpush1.msra.mxu0 0.0
    %1768 = vmatprep.subr.mxu0 0.0
    %1769 = vmatpush1.msra.mxu0 0.0
    %1770 = vmatprep.subr.mxu0 0.0
    %1771 = vmatpush1.msra.mxu0 0.0
    %1772 = vmatprep.subr.mxu0 0.0
    %1773 = vmatpush1.msra.mxu0 0.0
    %1774 = vmatprep.subr.mxu0 0.0
    %1775 = vmatpush1.msra.mxu0 0.0
    %1776 = vmatprep.subr.mxu0 0.0
    %1777 = vmatpush1.msra.mxu0 0.0
    %1778 = vmatprep.subr.mxu0 0.0
    %1779 = vmatpush1.msra.mxu0 0.0
    %1780 = vmatprep.subr.mxu0 0.0
    %1781 = vmatpush1.msra.mxu0 0.0
    %1782 = vmatprep.subr.mxu0 0.0
    %1783 = vmatpush1.msra.mxu0 0.0
    %1784 = vmatprep.subr.mxu0 0.0
    %1785 = vmatpush1.msra.mxu0 0.0
    %1786 = vmatprep.subr.mxu0 0.0
    %1787 = vmatpush1.msra.mxu0 0.0
    %1788 = vmatprep.subr.mxu0 0.0
    %1789 = vmatpush1.msra.mxu0 0.0
    %1790 = vmatprep.subr.mxu0 0.0
    %1791 = vmatpush1.msra.mxu0 0.0
    %1792 = vmatprep.subr.mxu0 0.0
    %1793 = vmatpush1.msra.mxu0 0.0
    %1794 = vmatprep.subr.mxu0 0.0
    %1795 = vmatpush1.msra.mxu0 0.0
    %1796 = vmatprep.subr.mxu0 0.0
    %1797 = vmatpush1.msra.mxu0 0.0
    %1798 = vmatprep.subr.mxu0 0.0
    %1799 = vmatpush1.msra.mxu0 0.0
    %1800 = vmatprep.subr.mxu0 0.0
    %1801 = vmatpush1.msra.mxu0 0.0
    %1802 = vmatprep.subr.mxu0 0.0
    %1803 = vmatpush1.msra.mxu0 0.0
    %1804 = vmatprep.subr.mxu0 0.0
    %1805 = vmatpush1.msra.mxu0 0.0
    %1806 = vmatprep.subr.mxu0 0.0
    %1807 = vmatpush1.msra.mxu0 0.0
    %1808 = vmatprep.subr.mxu0 0.0
    %1809 = vmatpush1.msra.mxu0 0.0
    %1810 = vmatprep.subr.mxu0 0.0
    %1811 = vmatpush1.msra.mxu0 0.0
    %1812 = vmatprep.mubr.f32.mxu0 0.0
    %1813 = vmatmul.mubr.f32.gmra.mrb[0].mxu0 %v1746
    %v1814 = vpop.f32.mrb[0].mxu0
    %v1815 = vadd.f32 0.0, %v1814
    %v1816 = vpop.f32.mrb[0].mxu0
    %1817 = vdwg.mxu0
    %1818 = vrot.lane.b32.xlu0 %v637, 104
    %v1819 = vpop.permute.xlu0 %1818
    %1820 = vrot.lane.b32.xlu0 %v637, 72
    %v1821 = vpop.permute.xlu0 %1820
    %v1822 = vsel %vm643, %v1819, 0
    %v1824 = vsel %vm643, %v1821, 0
    %1826 = vmatprep.subr.mxu0 0.0
    %1827 = vmatpush1.xpose.msra.mxu0 %v1824
    %1828 = vmatprep.subr.mxu0 0.0
    %1829 = vmatpush1.xpose.msra.mxu0 0.0
    %1830 = vmatprep.subr.mxu0 0.0
    %1831 = vmatpush1.xpose.msra.mxu0 0.0
    %1832 = vmatprep.subr.mxu0 0.0
    %1833 = vmatpush1.xpose.msra.mxu0 0.0
    %1834 = vmatprep.subr.mxu0 0.0
    %1835 = vmatpush1.xpose.msra.mxu0 0.0
    %1836 = vmatprep.subr.mxu0 0.0
    %1837 = vmatpush1.xpose.msra.mxu0 0.0
    %1838 = vmatprep.subr.mxu0 0.0
    %1839 = vmatpush1.xpose.msra.mxu0 0.0
    %1840 = vmatprep.subr.mxu0 0.0
    %1841 = vmatpush1.xpose.msra.mxu0 0.0
    %1842 = vmatprep.subr.mxu0 0.0
    %1843 = vmatpush1.xpose.msra.mxu0 0.0
    %1844 = vmatprep.subr.mxu0 0.0
    %1845 = vmatpush1.xpose.msra.mxu0 0.0
    %1846 = vmatprep.subr.mxu0 0.0
    %1847 = vmatpush1.xpose.msra.mxu0 0.0
    %1848 = vmatprep.subr.mxu0 0.0
    %1849 = vmatpush1.xpose.msra.mxu0 0.0
    %1850 = vmatprep.subr.mxu0 0.0
    %1851 = vmatpush1.xpose.msra.mxu0 0.0
    %1852 = vmatprep.subr.mxu0 0.0
    %1853 = vmatpush1.xpose.msra.mxu0 0.0
    %1854 = vmatprep.subr.mxu0 0.0
    %1855 = vmatpush1.xpose.msra.mxu0 0.0
    %1856 = vmatprep.subr.mxu0 0.0
    %1857 = vmatpush1.xpose.msra.mxu0 0.0
    %1858 = vmatprep.subr.mxu0 0.0
    %1859 = vmatpush1.xpose.msra.mxu0 0.0
    %1860 = vmatprep.subr.mxu0 0.0
    %1861 = vmatpush1.xpose.msra.mxu0 0.0
    %1862 = vmatprep.subr.mxu0 0.0
    %1863 = vmatpush1.xpose.msra.mxu0 0.0
    %1864 = vmatprep.subr.mxu0 0.0
    %1865 = vmatpush1.xpose.msra.mxu0 0.0
    %1866 = vmatprep.subr.mxu0 0.0
    %1867 = vmatpush1.xpose.msra.mxu0 0.0
    %1868 = vmatprep.subr.mxu0 0.0
    %1869 = vmatpush1.xpose.msra.mxu0 0.0
    %1870 = vmatprep.subr.mxu0 0.0
    %1871 = vmatpush1.xpose.msra.mxu0 0.0
    %1872 = vmatprep.subr.mxu0 0.0
    %1873 = vmatpush1.xpose.msra.mxu0 0.0
    %1874 = vmatprep.subr.mxu0 0.0
    %1875 = vmatpush1.xpose.msra.mxu0 0.0
    %1876 = vmatprep.subr.mxu0 0.0
    %1877 = vmatpush1.xpose.msra.mxu0 0.0
    %1878 = vmatprep.subr.mxu0 0.0
    %1879 = vmatpush1.xpose.msra.mxu0 0.0
    %1880 = vmatprep.subr.mxu0 0.0
    %1881 = vmatpush1.xpose.msra.mxu0 0.0
    %1882 = vmatprep.subr.mxu0 0.0
    %1883 = vmatpush1.xpose.msra.mxu0 0.0
    %1884 = vmatprep.subr.mxu0 0.0
    %1885 = vmatpush1.xpose.msra.mxu0 0.0
    %1886 = vmatprep.subr.mxu0 0.0
    %1887 = vmatpush1.xpose.msra.mxu0 0.0
    %1888 = vmatprep.subr.mxu0 0.0
    %1889 = vmatpush1.xpose.msra.mxu0 0.0
    %1890 = vmatprep.mubr.f32.mxu0 0.0
    %1891 = vmatmul.mubr.f32.gmra.mrb[0].mxu0 %v1822
    %v1892 = vpop.f32.mrb[0].mxu0
    %v1893 = vadd.f32 0.0, %v1892
    %v1894 = vpop.f32.mrb[0].mxu0
    %1895 = vdwg.mxu0
    %v1896 = vsel %vm506, -1e+09, %v1893
    %v1897 = vsel %vm643, %v1896, -inf
    %1898 = vmax.xlane.f32.xlu0 %v1897
    %v1899 = vpop.xlane.xlu0 %1898
    %v1900 = vsub.f32 %v1896, %v1899
    %v1901 = vmul.f32 %v1900, 1.442695
    %v1902 = vpow.pop %v1901
    %v1903 = vsel %vm643, %v1902, 0.0
    %1904 = vadd.xlane.f32.xlu0 %v1903
    %v1905 = vpop.xlane.xlu0 %1904
    %v1906 = vrcp.pop %v1905
    %v1907 = vmul.f32 %v1902, %v1906
    %1908 = vrot.lane.b32.xlu0 %v637, 40
    %v1909 = vpop.permute.xlu0 %1908
    %v1912 = vsel %vm643, %v1907, 0
    %1914 = vmatprep.subr.mxu0 0.0
    %1915 = vmatpush1.msra.mxu0 %v1909
    %1916 = vmatprep.subr.mxu0 0.0
    %1917 = vmatpush1.msra.mxu0 0.0
    %1918 = vmatprep.subr.mxu0 0.0
    %1919 = vmatpush1.msra.mxu0 0.0
    %1920 = vmatprep.subr.mxu0 0.0
    %1921 = vmatpush1.msra.mxu0 0.0
    %1922 = vmatprep.subr.mxu0 0.0
    %1923 = vmatpush1.msra.mxu0 0.0
    %1924 = vmatprep.subr.mxu0 0.0
    %1925 = vmatpush1.msra.mxu0 0.0
    %1926 = vmatprep.subr.mxu0 0.0
    %1927 = vmatpush1.msra.mxu0 0.0
    %1928 = vmatprep.subr.mxu0 0.0
    %1929 = vmatpush1.msra.mxu0 0.0
    %1930 = vmatprep.subr.mxu0 0.0
    %1931 = vmatpush1.msra.mxu0 0.0
    %1932 = vmatprep.subr.mxu0 0.0
    %1933 = vmatpush1.msra.mxu0 0.0
    %1934 = vmatprep.subr.mxu0 0.0
    %1935 = vmatpush1.msra.mxu0 0.0
    %1936 = vmatprep.subr.mxu0 0.0
    %1937 = vmatpush1.msra.mxu0 0.0
    %1938 = vmatprep.subr.mxu0 0.0
    %1939 = vmatpush1.msra.mxu0 0.0
    %1940 = vmatprep.subr.mxu0 0.0
    %1941 = vmatpush1.msra.mxu0 0.0
    %1942 = vmatprep.subr.mxu0 0.0
    %1943 = vmatpush1.msra.mxu0 0.0
    %1944 = vmatprep.subr.mxu0 0.0
    %1945 = vmatpush1.msra.mxu0 0.0
    %1946 = vmatprep.subr.mxu0 0.0
    %1947 = vmatpush1.msra.mxu0 0.0
    %1948 = vmatprep.subr.mxu0 0.0
    %1949 = vmatpush1.msra.mxu0 0.0
    %1950 = vmatprep.subr.mxu0 0.0
    %1951 = vmatpush1.msra.mxu0 0.0
    %1952 = vmatprep.subr.mxu0 0.0
    %1953 = vmatpush1.msra.mxu0 0.0
    %1954 = vmatprep.subr.mxu0 0.0
    %1955 = vmatpush1.msra.mxu0 0.0
    %1956 = vmatprep.subr.mxu0 0.0
    %1957 = vmatpush1.msra.mxu0 0.0
    %1958 = vmatprep.subr.mxu0 0.0
    %1959 = vmatpush1.msra.mxu0 0.0
    %1960 = vmatprep.subr.mxu0 0.0
    %1961 = vmatpush1.msra.mxu0 0.0
    %1962 = vmatprep.subr.mxu0 0.0
    %1963 = vmatpush1.msra.mxu0 0.0
    %1964 = vmatprep.subr.mxu0 0.0
    %1965 = vmatpush1.msra.mxu0 0.0
    %1966 = vmatprep.subr.mxu0 0.0
    %1967 = vmatpush1.msra.mxu0 0.0
    %1968 = vmatprep.subr.mxu0 0.0
    %1969 = vmatpush1.msra.mxu0 0.0
    %1970 = vmatprep.subr.mxu0 0.0
    %1971 = vmatpush1.msra.mxu0 0.0
    %1972 = vmatprep.subr.mxu0 0.0
    %1973 = vmatpush1.msra.mxu0 0.0
    %1974 = vmatprep.subr.mxu0 0.0
    %1975 = vmatpush1.msra.mxu0 0.0
    %1976 = vmatprep.subr.mxu0 0.0
    %1977 = vmatpush1.msra.mxu0 0.0
    %1978 = vmatprep.mubr.f32.mxu0 0.0
    %1979 = vmatmul.mubr.f32.gmra.mrb[0].mxu0 %v1912
    %v1980 = vpop.f32.mrb[0].mxu0
    %v1981 = vadd.f32 0.0, %v1980
    %v1982 = vpop.f32.mrb[0].mxu0
    %1983 = vdwg.mxu0
    %1985 = vrot.lane.b32.xlu0 %v1649, 8
    %v1986 = vpop.permute.xlu0 %1985
    %1989 = vrot.lane.b32.xlu0 %v1815, 16
    %v1990 = vpop.permute.xlu0 %1989
    %1993 = vrot.lane.b32.xlu0 %v1981, 24
    %v1994 = vpop.permute.xlu0 %1993
    %v1996 = vsel %vm643, %v1483, %v1986
    %v1997 = vsel %vm1317, %v1996, %v1990
    %v1998 = vsel %vm1319, %v1997, %v1994
    %v2000 = vlaneseq
    %v2001 = vshrl.u32 %v2000, 7
    %v2002 = vsub.s32 0, %v2001
    %v2003 = vrot.slane %v516, %v2002
    %v2006 = vsel %vm558, %v1320, 0
    %v2009 = vsel %vm558, %v1998, 0
    %2011 = vmatprep.subr.mxu0 0.0
    %2012 = vmatpush1.msra.mxu0 %v512
    %2013 = vmatprep.subr.mxu0 0.0
    %2014 = vmatpush1.msra.mxu0 %v513
    %2015 = vmatprep.subr.mxu0 0.0
    %2016 = vmatpush1.msra.mxu0 %v514
    %2017 = vmatprep.subr.mxu0 0.0
    %2018 = vmatpush1.msra.mxu0 %v515
    %2019 = vmatprep.subr.mxu0 0.0
    %2020 = vmatpush1.msra.mxu0 0.0
    %2021 = vmatprep.subr.mxu0 0.0
    %2022 = vmatpush1.msra.mxu0 0.0
    %2023 = vmatprep.subr.mxu0 0.0
    %2024 = vmatpush1.msra.mxu0 0.0
    %2025 = vmatprep.subr.mxu0 0.0
    %2026 = vmatpush1.msra.mxu0 0.0
    %2027 = vmatprep.subr.mxu0 0.0
    %2028 = vmatpush1.msra.mxu0 0.0
    %2029 = vmatprep.subr.mxu0 0.0
    %2030 = vmatpush1.msra.mxu0 0.0
    %2031 = vmatprep.subr.mxu0 0.0
    %2032 = vmatpush1.msra.mxu0 0.0
    %2033 = vmatprep.subr.mxu0 0.0
    %2034 = vmatpush1.msra.mxu0 0.0
    %2035 = vmatprep.subr.mxu0 0.0
    %2036 = vmatpush1.msra.mxu0 0.0
    %2037 = vmatprep.subr.mxu0 0.0
    %2038 = vmatpush1.msra.mxu0 0.0
    %2039 = vmatprep.subr.mxu0 0.0
    %2040 = vmatpush1.msra.mxu0 0.0
    %2041 = vmatprep.subr.mxu0 0.0
    %2042 = vmatpush1.msra.mxu0 0.0
    %2043 = vmatprep.subr.mxu0 0.0
    %2044 = vmatpush1.msra.mxu0 0.0
    %2045 = vmatprep.subr.mxu0 0.0
    %2046 = vmatpush1.msra.mxu0 0.0
    %2047 = vmatprep.subr.mxu0 0.0
    %2048 = vmatpush1.msra.mxu0 0.0
    %2049 = vmatprep.subr.mxu0 0.0
    %2050 = vmatpush1.msra.mxu0 0.0
    %2051 = vmatprep.subr.mxu0 0.0
    %2052 = vmatpush1.msra.mxu0 0.0
    %2053 = vmatprep.subr.mxu0 0.0
    %2054 = vmatpush1.msra.mxu0 0.0
    %2055 = vmatprep.subr.mxu0 0.0
    %2056 = vmatpush1.msra.mxu0 0.0
    %2057 = vmatprep.subr.mxu0 0.0
    %2058 = vmatpush1.msra.mxu0 0.0
    %2059 = vmatprep.subr.mxu0 0.0
    %2060 = vmatpush1.msra.mxu0 0.0
    %2061 = vmatprep.subr.mxu0 0.0
    %2062 = vmatpush1.msra.mxu0 0.0
    %2063 = vmatprep.subr.mxu0 0.0
    %2064 = vmatpush1.msra.mxu0 0.0
    %2065 = vmatprep.subr.mxu0 0.0
    %2066 = vmatpush1.msra.mxu0 0.0
    %2067 = vmatprep.subr.mxu0 0.0
    %2068 = vmatpush1.msra.mxu0 0.0
    %2069 = vmatprep.subr.mxu0 0.0
    %2070 = vmatpush1.msra.mxu0 0.0
    %2071 = vmatprep.subr.mxu0 0.0
    %2072 = vmatpush1.msra.mxu0 0.0
    %2073 = vmatprep.subr.mxu0 0.0
    %2074 = vmatpush1.msra.mxu0 0.0
    %2075 = vmatprep.mubr.f32.mxu0 0.0
    %2076 = vmatmul.mubr.f32.gmra.mrb[0].mxu0 %v2006
    %v2077 = vpop.f32.mrb[0].mxu0
    %v2078 = vadd.f32 %v2003, %v2077
    %v2079 = vpop.f32.mrb[0].mxu0
    %2080 = vmatprep.mubr.f32.mxu0 0.0
    %2081 = vmatmul.mubr.f32.gmra.mrb[0].mxu0 %v2009
    %v2082 = vpop.f32.mrb[0].mxu0
    %v2083 = vadd.f32 %v2003, %v2082
    %v2084 = vpop.f32.mrb[0].mxu0
    %2085 = vdwg.mxu0
    %v2086 = vsel %vm558, %v2078, 0.0
    %2087 = vadd.xlane.f32.xlu0 %v2086
    %v2088 = vpop.xlane.xlu0 %2087
    %v2089 = vsel %vm558, %v2083, 0.0
    %2090 = vadd.xlane.f32.xlu0 %v2089
    %v2091 = vpop.xlane.xlu0 %2090
    %v2092 = vrcp.pop 32.0
    %v2093 = vmul.f32 %v2088, %v2092
    %v2094 = vmul.f32 %v2091, %v2092
    %v2095 = vsub.f32 %v2078, %v2093
    %v2096 = vsub.f32 %v2083, %v2094
    %v2097 = vmul.f32 %v2095, %v2095
    %v2098 = vmul.f32 %v2096, %v2096
    %v2099 = vsel %vm558, %v2097, 0.0
    %2100 = vadd.xlane.f32.xlu0 %v2099
    %v2101 = vpop.xlane.xlu0 %2100
    %v2102 = vsel %vm558, %v2098, 0.0
    %2103 = vadd.xlane.f32.xlu0 %v2102
    %v2104 = vpop.xlane.xlu0 %2103
    %v2105 = vrcp.pop 31.0
    %v2106 = vmul.f32 %v2101, %v2105
    %v2107 = vmul.f32 %v2104, %v2105
    %v2108 = vrsqrt.pop %v2106
    %v2109 = vmul.f32 %v2106, %v2108
    %vm2110 = vcmp.eq.f32.partialorder %v2106, inf
    %v2111 = vsel %vm2110, %v2106, %v2109
    %vm2112 = vcmp.eq.f32.partialorder %v2106, 0.0
    %v2113 = vand.u32 %v2106, 2147483648
    %v2114 = vsel %vm2112, %v2113, %v2111
    %v2115 = vrsqrt.pop %v2107
    %v2116 = vmul.f32 %v2107, %v2115
    %vm2117 = vcmp.eq.f32.partialorder %v2107, inf
    %v2118 = vsel %vm2117, %v2107, %v2116
    %vm2119 = vcmp.eq.f32.partialorder %v2107, 0.0
    %v2120 = vand.u32 %v2107, 2147483648
    %v2121 = vsel %vm2119, %v2120, %v2118
    %v2123 = vlaneseq
    %v2124 = vshrl.u32 %v2123, 7
    %v2125 = vsub.s32 0, %v2124
    %v2126 = vrot.slane %v517, %v2125
    %v2128 = vmul.f32 %v2126, %v2095
    %v2129 = vmul.f32 %v2126, %v2096
    %v2130 = vadd.f32 %v2114, 1e-06
    %v2131 = vadd.f32 %v2121, 1e-06
    %v2132 = vrcp.pop %v2130
    %v2133 = vmul.f32 %v2128, %v2132
    %v2134 = vrcp.pop %v2131
    %v2135 = vmul.f32 %v2129, %v2134
    %v2136 = vadd.f32 %v498, %v2133
    %v2137 = vadd.f32 %v499, %v2135
    %v2139 = vlaneseq
    %v2140 = vshrl.u32 %v2139, 7
    %v2141 = vsub.s32 0, %v2140
    %v2142 = vrot.slane %v518, %v2141
    %v2144 = vadd.f32 %v2136, %v2142
    %v2145 = vadd.f32 %v2137, %v2142
    %v2147 = vlaneseq
    %v2148 = vshrl.u32 %v2147, 7
    %v2149 = vsub.s32 0, %v2148
    %v2150 = vrot.slane %v523, %v2149
    %v2153 = vsel %vm558, %v2144, 0
    %v2156 = vsel %vm558, %v2145, 0
    %2158 = vmatprep.subr.mxu0 0.0
    %2159 = vmatpush1.msra.mxu0 %v519
    %2160 = vmatprep.subr.mxu0 0.0
    %2161 = vmatpush1.msra.mxu0 %v520
    %2162 = vmatprep.subr.mxu0 0.0
    %2163 = vmatpush1.msra.mxu0 %v521
    %2164 = vmatprep.subr.mxu0 0.0
    %2165 = vmatpush1.msra.mxu0 %v522
    %2166 = vmatprep.subr.mxu0 0.0
    %2167 = vmatpush1.msra.mxu0 0.0
    %2168 = vmatprep.subr.mxu0 0.0
    %2169 = vmatpush1.msra.mxu0 0.0
    %2170 = vmatprep.subr.mxu0 0.0
    %2171 = vmatpush1.msra.mxu0 0.0
    %2172 = vmatprep.subr.mxu0 0.0
    %2173 = vmatpush1.msra.mxu0 0.0
    %2174 = vmatprep.subr.mxu0 0.0
    %2175 = vmatpush1.msra.mxu0 0.0
    %2176 = vmatprep.subr.mxu0 0.0
    %2177 = vmatpush1.msra.mxu0 0.0
    %2178 = vmatprep.subr.mxu0 0.0
    %2179 = vmatpush1.msra.mxu0 0.0
    %2180 = vmatprep.subr.mxu0 0.0
    %2181 = vmatpush1.msra.mxu0 0.0
    %2182 = vmatprep.subr.mxu0 0.0
    %2183 = vmatpush1.msra.mxu0 0.0
    %2184 = vmatprep.subr.mxu0 0.0
    %2185 = vmatpush1.msra.mxu0 0.0
    %2186 = vmatprep.subr.mxu0 0.0
    %2187 = vmatpush1.msra.mxu0 0.0
    %2188 = vmatprep.subr.mxu0 0.0
    %2189 = vmatpush1.msra.mxu0 0.0
    %2190 = vmatprep.subr.mxu0 0.0
    %2191 = vmatpush1.msra.mxu0 0.0
    %2192 = vmatprep.subr.mxu0 0.0
    %2193 = vmatpush1.msra.mxu0 0.0
    %2194 = vmatprep.subr.mxu0 0.0
    %2195 = vmatpush1.msra.mxu0 0.0
    %2196 = vmatprep.subr.mxu0 0.0
    %2197 = vmatpush1.msra.mxu0 0.0
    %2198 = vmatprep.subr.mxu0 0.0
    %2199 = vmatpush1.msra.mxu0 0.0
    %2200 = vmatprep.subr.mxu0 0.0
    %2201 = vmatpush1.msra.mxu0 0.0
    %2202 = vmatprep.subr.mxu0 0.0
    %2203 = vmatpush1.msra.mxu0 0.0
    %2204 = vmatprep.subr.mxu0 0.0
    %2205 = vmatpush1.msra.mxu0 0.0
    %2206 = vmatprep.subr.mxu0 0.0
    %2207 = vmatpush1.msra.mxu0 0.0
    %2208 = vmatprep.subr.mxu0 0.0
    %2209 = vmatpush1.msra.mxu0 0.0
    %2210 = vmatprep.subr.mxu0 0.0
    %2211 = vmatpush1.msra.mxu0 0.0
    %2212 = vmatprep.subr.mxu0 0.0
    %2213 = vmatpush1.msra.mxu0 0.0
    %2214 = vmatprep.subr.mxu0 0.0
    %2215 = vmatpush1.msra.mxu0 0.0
    %2216 = vmatprep.subr.mxu0 0.0
    %2217 = vmatpush1.msra.mxu0 0.0
    %2218 = vmatprep.subr.mxu0 0.0
    %2219 = vmatpush1.msra.mxu0 0.0
    %2220 = vmatprep.subr.mxu0 0.0
    %2221 = vmatpush1.msra.mxu0 0.0
    %2222 = vmatprep.mubr.f32.mxu0 0.0
    %2223 = vmatmul.mubr.f32.gmra.mrb[0].mxu0 %v2153
    %v2224 = vpop.f32.mrb[0].mxu0
    %v2225 = vadd.f32 %v2150, %v2224
    %v2226 = vpop.f32.mrb[0].mxu0
    %2227 = vmatprep.mubr.f32.mxu0 0.0
    %2228 = vmatmul.mubr.f32.gmra.mrb[0].mxu0 %v2156
    %v2229 = vpop.f32.mrb[0].mxu0
    %v2230 = vadd.f32 %v2150, %v2229
    %v2231 = vpop.f32.mrb[0].mxu0
    %2232 = vdwg.mxu0
    %v2234 = vlaneseq
    %v2235 = vshrl.u32 %v2234, 7
    %v2236 = vsub.s32 0, %v2235
    %v2237 = vrot.slane %v528, %v2236
    %v2240 = vsel %vm558, %v500, 0
    %v2243 = vsel %vm558, %v501, 0
    %2245 = vmatprep.subr.mxu0 0.0
    %2246 = vmatpush1.msra.mxu0 %v524
    %2247 = vmatprep.subr.mxu0 0.0
    %2248 = vmatpush1.msra.mxu0 %v525
    %2249 = vmatprep.subr.mxu0 0.0
    %2250 = vmatpush1.msra.mxu0 %v526
    %2251 = vmatprep.subr.mxu0 0.0
    %2252 = vmatpush1.msra.mxu0 %v527
    %2253 = vmatprep.subr.mxu0 0.0
    %2254 = vmatpush1.msra.mxu0 0.0
    %2255 = vmatprep.subr.mxu0 0.0
    %2256 = vmatpush1.msra.mxu0 0.0
    %2257 = vmatprep.subr.mxu0 0.0
    %2258 = vmatpush1.msra.mxu0 0.0
    %2259 = vmatprep.subr.mxu0 0.0
    %2260 = vmatpush1.msra.mxu0 0.0
    %2261 = vmatprep.subr.mxu0 0.0
    %2262 = vmatpush1.msra.mxu0 0.0
    %2263 = vmatprep.subr.mxu0 0.0
    %2264 = vmatpush1.msra.mxu0 0.0
    %2265 = vmatprep.subr.mxu0 0.0
    %2266 = vmatpush1.msra.mxu0 0.0
    %2267 = vmatprep.subr.mxu0 0.0
    %2268 = vmatpush1.msra.mxu0 0.0
    %2269 = vmatprep.subr.mxu0 0.0
    %2270 = vmatpush1.msra.mxu0 0.0
    %2271 = vmatprep.subr.mxu0 0.0
    %2272 = vmatpush1.msra.mxu0 0.0
    %2273 = vmatprep.subr.mxu0 0.0
    %2274 = vmatpush1.msra.mxu0 0.0
    %2275 = vmatprep.subr.mxu0 0.0
    %2276 = vmatpush1.msra.mxu0 0.0
    %2277 = vmatprep.subr.mxu0 0.0
    %2278 = vmatpush1.msra.mxu0 0.0
    %2279 = vmatprep.subr.mxu0 0.0
    %2280 = vmatpush1.msra.mxu0 0.0
    %2281 = vmatprep.subr.mxu0 0.0
    %2282 = vmatpush1.msra.mxu0 0.0
    %2283 = vmatprep.subr.mxu0 0.0
    %2284 = vmatpush1.msra.mxu0 0.0
    %2285 = vmatprep.subr.mxu0 0.0
    %2286 = vmatpush1.msra.mxu0 0.0
    %2287 = vmatprep.subr.mxu0 0.0
    %2288 = vmatpush1.msra.mxu0 0.0
    %2289 = vmatprep.subr.mxu0 0.0
    %2290 = vmatpush1.msra.mxu0 0.0
    %2291 = vmatprep.subr.mxu0 0.0
    %2292 = vmatpush1.msra.mxu0 0.0
    %2293 = vmatprep.subr.mxu0 0.0
    %2294 = vmatpush1.msra.mxu0 0.0
    %2295 = vmatprep.subr.mxu0 0.0
    %2296 = vmatpush1.msra.mxu0 0.0
    %2297 = vmatprep.subr.mxu0 0.0
    %2298 = vmatpush1.msra.mxu0 0.0
    %2299 = vmatprep.subr.mxu0 0.0
    %2300 = vmatpush1.msra.mxu0 0.0
    %2301 = vmatprep.subr.mxu0 0.0
    %2302 = vmatpush1.msra.mxu0 0.0
    %2303 = vmatprep.subr.mxu0 0.0
    %2304 = vmatpush1.msra.mxu0 0.0
    %2305 = vmatprep.subr.mxu0 0.0
    %2306 = vmatpush1.msra.mxu0 0.0
    %2307 = vmatprep.subr.mxu0 0.0
    %2308 = vmatpush1.msra.mxu0 0.0
    %2309 = vmatprep.mubr.f32.mxu0 0.0
    %2310 = vmatmul.mubr.f32.gmra.mrb[0].mxu0 %v2240
    %v2311 = vpop.f32.mrb[0].mxu0
    %v2312 = vadd.f32 %v2237, %v2311
    %v2313 = vpop.f32.mrb[0].mxu0
    %2314 = vmatprep.mubr.f32.mxu0 0.0
    %2315 = vmatmul.mubr.f32.gmra.mrb[0].mxu0 %v2243
    %v2316 = vpop.f32.mrb[0].mxu0
    %v2317 = vadd.f32 %v2237, %v2316
    %v2318 = vpop.f32.mrb[0].mxu0
    %2319 = vdwg.mxu0
    %v2321 = vsel %vm643, %v2225, 0
    %v2324 = vsel %vm643, %v2312, 0
    %2326 = vmatprep.subr.mxu0 0.0
    %2327 = vmatpush1.xpose.msra.mxu0 %v2324
    %2328 = vmatprep.subr.mxu0 0.0
    %2329 = vmatpush1.xpose.msra.mxu0 0.0
    %2330 = vmatprep.subr.mxu0 0.0
    %2331 = vmatpush1.xpose.msra.mxu0 0.0
    %2332 = vmatprep.subr.mxu0 0.0
    %2333 = vmatpush1.xpose.msra.mxu0 0.0
    %2334 = vmatprep.subr.mxu0 0.0
    %2335 = vmatpush1.xpose.msra.mxu0 0.0
    %2336 = vmatprep.subr.mxu0 0.0
    %2337 = vmatpush1.xpose.msra.mxu0 0.0
    %2338 = vmatprep.subr.mxu0 0.0
    %2339 = vmatpush1.xpose.msra.mxu0 0.0
    %2340 = vmatprep.subr.mxu0 0.0
    %2341 = vmatpush1.xpose.msra.mxu0 0.0
    %2342 = vmatprep.subr.mxu0 0.0
    %2343 = vmatpush1.xpose.msra.mxu0 0.0
    %2344 = vmatprep.subr.mxu0 0.0
    %2345 = vmatpush1.xpose.msra.mxu0 0.0
    %2346 = vmatprep.subr.mxu0 0.0
    %2347 = vmatpush1.xpose.msra.mxu0 0.0
    %2348 = vmatprep.subr.mxu0 0.0
    %2349 = vmatpush1.xpose.msra.mxu0 0.0
    %2350 = vmatprep.subr.mxu0 0.0
    %2351 = vmatpush1.xpose.msra.mxu0 0.0
    %2352 = vmatprep.subr.mxu0 0.0
    %2353 = vmatpush1.xpose.msra.mxu0 0.0
    %2354 = vmatprep.subr.mxu0 0.0
    %2355 = vmatpush1.xpose.msra.mxu0 0.0
    %2356 = vmatprep.subr.mxu0 0.0
    %2357 = vmatpush1.xpose.msra.mxu0 0.0
    %2358 = vmatprep.subr.mxu0 0.0
    %2359 = vmatpush1.xpose.msra.mxu0 0.0
    %2360 = vmatprep.subr.mxu0 0.0
    %2361 = vmatpush1.xpose.msra.mxu0 0.0
    %2362 = vmatprep.subr.mxu0 0.0
    %2363 = vmatpush1.xpose.msra.mxu0 0.0
    %2364 = vmatprep.subr.mxu0 0.0
    %2365 = vmatpush1.xpose.msra.mxu0 0.0
    %2366 = vmatprep.subr.mxu0 0.0
    %2367 = vmatpush1.xpose.msra.mxu0 0.0
    %2368 = vmatprep.subr.mxu0 0.0
    %2369 = vmatpush1.xpose.msra.mxu0 0.0
    %2370 = vmatprep.subr.mxu0 0.0
    %2371 = vmatpush1.xpose.msra.mxu0 0.0
    %2372 = vmatprep.subr.mxu0 0.0
    %2373 = vmatpush1.xpose.msra.mxu0 0.0
    %2374 = vmatprep.subr.mxu0 0.0
    %2375 = vmatpush1.xpose.msra.mxu0 0.0
    %2376 = vmatprep.subr.mxu0 0.0
    %2377 = vmatpush1.xpose.msra.mxu0 0.0
    %2378 = vmatprep.subr.mxu0 0.0
    %2379 = vmatpush1.xpose.msra.mxu0 0.0
    %2380 = vmatprep.subr.mxu0 0.0
    %2381 = vmatpush1.xpose.msra.mxu0 0.0
    %2382 = vmatprep.subr.mxu0 0.0
    %2383 = vmatpush1.xpose.msra.mxu0 0.0
    %2384 = vmatprep.subr.mxu0 0.0
    %2385 = vmatpush1.xpose.msra.mxu0 0.0
    %2386 = vmatprep.subr.mxu0 0.0
    %2387 = vmatpush1.xpose.msra.mxu0 0.0
    %2388 = vmatprep.subr.mxu0 0.0
    %2389 = vmatpush1.xpose.msra.mxu0 0.0
    %2390 = vmatprep.mubr.f32.mxu0 0.0
    %2391 = vmatmul.mubr.f32.gmra.mrb[0].mxu0 %v2321
    %v2392 = vpop.f32.mrb[0].mxu0
    %v2393 = vadd.f32 0.0, %v2392
    %v2394 = vpop.f32.mrb[0].mxu0
    %2395 = vdwg.mxu0
    %v2396 = vsel %vm643, %v2393, -inf
    %2397 = vmax.xlane.f32.xlu0 %v2396
    %v2398 = vpop.xlane.xlu0 %2397
    %v2399 = vsub.f32 %v2393, %v2398
    %v2400 = vmul.f32 %v2399, 1.442695
    %v2401 = vpow.pop %v2400
    %v2402 = vsel %vm643, %v2401, 0.0
    %2403 = vadd.xlane.f32.xlu0 %v2402
    %v2404 = vpop.xlane.xlu0 %2403
    %v2405 = vrcp.pop %v2404
    %v2406 = vmul.f32 %v2401, %v2405
    %2407 = vrot.lane.b32.xlu0 %v2312, 96
    %v2408 = vpop.permute.xlu0 %2407
    %v2411 = vsel %vm643, %v2406, 0
    %2413 = vmatprep.subr.mxu0 0.0
    %2414 = vmatpush1.msra.mxu0 %v2408
    %2415 = vmatprep.subr.mxu0 0.0
    %2416 = vmatpush1.msra.mxu0 0.0
    %2417 = vmatprep.subr.mxu0 0.0
    %2418 = vmatpush1.msra.mxu0 0.0
    %2419 = vmatprep.subr.mxu0 0.0
    %2420 = vmatpush1.msra.mxu0 0.0
    %2421 = vmatprep.subr.mxu0 0.0
    %2422 = vmatpush1.msra.mxu0 0.0
    %2423 = vmatprep.subr.mxu0 0.0
    %2424 = vmatpush1.msra.mxu0 0.0
    %2425 = vmatprep.subr.mxu0 0.0
    %2426 = vmatpush1.msra.mxu0 0.0
    %2427 = vmatprep.subr.mxu0 0.0
    %2428 = vmatpush1.msra.mxu0 0.0
    %2429 = vmatprep.subr.mxu0 0.0
    %2430 = vmatpush1.msra.mxu0 0.0
    %2431 = vmatprep.subr.mxu0 0.0
    %2432 = vmatpush1.msra.mxu0 0.0
    %2433 = vmatprep.subr.mxu0 0.0
    %2434 = vmatpush1.msra.mxu0 0.0
    %2435 = vmatprep.subr.mxu0 0.0
    %2436 = vmatpush1.msra.mxu0 0.0
    %2437 = vmatprep.subr.mxu0 0.0
    %2438 = vmatpush1.msra.mxu0 0.0
    %2439 = vmatprep.subr.mxu0 0.0
    %2440 = vmatpush1.msra.mxu0 0.0
    %2441 = vmatprep.subr.mxu0 0.0
    %2442 = vmatpush1.msra.mxu0 0.0
    %2443 = vmatprep.subr.mxu0 0.0
    %2444 = vmatpush1.msra.mxu0 0.0
    %2445 = vmatprep.subr.mxu0 0.0
    %2446 = vmatpush1.msra.mxu0 0.0
    %2447 = vmatprep.subr.mxu0 0.0
    %2448 = vmatpush1.msra.mxu0 0.0
    %2449 = vmatprep.subr.mxu0 0.0
    %2450 = vmatpush1.msra.mxu0 0.0
    %2451 = vmatprep.subr.mxu0 0.0
    %2452 = vmatpush1.msra.mxu0 0.0
    %2453 = vmatprep.subr.mxu0 0.0
    %2454 = vmatpush1.msra.mxu0 0.0
    %2455 = vmatprep.subr.mxu0 0.0
    %2456 = vmatpush1.msra.mxu0 0.0
    %2457 = vmatprep.subr.mxu0 0.0
    %2458 = vmatpush1.msra.mxu0 0.0
    %2459 = vmatprep.subr.mxu0 0.0
    %2460 = vmatpush1.msra.mxu0 0.0
    %2461 = vmatprep.subr.mxu0 0.0
    %2462 = vmatpush1.msra.mxu0 0.0
    %2463 = vmatprep.subr.mxu0 0.0
    %2464 = vmatpush1.msra.mxu0 0.0
    %2465 = vmatprep.subr.mxu0 0.0
    %2466 = vmatpush1.msra.mxu0 0.0
    %2467 = vmatprep.subr.mxu0 0.0
    %2468 = vmatpush1.msra.mxu0 0.0
    %2469 = vmatprep.subr.mxu0 0.0
    %2470 = vmatpush1.msra.mxu0 0.0
    %2471 = vmatprep.subr.mxu0 0.0
    %2472 = vmatpush1.msra.mxu0 0.0
    %2473 = vmatprep.subr.mxu0 0.0
    %2474 = vmatpush1.msra.mxu0 0.0
    %2475 = vmatprep.subr.mxu0 0.0
    %2476 = vmatpush1.msra.mxu0 0.0
    %2477 = vmatprep.mubr.f32.mxu0 0.0
    %2478 = vmatmul.mubr.f32.gmra.mrb[0].mxu0 %v2411
    %v2479 = vpop.f32.mrb[0].mxu0
    %v2480 = vadd.f32 0.0, %v2479
    %v2481 = vpop.f32.mrb[0].mxu0
    %2482 = vdwg.mxu0
    %2483 = vrot.lane.b32.xlu0 %v2225, 120
    %v2484 = vpop.permute.xlu0 %2483
    %2485 = vrot.lane.b32.xlu0 %v2312, 120
    %v2486 = vpop.permute.xlu0 %2485
    %v2487 = vsel %vm643, %v2484, 0
    %v2489 = vsel %vm643, %v2486, 0
    %2491 = vmatprep.subr.mxu0 0.0
    %2492 = vmatpush1.xpose.msra.mxu0 %v2489
    %2493 = vmatprep.subr.mxu0 0.0
    %2494 = vmatpush1.xpose.msra.mxu0 0.0
    %2495 = vmatprep.subr.mxu0 0.0
    %2496 = vmatpush1.xpose.msra.mxu0 0.0
    %2497 = vmatprep.subr.mxu0 0.0
    %2498 = vmatpush1.xpose.msra.mxu0 0.0
    %2499 = vmatprep.subr.mxu0 0.0
    %2500 = vmatpush1.xpose.msra.mxu0 0.0
    %2501 = vmatprep.subr.mxu0 0.0
    %2502 = vmatpush1.xpose.msra.mxu0 0.0
    %2503 = vmatprep.subr.mxu0 0.0
    %2504 = vmatpush1.xpose.msra.mxu0 0.0
    %2505 = vmatprep.subr.mxu0 0.0
    %2506 = vmatpush1.xpose.msra.mxu0 0.0
    %2507 = vmatprep.subr.mxu0 0.0
    %2508 = vmatpush1.xpose.msra.mxu0 0.0
    %2509 = vmatprep.subr.mxu0 0.0
    %2510 = vmatpush1.xpose.msra.mxu0 0.0
    %2511 = vmatprep.subr.mxu0 0.0
    %2512 = vmatpush1.xpose.msra.mxu0 0.0
    %2513 = vmatprep.subr.mxu0 0.0
    %2514 = vmatpush1.xpose.msra.mxu0 0.0
    %2515 = vmatprep.subr.mxu0 0.0
    %2516 = vmatpush1.xpose.msra.mxu0 0.0
    %2517 = vmatprep.subr.mxu0 0.0
    %2518 = vmatpush1.xpose.msra.mxu0 0.0
    %2519 = vmatprep.subr.mxu0 0.0
    %2520 = vmatpush1.xpose.msra.mxu0 0.0
    %2521 = vmatprep.subr.mxu0 0.0
    %2522 = vmatpush1.xpose.msra.mxu0 0.0
    %2523 = vmatprep.subr.mxu0 0.0
    %2524 = vmatpush1.xpose.msra.mxu0 0.0
    %2525 = vmatprep.subr.mxu0 0.0
    %2526 = vmatpush1.xpose.msra.mxu0 0.0
    %2527 = vmatprep.subr.mxu0 0.0
    %2528 = vmatpush1.xpose.msra.mxu0 0.0
    %2529 = vmatprep.subr.mxu0 0.0
    %2530 = vmatpush1.xpose.msra.mxu0 0.0
    %2531 = vmatprep.subr.mxu0 0.0
    %2532 = vmatpush1.xpose.msra.mxu0 0.0
    %2533 = vmatprep.subr.mxu0 0.0
    %2534 = vmatpush1.xpose.msra.mxu0 0.0
    %2535 = vmatprep.subr.mxu0 0.0
    %2536 = vmatpush1.xpose.msra.mxu0 0.0
    %2537 = vmatprep.subr.mxu0 0.0
    %2538 = vmatpush1.xpose.msra.mxu0 0.0
    %2539 = vmatprep.subr.mxu0 0.0
    %2540 = vmatpush1.xpose.msra.mxu0 0.0
    %2541 = vmatprep.subr.mxu0 0.0
    %2542 = vmatpush1.xpose.msra.mxu0 0.0
    %2543 = vmatprep.subr.mxu0 0.0
    %2544 = vmatpush1.xpose.msra.mxu0 0.0
    %2545 = vmatprep.subr.mxu0 0.0
    %2546 = vmatpush1.xpose.msra.mxu0 0.0
    %2547 = vmatprep.subr.mxu0 0.0
    %2548 = vmatpush1.xpose.msra.mxu0 0.0
    %2549 = vmatprep.subr.mxu0 0.0
    %2550 = vmatpush1.xpose.msra.mxu0 0.0
    %2551 = vmatprep.subr.mxu0 0.0
    %2552 = vmatpush1.xpose.msra.mxu0 0.0
    %2553 = vmatprep.subr.mxu0 0.0
    %2554 = vmatpush1.xpose.msra.mxu0 0.0
    %2555 = vmatprep.mubr.f32.mxu0 0.0
    %2556 = vmatmul.mubr.f32.gmra.mrb[0].mxu0 %v2487
    %v2557 = vpop.f32.mrb[0].mxu0
    %v2558 = vadd.f32 0.0, %v2557
    %v2559 = vpop.f32.mrb[0].mxu0
    %2560 = vdwg.mxu0
    %v2561 = vsel %vm643, %v2558, -inf
    %2562 = vmax.xlane.f32.xlu0 %v2561
    %v2563 = vpop.xlane.xlu0 %2562
    %v2564 = vsub.f32 %v2558, %v2563
    %v2565 = vmul.f32 %v2564, 1.442695
    %v2566 = vpow.pop %v2565
    %v2567 = vsel %vm643, %v2566, 0.0
    %2568 = vadd.xlane.f32.xlu0 %v2567
    %v2569 = vpop.xlane.xlu0 %2568
    %v2570 = vrcp.pop %v2569
    %v2571 = vmul.f32 %v2566, %v2570
    %2572 = vrot.lane.b32.xlu0 %v2312, 88
    %v2573 = vpop.permute.xlu0 %2572
    %v2576 = vsel %vm643, %v2571, 0
    %2578 = vmatprep.subr.mxu0 0.0
    %2579 = vmatpush1.msra.mxu0 %v2573
    %2580 = vmatprep.subr.mxu0 0.0
    %2581 = vmatpush1.msra.mxu0 0.0
    %2582 = vmatprep.subr.mxu0 0.0
    %2583 = vmatpush1.msra.mxu0 0.0
    %2584 = vmatprep.subr.mxu0 0.0
    %2585 = vmatpush1.msra.mxu0 0.0
    %2586 = vmatprep.subr.mxu0 0.0
    %2587 = vmatpush1.msra.mxu0 0.0
    %2588 = vmatprep.subr.mxu0 0.0
    %2589 = vmatpush1.msra.mxu0 0.0
    %2590 = vmatprep.subr.mxu0 0.0
    %2591 = vmatpush1.msra.mxu0 0.0
    %2592 = vmatprep.subr.mxu0 0.0
    %2593 = vmatpush1.msra.mxu0 0.0
    %2594 = vmatprep.subr.mxu0 0.0
    %2595 = vmatpush1.msra.mxu0 0.0
    %2596 = vmatprep.subr.mxu0 0.0
    %2597 = vmatpush1.msra.mxu0 0.0
    %2598 = vmatprep.subr.mxu0 0.0
    %2599 = vmatpush1.msra.mxu0 0.0
    %2600 = vmatprep.subr.mxu0 0.0
    %2601 = vmatpush1.msra.mxu0 0.0
    %2602 = vmatprep.subr.mxu0 0.0
    %2603 = vmatpush1.msra.mxu0 0.0
    %2604 = vmatprep.subr.mxu0 0.0
    %2605 = vmatpush1.msra.mxu0 0.0
    %2606 = vmatprep.subr.mxu0 0.0
    %2607 = vmatpush1.msra.mxu0 0.0
    %2608 = vmatprep.subr.mxu0 0.0
    %2609 = vmatpush1.msra.mxu0 0.0
    %2610 = vmatprep.subr.mxu0 0.0
    %2611 = vmatpush1.msra.mxu0 0.0
    %2612 = vmatprep.subr.mxu0 0.0
    %2613 = vmatpush1.msra.mxu0 0.0
    %2614 = vmatprep.subr.mxu0 0.0
    %2615 = vmatpush1.msra.mxu0 0.0
    %2616 = vmatprep.subr.mxu0 0.0
    %2617 = vmatpush1.msra.mxu0 0.0
    %2618 = vmatprep.subr.mxu0 0.0
    %2619 = vmatpush1.msra.mxu0 0.0
    %2620 = vmatprep.subr.mxu0 0.0
    %2621 = vmatpush1.msra.mxu0 0.0
    %2622 = vmatprep.subr.mxu0 0.0
    %2623 = vmatpush1.msra.mxu0 0.0
    %2624 = vmatprep.subr.mxu0 0.0
    %2625 = vmatpush1.msra.mxu0 0.0
    %2626 = vmatprep.subr.mxu0 0.0
    %2627 = vmatpush1.msra.mxu0 0.0
    %2628 = vmatprep.subr.mxu0 0.0
    %2629 = vmatpush1.msra.mxu0 0.0
    %2630 = vmatprep.subr.mxu0 0.0
    %2631 = vmatpush1.msra.mxu0 0.0
    %2632 = vmatprep.subr.mxu0 0.0
    %2633 = vmatpush1.msra.mxu0 0.0
    %2634 = vmatprep.subr.mxu0 0.0
    %2635 = vmatpush1.msra.mxu0 0.0
    %2636 = vmatprep.subr.mxu0 0.0
    %2637 = vmatpush1.msra.mxu0 0.0
    %2638 = vmatprep.subr.mxu0 0.0
    %2639 = vmatpush1.msra.mxu0 0.0
    %2640 = vmatprep.subr.mxu0 0.0
    %2641 = vmatpush1.msra.mxu0 0.0
    %2642 = vmatprep.mubr.f32.mxu0 0.0
    %2643 = vmatmul.mubr.f32.gmra.mrb[0].mxu0 %v2576
    %v2644 = vpop.f32.mrb[0].mxu0
    %v2645 = vadd.f32 0.0, %v2644
    %v2646 = vpop.f32.mrb[0].mxu0
    %2647 = vdwg.mxu0
    %2648 = vrot.lane.b32.xlu0 %v2225, 112
    %v2649 = vpop.permute.xlu0 %2648
    %2650 = vrot.lane.b32.xlu0 %v2312, 112
    %v2651 = vpop.permute.xlu0 %2650
    %v2652 = vsel %vm643, %v2649, 0
    %v2654 = vsel %vm643, %v2651, 0
    %2656 = vmatprep.subr.mxu0 0.0
    %2657 = vmatpush1.xpose.msra.mxu0 %v2654
    %2658 = vmatprep.subr.mxu0 0.0
    %2659 = vmatpush1.xpose.msra.mxu0 0.0
    %2660 = vmatprep.subr.mxu0 0.0
    %2661 = vmatpush1.xpose.msra.mxu0 0.0
    %2662 = vmatprep.subr.mxu0 0.0
    %2663 = vmatpush1.xpose.msra.mxu0 0.0
    %2664 = vmatprep.subr.mxu0 0.0
    %2665 = vmatpush1.xpose.msra.mxu0 0.0
    %2666 = vmatprep.subr.mxu0 0.0
    %2667 = vmatpush1.xpose.msra.mxu0 0.0
    %2668 = vmatprep.subr.mxu0 0.0
    %2669 = vmatpush1.xpose.msra.mxu0 0.0
    %2670 = vmatprep.subr.mxu0 0.0
    %2671 = vmatpush1.xpose.msra.mxu0 0.0
    %2672 = vmatprep.subr.mxu0 0.0
    %2673 = vmatpush1.xpose.msra.mxu0 0.0
    %2674 = vmatprep.subr.mxu0 0.0
    %2675 = vmatpush1.xpose.msra.mxu0 0.0
    %2676 = vmatprep.subr.mxu0 0.0
    %2677 = vmatpush1.xpose.msra.mxu0 0.0
    %2678 = vmatprep.subr.mxu0 0.0
    %2679 = vmatpush1.xpose.msra.mxu0 0.0
    %2680 = vmatprep.subr.mxu0 0.0
    %2681 = vmatpush1.xpose.msra.mxu0 0.0
    %2682 = vmatprep.subr.mxu0 0.0
    %2683 = vmatpush1.xpose.msra.mxu0 0.0
    %2684 = vmatprep.subr.mxu0 0.0
    %2685 = vmatpush1.xpose.msra.mxu0 0.0
    %2686 = vmatprep.subr.mxu0 0.0
    %2687 = vmatpush1.xpose.msra.mxu0 0.0
    %2688 = vmatprep.subr.mxu0 0.0
    %2689 = vmatpush1.xpose.msra.mxu0 0.0
    %2690 = vmatprep.subr.mxu0 0.0
    %2691 = vmatpush1.xpose.msra.mxu0 0.0
    %2692 = vmatprep.subr.mxu0 0.0
    %2693 = vmatpush1.xpose.msra.mxu0 0.0
    %2694 = vmatprep.subr.mxu0 0.0
    %2695 = vmatpush1.xpose.msra.mxu0 0.0
    %2696 = vmatprep.subr.mxu0 0.0
    %2697 = vmatpush1.xpose.msra.mxu0 0.0
    %2698 = vmatprep.subr.mxu0 0.0
    %2699 = vmatpush1.xpose.msra.mxu0 0.0
    %2700 = vmatprep.subr.mxu0 0.0
    %2701 = vmatpush1.xpose.msra.mxu0 0.0
    %2702 = vmatprep.subr.mxu0 0.0
    %2703 = vmatpush1.xpose.msra.mxu0 0.0
    %2704 = vmatprep.subr.mxu0 0.0
    %2705 = vmatpush1.xpose.msra.mxu0 0.0
    %2706 = vmatprep.subr.mxu0 0.0
    %2707 = vmatpush1.xpose.msra.mxu0 0.0
    %2708 = vmatprep.subr.mxu0 0.0
    %2709 = vmatpush1.xpose.msra.mxu0 0.0
    %2710 = vmatprep.subr.mxu0 0.0
    %2711 = vmatpush1.xpose.msra.mxu0 0.0
    %2712 = vmatprep.subr.mxu0 0.0
    %2713 = vmatpush1.xpose.msra.mxu0 0.0
    %2714 = vmatprep.subr.mxu0 0.0
    %2715 = vmatpush1.xpose.msra.mxu0 0.0
    %2716 = vmatprep.subr.mxu0 0.0
    %2717 = vmatpush1.xpose.msra.mxu0 0.0
    %2718 = vmatprep.subr.mxu0 0.0
    %2719 = vmatpush1.xpose.msra.mxu0 0.0
    %2720 = vmatprep.mubr.f32.mxu0 0.0
    %2721 = vmatmul.mubr.f32.gmra.mrb[0].mxu0 %v2652
    %v2722 = vpop.f32.mrb[0].mxu0
    %v2723 = vadd.f32 0.0, %v2722
    %v2724 = vpop.f32.mrb[0].mxu0
    %2725 = vdwg.mxu0
    %v2726 = vsel %vm643, %v2723, -inf
    %2727 = vmax.xlane.f32.xlu0 %v2726
    %v2728 = vpop.xlane.xlu0 %2727
    %v2729 = vsub.f32 %v2723, %v2728
    %v2730 = vmul.f32 %v2729, 1.442695
    %v2731 = vpow.pop %v2730
    %v2732 = vsel %vm643, %v2731, 0.0
    %2733 = vadd.xlane.f32.xlu0 %v2732
    %v2734 = vpop.xlane.xlu0 %2733
    %v2735 = vrcp.pop %v2734
    %v2736 = vmul.f32 %v2731, %v2735
    %2737 = vrot.lane.b32.xlu0 %v2312, 80
    %v2738 = vpop.permute.xlu0 %2737
    %v2741 = vsel %vm643, %v2736, 0
    %2743 = vmatprep.subr.mxu0 0.0
    %2744 = vmatpush1.msra.mxu0 %v2738
    %2745 = vmatprep.subr.mxu0 0.0
    %2746 = vmatpush1.msra.mxu0 0.0
    %2747 = vmatprep.subr.mxu0 0.0
    %2748 = vmatpush1.msra.mxu0 0.0
    %2749 = vmatprep.subr.mxu0 0.0
    %2750 = vmatpush1.msra.mxu0 0.0
    %2751 = vmatprep.subr.mxu0 0.0
    %2752 = vmatpush1.msra.mxu0 0.0
    %2753 = vmatprep.subr.mxu0 0.0
    %2754 = vmatpush1.msra.mxu0 0.0
    %2755 = vmatprep.subr.mxu0 0.0
    %2756 = vmatpush1.msra.mxu0 0.0
    %2757 = vmatprep.subr.mxu0 0.0
    %2758 = vmatpush1.msra.mxu0 0.0
    %2759 = vmatprep.subr.mxu0 0.0
    %2760 = vmatpush1.msra.mxu0 0.0
    %2761 = vmatprep.subr.mxu0 0.0
    %2762 = vmatpush1.msra.mxu0 0.0
    %2763 = vmatprep.subr.mxu0 0.0
    %2764 = vmatpush1.msra.mxu0 0.0
    %2765 = vmatprep.subr.mxu0 0.0
    %2766 = vmatpush1.msra.mxu0 0.0
    %2767 = vmatprep.subr.mxu0 0.0
    %2768 = vmatpush1.msra.mxu0 0.0
    %2769 = vmatprep.subr.mxu0 0.0
    %2770 = vmatpush1.msra.mxu0 0.0
    %2771 = vmatprep.subr.mxu0 0.0
    %2772 = vmatpush1.msra.mxu0 0.0
    %2773 = vmatprep.subr.mxu0 0.0
    %2774 = vmatpush1.msra.mxu0 0.0
    %2775 = vmatprep.subr.mxu0 0.0
    %2776 = vmatpush1.msra.mxu0 0.0
    %2777 = vmatprep.subr.mxu0 0.0
    %2778 = vmatpush1.msra.mxu0 0.0
    %2779 = vmatprep.subr.mxu0 0.0
    %2780 = vmatpush1.msra.mxu0 0.0
    %2781 = vmatprep.subr.mxu0 0.0
    %2782 = vmatpush1.msra.mxu0 0.0
    %2783 = vmatprep.subr.mxu0 0.0
    %2784 = vmatpush1.msra.mxu0 0.0
    %2785 = vmatprep.subr.mxu0 0.0
    %2786 = vmatpush1.msra.mxu0 0.0
    %2787 = vmatprep.subr.mxu0 0.0
    %2788 = vmatpush1.msra.mxu0 0.0
    %2789 = vmatprep.subr.mxu0 0.0
    %2790 = vmatpush1.msra.mxu0 0.0
    %2791 = vmatprep.subr.mxu0 0.0
    %2792 = vmatpush1.msra.mxu0 0.0
    %2793 = vmatprep.subr.mxu0 0.0
    %2794 = vmatpush1.msra.mxu0 0.0
    %2795 = vmatprep.subr.mxu0 0.0
    %2796 = vmatpush1.msra.mxu0 0.0
    %2797 = vmatprep.subr.mxu0 0.0
    %2798 = vmatpush1.msra.mxu0 0.0
    %2799 = vmatprep.subr.mxu0 0.0
    %2800 = vmatpush1.msra.mxu0 0.0
    %2801 = vmatprep.subr.mxu0 0.0
    %2802 = vmatpush1.msra.mxu0 0.0
    %2803 = vmatprep.subr.mxu0 0.0
    %2804 = vmatpush1.msra.mxu0 0.0
    %2805 = vmatprep.subr.mxu0 0.0
    %2806 = vmatpush1.msra.mxu0 0.0
    %2807 = vmatprep.mubr.f32.mxu0 0.0
    %2808 = vmatmul.mubr.f32.gmra.mrb[0].mxu0 %v2741
    %v2809 = vpop.f32.mrb[0].mxu0
    %v2810 = vadd.f32 0.0, %v2809
    %v2811 = vpop.f32.mrb[0].mxu0
    %2812 = vdwg.mxu0
    %2813 = vrot.lane.b32.xlu0 %v2225, 104
    %v2814 = vpop.permute.xlu0 %2813
    %2815 = vrot.lane.b32.xlu0 %v2312, 104
    %v2816 = vpop.permute.xlu0 %2815
    %v2817 = vsel %vm643, %v2814, 0
    %v2819 = vsel %vm643, %v2816, 0
    %2821 = vmatprep.subr.mxu0 0.0
    %2822 = vmatpush1.xpose.msra.mxu0 %v2819
    %2823 = vmatprep.subr.mxu0 0.0
    %2824 = vmatpush1.xpose.msra.mxu0 0.0
    %2825 = vmatprep.subr.mxu0 0.0
    %2826 = vmatpush1.xpose.msra.mxu0 0.0
    %2827 = vmatprep.subr.mxu0 0.0
    %2828 = vmatpush1.xpose.msra.mxu0 0.0
    %2829 = vmatprep.subr.mxu0 0.0
    %2830 = vmatpush1.xpose.msra.mxu0 0.0
    %2831 = vmatprep.subr.mxu0 0.0
    %2832 = vmatpush1.xpose.msra.mxu0 0.0
    %2833 = vmatprep.subr.mxu0 0.0
    %2834 = vmatpush1.xpose.msra.mxu0 0.0
    %2835 = vmatprep.subr.mxu0 0.0
    %2836 = vmatpush1.xpose.msra.mxu0 0.0
    %2837 = vmatprep.subr.mxu0 0.0
    %2838 = vmatpush1.xpose.msra.mxu0 0.0
    %2839 = vmatprep.subr.mxu0 0.0
    %2840 = vmatpush1.xpose.msra.mxu0 0.0
    %2841 = vmatprep.subr.mxu0 0.0
    %2842 = vmatpush1.xpose.msra.mxu0 0.0
    %2843 = vmatprep.subr.mxu0 0.0
    %2844 = vmatpush1.xpose.msra.mxu0 0.0
    %2845 = vmatprep.subr.mxu0 0.0
    %2846 = vmatpush1.xpose.msra.mxu0 0.0
    %2847 = vmatprep.subr.mxu0 0.0
    %2848 = vmatpush1.xpose.msra.mxu0 0.0
    %2849 = vmatprep.subr.mxu0 0.0
    %2850 = vmatpush1.xpose.msra.mxu0 0.0
    %2851 = vmatprep.subr.mxu0 0.0
    %2852 = vmatpush1.xpose.msra.mxu0 0.0
    %2853 = vmatprep.subr.mxu0 0.0
    %2854 = vmatpush1.xpose.msra.mxu0 0.0
    %2855 = vmatprep.subr.mxu0 0.0
    %2856 = vmatpush1.xpose.msra.mxu0 0.0
    %2857 = vmatprep.subr.mxu0 0.0
    %2858 = vmatpush1.xpose.msra.mxu0 0.0
    %2859 = vmatprep.subr.mxu0 0.0
    %2860 = vmatpush1.xpose.msra.mxu0 0.0
    %2861 = vmatprep.subr.mxu0 0.0
    %2862 = vmatpush1.xpose.msra.mxu0 0.0
    %2863 = vmatprep.subr.mxu0 0.0
    %2864 = vmatpush1.xpose.msra.mxu0 0.0
    %2865 = vmatprep.subr.mxu0 0.0
    %2866 = vmatpush1.xpose.msra.mxu0 0.0
    %2867 = vmatprep.subr.mxu0 0.0
    %2868 = vmatpush1.xpose.msra.mxu0 0.0
    %2869 = vmatprep.subr.mxu0 0.0
    %2870 = vmatpush1.xpose.msra.mxu0 0.0
    %2871 = vmatprep.subr.mxu0 0.0
    %2872 = vmatpush1.xpose.msra.mxu0 0.0
    %2873 = vmatprep.subr.mxu0 0.0
    %2874 = vmatpush1.xpose.msra.mxu0 0.0
    %2875 = vmatprep.subr.mxu0 0.0
    %2876 = vmatpush1.xpose.msra.mxu0 0.0
    %2877 = vmatprep.subr.mxu0 0.0
    %2878 = vmatpush1.xpose.msra.mxu0 0.0
    %2879 = vmatprep.subr.mxu0 0.0
    %2880 = vmatpush1.xpose.msra.mxu0 0.0
    %2881 = vmatprep.subr.mxu0 0.0
    %2882 = vmatpush1.xpose.msra.mxu0 0.0
    %2883 = vmatprep.subr.mxu0 0.0
    %2884 = vmatpush1.xpose.msra.mxu0 0.0
    %2885 = vmatprep.mubr.f32.mxu0 0.0
    %2886 = vmatmul.mubr.f32.gmra.mrb[0].mxu0 %v2817
    %v2887 = vpop.f32.mrb[0].mxu0
    %v2888 = vadd.f32 0.0, %v2887
    %v2889 = vpop.f32.mrb[0].mxu0
    %2890 = vdwg.mxu0
    %v2891 = vsel %vm643, %v2888, -inf
    %2892 = vmax.xlane.f32.xlu0 %v2891
    %v2893 = vpop.xlane.xlu0 %2892
    %v2894 = vsub.f32 %v2888, %v2893
    %v2895 = vmul.f32 %v2894, 1.442695
    %v2896 = vpow.pop %v2895
    %v2897 = vsel %vm643, %v2896, 0.0
    %2898 = vadd.xlane.f32.xlu0 %v2897
    %v2899 = vpop.xlane.xlu0 %2898
    %v2900 = vrcp.pop %v2899
    %v2901 = vmul.f32 %v2896, %v2900
    %2902 = vrot.lane.b32.xlu0 %v2312, 72
    %v2903 = vpop.permute.xlu0 %2902
    %v2906 = vsel %vm643, %v2901, 0
    %2908 = vmatprep.subr.mxu0 0.0
    %2909 = vmatpush1.msra.mxu0 %v2903
    %2910 = vmatprep.subr.mxu0 0.0
    %2911 = vmatpush1.msra.mxu0 0.0
    %2912 = vmatprep.subr.mxu0 0.0
    %2913 = vmatpush1.msra.mxu0 0.0
    %2914 = vmatprep.subr.mxu0 0.0
    %2915 = vmatpush1.msra.mxu0 0.0
    %2916 = vmatprep.subr.mxu0 0.0
    %2917 = vmatpush1.msra.mxu0 0.0
    %2918 = vmatprep.subr.mxu0 0.0
    %2919 = vmatpush1.msra.mxu0 0.0
    %2920 = vmatprep.subr.mxu0 0.0
    %2921 = vmatpush1.msra.mxu0 0.0
    %2922 = vmatprep.subr.mxu0 0.0
    %2923 = vmatpush1.msra.mxu0 0.0
    %2924 = vmatprep.subr.mxu0 0.0
    %2925 = vmatpush1.msra.mxu0 0.0
    %2926 = vmatprep.subr.mxu0 0.0
    %2927 = vmatpush1.msra.mxu0 0.0
    %2928 = vmatprep.subr.mxu0 0.0
    %2929 = vmatpush1.msra.mxu0 0.0
    %2930 = vmatprep.subr.mxu0 0.0
    %2931 = vmatpush1.msra.mxu0 0.0
    %2932 = vmatprep.subr.mxu0 0.0
    %2933 = vmatpush1.msra.mxu0 0.0
    %2934 = vmatprep.subr.mxu0 0.0
    %2935 = vmatpush1.msra.mxu0 0.0
    %2936 = vmatprep.subr.mxu0 0.0
    %2937 = vmatpush1.msra.mxu0 0.0
    %2938 = vmatprep.subr.mxu0 0.0
    %2939 = vmatpush1.msra.mxu0 0.0
    %2940 = vmatprep.subr.mxu0 0.0
    %2941 = vmatpush1.msra.mxu0 0.0
    %2942 = vmatprep.subr.mxu0 0.0
    %2943 = vmatpush1.msra.mxu0 0.0
    %2944 = vmatprep.subr.mxu0 0.0
    %2945 = vmatpush1.msra.mxu0 0.0
    %2946 = vmatprep.subr.mxu0 0.0
    %2947 = vmatpush1.msra.mxu0 0.0
    %2948 = vmatprep.subr.mxu0 0.0
    %2949 = vmatpush1.msra.mxu0 0.0
    %2950 = vmatprep.subr.mxu0 0.0
    %2951 = vmatpush1.msra.mxu0 0.0
    %2952 = vmatprep.subr.mxu0 0.0
    %2953 = vmatpush1.msra.mxu0 0.0
    %2954 = vmatprep.subr.mxu0 0.0
    %2955 = vmatpush1.msra.mxu0 0.0
    %2956 = vmatprep.subr.mxu0 0.0
    %2957 = vmatpush1.msra.mxu0 0.0
    %2958 = vmatprep.subr.mxu0 0.0
    %2959 = vmatpush1.msra.mxu0 0.0
    %2960 = vmatprep.subr.mxu0 0.0
    %2961 = vmatpush1.msra.mxu0 0.0
    %2962 = vmatprep.subr.mxu0 0.0
    %2963 = vmatpush1.msra.mxu0 0.0
    %2964 = vmatprep.subr.mxu0 0.0
    %2965 = vmatpush1.msra.mxu0 0.0
    %2966 = vmatprep.subr.mxu0 0.0
    %2967 = vmatpush1.msra.mxu0 0.0
    %2968 = vmatprep.subr.mxu0 0.0
    %2969 = vmatpush1.msra.mxu0 0.0
    %2970 = vmatprep.subr.mxu0 0.0
    %2971 = vmatpush1.msra.mxu0 0.0
    %2972 = vmatprep.mubr.f32.mxu0 0.0
    %2973 = vmatmul.mubr.f32.gmra.mrb[0].mxu0 %v2906
    %v2974 = vpop.f32.mrb[0].mxu0
    %v2975 = vadd.f32 0.0, %v2974
    %v2976 = vpop.f32.mrb[0].mxu0
    %2977 = vdwg.mxu0
    %2979 = vrot.lane.b32.xlu0 %v2645, 8
    %v2980 = vpop.permute.xlu0 %2979
    %2983 = vrot.lane.b32.xlu0 %v2810, 16
    %v2984 = vpop.permute.xlu0 %2983
    %2987 = vrot.lane.b32.xlu0 %v2975, 24
    %v2988 = vpop.permute.xlu0 %2987
    %v2990 = vsel %vm643, %v2480, %v2980
    %v2991 = vsel %vm1317, %v2990, %v2984
    %v2992 = vsel %vm1319, %v2991, %v2988
    %v2994 = vsel %vm643, %v2230, 0
    %v2997 = vsel %vm643, %v2317, 0
    %2999 = vmatprep.subr.mxu0 0.0
    %3000 = vmatpush1.xpose.msra.mxu0 %v2997
    %3001 = vmatprep.subr.mxu0 0.0
    %3002 = vmatpush1.xpose.msra.mxu0 0.0
    %3003 = vmatprep.subr.mxu0 0.0
    %3004 = vmatpush1.xpose.msra.mxu0 0.0
    %3005 = vmatprep.subr.mxu0 0.0
    %3006 = vmatpush1.xpose.msra.mxu0 0.0
    %3007 = vmatprep.subr.mxu0 0.0
    %3008 = vmatpush1.xpose.msra.mxu0 0.0
    %3009 = vmatprep.subr.mxu0 0.0
    %3010 = vmatpush1.xpose.msra.mxu0 0.0
    %3011 = vmatprep.subr.mxu0 0.0
    %3012 = vmatpush1.xpose.msra.mxu0 0.0
    %3013 = vmatprep.subr.mxu0 0.0
    %3014 = vmatpush1.xpose.msra.mxu0 0.0
    %3015 = vmatprep.subr.mxu0 0.0
    %3016 = vmatpush1.xpose.msra.mxu0 0.0
    %3017 = vmatprep.subr.mxu0 0.0
    %3018 = vmatpush1.xpose.msra.mxu0 0.0
    %3019 = vmatprep.subr.mxu0 0.0
    %3020 = vmatpush1.xpose.msra.mxu0 0.0
    %3021 = vmatprep.subr.mxu0 0.0
    %3022 = vmatpush1.xpose.msra.mxu0 0.0
    %3023 = vmatprep.subr.mxu0 0.0
    %3024 = vmatpush1.xpose.msra.mxu0 0.0
    %3025 = vmatprep.subr.mxu0 0.0
    %3026 = vmatpush1.xpose.msra.mxu0 0.0
    %3027 = vmatprep.subr.mxu0 0.0
    %3028 = vmatpush1.xpose.msra.mxu0 0.0
    %3029 = vmatprep.subr.mxu0 0.0
    %3030 = vmatpush1.xpose.msra.mxu0 0.0
    %3031 = vmatprep.subr.mxu0 0.0
    %3032 = vmatpush1.xpose.msra.mxu0 0.0
    %3033 = vmatprep.subr.mxu0 0.0
    %3034 = vmatpush1.xpose.msra.mxu0 0.0
    %3035 = vmatprep.subr.mxu0 0.0
    %3036 = vmatpush1.xpose.msra.mxu0 0.0
    %3037 = vmatprep.subr.mxu0 0.0
    %3038 = vmatpush1.xpose.msra.mxu0 0.0
    %3039 = vmatprep.subr.mxu0 0.0
    %3040 = vmatpush1.xpose.msra.mxu0 0.0
    %3041 = vmatprep.subr.mxu0 0.0
    %3042 = vmatpush1.xpose.msra.mxu0 0.0
    %3043 = vmatprep.subr.mxu0 0.0
    %3044 = vmatpush1.xpose.msra.mxu0 0.0
    %3045 = vmatprep.subr.mxu0 0.0
    %3046 = vmatpush1.xpose.msra.mxu0 0.0
    %3047 = vmatprep.subr.mxu0 0.0
    %3048 = vmatpush1.xpose.msra.mxu0 0.0
    %3049 = vmatprep.subr.mxu0 0.0
    %3050 = vmatpush1.xpose.msra.mxu0 0.0
    %3051 = vmatprep.subr.mxu0 0.0
    %3052 = vmatpush1.xpose.msra.mxu0 0.0
    %3053 = vmatprep.subr.mxu0 0.0
    %3054 = vmatpush1.xpose.msra.mxu0 0.0
    %3055 = vmatprep.subr.mxu0 0.0
    %3056 = vmatpush1.xpose.msra.mxu0 0.0
    %3057 = vmatprep.subr.mxu0 0.0
    %3058 = vmatpush1.xpose.msra.mxu0 0.0
    %3059 = vmatprep.subr.mxu0 0.0
    %3060 = vmatpush1.xpose.msra.mxu0 0.0
    %3061 = vmatprep.subr.mxu0 0.0
    %3062 = vmatpush1.xpose.msra.mxu0 0.0
    %3063 = vmatprep.mubr.f32.mxu0 0.0
    %3064 = vmatmul.mubr.f32.gmra.mrb[0].mxu0 %v2994
    %v3065 = vpop.f32.mrb[0].mxu0
    %v3066 = vadd.f32 0.0, %v3065
    %v3067 = vpop.f32.mrb[0].mxu0
    %3068 = vdwg.mxu0
    %v3069 = vsel %vm643, %v3066, -inf
    %3070 = vmax.xlane.f32.xlu0 %v3069
    %v3071 = vpop.xlane.xlu0 %3070
    %v3072 = vsub.f32 %v3066, %v3071
    %v3073 = vmul.f32 %v3072, 1.442695
    %v3074 = vpow.pop %v3073
    %v3075 = vsel %vm643, %v3074, 0.0
    %3076 = vadd.xlane.f32.xlu0 %v3075
    %v3077 = vpop.xlane.xlu0 %3076
    %v3078 = vrcp.pop %v3077
    %v3079 = vmul.f32 %v3074, %v3078
    %3080 = vrot.lane.b32.xlu0 %v2317, 96
    %v3081 = vpop.permute.xlu0 %3080
    %v3084 = vsel %vm643, %v3079, 0
    %3086 = vmatprep.subr.mxu0 0.0
    %3087 = vmatpush1.msra.mxu0 %v3081
    %3088 = vmatprep.subr.mxu0 0.0
    %3089 = vmatpush1.msra.mxu0 0.0
    %3090 = vmatprep.subr.mxu0 0.0
    %3091 = vmatpush1.msra.mxu0 0.0
    %3092 = vmatprep.subr.mxu0 0.0
    %3093 = vmatpush1.msra.mxu0 0.0
    %3094 = vmatprep.subr.mxu0 0.0
    %3095 = vmatpush1.msra.mxu0 0.0
    %3096 = vmatprep.subr.mxu0 0.0
    %3097 = vmatpush1.msra.mxu0 0.0
    %3098 = vmatprep.subr.mxu0 0.0
    %3099 = vmatpush1.msra.mxu0 0.0
    %3100 = vmatprep.subr.mxu0 0.0
    %3101 = vmatpush1.msra.mxu0 0.0
    %3102 = vmatprep.subr.mxu0 0.0
    %3103 = vmatpush1.msra.mxu0 0.0
    %3104 = vmatprep.subr.mxu0 0.0
    %3105 = vmatpush1.msra.mxu0 0.0
    %3106 = vmatprep.subr.mxu0 0.0
    %3107 = vmatpush1.msra.mxu0 0.0
    %3108 = vmatprep.subr.mxu0 0.0
    %3109 = vmatpush1.msra.mxu0 0.0
    %3110 = vmatprep.subr.mxu0 0.0
    %3111 = vmatpush1.msra.mxu0 0.0
    %3112 = vmatprep.subr.mxu0 0.0
    %3113 = vmatpush1.msra.mxu0 0.0
    %3114 = vmatprep.subr.mxu0 0.0
    %3115 = vmatpush1.msra.mxu0 0.0
    %3116 = vmatprep.subr.mxu0 0.0
    %3117 = vmatpush1.msra.mxu0 0.0
    %3118 = vmatprep.subr.mxu0 0.0
    %3119 = vmatpush1.msra.mxu0 0.0
    %3120 = vmatprep.subr.mxu0 0.0
    %3121 = vmatpush1.msra.mxu0 0.0
    %3122 = vmatprep.subr.mxu0 0.0
    %3123 = vmatpush1.msra.mxu0 0.0
    %3124 = vmatprep.subr.mxu0 0.0
    %3125 = vmatpush1.msra.mxu0 0.0
    %3126 = vmatprep.subr.mxu0 0.0
    %3127 = vmatpush1.msra.mxu0 0.0
    %3128 = vmatprep.subr.mxu0 0.0
    %3129 = vmatpush1.msra.mxu0 0.0
    %3130 = vmatprep.subr.mxu0 0.0
    %3131 = vmatpush1.msra.mxu0 0.0
    %3132 = vmatprep.subr.mxu0 0.0
    %3133 = vmatpush1.msra.mxu0 0.0
    %3134 = vmatprep.subr.mxu0 0.0
    %3135 = vmatpush1.msra.mxu0 0.0
    %3136 = vmatprep.subr.mxu0 0.0
    %3137 = vmatpush1.msra.mxu0 0.0
    %3138 = vmatprep.subr.mxu0 0.0
    %3139 = vmatpush1.msra.mxu0 0.0
    %3140 = vmatprep.subr.mxu0 0.0
    %3141 = vmatpush1.msra.mxu0 0.0
    %3142 = vmatprep.subr.mxu0 0.0
    %3143 = vmatpush1.msra.mxu0 0.0
    %3144 = vmatprep.subr.mxu0 0.0
    %3145 = vmatpush1.msra.mxu0 0.0
    %3146 = vmatprep.subr.mxu0 0.0
    %3147 = vmatpush1.msra.mxu0 0.0
    %3148 = vmatprep.subr.mxu0 0.0
    %3149 = vmatpush1.msra.mxu0 0.0
    %3150 = vmatprep.mubr.f32.mxu0 0.0
    %3151 = vmatmul.mubr.f32.gmra.mrb[0].mxu0 %v3084
    %v3152 = vpop.f32.mrb[0].mxu0
    %v3153 = vadd.f32 0.0, %v3152
    %v3154 = vpop.f32.mrb[0].mxu0
    %3155 = vdwg.mxu0
    %3156 = vrot.lane.b32.xlu0 %v2230, 120
    %v3157 = vpop.permute.xlu0 %3156
    %3158 = vrot.lane.b32.xlu0 %v2317, 120
    %v3159 = vpop.permute.xlu0 %3158
    %v3160 = vsel %vm643, %v3157, 0
    %v3162 = vsel %vm643, %v3159, 0
    %3164 = vmatprep.subr.mxu0 0.0
    %3165 = vmatpush1.xpose.msra.mxu0 %v3162
    %3166 = vmatprep.subr.mxu0 0.0
    %3167 = vmatpush1.xpose.msra.mxu0 0.0
    %3168 = vmatprep.subr.mxu0 0.0
    %3169 = vmatpush1.xpose.msra.mxu0 0.0
    %3170 = vmatprep.subr.mxu0 0.0
    %3171 = vmatpush1.xpose.msra.mxu0 0.0
    %3172 = vmatprep.subr.mxu0 0.0
    %3173 = vmatpush1.xpose.msra.mxu0 0.0
    %3174 = vmatprep.subr.mxu0 0.0
    %3175 = vmatpush1.xpose.msra.mxu0 0.0
    %3176 = vmatprep.subr.mxu0 0.0
    %3177 = vmatpush1.xpose.msra.mxu0 0.0
    %3178 = vmatprep.subr.mxu0 0.0
    %3179 = vmatpush1.xpose.msra.mxu0 0.0
    %3180 = vmatprep.subr.mxu0 0.0
    %3181 = vmatpush1.xpose.msra.mxu0 0.0
    %3182 = vmatprep.subr.mxu0 0.0
    %3183 = vmatpush1.xpose.msra.mxu0 0.0
    %3184 = vmatprep.subr.mxu0 0.0
    %3185 = vmatpush1.xpose.msra.mxu0 0.0
    %3186 = vmatprep.subr.mxu0 0.0
    %3187 = vmatpush1.xpose.msra.mxu0 0.0
    %3188 = vmatprep.subr.mxu0 0.0
    %3189 = vmatpush1.xpose.msra.mxu0 0.0
    %3190 = vmatprep.subr.mxu0 0.0
    %3191 = vmatpush1.xpose.msra.mxu0 0.0
    %3192 = vmatprep.subr.mxu0 0.0
    %3193 = vmatpush1.xpose.msra.mxu0 0.0
    %3194 = vmatprep.subr.mxu0 0.0
    %3195 = vmatpush1.xpose.msra.mxu0 0.0
    %3196 = vmatprep.subr.mxu0 0.0
    %3197 = vmatpush1.xpose.msra.mxu0 0.0
    %3198 = vmatprep.subr.mxu0 0.0
    %3199 = vmatpush1.xpose.msra.mxu0 0.0
    %3200 = vmatprep.subr.mxu0 0.0
    %3201 = vmatpush1.xpose.msra.mxu0 0.0
    %3202 = vmatprep.subr.mxu0 0.0
    %3203 = vmatpush1.xpose.msra.mxu0 0.0
    %3204 = vmatprep.subr.mxu0 0.0
    %3205 = vmatpush1.xpose.msra.mxu0 0.0
    %3206 = vmatprep.subr.mxu0 0.0
    %3207 = vmatpush1.xpose.msra.mxu0 0.0
    %3208 = vmatprep.subr.mxu0 0.0
    %3209 = vmatpush1.xpose.msra.mxu0 0.0
    %3210 = vmatprep.subr.mxu0 0.0
    %3211 = vmatpush1.xpose.msra.mxu0 0.0
    %3212 = vmatprep.subr.mxu0 0.0
    %3213 = vmatpush1.xpose.msra.mxu0 0.0
    %3214 = vmatprep.subr.mxu0 0.0
    %3215 = vmatpush1.xpose.msra.mxu0 0.0
    %3216 = vmatprep.subr.mxu0 0.0
    %3217 = vmatpush1.xpose.msra.mxu0 0.0
    %3218 = vmatprep.subr.mxu0 0.0
    %3219 = vmatpush1.xpose.msra.mxu0 0.0
    %3220 = vmatprep.subr.mxu0 0.0
    %3221 = vmatpush1.xpose.msra.mxu0 0.0
    %3222 = vmatprep.subr.mxu0 0.0
    %3223 = vmatpush1.xpose.msra.mxu0 0.0
    %3224 = vmatprep.subr.mxu0 0.0
    %3225 = vmatpush1.xpose.msra.mxu0 0.0
    %3226 = vmatprep.subr.mxu0 0.0
    %3227 = vmatpush1.xpose.msra.mxu0 0.0
    %3228 = vmatprep.mubr.f32.mxu0 0.0
    %3229 = vmatmul.mubr.f32.gmra.mrb[0].mxu0 %v3160
    %v3230 = vpop.f32.mrb[0].mxu0
    %v3231 = vadd.f32 0.0, %v3230
    %v3232 = vpop.f32.mrb[0].mxu0
    %3233 = vdwg.mxu0
    %v3234 = vsel %vm643, %v3231, -inf
    %3235 = vmax.xlane.f32.xlu0 %v3234
    %v3236 = vpop.xlane.xlu0 %3235
    %v3237 = vsub.f32 %v3231, %v3236
    %v3238 = vmul.f32 %v3237, 1.442695
    %v3239 = vpow.pop %v3238
    %v3240 = vsel %vm643, %v3239, 0.0
    %3241 = vadd.xlane.f32.xlu0 %v3240
    %v3242 = vpop.xlane.xlu0 %3241
    %v3243 = vrcp.pop %v3242
    %v3244 = vmul.f32 %v3239, %v3243
    %3245 = vrot.lane.b32.xlu0 %v2317, 88
    %v3246 = vpop.permute.xlu0 %3245
    %v3249 = vsel %vm643, %v3244, 0
    %3251 = vmatprep.subr.mxu0 0.0
    %3252 = vmatpush1.msra.mxu0 %v3246
    %3253 = vmatprep.subr.mxu0 0.0
    %3254 = vmatpush1.msra.mxu0 0.0
    %3255 = vmatprep.subr.mxu0 0.0
    %3256 = vmatpush1.msra.mxu0 0.0
    %3257 = vmatprep.subr.mxu0 0.0
    %3258 = vmatpush1.msra.mxu0 0.0
    %3259 = vmatprep.subr.mxu0 0.0
    %3260 = vmatpush1.msra.mxu0 0.0
    %3261 = vmatprep.subr.mxu0 0.0
    %3262 = vmatpush1.msra.mxu0 0.0
    %3263 = vmatprep.subr.mxu0 0.0
    %3264 = vmatpush1.msra.mxu0 0.0
    %3265 = vmatprep.subr.mxu0 0.0
    %3266 = vmatpush1.msra.mxu0 0.0
    %3267 = vmatprep.subr.mxu0 0.0
    %3268 = vmatpush1.msra.mxu0 0.0
    %3269 = vmatprep.subr.mxu0 0.0
    %3270 = vmatpush1.msra.mxu0 0.0
    %3271 = vmatprep.subr.mxu0 0.0
    %3272 = vmatpush1.msra.mxu0 0.0
    %3273 = vmatprep.subr.mxu0 0.0
    %3274 = vmatpush1.msra.mxu0 0.0
    %3275 = vmatprep.subr.mxu0 0.0
    %3276 = vmatpush1.msra.mxu0 0.0
    %3277 = vmatprep.subr.mxu0 0.0
    %3278 = vmatpush1.msra.mxu0 0.0
    %3279 = vmatprep.subr.mxu0 0.0
    %3280 = vmatpush1.msra.mxu0 0.0
    %3281 = vmatprep.subr.mxu0 0.0
    %3282 = vmatpush1.msra.mxu0 0.0
    %3283 = vmatprep.subr.mxu0 0.0
    %3284 = vmatpush1.msra.mxu0 0.0
    %3285 = vmatprep.subr.mxu0 0.0
    %3286 = vmatpush1.msra.mxu0 0.0
    %3287 = vmatprep.subr.mxu0 0.0
    %3288 = vmatpush1.msra.mxu0 0.0
    %3289 = vmatprep.subr.mxu0 0.0
    %3290 = vmatpush1.msra.mxu0 0.0
    %3291 = vmatprep.subr.mxu0 0.0
    %3292 = vmatpush1.msra.mxu0 0.0
    %3293 = vmatprep.subr.mxu0 0.0
    %3294 = vmatpush1.msra.mxu0 0.0
    %3295 = vmatprep.subr.mxu0 0.0
    %3296 = vmatpush1.msra.mxu0 0.0
    %3297 = vmatprep.subr.mxu0 0.0
    %3298 = vmatpush1.msra.mxu0 0.0
    %3299 = vmatprep.subr.mxu0 0.0
    %3300 = vmatpush1.msra.mxu0 0.0
    %3301 = vmatprep.subr.mxu0 0.0
    %3302 = vmatpush1.msra.mxu0 0.0
    %3303 = vmatprep.subr.mxu0 0.0
    %3304 = vmatpush1.msra.mxu0 0.0
    %3305 = vmatprep.subr.mxu0 0.0
    %3306 = vmatpush1.msra.mxu0 0.0
    %3307 = vmatprep.subr.mxu0 0.0
    %3308 = vmatpush1.msra.mxu0 0.0
    %3309 = vmatprep.subr.mxu0 0.0
    %3310 = vmatpush1.msra.mxu0 0.0
    %3311 = vmatprep.subr.mxu0 0.0
    %3312 = vmatpush1.msra.mxu0 0.0
    %3313 = vmatprep.subr.mxu0 0.0
    %3314 = vmatpush1.msra.mxu0 0.0
    %3315 = vmatprep.mubr.f32.mxu0 0.0
    %3316 = vmatmul.mubr.f32.gmra.mrb[0].mxu0 %v3249
    %v3317 = vpop.f32.mrb[0].mxu0
    %v3318 = vadd.f32 0.0, %v3317
    %v3319 = vpop.f32.mrb[0].mxu0
    %3320 = vdwg.mxu0
    %3321 = vrot.lane.b32.xlu0 %v2230, 112
    %v3322 = vpop.permute.xlu0 %3321
    %3323 = vrot.lane.b32.xlu0 %v2317, 112
    %v3324 = vpop.permute.xlu0 %3323
    %v3325 = vsel %vm643, %v3322, 0
    %v3327 = vsel %vm643, %v3324, 0
    %3329 = vmatprep.subr.mxu0 0.0
    %3330 = vmatpush1.xpose.msra.mxu0 %v3327
    %3331 = vmatprep.subr.mxu0 0.0
    %3332 = vmatpush1.xpose.msra.mxu0 0.0
    %3333 = vmatprep.subr.mxu0 0.0
    %3334 = vmatpush1.xpose.msra.mxu0 0.0
    %3335 = vmatprep.subr.mxu0 0.0
    %3336 = vmatpush1.xpose.msra.mxu0 0.0
    %3337 = vmatprep.subr.mxu0 0.0
    %3338 = vmatpush1.xpose.msra.mxu0 0.0
    %3339 = vmatprep.subr.mxu0 0.0
    %3340 = vmatpush1.xpose.msra.mxu0 0.0
    %3341 = vmatprep.subr.mxu0 0.0
    %3342 = vmatpush1.xpose.msra.mxu0 0.0
    %3343 = vmatprep.subr.mxu0 0.0
    %3344 = vmatpush1.xpose.msra.mxu0 0.0
    %3345 = vmatprep.subr.mxu0 0.0
    %3346 = vmatpush1.xpose.msra.mxu0 0.0
    %3347 = vmatprep.subr.mxu0 0.0
    %3348 = vmatpush1.xpose.msra.mxu0 0.0
    %3349 = vmatprep.subr.mxu0 0.0
    %3350 = vmatpush1.xpose.msra.mxu0 0.0
    %3351 = vmatprep.subr.mxu0 0.0
    %3352 = vmatpush1.xpose.msra.mxu0 0.0
    %3353 = vmatprep.subr.mxu0 0.0
    %3354 = vmatpush1.xpose.msra.mxu0 0.0
    %3355 = vmatprep.subr.mxu0 0.0
    %3356 = vmatpush1.xpose.msra.mxu0 0.0
    %3357 = vmatprep.subr.mxu0 0.0
    %3358 = vmatpush1.xpose.msra.mxu0 0.0
    %3359 = vmatprep.subr.mxu0 0.0
    %3360 = vmatpush1.xpose.msra.mxu0 0.0
    %3361 = vmatprep.subr.mxu0 0.0
    %3362 = vmatpush1.xpose.msra.mxu0 0.0
    %3363 = vmatprep.subr.mxu0 0.0
    %3364 = vmatpush1.xpose.msra.mxu0 0.0
    %3365 = vmatprep.subr.mxu0 0.0
    %3366 = vmatpush1.xpose.msra.mxu0 0.0
    %3367 = vmatprep.subr.mxu0 0.0
    %3368 = vmatpush1.xpose.msra.mxu0 0.0
    %3369 = vmatprep.subr.mxu0 0.0
    %3370 = vmatpush1.xpose.msra.mxu0 0.0
    %3371 = vmatprep.subr.mxu0 0.0
    %3372 = vmatpush1.xpose.msra.mxu0 0.0
    %3373 = vmatprep.subr.mxu0 0.0
    %3374 = vmatpush1.xpose.msra.mxu0 0.0
    %3375 = vmatprep.subr.mxu0 0.0
    %3376 = vmatpush1.xpose.msra.mxu0 0.0
    %3377 = vmatprep.subr.mxu0 0.0
    %3378 = vmatpush1.xpose.msra.mxu0 0.0
    %3379 = vmatprep.subr.mxu0 0.0
    %3380 = vmatpush1.xpose.msra.mxu0 0.0
    %3381 = vmatprep.subr.mxu0 0.0
    %3382 = vmatpush1.xpose.msra.mxu0 0.0
    %3383 = vmatprep.subr.mxu0 0.0
    %3384 = vmatpush1.xpose.msra.mxu0 0.0
    %3385 = vmatprep.subr.mxu0 0.0
    %3386 = vmatpush1.xpose.msra.mxu0 0.0
    %3387 = vmatprep.subr.mxu0 0.0
    %3388 = vmatpush1.xpose.msra.mxu0 0.0
    %3389 = vmatprep.subr.mxu0 0.0
    %3390 = vmatpush1.xpose.msra.mxu0 0.0
    %3391 = vmatprep.subr.mxu0 0.0
    %3392 = vmatpush1.xpose.msra.mxu0 0.0
    %3393 = vmatprep.mubr.f32.mxu0 0.0
    %3394 = vmatmul.mubr.f32.gmra.mrb[0].mxu0 %v3325
    %v3395 = vpop.f32.mrb[0].mxu0
    %v3396 = vadd.f32 0.0, %v3395
    %v3397 = vpop.f32.mrb[0].mxu0
    %3398 = vdwg.mxu0
    %v3399 = vsel %vm643, %v3396, -inf
    %3400 = vmax.xlane.f32.xlu0 %v3399
    %v3401 = vpop.xlane.xlu0 %3400
    %v3402 = vsub.f32 %v3396, %v3401
    %v3403 = vmul.f32 %v3402, 1.442695
    %v3404 = vpow.pop %v3403
    %v3405 = vsel %vm643, %v3404, 0.0
    %3406 = vadd.xlane.f32.xlu0 %v3405
    %v3407 = vpop.xlane.xlu0 %3406
    %v3408 = vrcp.pop %v3407
    %v3409 = vmul.f32 %v3404, %v3408
    %3410 = vrot.lane.b32.xlu0 %v2317, 80
    %v3411 = vpop.permute.xlu0 %3410
    %v3414 = vsel %vm643, %v3409, 0
    %3416 = vmatprep.subr.mxu0 0.0
    %3417 = vmatpush1.msra.mxu0 %v3411
    %3418 = vmatprep.subr.mxu0 0.0
    %3419 = vmatpush1.msra.mxu0 0.0
    %3420 = vmatprep.subr.mxu0 0.0
    %3421 = vmatpush1.msra.mxu0 0.0
    %3422 = vmatprep.subr.mxu0 0.0
    %3423 = vmatpush1.msra.mxu0 0.0
    %3424 = vmatprep.subr.mxu0 0.0
    %3425 = vmatpush1.msra.mxu0 0.0
    %3426 = vmatprep.subr.mxu0 0.0
    %3427 = vmatpush1.msra.mxu0 0.0
    %3428 = vmatprep.subr.mxu0 0.0
    %3429 = vmatpush1.msra.mxu0 0.0
    %3430 = vmatprep.subr.mxu0 0.0
    %3431 = vmatpush1.msra.mxu0 0.0
    %3432 = vmatprep.subr.mxu0 0.0
    %3433 = vmatpush1.msra.mxu0 0.0
    %3434 = vmatprep.subr.mxu0 0.0
    %3435 = vmatpush1.msra.mxu0 0.0
    %3436 = vmatprep.subr.mxu0 0.0
    %3437 = vmatpush1.msra.mxu0 0.0
    %3438 = vmatprep.subr.mxu0 0.0
    %3439 = vmatpush1.msra.mxu0 0.0
    %3440 = vmatprep.subr.mxu0 0.0
    %3441 = vmatpush1.msra.mxu0 0.0
    %3442 = vmatprep.subr.mxu0 0.0
    %3443 = vmatpush1.msra.mxu0 0.0
    %3444 = vmatprep.subr.mxu0 0.0
    %3445 = vmatpush1.msra.mxu0 0.0
    %3446 = vmatprep.subr.mxu0 0.0
    %3447 = vmatpush1.msra.mxu0 0.0
    %3448 = vmatprep.subr.mxu0 0.0
    %3449 = vmatpush1.msra.mxu0 0.0
    %3450 = vmatprep.subr.mxu0 0.0
    %3451 = vmatpush1.msra.mxu0 0.0
    %3452 = vmatprep.subr.mxu0 0.0
    %3453 = vmatpush1.msra.mxu0 0.0
    %3454 = vmatprep.subr.mxu0 0.0
    %3455 = vmatpush1.msra.mxu0 0.0
    %3456 = vmatprep.subr.mxu0 0.0
    %3457 = vmatpush1.msra.mxu0 0.0
    %3458 = vmatprep.subr.mxu0 0.0
    %3459 = vmatpush1.msra.mxu0 0.0
    %3460 = vmatprep.subr.mxu0 0.0
    %3461 = vmatpush1.msra.mxu0 0.0
    %3462 = vmatprep.subr.mxu0 0.0
    %3463 = vmatpush1.msra.mxu0 0.0
    %3464 = vmatprep.subr.mxu0 0.0
    %3465 = vmatpush1.msra.mxu0 0.0
    %3466 = vmatprep.subr.mxu0 0.0
    %3467 = vmatpush1.msra.mxu0 0.0
    %3468 = vmatprep.subr.mxu0 0.0
    %3469 = vmatpush1.msra.mxu0 0.0
    %3470 = vmatprep.subr.mxu0 0.0
    %3471 = vmatpush1.msra.mxu0 0.0
    %3472 = vmatprep.subr.mxu0 0.0
    %3473 = vmatpush1.msra.mxu0 0.0
    %3474 = vmatprep.subr.mxu0 0.0
    %3475 = vmatpush1.msra.mxu0 0.0
    %3476 = vmatprep.subr.mxu0 0.0
    %3477 = vmatpush1.msra.mxu0 0.0
    %3478 = vmatprep.subr.mxu0 0.0
    %3479 = vmatpush1.msra.mxu0 0.0
    %3480 = vmatprep.mubr.f32.mxu0 0.0
    %3481 = vmatmul.mubr.f32.gmra.mrb[0].mxu0 %v3414
    %v3482 = vpop.f32.mrb[0].mxu0
    %v3483 = vadd.f32 0.0, %v3482
    %v3484 = vpop.f32.mrb[0].mxu0
    %3485 = vdwg.mxu0
    %3486 = vrot.lane.b32.xlu0 %v2230, 104
    %v3487 = vpop.permute.xlu0 %3486
    %3488 = vrot.lane.b32.xlu0 %v2317, 104
    %v3489 = vpop.permute.xlu0 %3488
    %v3490 = vsel %vm643, %v3487, 0
    %v3492 = vsel %vm643, %v3489, 0
    %3494 = vmatprep.subr.mxu0 0.0
    %3495 = vmatpush1.xpose.msra.mxu0 %v3492
    %3496 = vmatprep.subr.mxu0 0.0
    %3497 = vmatpush1.xpose.msra.mxu0 0.0
    %3498 = vmatprep.subr.mxu0 0.0
    %3499 = vmatpush1.xpose.msra.mxu0 0.0
    %3500 = vmatprep.subr.mxu0 0.0
    %3501 = vmatpush1.xpose.msra.mxu0 0.0
    %3502 = vmatprep.subr.mxu0 0.0
    %3503 = vmatpush1.xpose.msra.mxu0 0.0
    %3504 = vmatprep.subr.mxu0 0.0
    %3505 = vmatpush1.xpose.msra.mxu0 0.0
    %3506 = vmatprep.subr.mxu0 0.0
    %3507 = vmatpush1.xpose.msra.mxu0 0.0
    %3508 = vmatprep.subr.mxu0 0.0
    %3509 = vmatpush1.xpose.msra.mxu0 0.0
    %3510 = vmatprep.subr.mxu0 0.0
    %3511 = vmatpush1.xpose.msra.mxu0 0.0
    %3512 = vmatprep.subr.mxu0 0.0
    %3513 = vmatpush1.xpose.msra.mxu0 0.0
    %3514 = vmatprep.subr.mxu0 0.0
    %3515 = vmatpush1.xpose.msra.mxu0 0.0
    %3516 = vmatprep.subr.mxu0 0.0
    %3517 = vmatpush1.xpose.msra.mxu0 0.0
    %3518 = vmatprep.subr.mxu0 0.0
    %3519 = vmatpush1.xpose.msra.mxu0 0.0
    %3520 = vmatprep.subr.mxu0 0.0
    %3521 = vmatpush1.xpose.msra.mxu0 0.0
    %3522 = vmatprep.subr.mxu0 0.0
    %3523 = vmatpush1.xpose.msra.mxu0 0.0
    %3524 = vmatprep.subr.mxu0 0.0
    %3525 = vmatpush1.xpose.msra.mxu0 0.0
    %3526 = vmatprep.subr.mxu0 0.0
    %3527 = vmatpush1.xpose.msra.mxu0 0.0
    %3528 = vmatprep.subr.mxu0 0.0
    %3529 = vmatpush1.xpose.msra.mxu0 0.0
    %3530 = vmatprep.subr.mxu0 0.0
    %3531 = vmatpush1.xpose.msra.mxu0 0.0
    %3532 = vmatprep.subr.mxu0 0.0
    %3533 = vmatpush1.xpose.msra.mxu0 0.0
    %3534 = vmatprep.subr.mxu0 0.0
    %3535 = vmatpush1.xpose.msra.mxu0 0.0
    %3536 = vmatprep.subr.mxu0 0.0
    %3537 = vmatpush1.xpose.msra.mxu0 0.0
    %3538 = vmatprep.subr.mxu0 0.0
    %3539 = vmatpush1.xpose.msra.mxu0 0.0
    %3540 = vmatprep.subr.mxu0 0.0
    %3541 = vmatpush1.xpose.msra.mxu0 0.0
    %3542 = vmatprep.subr.mxu0 0.0
    %3543 = vmatpush1.xpose.msra.mxu0 0.0
    %3544 = vmatprep.subr.mxu0 0.0
    %3545 = vmatpush1.xpose.msra.mxu0 0.0
    %3546 = vmatprep.subr.mxu0 0.0
    %3547 = vmatpush1.xpose.msra.mxu0 0.0
    %3548 = vmatprep.subr.mxu0 0.0
    %3549 = vmatpush1.xpose.msra.mxu0 0.0
    %3550 = vmatprep.subr.mxu0 0.0
    %3551 = vmatpush1.xpose.msra.mxu0 0.0
    %3552 = vmatprep.subr.mxu0 0.0
    %3553 = vmatpush1.xpose.msra.mxu0 0.0
    %3554 = vmatprep.subr.mxu0 0.0
    %3555 = vmatpush1.xpose.msra.mxu0 0.0
    %3556 = vmatprep.subr.mxu0 0.0
    %3557 = vmatpush1.xpose.msra.mxu0 0.0
    %3558 = vmatprep.mubr.f32.mxu0 0.0
    %3559 = vmatmul.mubr.f32.gmra.mrb[0].mxu0 %v3490
    %v3560 = vpop.f32.mrb[0].mxu0
    %v3561 = vadd.f32 0.0, %v3560
    %v3562 = vpop.f32.mrb[0].mxu0
    %3563 = vdwg.mxu0
    %v3564 = vsel %vm643, %v3561, -inf
    %3565 = vmax.xlane.f32.xlu0 %v3564
    %v3566 = vpop.xlane.xlu0 %3565
    %v3567 = vsub.f32 %v3561, %v3566
    %v3568 = vmul.f32 %v3567, 1.442695
    %v3569 = vpow.pop %v3568
    %v3570 = vsel %vm643, %v3569, 0.0
    %3571 = vadd.xlane.f32.xlu0 %v3570
    %v3572 = vpop.xlane.xlu0 %3571
    %v3573 = vrcp.pop %v3572
    %v3574 = vmul.f32 %v3569, %v3573
    %3575 = vrot.lane.b32.xlu0 %v2317, 72
    %v3576 = vpop.permute.xlu0 %3575
    %v3579 = vsel %vm643, %v3574, 0
    %3581 = vmatprep.subr.mxu0 0.0
    %3582 = vmatpush1.msra.mxu0 %v3576
    %3583 = vmatprep.subr.mxu0 0.0
    %3584 = vmatpush1.msra.mxu0 0.0
    %3585 = vmatprep.subr.mxu0 0.0
    %3586 = vmatpush1.msra.mxu0 0.0
    %3587 = vmatprep.subr.mxu0 0.0
    %3588 = vmatpush1.msra.mxu0 0.0
    %3589 = vmatprep.subr.mxu0 0.0
    %3590 = vmatpush1.msra.mxu0 0.0
    %3591 = vmatprep.subr.mxu0 0.0
    %3592 = vmatpush1.msra.mxu0 0.0
    %3593 = vmatprep.subr.mxu0 0.0
    %3594 = vmatpush1.msra.mxu0 0.0
    %3595 = vmatprep.subr.mxu0 0.0
    %3596 = vmatpush1.msra.mxu0 0.0
    %3597 = vmatprep.subr.mxu0 0.0
    %3598 = vmatpush1.msra.mxu0 0.0
    %3599 = vmatprep.subr.mxu0 0.0
    %3600 = vmatpush1.msra.mxu0 0.0
    %3601 = vmatprep.subr.mxu0 0.0
    %3602 = vmatpush1.msra.mxu0 0.0
    %3603 = vmatprep.subr.mxu0 0.0
    %3604 = vmatpush1.msra.mxu0 0.0
    %3605 = vmatprep.subr.mxu0 0.0
    %3606 = vmatpush1.msra.mxu0 0.0
    %3607 = vmatprep.subr.mxu0 0.0
    %3608 = vmatpush1.msra.mxu0 0.0
    %3609 = vmatprep.subr.mxu0 0.0
    %3610 = vmatpush1.msra.mxu0 0.0
    %3611 = vmatprep.subr.mxu0 0.0
    %3612 = vmatpush1.msra.mxu0 0.0
    %3613 = vmatprep.subr.mxu0 0.0
    %3614 = vmatpush1.msra.mxu0 0.0
    %3615 = vmatprep.subr.mxu0 0.0
    %3616 = vmatpush1.msra.mxu0 0.0
    %3617 = vmatprep.subr.mxu0 0.0
    %3618 = vmatpush1.msra.mxu0 0.0
    %3619 = vmatprep.subr.mxu0 0.0
    %3620 = vmatpush1.msra.mxu0 0.0
    %3621 = vmatprep.subr.mxu0 0.0
    %3622 = vmatpush1.msra.mxu0 0.0
    %3623 = vmatprep.subr.mxu0 0.0
    %3624 = vmatpush1.msra.mxu0 0.0
    %3625 = vmatprep.subr.mxu0 0.0
    %3626 = vmatpush1.msra.mxu0 0.0
    %3627 = vmatprep.subr.mxu0 0.0
    %3628 = vmatpush1.msra.mxu0 0.0
    %3629 = vmatprep.subr.mxu0 0.0
    %3630 = vmatpush1.msra.mxu0 0.0
    %3631 = vmatprep.subr.mxu0 0.0
    %3632 = vmatpush1.msra.mxu0 0.0
    %3633 = vmatprep.subr.mxu0 0.0
    %3634 = vmatpush1.msra.mxu0 0.0
    %3635 = vmatprep.subr.mxu0 0.0
    %3636 = vmatpush1.msra.mxu0 0.0
    %3637 = vmatprep.subr.mxu0 0.0
    %3638 = vmatpush1.msra.mxu0 0.0
    %3639 = vmatprep.subr.mxu0 0.0
    %3640 = vmatpush1.msra.mxu0 0.0
    %3641 = vmatprep.subr.mxu0 0.0
    %3642 = vmatpush1.msra.mxu0 0.0
    %3643 = vmatprep.subr.mxu0 0.0
    %3644 = vmatpush1.msra.mxu0 0.0
    %3645 = vmatprep.mubr.f32.mxu0 0.0
    %3646 = vmatmul.mubr.f32.gmra.mrb[0].mxu0 %v3579
    %v3647 = vpop.f32.mrb[0].mxu0
    %v3648 = vadd.f32 0.0, %v3647
    %v3649 = vpop.f32.mrb[0].mxu0
    %3650 = vdwg.mxu0
    %3652 = vrot.lane.b32.xlu0 %v3318, 8
    %v3653 = vpop.permute.xlu0 %3652
    %3656 = vrot.lane.b32.xlu0 %v3483, 16
    %v3657 = vpop.permute.xlu0 %3656
    %3660 = vrot.lane.b32.xlu0 %v3648, 24
    %v3661 = vpop.permute.xlu0 %3660
    %v3663 = vsel %vm643, %v3153, %v3653
    %v3664 = vsel %vm1317, %v3663, %v3657
    %v3665 = vsel %vm1319, %v3664, %v3661
    %v3667 = vlaneseq
    %v3668 = vshrl.u32 %v3667, 7
    %v3669 = vsub.s32 0, %v3668
    %v3670 = vrot.slane %v533, %v3669
    %v3673 = vsel %vm558, %v2992, 0
    %v3676 = vsel %vm558, %v3665, 0
    %3678 = vmatprep.subr.mxu0 0.0
    %3679 = vmatpush1.msra.mxu0 %v529
    %3680 = vmatprep.subr.mxu0 0.0
    %3681 = vmatpush1.msra.mxu0 %v530
    %3682 = vmatprep.subr.mxu0 0.0
    %3683 = vmatpush1.msra.mxu0 %v531
    %3684 = vmatprep.subr.mxu0 0.0
    %3685 = vmatpush1.msra.mxu0 %v532
    %3686 = vmatprep.subr.mxu0 0.0
    %3687 = vmatpush1.msra.mxu0 0.0
    %3688 = vmatprep.subr.mxu0 0.0
    %3689 = vmatpush1.msra.mxu0 0.0
    %3690 = vmatprep.subr.mxu0 0.0
    %3691 = vmatpush1.msra.mxu0 0.0
    %3692 = vmatprep.subr.mxu0 0.0
    %3693 = vmatpush1.msra.mxu0 0.0
    %3694 = vmatprep.subr.mxu0 0.0
    %3695 = vmatpush1.msra.mxu0 0.0
    %3696 = vmatprep.subr.mxu0 0.0
    %3697 = vmatpush1.msra.mxu0 0.0
    %3698 = vmatprep.subr.mxu0 0.0
    %3699 = vmatpush1.msra.mxu0 0.0
    %3700 = vmatprep.subr.mxu0 0.0
    %3701 = vmatpush1.msra.mxu0 0.0
    %3702 = vmatprep.subr.mxu0 0.0
    %3703 = vmatpush1.msra.mxu0 0.0
    %3704 = vmatprep.subr.mxu0 0.0
    %3705 = vmatpush1.msra.mxu0 0.0
    %3706 = vmatprep.subr.mxu0 0.0
    %3707 = vmatpush1.msra.mxu0 0.0
    %3708 = vmatprep.subr.mxu0 0.0
    %3709 = vmatpush1.msra.mxu0 0.0
    %3710 = vmatprep.subr.mxu0 0.0
    %3711 = vmatpush1.msra.mxu0 0.0
    %3712 = vmatprep.subr.mxu0 0.0
    %3713 = vmatpush1.msra.mxu0 0.0
    %3714 = vmatprep.subr.mxu0 0.0
    %3715 = vmatpush1.msra.mxu0 0.0
    %3716 = vmatprep.subr.mxu0 0.0
    %3717 = vmatpush1.msra.mxu0 0.0
    %3718 = vmatprep.subr.mxu0 0.0
    %3719 = vmatpush1.msra.mxu0 0.0
    %3720 = vmatprep.subr.mxu0 0.0
    %3721 = vmatpush1.msra.mxu0 0.0
    %3722 = vmatprep.subr.mxu0 0.0
    %3723 = vmatpush1.msra.mxu0 0.0
    %3724 = vmatprep.subr.mxu0 0.0
    %3725 = vmatpush1.msra.mxu0 0.0
    %3726 = vmatprep.subr.mxu0 0.0
    %3727 = vmatpush1.msra.mxu0 0.0
    %3728 = vmatprep.subr.mxu0 0.0
    %3729 = vmatpush1.msra.mxu0 0.0
    %3730 = vmatprep.subr.mxu0 0.0
    %3731 = vmatpush1.msra.mxu0 0.0
    %3732 = vmatprep.subr.mxu0 0.0
    %3733 = vmatpush1.msra.mxu0 0.0
    %3734 = vmatprep.subr.mxu0 0.0
    %3735 = vmatpush1.msra.mxu0 0.0
    %3736 = vmatprep.subr.mxu0 0.0
    %3737 = vmatpush1.msra.mxu0 0.0
    %3738 = vmatprep.subr.mxu0 0.0
    %3739 = vmatpush1.msra.mxu0 0.0
    %3740 = vmatprep.subr.mxu0 0.0
    %3741 = vmatpush1.msra.mxu0 0.0
    %3742 = vmatprep.mubr.f32.mxu0 0.0
    %3743 = vmatmul.mubr.f32.gmra.mrb[0].mxu0 %v3673
    %v3744 = vpop.f32.mrb[0].mxu0
    %v3745 = vadd.f32 %v3670, %v3744
    %v3746 = vpop.f32.mrb[0].mxu0
    %3747 = vmatprep.mubr.f32.mxu0 0.0
    %3748 = vmatmul.mubr.f32.gmra.mrb[0].mxu0 %v3676
    %v3749 = vpop.f32.mrb[0].mxu0
    %v3750 = vadd.f32 %v3670, %v3749
    %v3751 = vpop.f32.mrb[0].mxu0
    %3752 = vdwg.mxu0
    %v3753 = vsel %vm558, %v3745, 0.0
    %3754 = vadd.xlane.f32.xlu0 %v3753
    %v3755 = vpop.xlane.xlu0 %3754
    %v3756 = vsel %vm558, %v3750, 0.0
    %3757 = vadd.xlane.f32.xlu0 %v3756
    %v3758 = vpop.xlane.xlu0 %3757
    %v3759 = vmul.f32 %v3755, %v2092
    %v3760 = vmul.f32 %v3758, %v2092
    %v3761 = vsub.f32 %v3745, %v3759
    %v3762 = vsub.f32 %v3750, %v3760
    %v3763 = vmul.f32 %v3761, %v3761
    %v3764 = vmul.f32 %v3762, %v3762
    %v3765 = vsel %vm558, %v3763, 0.0
    %3766 = vadd.xlane.f32.xlu0 %v3765
    %v3767 = vpop.xlane.xlu0 %3766
    %v3768 = vsel %vm558, %v3764, 0.0
    %3769 = vadd.xlane.f32.xlu0 %v3768
    %v3770 = vpop.xlane.xlu0 %3769
    %v3771 = vmul.f32 %v3767, %v2105
    %v3772 = vmul.f32 %v3770, %v2105
    %v3773 = vrsqrt.pop %v3771
    %v3774 = vmul.f32 %v3771, %v3773
    %vm3775 = vcmp.eq.f32.partialorder %v3771, inf
    %v3776 = vsel %vm3775, %v3771, %v3774
    %vm3777 = vcmp.eq.f32.partialorder %v3771, 0.0
    %v3778 = vand.u32 %v3771, 2147483648
    %v3779 = vsel %vm3777, %v3778, %v3776
    %v3780 = vrsqrt.pop %v3772
    %v3781 = vmul.f32 %v3772, %v3780
    %vm3782 = vcmp.eq.f32.partialorder %v3772, inf
    %v3783 = vsel %vm3782, %v3772, %v3781
    %vm3784 = vcmp.eq.f32.partialorder %v3772, 0.0
    %v3785 = vand.u32 %v3772, 2147483648
    %v3786 = vsel %vm3784, %v3785, %v3783
    %v3788 = vlaneseq
    %v3789 = vshrl.u32 %v3788, 7
    %v3790 = vsub.s32 0, %v3789
    %v3791 = vrot.slane %v534, %v3790
    %v3793 = vmul.f32 %v3791, %v3761
    %v3794 = vmul.f32 %v3791, %v3762
    %v3795 = vadd.f32 %v3779, 1e-06
    %v3796 = vadd.f32 %v3786, 1e-06
    %v3797 = vrcp.pop %v3795
    %v3798 = vmul.f32 %v3793, %v3797
    %v3799 = vrcp.pop %v3796
    %v3800 = vmul.f32 %v3794, %v3799
    %v3801 = vadd.f32 %v2144, %v3798
    %v3802 = vadd.f32 %v2145, %v3800
    %v3804 = vlaneseq
    %v3805 = vshrl.u32 %v3804, 7
    %v3806 = vsub.s32 0, %v3805
    %v3807 = vrot.slane %v535, %v3806
    %v3809 = vadd.f32 %v3801, %v3807
    %v3810 = vadd.f32 %v3802, %v3807
    %v3812 = vlaneseq
    %v3813 = vshrl.u32 %v3812, 7
    %v3814 = vsub.s32 0, %v3813
    %v3815 = vrot.slane %v540, %v3814
    %v3818 = vsel %vm558, %v3809, 0
    %v3821 = vsel %vm558, %v3810, 0
    %3823 = vmatprep.subr.mxu0 0.0
    %3824 = vmatpush1.msra.mxu0 %v536
    %3825 = vmatprep.subr.mxu0 0.0
    %3826 = vmatpush1.msra.mxu0 %v537
    %3827 = vmatprep.subr.mxu0 0.0
    %3828 = vmatpush1.msra.mxu0 %v538
    %3829 = vmatprep.subr.mxu0 0.0
    %3830 = vmatpush1.msra.mxu0 %v539
    %3831 = vmatprep.subr.mxu0 0.0
    %3832 = vmatpush1.msra.mxu0 0.0
    %3833 = vmatprep.subr.mxu0 0.0
    %3834 = vmatpush1.msra.mxu0 0.0
    %3835 = vmatprep.subr.mxu0 0.0
    %3836 = vmatpush1.msra.mxu0 0.0
    %3837 = vmatprep.subr.mxu0 0.0
    %3838 = vmatpush1.msra.mxu0 0.0
    %3839 = vmatprep.subr.mxu0 0.0
    %3840 = vmatpush1.msra.mxu0 0.0
    %3841 = vmatprep.subr.mxu0 0.0
    %3842 = vmatpush1.msra.mxu0 0.0
    %3843 = vmatprep.subr.mxu0 0.0
    %3844 = vmatpush1.msra.mxu0 0.0
    %3845 = vmatprep.subr.mxu0 0.0
    %3846 = vmatpush1.msra.mxu0 0.0
    %3847 = vmatprep.subr.mxu0 0.0
    %3848 = vmatpush1.msra.mxu0 0.0
    %3849 = vmatprep.subr.mxu0 0.0
    %3850 = vmatpush1.msra.mxu0 0.0
    %3851 = vmatprep.subr.mxu0 0.0
    %3852 = vmatpush1.msra.mxu0 0.0
    %3853 = vmatprep.subr.mxu0 0.0
    %3854 = vmatpush1.msra.mxu0 0.0
    %3855 = vmatprep.subr.mxu0 0.0
    %3856 = vmatpush1.msra.mxu0 0.0
    %3857 = vmatprep.subr.mxu0 0.0
    %3858 = vmatpush1.msra.mxu0 0.0
    %3859 = vmatprep.subr.mxu0 0.0
    %3860 = vmatpush1.msra.mxu0 0.0
    %3861 = vmatprep.subr.mxu0 0.0
    %3862 = vmatpush1.msra.mxu0 0.0
    %3863 = vmatprep.subr.mxu0 0.0
    %3864 = vmatpush1.msra.mxu0 0.0
    %3865 = vmatprep.subr.mxu0 0.0
    %3866 = vmatpush1.msra.mxu0 0.0
    %3867 = vmatprep.subr.mxu0 0.0
    %3868 = vmatpush1.msra.mxu0 0.0
    %3869 = vmatprep.subr.mxu0 0.0
    %3870 = vmatpush1.msra.mxu0 0.0
    %3871 = vmatprep.subr.mxu0 0.0
    %3872 = vmatpush1.msra.mxu0 0.0
    %3873 = vmatprep.subr.mxu0 0.0
    %3874 = vmatpush1.msra.mxu0 0.0
    %3875 = vmatprep.subr.mxu0 0.0
    %3876 = vmatpush1.msra.mxu0 0.0
    %3877 = vmatprep.subr.mxu0 0.0
    %3878 = vmatpush1.msra.mxu0 0.0
    %3879 = vmatprep.subr.mxu0 0.0
    %3880 = vmatpush1.msra.mxu0 0.0
    %3881 = vmatprep.subr.mxu0 0.0
    %3882 = vmatpush1.msra.mxu0 0.0
    %3883 = vmatprep.subr.mxu0 0.0
    %3884 = vmatpush1.msra.mxu0 0.0
    %3885 = vmatprep.subr.mxu0 0.0
    %3886 = vmatpush1.msra.mxu0 0.0
    %3887 = vmatprep.mubr.f32.mxu0 0.0
    %3888 = vmatmul.mubr.f32.gmra.mrb[0].mxu0 %v3818
    %v3889 = vpop.f32.mrb[0].mxu0
    %v3890 = vadd.f32 %v3815, %v3889
    %v3891 = vpop.f32.mrb[0].mxu0
    %3892 = vmatprep.mubr.f32.mxu0 0.0
    %3893 = vmatmul.mubr.f32.gmra.mrb[0].mxu0 %v3821
    %v3894 = vpop.f32.mrb[0].mxu0
    %v3895 = vadd.f32 %v3815, %v3894
    %v3896 = vpop.f32.mrb[0].mxu0
    %3897 = vdwg.mxu0
    %v3898 = vmax.f32 %v3890, 0.0
    %v3899 = vmax.f32 %v3895, 0.0
    %v3901 = vlaneseq
    %v3902 = vshrl.u32 %v3901, 7
    %v3903 = vsub.s32 0, %v3902
    %v3904 = vrot.slane %v549, %v3903
    %vm3906 = vcmask 523264
    %v3908 = vsel %vm3906, %v3898, 0
    %v3911 = vsel %vm3906, %v3899, 0
    %3913 = vmatprep.subr.mxu0 0.0
    %3914 = vmatpush1.msra.mxu0 %v541
    %3915 = vmatprep.subr.mxu0 0.0
    %3916 = vmatpush1.msra.mxu0 %v542
    %3917 = vmatprep.subr.mxu0 0.0
    %3918 = vmatpush1.msra.mxu0 %v543
    %3919 = vmatprep.subr.mxu0 0.0
    %3920 = vmatpush1.msra.mxu0 %v544
    %3921 = vmatprep.subr.mxu0 0.0
    %3922 = vmatpush1.msra.mxu0 %v545
    %3923 = vmatprep.subr.mxu0 0.0
    %3924 = vmatpush1.msra.mxu0 %v546
    %3925 = vmatprep.subr.mxu0 0.0
    %3926 = vmatpush1.msra.mxu0 %v547
    %3927 = vmatprep.subr.mxu0 0.0
    %3928 = vmatpush1.msra.mxu0 %v548
    %3929 = vmatprep.subr.mxu0 0.0
    %3930 = vmatpush1.msra.mxu0 0.0
    %3931 = vmatprep.subr.mxu0 0.0
    %3932 = vmatpush1.msra.mxu0 0.0
    %3933 = vmatprep.subr.mxu0 0.0
    %3934 = vmatpush1.msra.mxu0 0.0
    %3935 = vmatprep.subr.mxu0 0.0
    %3936 = vmatpush1.msra.mxu0 0.0
    %3937 = vmatprep.subr.mxu0 0.0
    %3938 = vmatpush1.msra.mxu0 0.0
    %3939 = vmatprep.subr.mxu0 0.0
    %3940 = vmatpush1.msra.mxu0 0.0
    %3941 = vmatprep.subr.mxu0 0.0
    %3942 = vmatpush1.msra.mxu0 0.0
    %3943 = vmatprep.subr.mxu0 0.0
    %3944 = vmatpush1.msra.mxu0 0.0
    %3945 = vmatprep.subr.mxu0 0.0
    %3946 = vmatpush1.msra.mxu0 0.0
    %3947 = vmatprep.subr.mxu0 0.0
    %3948 = vmatpush1.msra.mxu0 0.0
    %3949 = vmatprep.subr.mxu0 0.0
    %3950 = vmatpush1.msra.mxu0 0.0
    %3951 = vmatprep.subr.mxu0 0.0
    %3952 = vmatpush1.msra.mxu0 0.0
    %3953 = vmatprep.subr.mxu0 0.0
    %3954 = vmatpush1.msra.mxu0 0.0
    %3955 = vmatprep.subr.mxu0 0.0
    %3956 = vmatpush1.msra.mxu0 0.0
    %3957 = vmatprep.subr.mxu0 0.0
    %3958 = vmatpush1.msra.mxu0 0.0
    %3959 = vmatprep.subr.mxu0 0.0
    %3960 = vmatpush1.msra.mxu0 0.0
    %3961 = vmatprep.subr.mxu0 0.0
    %3962 = vmatpush1.msra.mxu0 0.0
    %3963 = vmatprep.subr.mxu0 0.0
    %3964 = vmatpush1.msra.mxu0 0.0
    %3965 = vmatprep.subr.mxu0 0.0
    %3966 = vmatpush1.msra.mxu0 0.0
    %3967 = vmatprep.subr.mxu0 0.0
    %3968 = vmatpush1.msra.mxu0 0.0
    %3969 = vmatprep.subr.mxu0 0.0
    %3970 = vmatpush1.msra.mxu0 0.0
    %3971 = vmatprep.subr.mxu0 0.0
    %3972 = vmatpush1.msra.mxu0 0.0
    %3973 = vmatprep.subr.mxu0 0.0
    %3974 = vmatpush1.msra.mxu0 0.0
    %3975 = vmatprep.subr.mxu0 0.0
    %3976 = vmatpush1.msra.mxu0 0.0
    %3977 = vmatprep.mubr.f32.mxu0 0.0
    %3978 = vmatmul.mubr.f32.gmra.mrb[0].mxu0 %v3908
    %v3979 = vpop.f32.mrb[0].mxu0
    %v3980 = vadd.f32 %v3904, %v3979
    %v3981 = vpop.f32.mrb[0].mxu0
    %3982 = vmatprep.mubr.f32.mxu0 0.0
    %3983 = vmatmul.mubr.f32.gmra.mrb[0].mxu0 %v3911
    %v3984 = vpop.f32.mrb[0].mxu0
    %v3985 = vadd.f32 %v3904, %v3984
    %v3986 = vpop.f32.mrb[0].mxu0
    %3987 = vdwg.mxu0
    %v3988 = vsel %vm558, %v3980, 0.0
    %3989 = vadd.xlane.f32.xlu0 %v3988
    %v3990 = vpop.xlane.xlu0 %3989
    %v3991 = vsel %vm558, %v3985, 0.0
    %3992 = vadd.xlane.f32.xlu0 %v3991
    %v3993 = vpop.xlane.xlu0 %3992
    %v3994 = vmul.f32 %v3990, %v2092
    %v3995 = vmul.f32 %v3993, %v2092
    %v3996 = vsub.f32 %v3980, %v3994
    %v3997 = vsub.f32 %v3985, %v3995
    %v3998 = vmul.f32 %v3996, %v3996
    %v3999 = vmul.f32 %v3997, %v3997
    %v4000 = vsel %vm558, %v3998, 0.0
    %4001 = vadd.xlane.f32.xlu0 %v4000
    %v4002 = vpop.xlane.xlu0 %4001
    %v4003 = vsel %vm558, %v3999, 0.0
    %4004 = vadd.xlane.f32.xlu0 %v4003
    %v4005 = vpop.xlane.xlu0 %4004
    %v4006 = vmul.f32 %v4002, %v2105
    %v4007 = vmul.f32 %v4005, %v2105
    %v4008 = vrsqrt.pop %v4006
    %v4009 = vmul.f32 %v4006, %v4008
    %vm4010 = vcmp.eq.f32.partialorder %v4006, inf
    %v4011 = vsel %vm4010, %v4006, %v4009
    %vm4012 = vcmp.eq.f32.partialorder %v4006, 0.0
    %v4013 = vand.u32 %v4006, 2147483648
    %v4014 = vsel %vm4012, %v4013, %v4011
    %v4015 = vrsqrt.pop %v4007
    %v4016 = vmul.f32 %v4007, %v4015
    %vm4017 = vcmp.eq.f32.partialorder %v4007, inf
    %v4018 = vsel %vm4017, %v4007, %v4016
    %vm4019 = vcmp.eq.f32.partialorder %v4007, 0.0
    %v4020 = vand.u32 %v4007, 2147483648
    %v4021 = vsel %vm4019, %v4020, %v4018
    %v4023 = vlaneseq
    %v4024 = vshrl.u32 %v4023, 7
    %v4025 = vsub.s32 0, %v4024
    %v4026 = vrot.slane %v550, %v4025
    %v4028 = vmul.f32 %v4026, %v3996
    %v4029 = vmul.f32 %v4026, %v3997
    %v4030 = vadd.f32 %v4014, 1e-06
    %v4031 = vadd.f32 %v4021, 1e-06
    %v4032 = vrcp.pop %v4030
    %v4033 = vmul.f32 %v4028, %v4032
    %v4034 = vrcp.pop %v4031
    %v4035 = vmul.f32 %v4029, %v4034
    %v4036 = vadd.f32 %v3809, %v4033
    %v4037 = vadd.f32 %v3810, %v4035
    %v4039 = vlaneseq
    %v4040 = vshrl.u32 %v4039, 7
    %v4041 = vsub.s32 0, %v4040
    %v4042 = vrot.slane %v551, %v4041
    %v4044 = vadd.f32 %v4036, %v4042
    %v4045 = vadd.f32 %v4037, %v4042
    %v4046 = vld [vmem:[#allocation26] sm:$0xff]
    %v4047 = vld [vmem:[#allocation26 + $0x8] sm:$0xff]
    %v4048 = vld [vmem:[#allocation26 + $0x10] sm:$0xff]
    %v4049 = vld [vmem:[#allocation26 + $0x18] sm:$0xff]
    %v4050 = vld [vmem:[#allocation28] sm:$0x1]
    %v4051 = vld [vmem:[#allocation29] sm:$0xff]
    %v4052 = vld [vmem:[#allocation29 + $0x8] sm:$0xff]
    %v4053 = vld [vmem:[#allocation29 + $0x10] sm:$0xff]
    %v4054 = vld [vmem:[#allocation29 + $0x18] sm:$0xff]
    %v4055 = vld [vmem:[#allocation31] sm:$0x1]
    %v4056 = vld [vmem:[#allocation32] sm:$0x1]
    %v4057 = vld [vmem:[#allocation34] sm:$0x1]
    %v4058 = vld [vmem:[%s57] sm:$0xff]
    %v4059 = vld [vmem:[%s57 + $0x8] sm:$0xff]
    %v4060 = vld [vmem:[%s57 + $0x10] sm:$0xff]
    %v4061 = vld [vmem:[%s57 + $0x18] sm:$0xff]
    %v4062 = vld [vmem:[#allocation35] sm:$0x1]
    %v4063 = vld [vmem:[#allocation37] sm:$0xff]
    %v4064 = vld [vmem:[#allocation37 + $0x8] sm:$0xff]
    %v4065 = vld [vmem:[#allocation37 + $0x10] sm:$0xff]
    %v4066 = vld [vmem:[#allocation37 + $0x18] sm:$0xff]
    %v4067 = vld [vmem:[#allocation38] sm:$0x1]
    %v4068 = vld [vmem:[#allocation40] sm:$0xff]
    %v4069 = vld [vmem:[#allocation40 + $0x8] sm:$0xff]
    %v4070 = vld [vmem:[#allocation40 + $0x10] sm:$0xff]
    %v4071 = vld [vmem:[#allocation40 + $0x18] sm:$0xff]
    %v4072 = vld [vmem:[#allocation41] sm:$0x1]
    %v4073 = vld [vmem:[#allocation43] sm:$0x1]
    %v4074 = vld [vmem:[%s71] sm:$0x1]
    %v4075 = vld [vmem:[%s73] sm:$0xff]
    %v4076 = vld [vmem:[%s73 + $0x8] sm:$0xff]
    %v4077 = vld [vmem:[%s73 + $0x10] sm:$0xff]
    %v4078 = vld [vmem:[%s73 + $0x18] sm:$0xff]
    %v4079 = vld [vmem:[%s75] sm:$0x1]
    %v4080 = vld [vmem:[%s77] sm:$0xff]
    %v4081 = vld [vmem:[%s77 + $0x8] sm:$0xff]
    %v4082 = vld [vmem:[%s77 + $0x10] sm:$0xff]
    %v4083 = vld [vmem:[%s77 + $0x18] sm:$0xff]
    %v4084 = vld [vmem:[%s77 + $0x20] sm:$0xff]
    %v4085 = vld [vmem:[%s77 + $0x28] sm:$0xff]
    %v4086 = vld [vmem:[%s77 + $0x30] sm:$0xff]
    %v4087 = vld [vmem:[%s77 + $0x38] sm:$0xff]
    %v4088 = vld [vmem:[%s79] sm:$0x1]
    %v4089 = vld [vmem:[%s81] sm:$0x1]
    %v4090 = vld [vmem:[%s83] sm:$0x1]
    %v4092 = vlaneseq
    %v4093 = vshrl.u32 %v4092, 7
    %v4094 = vsub.s32 0, %v4093
    %v4095 = vrot.slane %v4050, %v4094
    %v4098 = vsel %vm558, %v4044, 0
    %v4101 = vsel %vm558, %v4045, 0
    %4103 = vmatprep.subr.mxu0 0.0
    %4104 = vmatpush1.msra.mxu0 %v4046
    %4105 = vmatprep.subr.mxu0 0.0
    %4106 = vmatpush1.msra.mxu0 %v4047
    %4107 = vmatprep.subr.mxu0 0.0
    %4108 = vmatpush1.msra.mxu0 %v4048
    %4109 = vmatprep.subr.mxu0 0.0
    %4110 = vmatpush1.msra.mxu0 %v4049
    %4111 = vmatprep.subr.mxu0 0.0
    %4112 = vmatpush1.msra.mxu0 0.0
    %4113 = vmatprep.subr.mxu0 0.0
    %4114 = vmatpush1.msra.mxu0 0.0
    %4115 = vmatprep.subr.mxu0 0.0
    %4116 = vmatpush1.msra.mxu0 0.0
    %4117 = vmatprep.subr.mxu0 0.0
    %4118 = vmatpush1.msra.mxu0 0.0
    %4119 = vmatprep.subr.mxu0 0.0
    %4120 = vmatpush1.msra.mxu0 0.0
    %4121 = vmatprep.subr.mxu0 0.0
    %4122 = vmatpush1.msra.mxu0 0.0
    %4123 = vmatprep.subr.mxu0 0.0
    %4124 = vmatpush1.msra.mxu0 0.0
    %4125 = vmatprep.subr.mxu0 0.0
    %4126 = vmatpush1.msra.mxu0 0.0
    %4127 = vmatprep.subr.mxu0 0.0
    %4128 = vmatpush1.msra.mxu0 0.0
    %4129 = vmatprep.subr.mxu0 0.0
    %4130 = vmatpush1.msra.mxu0 0.0
    %4131 = vmatprep.subr.mxu0 0.0
    %4132 = vmatpush1.msra.mxu0 0.0
    %4133 = vmatprep.subr.mxu0 0.0
    %4134 = vmatpush1.msra.mxu0 0.0
    %4135 = vmatprep.subr.mxu0 0.0
    %4136 = vmatpush1.msra.mxu0 0.0
    %4137 = vmatprep.subr.mxu0 0.0
    %4138 = vmatpush1.msra.mxu0 0.0
    %4139 = vmatprep.subr.mxu0 0.0
    %4140 = vmatpush1.msra.mxu0 0.0
    %4141 = vmatprep.subr.mxu0 0.0
    %4142 = vmatpush1.msra.mxu0 0.0
    %4143 = vmatprep.subr.mxu0 0.0
    %4144 = vmatpush1.msra.mxu0 0.0
    %4145 = vmatprep.subr.mxu0 0.0
    %4146 = vmatpush1.msra.mxu0 0.0
    %4147 = vmatprep.subr.mxu0 0.0
    %4148 = vmatpush1.msra.mxu0 0.0
    %4149 = vmatprep.subr.mxu0 0.0
    %4150 = vmatpush1.msra.mxu0 0.0
    %4151 = vmatprep.subr.mxu0 0.0
    %4152 = vmatpush1.msra.mxu0 0.0
    %4153 = vmatprep.subr.mxu0 0.0
    %4154 = vmatpush1.msra.mxu0 0.0
    %4155 = vmatprep.subr.mxu0 0.0
    %4156 = vmatpush1.msra.mxu0 0.0
    %4157 = vmatprep.subr.mxu0 0.0
    %4158 = vmatpush1.msra.mxu0 0.0
    %4159 = vmatprep.subr.mxu0 0.0
    %4160 = vmatpush1.msra.mxu0 0.0
    %4161 = vmatprep.subr.mxu0 0.0
    %4162 = vmatpush1.msra.mxu0 0.0
    %4163 = vmatprep.subr.mxu0 0.0
    %4164 = vmatpush1.msra.mxu0 0.0
    %4165 = vmatprep.subr.mxu0 0.0
    %4166 = vmatpush1.msra.mxu0 0.0
    %4167 = vmatprep.mubr.f32.mxu0 0.0
    %4168 = vmatmul.mubr.f32.gmra.mrb[0].mxu0 %v4098
    %v4169 = vpop.f32.mrb[0].mxu0
    %v4170 = vadd.f32 %v4095, %v4169
    %v4171 = vpop.f32.mrb[0].mxu0
    %4172 = vmatprep.mubr.f32.mxu0 0.0
    %4173 = vmatmul.mubr.f32.gmra.mrb[0].mxu0 %v4101
    %v4174 = vpop.f32.mrb[0].mxu0
    %v4175 = vadd.f32 %v4095, %v4174
    %v4176 = vpop.f32.mrb[0].mxu0
    %4177 = vdwg.mxu0
    %4179 = vrot.lane.b32.xlu0 %v4170, 96
    %v4180 = vpop.permute.xlu0 %4179
    %v4181 = vsel %vm643, %v4170, 0
    %v4183 = vsel %vm643, %v4180, 0
    %4185 = vmatprep.subr.mxu0 0.0
    %4186 = vmatpush1.xpose.msra.mxu0 %v4183
    %4187 = vmatprep.subr.mxu0 0.0
    %4188 = vmatpush1.xpose.msra.mxu0 0.0
    %4189 = vmatprep.subr.mxu0 0.0
    %4190 = vmatpush1.xpose.msra.mxu0 0.0
    %4191 = vmatprep.subr.mxu0 0.0
    %4192 = vmatpush1.xpose.msra.mxu0 0.0
    %4193 = vmatprep.subr.mxu0 0.0
    %4194 = vmatpush1.xpose.msra.mxu0 0.0
    %4195 = vmatprep.subr.mxu0 0.0
    %4196 = vmatpush1.xpose.msra.mxu0 0.0
    %4197 = vmatprep.subr.mxu0 0.0
    %4198 = vmatpush1.xpose.msra.mxu0 0.0
    %4199 = vmatprep.subr.mxu0 0.0
    %4200 = vmatpush1.xpose.msra.mxu0 0.0
    %4201 = vmatprep.subr.mxu0 0.0
    %4202 = vmatpush1.xpose.msra.mxu0 0.0
    %4203 = vmatprep.subr.mxu0 0.0
    %4204 = vmatpush1.xpose.msra.mxu0 0.0
    %4205 = vmatprep.subr.mxu0 0.0
    %4206 = vmatpush1.xpose.msra.mxu0 0.0
    %4207 = vmatprep.subr.mxu0 0.0
    %4208 = vmatpush1.xpose.msra.mxu0 0.0
    %4209 = vmatprep.subr.mxu0 0.0
    %4210 = vmatpush1.xpose.msra.mxu0 0.0
    %4211 = vmatprep.subr.mxu0 0.0
    %4212 = vmatpush1.xpose.msra.mxu0 0.0
    %4213 = vmatprep.subr.mxu0 0.0
    %4214 = vmatpush1.xpose.msra.mxu0 0.0
    %4215 = vmatprep.subr.mxu0 0.0
    %4216 = vmatpush1.xpose.msra.mxu0 0.0
    %4217 = vmatprep.subr.mxu0 0.0
    %4218 = vmatpush1.xpose.msra.mxu0 0.0
    %4219 = vmatprep.subr.mxu0 0.0
    %4220 = vmatpush1.xpose.msra.mxu0 0.0
    %4221 = vmatprep.subr.mxu0 0.0
    %4222 = vmatpush1.xpose.msra.mxu0 0.0
    %4223 = vmatprep.subr.mxu0 0.0
    %4224 = vmatpush1.xpose.msra.mxu0 0.0
    %4225 = vmatprep.subr.mxu0 0.0
    %4226 = vmatpush1.xpose.msra.mxu0 0.0
    %4227 = vmatprep.subr.mxu0 0.0
    %4228 = vmatpush1.xpose.msra.mxu0 0.0
    %4229 = vmatprep.subr.mxu0 0.0
    %4230 = vmatpush1.xpose.msra.mxu0 0.0
    %4231 = vmatprep.subr.mxu0 0.0
    %4232 = vmatpush1.xpose.msra.mxu0 0.0
    %4233 = vmatprep.subr.mxu0 0.0
    %4234 = vmatpush1.xpose.msra.mxu0 0.0
    %4235 = vmatprep.subr.mxu0 0.0
    %4236 = vmatpush1.xpose.msra.mxu0 0.0
    %4237 = vmatprep.subr.mxu0 0.0
    %4238 = vmatpush1.xpose.msra.mxu0 0.0
    %4239 = vmatprep.subr.mxu0 0.0
    %4240 = vmatpush1.xpose.msra.mxu0 0.0
    %4241 = vmatprep.subr.mxu0 0.0
    %4242 = vmatpush1.xpose.msra.mxu0 0.0
    %4243 = vmatprep.subr.mxu0 0.0
    %4244 = vmatpush1.xpose.msra.mxu0 0.0
    %4245 = vmatprep.subr.mxu0 0.0
    %4246 = vmatpush1.xpose.msra.mxu0 0.0
    %4247 = vmatprep.subr.mxu0 0.0
    %4248 = vmatpush1.xpose.msra.mxu0 0.0
    %4249 = vmatprep.mubr.f32.mxu0 0.0
    %4250 = vmatmul.mubr.f32.gmra.mrb[0].mxu0 %v4181
    %v4251 = vpop.f32.mrb[0].mxu0
    %v4252 = vadd.f32 0.0, %v4251
    %v4253 = vpop.f32.mrb[0].mxu0
    %4254 = vdwg.mxu0
    %v4255 = vsel %vm506, -1e+09, %v4252
    %v4256 = vsel %vm643, %v4255, -inf
    %4257 = vmax.xlane.f32.xlu0 %v4256
    %v4258 = vpop.xlane.xlu0 %4257
    %v4259 = vsub.f32 %v4255, %v4258
    %v4260 = vmul.f32 %v4259, 1.442695
    %v4261 = vpow.pop %v4260
    %v4262 = vsel %vm643, %v4261, 0.0
    %4263 = vadd.xlane.f32.xlu0 %v4262
    %v4264 = vpop.xlane.xlu0 %4263
    %v4265 = vrcp.pop %v4264
    %v4266 = vmul.f32 %v4261, %v4265
    %4267 = vrot.lane.b32.xlu0 %v4170, 64
    %v4268 = vpop.permute.xlu0 %4267
    %v4271 = vsel %vm643, %v4266, 0
    %4273 = vmatprep.subr.mxu0 0.0
    %4274 = vmatpush1.msra.mxu0 %v4268
    %4275 = vmatprep.subr.mxu0 0.0
    %4276 = vmatpush1.msra.mxu0 0.0
    %4277 = vmatprep.subr.mxu0 0.0
    %4278 = vmatpush1.msra.mxu0 0.0
    %4279 = vmatprep.subr.mxu0 0.0
    %4280 = vmatpush1.msra.mxu0 0.0
    %4281 = vmatprep.subr.mxu0 0.0
    %4282 = vmatpush1.msra.mxu0 0.0
    %4283 = vmatprep.subr.mxu0 0.0
    %4284 = vmatpush1.msra.mxu0 0.0
    %4285 = vmatprep.subr.mxu0 0.0
    %4286 = vmatpush1.msra.mxu0 0.0
    %4287 = vmatprep.subr.mxu0 0.0
    %4288 = vmatpush1.msra.mxu0 0.0
    %4289 = vmatprep.subr.mxu0 0.0
    %4290 = vmatpush1.msra.mxu0 0.0
    %4291 = vmatprep.subr.mxu0 0.0
    %4292 = vmatpush1.msra.mxu0 0.0
    %4293 = vmatprep.subr.mxu0 0.0
    %4294 = vmatpush1.msra.mxu0 0.0
    %4295 = vmatprep.subr.mxu0 0.0
    %4296 = vmatpush1.msra.mxu0 0.0
    %4297 = vmatprep.subr.mxu0 0.0
    %4298 = vmatpush1.msra.mxu0 0.0
    %4299 = vmatprep.subr.mxu0 0.0
    %4300 = vmatpush1.msra.mxu0 0.0
    %4301 = vmatprep.subr.mxu0 0.0
    %4302 = vmatpush1.msra.mxu0 0.0
    %4303 = vmatprep.subr.mxu0 0.0
    %4304 = vmatpush1.msra.mxu0 0.0
    %4305 = vmatprep.subr.mxu0 0.0
    %4306 = vmatpush1.msra.mxu0 0.0
    %4307 = vmatprep.subr.mxu0 0.0
    %4308 = vmatpush1.msra.mxu0 0.0
    %4309 = vmatprep.subr.mxu0 0.0
    %4310 = vmatpush1.msra.mxu0 0.0
    %4311 = vmatprep.subr.mxu0 0.0
    %4312 = vmatpush1.msra.mxu0 0.0
    %4313 = vmatprep.subr.mxu0 0.0
    %4314 = vmatpush1.msra.mxu0 0.0
    %4315 = vmatprep.subr.mxu0 0.0
    %4316 = vmatpush1.msra.mxu0 0.0
    %4317 = vmatprep.subr.mxu0 0.0
    %4318 = vmatpush1.msra.mxu0 0.0
    %4319 = vmatprep.subr.mxu0 0.0
    %4320 = vmatpush1.msra.mxu0 0.0
    %4321 = vmatprep.subr.mxu0 0.0
    %4322 = vmatpush1.msra.mxu0 0.0
    %4323 = vmatprep.subr.mxu0 0.0
    %4324 = vmatpush1.msra.mxu0 0.0
    %4325 = vmatprep.subr.mxu0 0.0
    %4326 = vmatpush1.msra.mxu0 0.0
    %4327 = vmatprep.subr.mxu0 0.0
    %4328 = vmatpush1.msra.mxu0 0.0
    %4329 = vmatprep.subr.mxu0 0.0
    %4330 = vmatpush1.msra.mxu0 0.0
    %4331 = vmatprep.subr.mxu0 0.0
    %4332 = vmatpush1.msra.mxu0 0.0
    %4333 = vmatprep.subr.mxu0 0.0
    %4334 = vmatpush1.msra.mxu0 0.0
    %4335 = vmatprep.subr.mxu0 0.0
    %4336 = vmatpush1.msra.mxu0 0.0
    %4337 = vmatprep.mubr.f32.mxu0 0.0
    %4338 = vmatmul.mubr.f32.gmra.mrb[0].mxu0 %v4271
    %v4339 = vpop.f32.mrb[0].mxu0
    %v4340 = vadd.f32 0.0, %v4339
    %v4341 = vpop.f32.mrb[0].mxu0
    %4342 = vdwg.mxu0
    %4343 = vrot.lane.b32.xlu0 %v4170, 120
    %v4344 = vpop.permute.xlu0 %4343
    %4345 = vrot.lane.b32.xlu0 %v4170, 88
    %v4346 = vpop.permute.xlu0 %4345
    %v4347 = vsel %vm643, %v4344, 0
    %v4349 = vsel %vm643, %v4346, 0
    %4351 = vmatprep.subr.mxu0 0.0
    %4352 = vmatpush1.xpose.msra.mxu0 %v4349
    %4353 = vmatprep.subr.mxu0 0.0
    %4354 = vmatpush1.xpose.msra.mxu0 0.0
    %4355 = vmatprep.subr.mxu0 0.0
    %4356 = vmatpush1.xpose.msra.mxu0 0.0
    %4357 = vmatprep.subr.mxu0 0.0
    %4358 = vmatpush1.xpose.msra.mxu0 0.0
    %4359 = vmatprep.subr.mxu0 0.0
    %4360 = vmatpush1.xpose.msra.mxu0 0.0
    %4361 = vmatprep.subr.mxu0 0.0
    %4362 = vmatpush1.xpose.msra.mxu0 0.0
    %4363 = vmatprep.subr.mxu0 0.0
    %4364 = vmatpush1.xpose.msra.mxu0 0.0
    %4365 = vmatprep.subr.mxu0 0.0
    %4366 = vmatpush1.xpose.msra.mxu0 0.0
    %4367 = vmatprep.subr.mxu0 0.0
    %4368 = vmatpush1.xpose.msra.mxu0 0.0
    %4369 = vmatprep.subr.mxu0 0.0
    %4370 = vmatpush1.xpose.msra.mxu0 0.0
    %4371 = vmatprep.subr.mxu0 0.0
    %4372 = vmatpush1.xpose.msra.mxu0 0.0
    %4373 = vmatprep.subr.mxu0 0.0
    %4374 = vmatpush1.xpose.msra.mxu0 0.0
    %4375 = vmatprep.subr.mxu0 0.0
    %4376 = vmatpush1.xpose.msra.mxu0 0.0
    %4377 = vmatprep.subr.mxu0 0.0
    %4378 = vmatpush1.xpose.msra.mxu0 0.0
    %4379 = vmatprep.subr.mxu0 0.0
    %4380 = vmatpush1.xpose.msra.mxu0 0.0
    %4381 = vmatprep.subr.mxu0 0.0
    %4382 = vmatpush1.xpose.msra.mxu0 0.0
    %4383 = vmatprep.subr.mxu0 0.0
    %4384 = vmatpush1.xpose.msra.mxu0 0.0
    %4385 = vmatprep.subr.mxu0 0.0
    %4386 = vmatpush1.xpose.msra.mxu0 0.0
    %4387 = vmatprep.subr.mxu0 0.0
    %4388 = vmatpush1.xpose.msra.mxu0 0.0
    %4389 = vmatprep.subr.mxu0 0.0
    %4390 = vmatpush1.xpose.msra.mxu0 0.0
    %4391 = vmatprep.subr.mxu0 0.0
    %4392 = vmatpush1.xpose.msra.mxu0 0.0
    %4393 = vmatprep.subr.mxu0 0.0
    %4394 = vmatpush1.xpose.msra.mxu0 0.0
    %4395 = vmatprep.subr.mxu0 0.0
    %4396 = vmatpush1.xpose.msra.mxu0 0.0
    %4397 = vmatprep.subr.mxu0 0.0
    %4398 = vmatpush1.xpose.msra.mxu0 0.0
    %4399 = vmatprep.subr.mxu0 0.0
    %4400 = vmatpush1.xpose.msra.mxu0 0.0
    %4401 = vmatprep.subr.mxu0 0.0
    %4402 = vmatpush1.xpose.msra.mxu0 0.0
    %4403 = vmatprep.subr.mxu0 0.0
    %4404 = vmatpush1.xpose.msra.mxu0 0.0
    %4405 = vmatprep.subr.mxu0 0.0
    %4406 = vmatpush1.xpose.msra.mxu0 0.0
    %4407 = vmatprep.subr.mxu0 0.0
    %4408 = vmatpush1.xpose.msra.mxu0 0.0
    %4409 = vmatprep.subr.mxu0 0.0
    %4410 = vmatpush1.xpose.msra.mxu0 0.0
    %4411 = vmatprep.subr.mxu0 0.0
    %4412 = vmatpush1.xpose.msra.mxu0 0.0
    %4413 = vmatprep.subr.mxu0 0.0
    %4414 = vmatpush1.xpose.msra.mxu0 0.0
    %4415 = vmatprep.mubr.f32.mxu0 0.0
    %4416 = vmatmul.mubr.f32.gmra.mrb[0].mxu0 %v4347
    %v4417 = vpop.f32.mrb[0].mxu0
    %v4418 = vadd.f32 0.0, %v4417
    %v4419 = vpop.f32.mrb[0].mxu0
    %4420 = vdwg.mxu0
    %v4421 = vsel %vm506, -1e+09, %v4418
    %v4422 = vsel %vm643, %v4421, -inf
    %4423 = vmax.xlane.f32.xlu0 %v4422
    %v4424 = vpop.xlane.xlu0 %4423
    %v4425 = vsub.f32 %v4421, %v4424
    %v4426 = vmul.f32 %v4425, 1.442695
    %v4427 = vpow.pop %v4426
    %v4428 = vsel %vm643, %v4427, 0.0
    %4429 = vadd.xlane.f32.xlu0 %v4428
    %v4430 = vpop.xlane.xlu0 %4429
    %v4431 = vrcp.pop %v4430
    %v4432 = vmul.f32 %v4427, %v4431
    %4433 = vrot.lane.b32.xlu0 %v4170, 56
    %v4434 = vpop.permute.xlu0 %4433
    %v4437 = vsel %vm643, %v4432, 0
    %4439 = vmatprep.subr.mxu0 0.0
    %4440 = vmatpush1.msra.mxu0 %v4434
    %4441 = vmatprep.subr.mxu0 0.0
    %4442 = vmatpush1.msra.mxu0 0.0
    %4443 = vmatprep.subr.mxu0 0.0
    %4444 = vmatpush1.msra.mxu0 0.0
    %4445 = vmatprep.subr.mxu0 0.0
    %4446 = vmatpush1.msra.mxu0 0.0
    %4447 = vmatprep.subr.mxu0 0.0
    %4448 = vmatpush1.msra.mxu0 0.0
    %4449 = vmatprep.subr.mxu0 0.0
    %4450 = vmatpush1.msra.mxu0 0.0
    %4451 = vmatprep.subr.mxu0 0.0
    %4452 = vmatpush1.msra.mxu0 0.0
    %4453 = vmatprep.subr.mxu0 0.0
    %4454 = vmatpush1.msra.mxu0 0.0
    %4455 = vmatprep.subr.mxu0 0.0
    %4456 = vmatpush1.msra.mxu0 0.0
    %4457 = vmatprep.subr.mxu0 0.0
    %4458 = vmatpush1.msra.mxu0 0.0
    %4459 = vmatprep.subr.mxu0 0.0
    %4460 = vmatpush1.msra.mxu0 0.0
    %4461 = vmatprep.subr.mxu0 0.0
    %4462 = vmatpush1.msra.mxu0 0.0
    %4463 = vmatprep.subr.mxu0 0.0
    %4464 = vmatpush1.msra.mxu0 0.0
    %4465 = vmatprep.subr.mxu0 0.0
    %4466 = vmatpush1.msra.mxu0 0.0
    %4467 = vmatprep.subr.mxu0 0.0
    %4468 = vmatpush1.msra.mxu0 0.0
    %4469 = vmatprep.subr.mxu0 0.0
    %4470 = vmatpush1.msra.mxu0 0.0
    %4471 = vmatprep.subr.mxu0 0.0
    %4472 = vmatpush1.msra.mxu0 0.0
    %4473 = vmatprep.subr.mxu0 0.0
    %4474 = vmatpush1.msra.mxu0 0.0
    %4475 = vmatprep.subr.mxu0 0.0
    %4476 = vmatpush1.msra.mxu0 0.0
    %4477 = vmatprep.subr.mxu0 0.0
    %4478 = vmatpush1.msra.mxu0 0.0
    %4479 = vmatprep.subr.mxu0 0.0
    %4480 = vmatpush1.msra.mxu0 0.0
    %4481 = vmatprep.subr.mxu0 0.0
    %4482 = vmatpush1.msra.mxu0 0.0
    %4483 = vmatprep.subr.mxu0 0.0
    %4484 = vmatpush1.msra.mxu0 0.0
    %4485 = vmatprep.subr.mxu0 0.0
    %4486 = vmatpush1.msra.mxu0 0.0
    %4487 = vmatprep.subr.mxu0 0.0
    %4488 = vmatpush1.msra.mxu0 0.0
    %4489 = vmatprep.subr.mxu0 0.0
    %4490 = vmatpush1.msra.mxu0 0.0
    %4491 = vmatprep.subr.mxu0 0.0
    %4492 = vmatpush1.msra.mxu0 0.0
    %4493 = vmatprep.subr.mxu0 0.0
    %4494 = vmatpush1.msra.mxu0 0.0
    %4495 = vmatprep.subr.mxu0 0.0
    %4496 = vmatpush1.msra.mxu0 0.0
    %4497 = vmatprep.subr.mxu0 0.0
    %4498 = vmatpush1.msra.mxu0 0.0
    %4499 = vmatprep.subr.mxu0 0.0
    %4500 = vmatpush1.msra.mxu0 0.0
    %4501 = vmatprep.subr.mxu0 0.0
    %4502 = vmatpush1.msra.mxu0 0.0
    %4503 = vmatprep.mubr.f32.mxu0 0.0
    %4504 = vmatmul.mubr.f32.gmra.mrb[0].mxu0 %v4437
    %v4505 = vpop.f32.mrb[0].mxu0
    %v4506 = vadd.f32 0.0, %v4505
    %v4507 = vpop.f32.mrb[0].mxu0
    %4508 = vdwg.mxu0
    %4509 = vrot.lane.b32.xlu0 %v4170, 112
    %v4510 = vpop.permute.xlu0 %4509
    %4511 = vrot.lane.b32.xlu0 %v4170, 80
    %v4512 = vpop.permute.xlu0 %4511
    %v4513 = vsel %vm643, %v4510, 0
    %v4515 = vsel %vm643, %v4512, 0
    %4517 = vmatprep.subr.mxu0 0.0
    %4518 = vmatpush1.xpose.msra.mxu0 %v4515
    %4519 = vmatprep.subr.mxu0 0.0
    %4520 = vmatpush1.xpose.msra.mxu0 0.0
    %4521 = vmatprep.subr.mxu0 0.0
    %4522 = vmatpush1.xpose.msra.mxu0 0.0
    %4523 = vmatprep.subr.mxu0 0.0
    %4524 = vmatpush1.xpose.msra.mxu0 0.0
    %4525 = vmatprep.subr.mxu0 0.0
    %4526 = vmatpush1.xpose.msra.mxu0 0.0
    %4527 = vmatprep.subr.mxu0 0.0
    %4528 = vmatpush1.xpose.msra.mxu0 0.0
    %4529 = vmatprep.subr.mxu0 0.0
    %4530 = vmatpush1.xpose.msra.mxu0 0.0
    %4531 = vmatprep.subr.mxu0 0.0
    %4532 = vmatpush1.xpose.msra.mxu0 0.0
    %4533 = vmatprep.subr.mxu0 0.0
    %4534 = vmatpush1.xpose.msra.mxu0 0.0
    %4535 = vmatprep.subr.mxu0 0.0
    %4536 = vmatpush1.xpose.msra.mxu0 0.0
    %4537 = vmatprep.subr.mxu0 0.0
    %4538 = vmatpush1.xpose.msra.mxu0 0.0
    %4539 = vmatprep.subr.mxu0 0.0
    %4540 = vmatpush1.xpose.msra.mxu0 0.0
    %4541 = vmatprep.subr.mxu0 0.0
    %4542 = vmatpush1.xpose.msra.mxu0 0.0
    %4543 = vmatprep.subr.mxu0 0.0
    %4544 = vmatpush1.xpose.msra.mxu0 0.0
    %4545 = vmatprep.subr.mxu0 0.0
    %4546 = vmatpush1.xpose.msra.mxu0 0.0
    %4547 = vmatprep.subr.mxu0 0.0
    %4548 = vmatpush1.xpose.msra.mxu0 0.0
    %4549 = vmatprep.subr.mxu0 0.0
    %4550 = vmatpush1.xpose.msra.mxu0 0.0
    %4551 = vmatprep.subr.mxu0 0.0
    %4552 = vmatpush1.xpose.msra.mxu0 0.0
    %4553 = vmatprep.subr.mxu0 0.0
    %4554 = vmatpush1.xpose.msra.mxu0 0.0
    %4555 = vmatprep.subr.mxu0 0.0
    %4556 = vmatpush1.xpose.msra.mxu0 0.0
    %4557 = vmatprep.subr.mxu0 0.0
    %4558 = vmatpush1.xpose.msra.mxu0 0.0
    %4559 = vmatprep.subr.mxu0 0.0
    %4560 = vmatpush1.xpose.msra.mxu0 0.0
    %4561 = vmatprep.subr.mxu0 0.0
    %4562 = vmatpush1.xpose.msra.mxu0 0.0
    %4563 = vmatprep.subr.mxu0 0.0
    %4564 = vmatpush1.xpose.msra.mxu0 0.0
    %4565 = vmatprep.subr.mxu0 0.0
    %4566 = vmatpush1.xpose.msra.mxu0 0.0
    %4567 = vmatprep.subr.mxu0 0.0
    %4568 = vmatpush1.xpose.msra.mxu0 0.0
    %4569 = vmatprep.subr.mxu0 0.0
    %4570 = vmatpush1.xpose.msra.mxu0 0.0
    %4571 = vmatprep.subr.mxu0 0.0
    %4572 = vmatpush1.xpose.msra.mxu0 0.0
    %4573 = vmatprep.subr.mxu0 0.0
    %4574 = vmatpush1.xpose.msra.mxu0 0.0
    %4575 = vmatprep.subr.mxu0 0.0
    %4576 = vmatpush1.xpose.msra.mxu0 0.0
    %4577 = vmatprep.subr.mxu0 0.0
    %4578 = vmatpush1.xpose.msra.mxu0 0.0
    %4579 = vmatprep.subr.mxu0 0.0
    %4580 = vmatpush1.xpose.msra.mxu0 0.0
    %4581 = vmatprep.mubr.f32.mxu0 0.0
    %4582 = vmatmul.mubr.f32.gmra.mrb[0].mxu0 %v4513
    %v4583 = vpop.f32.mrb[0].mxu0
    %v4584 = vadd.f32 0.0, %v4583
    %v4585 = vpop.f32.mrb[0].mxu0
    %4586 = vdwg.mxu0
    %v4587 = vsel %vm506, -1e+09, %v4584
    %v4588 = vsel %vm643, %v4587, -inf
    %4589 = vmax.xlane.f32.xlu0 %v4588
    %v4590 = vpop.xlane.xlu0 %4589
    %v4591 = vsub.f32 %v4587, %v4590
    %v4592 = vmul.f32 %v4591, 1.442695
    %v4593 = vpow.pop %v4592
    %v4594 = vsel %vm643, %v4593, 0.0
    %4595 = vadd.xlane.f32.xlu0 %v4594
    %v4596 = vpop.xlane.xlu0 %4595
    %v4597 = vrcp.pop %v4596
    %v4598 = vmul.f32 %v4593, %v4597
    %4599 = vrot.lane.b32.xlu0 %v4170, 48
    %v4600 = vpop.permute.xlu0 %4599
    %v4603 = vsel %vm643, %v4598, 0
    %4605 = vmatprep.subr.mxu0 0.0
    %4606 = vmatpush1.msra.mxu0 %v4600
    %4607 = vmatprep.subr.mxu0 0.0
    %4608 = vmatpush1.msra.mxu0 0.0
    %4609 = vmatprep.subr.mxu0 0.0
    %4610 = vmatpush1.msra.mxu0 0.0
    %4611 = vmatprep.subr.mxu0 0.0
    %4612 = vmatpush1.msra.mxu0 0.0
    %4613 = vmatprep.subr.mxu0 0.0
    %4614 = vmatpush1.msra.mxu0 0.0
    %4615 = vmatprep.subr.mxu0 0.0
    %4616 = vmatpush1.msra.mxu0 0.0
    %4617 = vmatprep.subr.mxu0 0.0
    %4618 = vmatpush1.msra.mxu0 0.0
    %4619 = vmatprep.subr.mxu0 0.0
    %4620 = vmatpush1.msra.mxu0 0.0
    %4621 = vmatprep.subr.mxu0 0.0
    %4622 = vmatpush1.msra.mxu0 0.0
    %4623 = vmatprep.subr.mxu0 0.0
    %4624 = vmatpush1.msra.mxu0 0.0
    %4625 = vmatprep.subr.mxu0 0.0
    %4626 = vmatpush1.msra.mxu0 0.0
    %4627 = vmatprep.subr.mxu0 0.0
    %4628 = vmatpush1.msra.mxu0 0.0
    %4629 = vmatprep.subr.mxu0 0.0
    %4630 = vmatpush1.msra.mxu0 0.0
    %4631 = vmatprep.subr.mxu0 0.0
    %4632 = vmatpush1.msra.mxu0 0.0
    %4633 = vmatprep.subr.mxu0 0.0
    %4634 = vmatpush1.msra.mxu0 0.0
    %4635 = vmatprep.subr.mxu0 0.0
    %4636 = vmatpush1.msra.mxu0 0.0
    %4637 = vmatprep.subr.mxu0 0.0
    %4638 = vmatpush1.msra.mxu0 0.0
    %4639 = vmatprep.subr.mxu0 0.0
    %4640 = vmatpush1.msra.mxu0 0.0
    %4641 = vmatprep.subr.mxu0 0.0
    %4642 = vmatpush1.msra.mxu0 0.0
    %4643 = vmatprep.subr.mxu0 0.0
    %4644 = vmatpush1.msra.mxu0 0.0
    %4645 = vmatprep.subr.mxu0 0.0
    %4646 = vmatpush1.msra.mxu0 0.0
    %4647 = vmatprep.subr.mxu0 0.0
    %4648 = vmatpush1.msra.mxu0 0.0
    %4649 = vmatprep.subr.mxu0 0.0
    %4650 = vmatpush1.msra.mxu0 0.0
    %4651 = vmatprep.subr.mxu0 0.0
    %4652 = vmatpush1.msra.mxu0 0.0
    %4653 = vmatprep.subr.mxu0 0.0
    %4654 = vmatpush1.msra.mxu0 0.0
    %4655 = vmatprep.subr.mxu0 0.0
    %4656 = vmatpush1.msra.mxu0 0.0
    %4657 = vmatprep.subr.mxu0 0.0
    %4658 = vmatpush1.msra.mxu0 0.0
    %4659 = vmatprep.subr.mxu0 0.0
    %4660 = vmatpush1.msra.mxu0 0.0
    %4661 = vmatprep.subr.mxu0 0.0
    %4662 = vmatpush1.msra.mxu0 0.0
    %4663 = vmatprep.subr.mxu0 0.0
    %4664 = vmatpush1.msra.mxu0 0.0
    %4665 = vmatprep.subr.mxu0 0.0
    %4666 = vmatpush1.msra.mxu0 0.0
    %4667 = vmatprep.subr.mxu0 0.0
    %4668 = vmatpush1.msra.mxu0 0.0
    %4669 = vmatprep.mubr.f32.mxu0 0.0
    %4670 = vmatmul.mubr.f32.gmra.mrb[0].mxu0 %v4603
    %v4671 = vpop.f32.mrb[0].mxu0
    %v4672 = vadd.f32 0.0, %v4671
    %v4673 = vpop.f32.mrb[0].mxu0
    %4674 = vdwg.mxu0
    %4675 = vrot.lane.b32.xlu0 %v4170, 104
    %v4676 = vpop.permute.xlu0 %4675
    %4677 = vrot.lane.b32.xlu0 %v4170, 72
    %v4678 = vpop.permute.xlu0 %4677
    %v4679 = vsel %vm643, %v4676, 0
    %v4681 = vsel %vm643, %v4678, 0
    %4683 = vmatprep.subr.mxu0 0.0
    %4684 = vmatpush1.xpose.msra.mxu0 %v4681
    %4685 = vmatprep.subr.mxu0 0.0
    %4686 = vmatpush1.xpose.msra.mxu0 0.0
    %4687 = vmatprep.subr.mxu0 0.0
    %4688 = vmatpush1.xpose.msra.mxu0 0.0
    %4689 = vmatprep.subr.mxu0 0.0
    %4690 = vmatpush1.xpose.msra.mxu0 0.0
    %4691 = vmatprep.subr.mxu0 0.0
    %4692 = vmatpush1.xpose.msra.mxu0 0.0
    %4693 = vmatprep.subr.mxu0 0.0
    %4694 = vmatpush1.xpose.msra.mxu0 0.0
    %4695 = vmatprep.subr.mxu0 0.0
    %4696 = vmatpush1.xpose.msra.mxu0 0.0
    %4697 = vmatprep.subr.mxu0 0.0
    %4698 = vmatpush1.xpose.msra.mxu0 0.0
    %4699 = vmatprep.subr.mxu0 0.0
    %4700 = vmatpush1.xpose.msra.mxu0 0.0
    %4701 = vmatprep.subr.mxu0 0.0
    %4702 = vmatpush1.xpose.msra.mxu0 0.0
    %4703 = vmatprep.subr.mxu0 0.0
    %4704 = vmatpush1.xpose.msra.mxu0 0.0
    %4705 = vmatprep.subr.mxu0 0.0
    %4706 = vmatpush1.xpose.msra.mxu0 0.0
    %4707 = vmatprep.subr.mxu0 0.0
    %4708 = vmatpush1.xpose.msra.mxu0 0.0
    %4709 = vmatprep.subr.mxu0 0.0
    %4710 = vmatpush1.xpose.msra.mxu0 0.0
    %4711 = vmatprep.subr.mxu0 0.0
    %4712 = vmatpush1.xpose.msra.mxu0 0.0
    %4713 = vmatprep.subr.mxu0 0.0
    %4714 = vmatpush1.xpose.msra.mxu0 0.0
    %4715 = vmatprep.subr.mxu0 0.0
    %4716 = vmatpush1.xpose.msra.mxu0 0.0
    %4717 = vmatprep.subr.mxu0 0.0
    %4718 = vmatpush1.xpose.msra.mxu0 0.0
    %4719 = vmatprep.subr.mxu0 0.0
    %4720 = vmatpush1.xpose.msra.mxu0 0.0
    %4721 = vmatprep.subr.mxu0 0.0
    %4722 = vmatpush1.xpose.msra.mxu0 0.0
    %4723 = vmatprep.subr.mxu0 0.0
    %4724 = vmatpush1.xpose.msra.mxu0 0.0
    %4725 = vmatprep.subr.mxu0 0.0
    %4726 = vmatpush1.xpose.msra.mxu0 0.0
    %4727 = vmatprep.subr.mxu0 0.0
    %4728 = vmatpush1.xpose.msra.mxu0 0.0
    %4729 = vmatprep.subr.mxu0 0.0
    %4730 = vmatpush1.xpose.msra.mxu0 0.0
    %4731 = vmatprep.subr.mxu0 0.0
    %4732 = vmatpush1.xpose.msra.mxu0 0.0
    %4733 = vmatprep.subr.mxu0 0.0
    %4734 = vmatpush1.xpose.msra.mxu0 0.0
    %4735 = vmatprep.subr.mxu0 0.0
    %4736 = vmatpush1.xpose.msra.mxu0 0.0
    %4737 = vmatprep.subr.mxu0 0.0
    %4738 = vmatpush1.xpose.msra.mxu0 0.0
    %4739 = vmatprep.subr.mxu0 0.0
    %4740 = vmatpush1.xpose.msra.mxu0 0.0
    %4741 = vmatprep.subr.mxu0 0.0
    %4742 = vmatpush1.xpose.msra.mxu0 0.0
    %4743 = vmatprep.subr.mxu0 0.0
    %4744 = vmatpush1.xpose.msra.mxu0 0.0
    %4745 = vmatprep.subr.mxu0 0.0
    %4746 = vmatpush1.xpose.msra.mxu0 0.0
    %4747 = vmatprep.mubr.f32.mxu0 0.0
    %4748 = vmatmul.mubr.f32.gmra.mrb[0].mxu0 %v4679
    %v4749 = vpop.f32.mrb[0].mxu0
    %v4750 = vadd.f32 0.0, %v4749
    %v4751 = vpop.f32.mrb[0].mxu0
    %4752 = vdwg.mxu0
    %v4753 = vsel %vm506, -1e+09, %v4750
    %v4754 = vsel %vm643, %v4753, -inf
    %4755 = vmax.xlane.f32.xlu0 %v4754
    %v4756 = vpop.xlane.xlu0 %4755
    %v4757 = vsub.f32 %v4753, %v4756
    %v4758 = vmul.f32 %v4757, 1.442695
    %v4759 = vpow.pop %v4758
    %v4760 = vsel %vm643, %v4759, 0.0
    %4761 = vadd.xlane.f32.xlu0 %v4760
    %v4762 = vpop.xlane.xlu0 %4761
    %v4763 = vrcp.pop %v4762
    %v4764 = vmul.f32 %v4759, %v4763
    %4765 = vrot.lane.b32.xlu0 %v4170, 40
    %v4766 = vpop.permute.xlu0 %4765
    %v4769 = vsel %vm643, %v4764, 0
    %4771 = vmatprep.subr.mxu0 0.0
    %4772 = vmatpush1.msra.mxu0 %v4766
    %4773 = vmatprep.subr.mxu0 0.0
    %4774 = vmatpush1.msra.mxu0 0.0
    %4775 = vmatprep.subr.mxu0 0.0
    %4776 = vmatpush1.msra.mxu0 0.0
    %4777 = vmatprep.subr.mxu0 0.0
    %4778 = vmatpush1.msra.mxu0 0.0
    %4779 = vmatprep.subr.mxu0 0.0
    %4780 = vmatpush1.msra.mxu0 0.0
    %4781 = vmatprep.subr.mxu0 0.0
    %4782 = vmatpush1.msra.mxu0 0.0
    %4783 = vmatprep.subr.mxu0 0.0
    %4784 = vmatpush1.msra.mxu0 0.0
    %4785 = vmatprep.subr.mxu0 0.0
    %4786 = vmatpush1.msra.mxu0 0.0
    %4787 = vmatprep.subr.mxu0 0.0
    %4788 = vmatpush1.msra.mxu0 0.0
    %4789 = vmatprep.subr.mxu0 0.0
    %4790 = vmatpush1.msra.mxu0 0.0
    %4791 = vmatprep.subr.mxu0 0.0
    %4792 = vmatpush1.msra.mxu0 0.0
    %4793 = vmatprep.subr.mxu0 0.0
    %4794 = vmatpush1.msra.mxu0 0.0
    %4795 = vmatprep.subr.mxu0 0.0
    %4796 = vmatpush1.msra.mxu0 0.0
    %4797 = vmatprep.subr.mxu0 0.0
    %4798 = vmatpush1.msra.mxu0 0.0
    %4799 = vmatprep.subr.mxu0 0.0
    %4800 = vmatpush1.msra.mxu0 0.0
    %4801 = vmatprep.subr.mxu0 0.0
    %4802 = vmatpush1.msra.mxu0 0.0
    %4803 = vmatprep.subr.mxu0 0.0
    %4804 = vmatpush1.msra.mxu0 0.0
    %4805 = vmatprep.subr.mxu0 0.0
    %4806 = vmatpush1.msra.mxu0 0.0
    %4807 = vmatprep.subr.mxu0 0.0
    %4808 = vmatpush1.msra.mxu0 0.0
    %4809 = vmatprep.subr.mxu0 0.0
    %4810 = vmatpush1.msra.mxu0 0.0
    %4811 = vmatprep.subr.mxu0 0.0
    %4812 = vmatpush1.msra.mxu0 0.0
    %4813 = vmatprep.subr.mxu0 0.0
    %4814 = vmatpush1.msra.mxu0 0.0
    %4815 = vmatprep.subr.mxu0 0.0
    %4816 = vmatpush1.msra.mxu0 0.0
    %4817 = vmatprep.subr.mxu0 0.0
    %4818 = vmatpush1.msra.mxu0 0.0
    %4819 = vmatprep.subr.mxu0 0.0
    %4820 = vmatpush1.msra.mxu0 0.0
    %4821 = vmatprep.subr.mxu0 0.0
    %4822 = vmatpush1.msra.mxu0 0.0
    %4823 = vmatprep.subr.mxu0 0.0
    %4824 = vmatpush1.msra.mxu0 0.0
    %4825 = vmatprep.subr.mxu0 0.0
    %4826 = vmatpush1.msra.mxu0 0.0
    %4827 = vmatprep.subr.mxu0 0.0
    %4828 = vmatpush1.msra.mxu0 0.0
    %4829 = vmatprep.subr.mxu0 0.0
    %4830 = vmatpush1.msra.mxu0 0.0
    %4831 = vmatprep.subr.mxu0 0.0
    %4832 = vmatpush1.msra.mxu0 0.0
    %4833 = vmatprep.subr.mxu0 0.0
    %4834 = vmatpush1.msra.mxu0 0.0
    %4835 = vmatprep.mubr.f32.mxu0 0.0
    %4836 = vmatmul.mubr.f32.gmra.mrb[0].mxu0 %v4769
    %v4837 = vpop.f32.mrb[0].mxu0
    %v4838 = vadd.f32 0.0, %v4837
    %v4839 = vpop.f32.mrb[0].mxu0
    %4840 = vdwg.mxu0
    %4842 = vrot.lane.b32.xlu0 %v4506, 8
    %v4843 = vpop.permute.xlu0 %4842
    %4846 = vrot.lane.b32.xlu0 %v4672, 16
    %v4847 = vpop.permute.xlu0 %4846
    %4850 = vrot.lane.b32.xlu0 %v4838, 24
    %v4851 = vpop.permute.xlu0 %4850
    %v4853 = vsel %vm643, %v4340, %v4843
    %v4854 = vsel %vm1317, %v4853, %v4847
    %v4855 = vsel %vm1319, %v4854, %v4851
    %4857 = vrot.lane.b32.xlu0 %v4175, 96
    %v4858 = vpop.permute.xlu0 %4857
    %v4859 = vsel %vm643, %v4175, 0
    %v4861 = vsel %vm643, %v4858, 0
    %4863 = vmatprep.subr.mxu0 0.0
    %4864 = vmatpush1.xpose.msra.mxu0 %v4861
    %4865 = vmatprep.subr.mxu0 0.0
    %4866 = vmatpush1.xpose.msra.mxu0 0.0
    %4867 = vmatprep.subr.mxu0 0.0
    %4868 = vmatpush1.xpose.msra.mxu0 0.0
    %4869 = vmatprep.subr.mxu0 0.0
    %4870 = vmatpush1.xpose.msra.mxu0 0.0
    %4871 = vmatprep.subr.mxu0 0.0
    %4872 = vmatpush1.xpose.msra.mxu0 0.0
    %4873 = vmatprep.subr.mxu0 0.0
    %4874 = vmatpush1.xpose.msra.mxu0 0.0
    %4875 = vmatprep.subr.mxu0 0.0
    %4876 = vmatpush1.xpose.msra.mxu0 0.0
    %4877 = vmatprep.subr.mxu0 0.0
    %4878 = vmatpush1.xpose.msra.mxu0 0.0
    %4879 = vmatprep.subr.mxu0 0.0
    %4880 = vmatpush1.xpose.msra.mxu0 0.0
    %4881 = vmatprep.subr.mxu0 0.0
    %4882 = vmatpush1.xpose.msra.mxu0 0.0
    %4883 = vmatprep.subr.mxu0 0.0
    %4884 = vmatpush1.xpose.msra.mxu0 0.0
    %4885 = vmatprep.subr.mxu0 0.0
    %4886 = vmatpush1.xpose.msra.mxu0 0.0
    %4887 = vmatprep.subr.mxu0 0.0
    %4888 = vmatpush1.xpose.msra.mxu0 0.0
    %4889 = vmatprep.subr.mxu0 0.0
    %4890 = vmatpush1.xpose.msra.mxu0 0.0
    %4891 = vmatprep.subr.mxu0 0.0
    %4892 = vmatpush1.xpose.msra.mxu0 0.0
    %4893 = vmatprep.subr.mxu0 0.0
    %4894 = vmatpush1.xpose.msra.mxu0 0.0
    %4895 = vmatprep.subr.mxu0 0.0
    %4896 = vmatpush1.xpose.msra.mxu0 0.0
    %4897 = vmatprep.subr.mxu0 0.0
    %4898 = vmatpush1.xpose.msra.mxu0 0.0
    %4899 = vmatprep.subr.mxu0 0.0
    %4900 = vmatpush1.xpose.msra.mxu0 0.0
    %4901 = vmatprep.subr.mxu0 0.0
    %4902 = vmatpush1.xpose.msra.mxu0 0.0
    %4903 = vmatprep.subr.mxu0 0.0
    %4904 = vmatpush1.xpose.msra.mxu0 0.0
    %4905 = vmatprep.subr.mxu0 0.0
    %4906 = vmatpush1.xpose.msra.mxu0 0.0
    %4907 = vmatprep.subr.mxu0 0.0
    %4908 = vmatpush1.xpose.msra.mxu0 0.0
    %4909 = vmatprep.subr.mxu0 0.0
    %4910 = vmatpush1.xpose.msra.mxu0 0.0
    %4911 = vmatprep.subr.mxu0 0.0
    %4912 = vmatpush1.xpose.msra.mxu0 0.0
    %4913 = vmatprep.subr.mxu0 0.0
    %4914 = vmatpush1.xpose.msra.mxu0 0.0
    %4915 = vmatprep.subr.mxu0 0.0
    %4916 = vmatpush1.xpose.msra.mxu0 0.0
    %4917 = vmatprep.subr.mxu0 0.0
    %4918 = vmatpush1.xpose.msra.mxu0 0.0
    %4919 = vmatprep.subr.mxu0 0.0
    %4920 = vmatpush1.xpose.msra.mxu0 0.0
    %4921 = vmatprep.subr.mxu0 0.0
    %4922 = vmatpush1.xpose.msra.mxu0 0.0
    %4923 = vmatprep.subr.mxu0 0.0
    %4924 = vmatpush1.xpose.msra.mxu0 0.0
    %4925 = vmatprep.subr.mxu0 0.0
    %4926 = vmatpush1.xpose.msra.mxu0 0.0
    %4927 = vmatprep.mubr.f32.mxu0 0.0
    %4928 = vmatmul.mubr.f32.gmra.mrb[0].mxu0 %v4859
    %v4929 = vpop.f32.mrb[0].mxu0
    %v4930 = vadd.f32 0.0, %v4929
    %v4931 = vpop.f32.mrb[0].mxu0
    %4932 = vdwg.mxu0
    %v4933 = vsel %vm506, -1e+09, %v4930
    %v4934 = vsel %vm643, %v4933, -inf
    %4935 = vmax.xlane.f32.xlu0 %v4934
    %v4936 = vpop.xlane.xlu0 %4935
    %v4937 = vsub.f32 %v4933, %v4936
    %v4938 = vmul.f32 %v4937, 1.442695
    %v4939 = vpow.pop %v4938
    %v4940 = vsel %vm643, %v4939, 0.0
    %4941 = vadd.xlane.f32.xlu0 %v4940
    %v4942 = vpop.xlane.xlu0 %4941
    %v4943 = vrcp.pop %v4942
    %v4944 = vmul.f32 %v4939, %v4943
    %4945 = vrot.lane.b32.xlu0 %v4175, 64
    %v4946 = vpop.permute.xlu0 %4945
    %v4949 = vsel %vm643, %v4944, 0
    %4951 = vmatprep.subr.mxu0 0.0
    %4952 = vmatpush1.msra.mxu0 %v4946
    %4953 = vmatprep.subr.mxu0 0.0
    %4954 = vmatpush1.msra.mxu0 0.0
    %4955 = vmatprep.subr.mxu0 0.0
    %4956 = vmatpush1.msra.mxu0 0.0
    %4957 = vmatprep.subr.mxu0 0.0
    %4958 = vmatpush1.msra.mxu0 0.0
    %4959 = vmatprep.subr.mxu0 0.0
    %4960 = vmatpush1.msra.mxu0 0.0
    %4961 = vmatprep.subr.mxu0 0.0
    %4962 = vmatpush1.msra.mxu0 0.0
    %4963 = vmatprep.subr.mxu0 0.0
    %4964 = vmatpush1.msra.mxu0 0.0
    %4965 = vmatprep.subr.mxu0 0.0
    %4966 = vmatpush1.msra.mxu0 0.0
    %4967 = vmatprep.subr.mxu0 0.0
    %4968 = vmatpush1.msra.mxu0 0.0
    %4969 = vmatprep.subr.mxu0 0.0
    %4970 = vmatpush1.msra.mxu0 0.0
    %4971 = vmatprep.subr.mxu0 0.0
    %4972 = vmatpush1.msra.mxu0 0.0
    %4973 = vmatprep.subr.mxu0 0.0
    %4974 = vmatpush1.msra.mxu0 0.0
    %4975 = vmatprep.subr.mxu0 0.0
    %4976 = vmatpush1.msra.mxu0 0.0
    %4977 = vmatprep.subr.mxu0 0.0
    %4978 = vmatpush1.msra.mxu0 0.0
    %4979 = vmatprep.subr.mxu0 0.0
    %4980 = vmatpush1.msra.mxu0 0.0
    %4981 = vmatprep.subr.mxu0 0.0
    %4982 = vmatpush1.msra.mxu0 0.0
    %4983 = vmatprep.subr.mxu0 0.0
    %4984 = vmatpush1.msra.mxu0 0.0
    %4985 = vmatprep.subr.mxu0 0.0
    %4986 = vmatpush1.msra.mxu0 0.0
    %4987 = vmatprep.subr.mxu0 0.0
    %4988 = vmatpush1.msra.mxu0 0.0
    %4989 = vmatprep.subr.mxu0 0.0
    %4990 = vmatpush1.msra.mxu0 0.0
    %4991 = vmatprep.subr.mxu0 0.0
    %4992 = vmatpush1.msra.mxu0 0.0
    %4993 = vmatprep.subr.mxu0 0.0
    %4994 = vmatpush1.msra.mxu0 0.0
    %4995 = vmatprep.subr.mxu0 0.0
    %4996 = vmatpush1.msra.mxu0 0.0
    %4997 = vmatprep.subr.mxu0 0.0
    %4998 = vmatpush1.msra.mxu0 0.0
    %4999 = vmatprep.subr.mxu0 0.0
    %5000 = vmatpush1.msra.mxu0 0.0
    %5001 = vmatprep.subr.mxu0 0.0
    %5002 = vmatpush1.msra.mxu0 0.0
    %5003 = vmatprep.subr.mxu0 0.0
    %5004 = vmatpush1.msra.mxu0 0.0
    %5005 = vmatprep.subr.mxu0 0.0
    %5006 = vmatpush1.msra.mxu0 0.0
    %5007 = vmatprep.subr.mxu0 0.0
    %5008 = vmatpush1.msra.mxu0 0.0
    %5009 = vmatprep.subr.mxu0 0.0
    %5010 = vmatpush1.msra.mxu0 0.0
    %5011 = vmatprep.subr.mxu0 0.0
    %5012 = vmatpush1.msra.mxu0 0.0
    %5013 = vmatprep.subr.mxu0 0.0
    %5014 = vmatpush1.msra.mxu0 0.0
    %5015 = vmatprep.mubr.f32.mxu0 0.0
    %5016 = vmatmul.mubr.f32.gmra.mrb[0].mxu0 %v4949
    %v5017 = vpop.f32.mrb[0].mxu0
    %v5018 = vadd.f32 0.0, %v5017
    %v5019 = vpop.f32.mrb[0].mxu0
    %5020 = vdwg.mxu0
    %5021 = vrot.lane.b32.xlu0 %v4175, 120
    %v5022 = vpop.permute.xlu0 %5021
    %5023 = vrot.lane.b32.xlu0 %v4175, 88
    %v5024 = vpop.permute.xlu0 %5023
    %v5025 = vsel %vm643, %v5022, 0
    %v5027 = vsel %vm643, %v5024, 0
    %5029 = vmatprep.subr.mxu0 0.0
    %5030 = vmatpush1.xpose.msra.mxu0 %v5027
    %5031 = vmatprep.subr.mxu0 0.0
    %5032 = vmatpush1.xpose.msra.mxu0 0.0
    %5033 = vmatprep.subr.mxu0 0.0
    %5034 = vmatpush1.xpose.msra.mxu0 0.0
    %5035 = vmatprep.subr.mxu0 0.0
    %5036 = vmatpush1.xpose.msra.mxu0 0.0
    %5037 = vmatprep.subr.mxu0 0.0
    %5038 = vmatpush1.xpose.msra.mxu0 0.0
    %5039 = vmatprep.subr.mxu0 0.0
    %5040 = vmatpush1.xpose.msra.mxu0 0.0
    %5041 = vmatprep.subr.mxu0 0.0
    %5042 = vmatpush1.xpose.msra.mxu0 0.0
    %5043 = vmatprep.subr.mxu0 0.0
    %5044 = vmatpush1.xpose.msra.mxu0 0.0
    %5045 = vmatprep.subr.mxu0 0.0
    %5046 = vmatpush1.xpose.msra.mxu0 0.0
    %5047 = vmatprep.subr.mxu0 0.0
    %5048 = vmatpush1.xpose.msra.mxu0 0.0
    %5049 = vmatprep.subr.mxu0 0.0
    %5050 = vmatpush1.xpose.msra.mxu0 0.0
    %5051 = vmatprep.subr.mxu0 0.0
    %5052 = vmatpush1.xpose.msra.mxu0 0.0
    %5053 = vmatprep.subr.mxu0 0.0
    %5054 = vmatpush1.xpose.msra.mxu0 0.0
    %5055 = vmatprep.subr.mxu0 0.0
    %5056 = vmatpush1.xpose.msra.mxu0 0.0
    %5057 = vmatprep.subr.mxu0 0.0
    %5058 = vmatpush1.xpose.msra.mxu0 0.0
    %5059 = vmatprep.subr.mxu0 0.0
    %5060 = vmatpush1.xpose.msra.mxu0 0.0
    %5061 = vmatprep.subr.mxu0 0.0
    %5062 = vmatpush1.xpose.msra.mxu0 0.0
    %5063 = vmatprep.subr.mxu0 0.0
    %5064 = vmatpush1.xpose.msra.mxu0 0.0
    %5065 = vmatprep.subr.mxu0 0.0
    %5066 = vmatpush1.xpose.msra.mxu0 0.0
    %5067 = vmatprep.subr.mxu0 0.0
    %5068 = vmatpush1.xpose.msra.mxu0 0.0
    %5069 = vmatprep.subr.mxu0 0.0
    %5070 = vmatpush1.xpose.msra.mxu0 0.0
    %5071 = vmatprep.subr.mxu0 0.0
    %5072 = vmatpush1.xpose.msra.mxu0 0.0
    %5073 = vmatprep.subr.mxu0 0.0
    %5074 = vmatpush1.xpose.msra.mxu0 0.0
    %5075 = vmatprep.subr.mxu0 0.0
    %5076 = vmatpush1.xpose.msra.mxu0 0.0
    %5077 = vmatprep.subr.mxu0 0.0
    %5078 = vmatpush1.xpose.msra.mxu0 0.0
    %5079 = vmatprep.subr.mxu0 0.0
    %5080 = vmatpush1.xpose.msra.mxu0 0.0
    %5081 = vmatprep.subr.mxu0 0.0
    %5082 = vmatpush1.xpose.msra.mxu0 0.0
    %5083 = vmatprep.subr.mxu0 0.0
    %5084 = vmatpush1.xpose.msra.mxu0 0.0
    %5085 = vmatprep.subr.mxu0 0.0
    %5086 = vmatpush1.xpose.msra.mxu0 0.0
    %5087 = vmatprep.subr.mxu0 0.0
    %5088 = vmatpush1.xpose.msra.mxu0 0.0
    %5089 = vmatprep.subr.mxu0 0.0
    %5090 = vmatpush1.xpose.msra.mxu0 0.0
    %5091 = vmatprep.subr.mxu0 0.0
    %5092 = vmatpush1.xpose.msra.mxu0 0.0
    %5093 = vmatprep.mubr.f32.mxu0 0.0
    %5094 = vmatmul.mubr.f32.gmra.mrb[0].mxu0 %v5025
    %v5095 = vpop.f32.mrb[0].mxu0
    %v5096 = vadd.f32 0.0, %v5095
    %v5097 = vpop.f32.mrb[0].mxu0
    %5098 = vdwg.mxu0
    %v5099 = vsel %vm506, -1e+09, %v5096
    %v5100 = vsel %vm643, %v5099, -inf
    %5101 = vmax.xlane.f32.xlu0 %v5100
    %v5102 = vpop.xlane.xlu0 %5101
    %v5103 = vsub.f32 %v5099, %v5102
    %v5104 = vmul.f32 %v5103, 1.442695
    %v5105 = vpow.pop %v5104
    %v5106 = vsel %vm643, %v5105, 0.0
    %5107 = vadd.xlane.f32.xlu0 %v5106
    %v5108 = vpop.xlane.xlu0 %5107
    %v5109 = vrcp.pop %v5108
    %v5110 = vmul.f32 %v5105, %v5109
    %5111 = vrot.lane.b32.xlu0 %v4175, 56
    %v5112 = vpop.permute.xlu0 %5111
    %v5115 = vsel %vm643, %v5110, 0
    %5117 = vmatprep.subr.mxu0 0.0
    %5118 = vmatpush1.msra.mxu0 %v5112
    %5119 = vmatprep.subr.mxu0 0.0
    %5120 = vmatpush1.msra.mxu0 0.0
    %5121 = vmatprep.subr.mxu0 0.0
    %5122 = vmatpush1.msra.mxu0 0.0
    %5123 = vmatprep.subr.mxu0 0.0
    %5124 = vmatpush1.msra.mxu0 0.0
    %5125 = vmatprep.subr.mxu0 0.0
    %5126 = vmatpush1.msra.mxu0 0.0
    %5127 = vmatprep.subr.mxu0 0.0
    %5128 = vmatpush1.msra.mxu0 0.0
    %5129 = vmatprep.subr.mxu0 0.0
    %5130 = vmatpush1.msra.mxu0 0.0
    %5131 = vmatprep.subr.mxu0 0.0
    %5132 = vmatpush1.msra.mxu0 0.0
    %5133 = vmatprep.subr.mxu0 0.0
    %5134 = vmatpush1.msra.mxu0 0.0
    %5135 = vmatprep.subr.mxu0 0.0
    %5136 = vmatpush1.msra.mxu0 0.0
    %5137 = vmatprep.subr.mxu0 0.0
    %5138 = vmatpush1.msra.mxu0 0.0
    %5139 = vmatprep.subr.mxu0 0.0
    %5140 = vmatpush1.msra.mxu0 0.0
    %5141 = vmatprep.subr.mxu0 0.0
    %5142 = vmatpush1.msra.mxu0 0.0
    %5143 = vmatprep.subr.mxu0 0.0
    %5144 = vmatpush1.msra.mxu0 0.0
    %5145 = vmatprep.subr.mxu0 0.0
    %5146 = vmatpush1.msra.mxu0 0.0
    %5147 = vmatprep.subr.mxu0 0.0
    %5148 = vmatpush1.msra.mxu0 0.0
    %5149 = vmatprep.subr.mxu0 0.0
    %5150 = vmatpush1.msra.mxu0 0.0
    %5151 = vmatprep.subr.mxu0 0.0
    %5152 = vmatpush1.msra.mxu0 0.0
    %5153 = vmatprep.subr.mxu0 0.0
    %5154 = vmatpush1.msra.mxu0 0.0
    %5155 = vmatprep.subr.mxu0 0.0
    %5156 = vmatpush1.msra.mxu0 0.0
    %5157 = vmatprep.subr.mxu0 0.0
    %5158 = vmatpush1.msra.mxu0 0.0
    %5159 = vmatprep.subr.mxu0 0.0
    %5160 = vmatpush1.msra.mxu0 0.0
    %5161 = vmatprep.subr.mxu0 0.0
    %5162 = vmatpush1.msra.mxu0 0.0
    %5163 = vmatprep.subr.mxu0 0.0
    %5164 = vmatpush1.msra.mxu0 0.0
    %5165 = vmatprep.subr.mxu0 0.0
    %5166 = vmatpush1.msra.mxu0 0.0
    %5167 = vmatprep.subr.mxu0 0.0
    %5168 = vmatpush1.msra.mxu0 0.0
    %5169 = vmatprep.subr.mxu0 0.0
    %5170 = vmatpush1.msra.mxu0 0.0
    %5171 = vmatprep.subr.mxu0 0.0
    %5172 = vmatpush1.msra.mxu0 0.0
    %5173 = vmatprep.subr.mxu0 0.0
    %5174 = vmatpush1.msra.mxu0 0.0
    %5175 = vmatprep.subr.mxu0 0.0
    %5176 = vmatpush1.msra.mxu0 0.0
    %5177 = vmatprep.subr.mxu0 0.0
    %5178 = vmatpush1.msra.mxu0 0.0
    %5179 = vmatprep.subr.mxu0 0.0
    %5180 = vmatpush1.msra.mxu0 0.0
    %5181 = vmatprep.mubr.f32.mxu0 0.0
    %5182 = vmatmul.mubr.f32.gmra.mrb[0].mxu0 %v5115
    %v5183 = vpop.f32.mrb[0].mxu0
    %v5184 = vadd.f32 0.0, %v5183
    %v5185 = vpop.f32.mrb[0].mxu0
    %5186 = vdwg.mxu0
    %5187 = vrot.lane.b32.xlu0 %v4175, 112
    %v5188 = vpop.permute.xlu0 %5187
    %5189 = vrot.lane.b32.xlu0 %v4175, 80
    %v5190 = vpop.permute.xlu0 %5189
    %v5191 = vsel %vm643, %v5188, 0
    %v5193 = vsel %vm643, %v5190, 0
    %5195 = vmatprep.subr.mxu0 0.0
    %5196 = vmatpush1.xpose.msra.mxu0 %v5193
    %5197 = vmatprep.subr.mxu0 0.0
    %5198 = vmatpush1.xpose.msra.mxu0 0.0
    %5199 = vmatprep.subr.mxu0 0.0
    %5200 = vmatpush1.xpose.msra.mxu0 0.0
    %5201 = vmatprep.subr.mxu0 0.0
    %5202 = vmatpush1.xpose.msra.mxu0 0.0
    %5203 = vmatprep.subr.mxu0 0.0
    %5204 = vmatpush1.xpose.msra.mxu0 0.0
    %5205 = vmatprep.subr.mxu0 0.0
    %5206 = vmatpush1.xpose.msra.mxu0 0.0
    %5207 = vmatprep.subr.mxu0 0.0
    %5208 = vmatpush1.xpose.msra.mxu0 0.0
    %5209 = vmatprep.subr.mxu0 0.0
    %5210 = vmatpush1.xpose.msra.mxu0 0.0
    %5211 = vmatprep.subr.mxu0 0.0
    %5212 = vmatpush1.xpose.msra.mxu0 0.0
    %5213 = vmatprep.subr.mxu0 0.0
    %5214 = vmatpush1.xpose.msra.mxu0 0.0
    %5215 = vmatprep.subr.mxu0 0.0
    %5216 = vmatpush1.xpose.msra.mxu0 0.0
    %5217 = vmatprep.subr.mxu0 0.0
    %5218 = vmatpush1.xpose.msra.mxu0 0.0
    %5219 = vmatprep.subr.mxu0 0.0
    %5220 = vmatpush1.xpose.msra.mxu0 0.0
    %5221 = vmatprep.subr.mxu0 0.0
    %5222 = vmatpush1.xpose.msra.mxu0 0.0
    %5223 = vmatprep.subr.mxu0 0.0
    %5224 = vmatpush1.xpose.msra.mxu0 0.0
    %5225 = vmatprep.subr.mxu0 0.0
    %5226 = vmatpush1.xpose.msra.mxu0 0.0
    %5227 = vmatprep.subr.mxu0 0.0
    %5228 = vmatpush1.xpose.msra.mxu0 0.0
    %5229 = vmatprep.subr.mxu0 0.0
    %5230 = vmatpush1.xpose.msra.mxu0 0.0
    %5231 = vmatprep.subr.mxu0 0.0
    %5232 = vmatpush1.xpose.msra.mxu0 0.0
    %5233 = vmatprep.subr.mxu0 0.0
    %5234 = vmatpush1.xpose.msra.mxu0 0.0
    %5235 = vmatprep.subr.mxu0 0.0
    %5236 = vmatpush1.xpose.msra.mxu0 0.0
    %5237 = vmatprep.subr.mxu0 0.0
    %5238 = vmatpush1.xpose.msra.mxu0 0.0
    %5239 = vmatprep.subr.mxu0 0.0
    %5240 = vmatpush1.xpose.msra.mxu0 0.0
    %5241 = vmatprep.subr.mxu0 0.0
    %5242 = vmatpush1.xpose.msra.mxu0 0.0
    %5243 = vmatprep.subr.mxu0 0.0
    %5244 = vmatpush1.xpose.msra.mxu0 0.0
    %5245 = vmatprep.subr.mxu0 0.0
    %5246 = vmatpush1.xpose.msra.mxu0 0.0
    %5247 = vmatprep.subr.mxu0 0.0
    %5248 = vmatpush1.xpose.msra.mxu0 0.0
    %5249 = vmatprep.subr.mxu0 0.0
    %5250 = vmatpush1.xpose.msra.mxu0 0.0
    %5251 = vmatprep.subr.mxu0 0.0
    %5252 = vmatpush1.xpose.msra.mxu0 0.0
    %5253 = vmatprep.subr.mxu0 0.0
    %5254 = vmatpush1.xpose.msra.mxu0 0.0
    %5255 = vmatprep.subr.mxu0 0.0
    %5256 = vmatpush1.xpose.msra.mxu0 0.0
    %5257 = vmatprep.subr.mxu0 0.0
    %5258 = vmatpush1.xpose.msra.mxu0 0.0
    %5259 = vmatprep.mubr.f32.mxu0 0.0
    %5260 = vmatmul.mubr.f32.gmra.mrb[0].mxu0 %v5191
    %v5261 = vpop.f32.mrb[0].mxu0
    %v5262 = vadd.f32 0.0, %v5261
    %v5263 = vpop.f32.mrb[0].mxu0
    %5264 = vdwg.mxu0
    %v5265 = vsel %vm506, -1e+09, %v5262
    %v5266 = vsel %vm643, %v5265, -inf
    %5267 = vmax.xlane.f32.xlu0 %v5266
    %v5268 = vpop.xlane.xlu0 %5267
    %v5269 = vsub.f32 %v5265, %v5268
    %v5270 = vmul.f32 %v5269, 1.442695
    %v5271 = vpow.pop %v5270
    %v5272 = vsel %vm643, %v5271, 0.0
    %5273 = vadd.xlane.f32.xlu0 %v5272
    %v5274 = vpop.xlane.xlu0 %5273
    %v5275 = vrcp.pop %v5274
    %v5276 = vmul.f32 %v5271, %v5275
    %5277 = vrot.lane.b32.xlu0 %v4175, 48
    %v5278 = vpop.permute.xlu0 %5277
    %v5281 = vsel %vm643, %v5276, 0
    %5283 = vmatprep.subr.mxu0 0.0
    %5284 = vmatpush1.msra.mxu0 %v5278
    %5285 = vmatprep.subr.mxu0 0.0
    %5286 = vmatpush1.msra.mxu0 0.0
    %5287 = vmatprep.subr.mxu0 0.0
    %5288 = vmatpush1.msra.mxu0 0.0
    %5289 = vmatprep.subr.mxu0 0.0
    %5290 = vmatpush1.msra.mxu0 0.0
    %5291 = vmatprep.subr.mxu0 0.0
    %5292 = vmatpush1.msra.mxu0 0.0
    %5293 = vmatprep.subr.mxu0 0.0
    %5294 = vmatpush1.msra.mxu0 0.0
    %5295 = vmatprep.subr.mxu0 0.0
    %5296 = vmatpush1.msra.mxu0 0.0
    %5297 = vmatprep.subr.mxu0 0.0
    %5298 = vmatpush1.msra.mxu0 0.0
    %5299 = vmatprep.subr.mxu0 0.0
    %5300 = vmatpush1.msra.mxu0 0.0
    %5301 = vmatprep.subr.mxu0 0.0
    %5302 = vmatpush1.msra.mxu0 0.0
    %5303 = vmatprep.subr.mxu0 0.0
    %5304 = vmatpush1.msra.mxu0 0.0
    %5305 = vmatprep.subr.mxu0 0.0
    %5306 = vmatpush1.msra.mxu0 0.0
    %5307 = vmatprep.subr.mxu0 0.0
    %5308 = vmatpush1.msra.mxu0 0.0
    %5309 = vmatprep.subr.mxu0 0.0
    %5310 = vmatpush1.msra.mxu0 0.0
    %5311 = vmatprep.subr.mxu0 0.0
    %5312 = vmatpush1.msra.mxu0 0.0
    %5313 = vmatprep.subr.mxu0 0.0
    %5314 = vmatpush1.msra.mxu0 0.0
    %5315 = vmatprep.subr.mxu0 0.0
    %5316 = vmatpush1.msra.mxu0 0.0
    %5317 = vmatprep.subr.mxu0 0.0
    %5318 = vmatpush1.msra.mxu0 0.0
    %5319 = vmatprep.subr.mxu0 0.0
    %5320 = vmatpush1.msra.mxu0 0.0
    %5321 = vmatprep.subr.mxu0 0.0
    %5322 = vmatpush1.msra.mxu0 0.0
    %5323 = vmatprep.subr.mxu0 0.0
    %5324 = vmatpush1.msra.mxu0 0.0
    %5325 = vmatprep.subr.mxu0 0.0
    %5326 = vmatpush1.msra.mxu0 0.0
    %5327 = vmatprep.subr.mxu0 0.0
    %5328 = vmatpush1.msra.mxu0 0.0
    %5329 = vmatprep.subr.mxu0 0.0
    %5330 = vmatpush1.msra.mxu0 0.0
    %5331 = vmatprep.subr.mxu0 0.0
    %5332 = vmatpush1.msra.mxu0 0.0
    %5333 = vmatprep.subr.mxu0 0.0
    %5334 = vmatpush1.msra.mxu0 0.0
    %5335 = vmatprep.subr.mxu0 0.0
    %5336 = vmatpush1.msra.mxu0 0.0
    %5337 = vmatprep.subr.mxu0 0.0
    %5338 = vmatpush1.msra.mxu0 0.0
    %5339 = vmatprep.subr.mxu0 0.0
    %5340 = vmatpush1.msra.mxu0 0.0
    %5341 = vmatprep.subr.mxu0 0.0
    %5342 = vmatpush1.msra.mxu0 0.0
    %5343 = vmatprep.subr.mxu0 0.0
    %5344 = vmatpush1.msra.mxu0 0.0
    %5345 = vmatprep.subr.mxu0 0.0
    %5346 = vmatpush1.msra.mxu0 0.0
    %5347 = vmatprep.mubr.f32.mxu0 0.0
    %5348 = vmatmul.mubr.f32.gmra.mrb[0].mxu0 %v5281
    %v5349 = vpop.f32.mrb[0].mxu0
    %v5350 = vadd.f32 0.0, %v5349
    %v5351 = vpop.f32.mrb[0].mxu0
    %5352 = vdwg.mxu0
    %5353 = vrot.lane.b32.xlu0 %v4175, 104
    %v5354 = vpop.permute.xlu0 %5353
    %5355 = vrot.lane.b32.xlu0 %v4175, 72
    %v5356 = vpop.permute.xlu0 %5355
    %v5357 = vsel %vm643, %v5354, 0
    %v5359 = vsel %vm643, %v5356, 0
    %5361 = vmatprep.subr.mxu0 0.0
    %5362 = vmatpush1.xpose.msra.mxu0 %v5359
    %5363 = vmatprep.subr.mxu0 0.0
    %5364 = vmatpush1.xpose.msra.mxu0 0.0
    %5365 = vmatprep.subr.mxu0 0.0
    %5366 = vmatpush1.xpose.msra.mxu0 0.0
    %5367 = vmatprep.subr.mxu0 0.0
    %5368 = vmatpush1.xpose.msra.mxu0 0.0
    %5369 = vmatprep.subr.mxu0 0.0
    %5370 = vmatpush1.xpose.msra.mxu0 0.0
    %5371 = vmatprep.subr.mxu0 0.0
    %5372 = vmatpush1.xpose.msra.mxu0 0.0
    %5373 = vmatprep.subr.mxu0 0.0
    %5374 = vmatpush1.xpose.msra.mxu0 0.0
    %5375 = vmatprep.subr.mxu0 0.0
    %5376 = vmatpush1.xpose.msra.mxu0 0.0
    %5377 = vmatprep.subr.mxu0 0.0
    %5378 = vmatpush1.xpose.msra.mxu0 0.0
    %5379 = vmatprep.subr.mxu0 0.0
    %5380 = vmatpush1.xpose.msra.mxu0 0.0
    %5381 = vmatprep.subr.mxu0 0.0
    %5382 = vmatpush1.xpose.msra.mxu0 0.0
    %5383 = vmatprep.subr.mxu0 0.0
    %5384 = vmatpush1.xpose.msra.mxu0 0.0
    %5385 = vmatprep.subr.mxu0 0.0
    %5386 = vmatpush1.xpose.msra.mxu0 0.0
    %5387 = vmatprep.subr.mxu0 0.0
    %5388 = vmatpush1.xpose.msra.mxu0 0.0
    %5389 = vmatprep.subr.mxu0 0.0
    %5390 = vmatpush1.xpose.msra.mxu0 0.0
    %5391 = vmatprep.subr.mxu0 0.0
    %5392 = vmatpush1.xpose.msra.mxu0 0.0
    %5393 = vmatprep.subr.mxu0 0.0
    %5394 = vmatpush1.xpose.msra.mxu0 0.0
    %5395 = vmatprep.subr.mxu0 0.0
    %5396 = vmatpush1.xpose.msra.mxu0 0.0
    %5397 = vmatprep.subr.mxu0 0.0
    %5398 = vmatpush1.xpose.msra.mxu0 0.0
    %5399 = vmatprep.subr.mxu0 0.0
    %5400 = vmatpush1.xpose.msra.mxu0 0.0
    %5401 = vmatprep.subr.mxu0 0.0
    %5402 = vmatpush1.xpose.msra.mxu0 0.0
    %5403 = vmatprep.subr.mxu0 0.0
    %5404 = vmatpush1.xpose.msra.mxu0 0.0
    %5405 = vmatprep.subr.mxu0 0.0
    %5406 = vmatpush1.xpose.msra.mxu0 0.0
    %5407 = vmatprep.subr.mxu0 0.0
    %5408 = vmatpush1.xpose.msra.mxu0 0.0
    %5409 = vmatprep.subr.mxu0 0.0
    %5410 = vmatpush1.xpose.msra.mxu0 0.0
    %5411 = vmatprep.subr.mxu0 0.0
    %5412 = vmatpush1.xpose.msra.mxu0 0.0
    %5413 = vmatprep.subr.mxu0 0.0
    %5414 = vmatpush1.xpose.msra.mxu0 0.0
    %5415 = vmatprep.subr.mxu0 0.0
    %5416 = vmatpush1.xpose.msra.mxu0 0.0
    %5417 = vmatprep.subr.mxu0 0.0
    %5418 = vmatpush1.xpose.msra.mxu0 0.0
    %5419 = vmatprep.subr.mxu0 0.0
    %5420 = vmatpush1.xpose.msra.mxu0 0.0
    %5421 = vmatprep.subr.mxu0 0.0
    %5422 = vmatpush1.xpose.msra.mxu0 0.0
    %5423 = vmatprep.subr.mxu0 0.0
    %5424 = vmatpush1.xpose.msra.mxu0 0.0
    %5425 = vmatprep.mubr.f32.mxu0 0.0
    %5426 = vmatmul.mubr.f32.gmra.mrb[0].mxu0 %v5357
    %v5427 = vpop.f32.mrb[0].mxu0
    %v5428 = vadd.f32 0.0, %v5427
    %v5429 = vpop.f32.mrb[0].mxu0
    %5430 = vdwg.mxu0
    %v5431 = vsel %vm506, -1e+09, %v5428
    %v5432 = vsel %vm643, %v5431, -inf
    %5433 = vmax.xlane.f32.xlu0 %v5432
    %v5434 = vpop.xlane.xlu0 %5433
    %v5435 = vsub.f32 %v5431, %v5434
    %v5436 = vmul.f32 %v5435, 1.442695
    %v5437 = vpow.pop %v5436
    %v5438 = vsel %vm643, %v5437, 0.0
    %5439 = vadd.xlane.f32.xlu0 %v5438
    %v5440 = vpop.xlane.xlu0 %5439
    %v5441 = vrcp.pop %v5440
    %v5442 = vmul.f32 %v5437, %v5441
    %5443 = vrot.lane.b32.xlu0 %v4175, 40
    %v5444 = vpop.permute.xlu0 %5443
    %v5447 = vsel %vm643, %v5442, 0
    %5449 = vmatprep.subr.mxu0 0.0
    %5450 = vmatpush1.msra.mxu0 %v5444
    %5451 = vmatprep.subr.mxu0 0.0
    %5452 = vmatpush1.msra.mxu0 0.0
    %5453 = vmatprep.subr.mxu0 0.0
    %5454 = vmatpush1.msra.mxu0 0.0
    %5455 = vmatprep.subr.mxu0 0.0
    %5456 = vmatpush1.msra.mxu0 0.0
    %5457 = vmatprep.subr.mxu0 0.0
    %5458 = vmatpush1.msra.mxu0 0.0
    %5459 = vmatprep.subr.mxu0 0.0
    %5460 = vmatpush1.msra.mxu0 0.0
    %5461 = vmatprep.subr.mxu0 0.0
    %5462 = vmatpush1.msra.mxu0 0.0
    %5463 = vmatprep.subr.mxu0 0.0
    %5464 = vmatpush1.msra.mxu0 0.0
    %5465 = vmatprep.subr.mxu0 0.0
    %5466 = vmatpush1.msra.mxu0 0.0
    %5467 = vmatprep.subr.mxu0 0.0
    %5468 = vmatpush1.msra.mxu0 0.0
    %5469 = vmatprep.subr.mxu0 0.0
    %5470 = vmatpush1.msra.mxu0 0.0
    %5471 = vmatprep.subr.mxu0 0.0
    %5472 = vmatpush1.msra.mxu0 0.0
    %5473 = vmatprep.subr.mxu0 0.0
    %5474 = vmatpush1.msra.mxu0 0.0
    %5475 = vmatprep.subr.mxu0 0.0
    %5476 = vmatpush1.msra.mxu0 0.0
    %5477 = vmatprep.subr.mxu0 0.0
    %5478 = vmatpush1.msra.mxu0 0.0
    %5479 = vmatprep.subr.mxu0 0.0
    %5480 = vmatpush1.msra.mxu0 0.0
    %5481 = vmatprep.subr.mxu0 0.0
    %5482 = vmatpush1.msra.mxu0 0.0
    %5483 = vmatprep.subr.mxu0 0.0
    %5484 = vmatpush1.msra.mxu0 0.0
    %5485 = vmatprep.subr.mxu0 0.0
    %5486 = vmatpush1.msra.mxu0 0.0
    %5487 = vmatprep.subr.mxu0 0.0
    %5488 = vmatpush1.msra.mxu0 0.0
    %5489 = vmatprep.subr.mxu0 0.0
    %5490 = vmatpush1.msra.mxu0 0.0
    %5491 = vmatprep.subr.mxu0 0.0
    %5492 = vmatpush1.msra.mxu0 0.0
    %5493 = vmatprep.subr.mxu0 0.0
    %5494 = vmatpush1.msra.mxu0 0.0
    %5495 = vmatprep.subr.mxu0 0.0
    %5496 = vmatpush1.msra.mxu0 0.0
    %5497 = vmatprep.subr.mxu0 0.0
    %5498 = vmatpush1.msra.mxu0 0.0
    %5499 = vmatprep.subr.mxu0 0.0
    %5500 = vmatpush1.msra.mxu0 0.0
    %5501 = vmatprep.subr.mxu0 0.0
    %5502 = vmatpush1.msra.mxu0 0.0
    %5503 = vmatprep.subr.mxu0 0.0
    %5504 = vmatpush1.msra.mxu0 0.0
    %5505 = vmatprep.subr.mxu0 0.0
    %5506 = vmatpush1.msra.mxu0 0.0
    %5507 = vmatprep.subr.mxu0 0.0
    %5508 = vmatpush1.msra.mxu0 0.0
    %5509 = vmatprep.subr.mxu0 0.0
    %5510 = vmatpush1.msra.mxu0 0.0
    %5511 = vmatprep.subr.mxu0 0.0
    %5512 = vmatpush1.msra.mxu0 0.0
    %5513 = vmatprep.mubr.f32.mxu0 0.0
    %5514 = vmatmul.mubr.f32.gmra.mrb[0].mxu0 %v5447
    %v5515 = vpop.f32.mrb[0].mxu0
    %v5516 = vadd.f32 0.0, %v5515
    %v5517 = vpop.f32.mrb[0].mxu0
    %5518 = vdwg.mxu0
    %5520 = vrot.lane.b32.xlu0 %v5184, 8
    %v5521 = vpop.permute.xlu0 %5520
    %5524 = vrot.lane.b32.xlu0 %v5350, 16
    %v5525 = vpop.permute.xlu0 %5524
    %5528 = vrot.lane.b32.xlu0 %v5516, 24
    %v5529 = vpop.permute.xlu0 %5528
    %v5531 = vsel %vm643, %v5018, %v5521
    %v5532 = vsel %vm1317, %v5531, %v5525
    %v5533 = vsel %vm1319, %v5532, %v5529
    %v5535 = vlaneseq
    %v5536 = vshrl.u32 %v5535, 7
    %v5537 = vsub.s32 0, %v5536
    %v5538 = vrot.slane %v4055, %v5537
    %v5541 = vsel %vm558, %v4855, 0
    %v5544 = vsel %vm558, %v5533, 0
    %5546 = vmatprep.subr.mxu0 0.0
    %5547 = vmatpush1.msra.mxu0 %v4051
    %5548 = vmatprep.subr.mxu0 0.0
    %5549 = vmatpush1.msra.mxu0 %v4052
    %5550 = vmatprep.subr.mxu0 0.0
    %5551 = vmatpush1.msra.mxu0 %v4053
    %5552 = vmatprep.subr.mxu0 0.0
    %5553 = vmatpush1.msra.mxu0 %v4054
    %5554 = vmatprep.subr.mxu0 0.0
    %5555 = vmatpush1.msra.mxu0 0.0
    %5556 = vmatprep.subr.mxu0 0.0
    %5557 = vmatpush1.msra.mxu0 0.0
    %5558 = vmatprep.subr.mxu0 0.0
    %5559 = vmatpush1.msra.mxu0 0.0
    %5560 = vmatprep.subr.mxu0 0.0
    %5561 = vmatpush1.msra.mxu0 0.0
    %5562 = vmatprep.subr.mxu0 0.0
    %5563 = vmatpush1.msra.mxu0 0.0
    %5564 = vmatprep.subr.mxu0 0.0
    %5565 = vmatpush1.msra.mxu0 0.0
    %5566 = vmatprep.subr.mxu0 0.0
    %5567 = vmatpush1.msra.mxu0 0.0
    %5568 = vmatprep.subr.mxu0 0.0
    %5569 = vmatpush1.msra.mxu0 0.0
    %5570 = vmatprep.subr.mxu0 0.0
    %5571 = vmatpush1.msra.mxu0 0.0
    %5572 = vmatprep.subr.mxu0 0.0
    %5573 = vmatpush1.msra.mxu0 0.0
    %5574 = vmatprep.subr.mxu0 0.0
    %5575 = vmatpush1.msra.mxu0 0.0
    %5576 = vmatprep.subr.mxu0 0.0
    %5577 = vmatpush1.msra.mxu0 0.0
    %5578 = vmatprep.subr.mxu0 0.0
    %5579 = vmatpush1.msra.mxu0 0.0
    %5580 = vmatprep.subr.mxu0 0.0
    %5581 = vmatpush1.msra.mxu0 0.0
    %5582 = vmatprep.subr.mxu0 0.0
    %5583 = vmatpush1.msra.mxu0 0.0
    %5584 = vmatprep.subr.mxu0 0.0
    %5585 = vmatpush1.msra.mxu0 0.0
    %5586 = vmatprep.subr.mxu0 0.0
    %5587 = vmatpush1.msra.mxu0 0.0
    %5588 = vmatprep.subr.mxu0 0.0
    %5589 = vmatpush1.msra.mxu0 0.0
    %5590 = vmatprep.subr.mxu0 0.0
    %5591 = vmatpush1.msra.mxu0 0.0
    %5592 = vmatprep.subr.mxu0 0.0
    %5593 = vmatpush1.msra.mxu0 0.0
    %5594 = vmatprep.subr.mxu0 0.0
    %5595 = vmatpush1.msra.mxu0 0.0
    %5596 = vmatprep.subr.mxu0 0.0
    %5597 = vmatpush1.msra.mxu0 0.0
    %5598 = vmatprep.subr.mxu0 0.0
    %5599 = vmatpush1.msra.mxu0 0.0
    %5600 = vmatprep.subr.mxu0 0.0
    %5601 = vmatpush1.msra.mxu0 0.0
    %5602 = vmatprep.subr.mxu0 0.0
    %5603 = vmatpush1.msra.mxu0 0.0
    %5604 = vmatprep.subr.mxu0 0.0
    %5605 = vmatpush1.msra.mxu0 0.0
    %5606 = vmatprep.subr.mxu0 0.0
    %5607 = vmatpush1.msra.mxu0 0.0
    %5608 = vmatprep.subr.mxu0 0.0
    %5609 = vmatpush1.msra.mxu0 0.0
    %5610 = vmatprep.mubr.f32.mxu0 0.0
    %5611 = vmatmul.mubr.f32.gmra.mrb[0].mxu0 %v5541
    %v5612 = vpop.f32.mrb[0].mxu0
    %v5613 = vadd.f32 %v5538, %v5612
    %v5614 = vpop.f32.mrb[0].mxu0
    %5615 = vmatprep.mubr.f32.mxu0 0.0
    %5616 = vmatmul.mubr.f32.gmra.mrb[0].mxu0 %v5544
    %v5617 = vpop.f32.mrb[0].mxu0
    %v5618 = vadd.f32 %v5538, %v5617
    %v5619 = vpop.f32.mrb[0].mxu0
    %5620 = vdwg.mxu0
    %v5621 = vsel %vm558, %v5613, 0.0
    %5622 = vadd.xlane.f32.xlu0 %v5621
    %v5623 = vpop.xlane.xlu0 %5622
    %v5624 = vsel %vm558, %v5618, 0.0
    %5625 = vadd.xlane.f32.xlu0 %v5624
    %v5626 = vpop.xlane.xlu0 %5625
    %v5627 = vmul.f32 %v5623, %v2092
    %v5628 = vmul.f32 %v5626, %v2092
    %v5629 = vsub.f32 %v5613, %v5627
    %v5630 = vsub.f32 %v5618, %v5628
    %v5631 = vmul.f32 %v5629, %v5629
    %v5632 = vmul.f32 %v5630, %v5630
    %v5633 = vsel %vm558, %v5631, 0.0
    %5634 = vadd.xlane.f32.xlu0 %v5633
    %v5635 = vpop.xlane.xlu0 %5634
    %v5636 = vsel %vm558, %v5632, 0.0
    %5637 = vadd.xlane.f32.xlu0 %v5636
    %v5638 = vpop.xlane.xlu0 %5637
    %v5639 = vmul.f32 %v5635, %v2105
    %v5640 = vmul.f32 %v5638, %v2105
    %v5641 = vrsqrt.pop %v5639
    %v5642 = vmul.f32 %v5639, %v5641
    %vm5643 = vcmp.eq.f32.partialorder %v5639, inf
    %v5644 = vsel %vm5643, %v5639, %v5642
    %vm5645 = vcmp.eq.f32.partialorder %v5639, 0.0
    %v5646 = vand.u32 %v5639, 2147483648
    %v5647 = vsel %vm5645, %v5646, %v5644
    %v5648 = vrsqrt.pop %v5640
    %v5649 = vmul.f32 %v5640, %v5648
    %vm5650 = vcmp.eq.f32.partialorder %v5640, inf
    %v5651 = vsel %vm5650, %v5640, %v5649
    %vm5652 = vcmp.eq.f32.partialorder %v5640, 0.0
    %v5653 = vand.u32 %v5640, 2147483648
    %v5654 = vsel %vm5652, %v5653, %v5651
    %v5656 = vlaneseq
    %v5657 = vshrl.u32 %v5656, 7
    %v5658 = vsub.s32 0, %v5657
    %v5659 = vrot.slane %v4056, %v5658
    %v5661 = vmul.f32 %v5659, %v5629
    %v5662 = vmul.f32 %v5659, %v5630
    %v5663 = vadd.f32 %v5647, 1e-06
    %v5664 = vadd.f32 %v5654, 1e-06
    %v5665 = vrcp.pop %v5663
    %v5666 = vmul.f32 %v5661, %v5665
    %v5667 = vrcp.pop %v5664
    %v5668 = vmul.f32 %v5662, %v5667
    %v5669 = vadd.f32 %v4044, %v5666
    %v5670 = vadd.f32 %v4045, %v5668
    %v5672 = vlaneseq
    %v5673 = vshrl.u32 %v5672, 7
    %v5674 = vsub.s32 0, %v5673
    %v5675 = vrot.slane %v4057, %v5674
    %v5677 = vadd.f32 %v5669, %v5675
    %v5678 = vadd.f32 %v5670, %v5675
    %v5680 = vlaneseq
    %v5681 = vshrl.u32 %v5680, 7
    %v5682 = vsub.s32 0, %v5681
    %v5683 = vrot.slane %v4062, %v5682
    %v5686 = vsel %vm558, %v5677, 0
    %v5689 = vsel %vm558, %v5678, 0
    %5691 = vmatprep.subr.mxu0 0.0
    %5692 = vmatpush1.msra.mxu0 %v4058
    %5693 = vmatprep.subr.mxu0 0.0
    %5694 = vmatpush1.msra.mxu0 %v4059
    %5695 = vmatprep.subr.mxu0 0.0
    %5696 = vmatpush1.msra.mxu0 %v4060
    %5697 = vmatprep.subr.mxu0 0.0
    %5698 = vmatpush1.msra.mxu0 %v4061
    %5699 = vmatprep.subr.mxu0 0.0
    %5700 = vmatpush1.msra.mxu0 0.0
    %5701 = vmatprep.subr.mxu0 0.0
    %5702 = vmatpush1.msra.mxu0 0.0
    %5703 = vmatprep.subr.mxu0 0.0
    %5704 = vmatpush1.msra.mxu0 0.0
    %5705 = vmatprep.subr.mxu0 0.0
    %5706 = vmatpush1.msra.mxu0 0.0
    %5707 = vmatprep.subr.mxu0 0.0
    %5708 = vmatpush1.msra.mxu0 0.0
    %5709 = vmatprep.subr.mxu0 0.0
    %5710 = vmatpush1.msra.mxu0 0.0
    %5711 = vmatprep.subr.mxu0 0.0
    %5712 = vmatpush1.msra.mxu0 0.0
    %5713 = vmatprep.subr.mxu0 0.0
    %5714 = vmatpush1.msra.mxu0 0.0
    %5715 = vmatprep.subr.mxu0 0.0
    %5716 = vmatpush1.msra.mxu0 0.0
    %5717 = vmatprep.subr.mxu0 0.0
    %5718 = vmatpush1.msra.mxu0 0.0
    %5719 = vmatprep.subr.mxu0 0.0
    %5720 = vmatpush1.msra.mxu0 0.0
    %5721 = vmatprep.subr.mxu0 0.0
    %5722 = vmatpush1.msra.mxu0 0.0
    %5723 = vmatprep.subr.mxu0 0.0
    %5724 = vmatpush1.msra.mxu0 0.0
    %5725 = vmatprep.subr.mxu0 0.0
    %5726 = vmatpush1.msra.mxu0 0.0
    %5727 = vmatprep.subr.mxu0 0.0
    %5728 = vmatpush1.msra.mxu0 0.0
    %5729 = vmatprep.subr.mxu0 0.0
    %5730 = vmatpush1.msra.mxu0 0.0
    %5731 = vmatprep.subr.mxu0 0.0
    %5732 = vmatpush1.msra.mxu0 0.0
    %5733 = vmatprep.subr.mxu0 0.0
    %5734 = vmatpush1.msra.mxu0 0.0
    %5735 = vmatprep.subr.mxu0 0.0
    %5736 = vmatpush1.msra.mxu0 0.0
    %5737 = vmatprep.subr.mxu0 0.0
    %5738 = vmatpush1.msra.mxu0 0.0
    %5739 = vmatprep.subr.mxu0 0.0
    %5740 = vmatpush1.msra.mxu0 0.0
    %5741 = vmatprep.subr.mxu0 0.0
    %5742 = vmatpush1.msra.mxu0 0.0
    %5743 = vmatprep.subr.mxu0 0.0
    %5744 = vmatpush1.msra.mxu0 0.0
    %5745 = vmatprep.subr.mxu0 0.0
    %5746 = vmatpush1.msra.mxu0 0.0
    %5747 = vmatprep.subr.mxu0 0.0
    %5748 = vmatpush1.msra.mxu0 0.0
    %5749 = vmatprep.subr.mxu0 0.0
    %5750 = vmatpush1.msra.mxu0 0.0
    %5751 = vmatprep.subr.mxu0 0.0
    %5752 = vmatpush1.msra.mxu0 0.0
    %5753 = vmatprep.subr.mxu0 0.0
    %5754 = vmatpush1.msra.mxu0 0.0
    %5755 = vmatprep.mubr.f32.mxu0 0.0
    %5756 = vmatmul.mubr.f32.gmra.mrb[0].mxu0 %v5686
    %v5757 = vpop.f32.mrb[0].mxu0
    %v5758 = vadd.f32 %v5683, %v5757
    %v5759 = vpop.f32.mrb[0].mxu0
    %5760 = vmatprep.mubr.f32.mxu0 0.0
    %5761 = vmatmul.mubr.f32.gmra.mrb[0].mxu0 %v5689
    %v5762 = vpop.f32.mrb[0].mxu0
    %v5763 = vadd.f32 %v5683, %v5762
    %v5764 = vpop.f32.mrb[0].mxu0
    %5765 = vdwg.mxu0
    %v5767 = vlaneseq
    %v5768 = vshrl.u32 %v5767, 7
    %v5769 = vsub.s32 0, %v5768
    %v5770 = vrot.slane %v4067, %v5769
    %5772 = vmatprep.subr.mxu0 0.0
    %5773 = vmatpush1.msra.mxu0 %v4063
    %5774 = vmatprep.subr.mxu0 0.0
    %5775 = vmatpush1.msra.mxu0 %v4064
    %5776 = vmatprep.subr.mxu0 0.0
    %5777 = vmatpush1.msra.mxu0 %v4065
    %5778 = vmatprep.subr.mxu0 0.0
    %5779 = vmatpush1.msra.mxu0 %v4066
    %5780 = vmatprep.subr.mxu0 0.0
    %5781 = vmatpush1.msra.mxu0 0.0
    %5782 = vmatprep.subr.mxu0 0.0
    %5783 = vmatpush1.msra.mxu0 0.0
    %5784 = vmatprep.subr.mxu0 0.0
    %5785 = vmatpush1.msra.mxu0 0.0
    %5786 = vmatprep.subr.mxu0 0.0
    %5787 = vmatpush1.msra.mxu0 0.0
    %5788 = vmatprep.subr.mxu0 0.0
    %5789 = vmatpush1.msra.mxu0 0.0
    %5790 = vmatprep.subr.mxu0 0.0
    %5791 = vmatpush1.msra.mxu0 0.0
    %5792 = vmatprep.subr.mxu0 0.0
    %5793 = vmatpush1.msra.mxu0 0.0
    %5794 = vmatprep.subr.mxu0 0.0
    %5795 = vmatpush1.msra.mxu0 0.0
    %5796 = vmatprep.subr.mxu0 0.0
    %5797 = vmatpush1.msra.mxu0 0.0
    %5798 = vmatprep.subr.mxu0 0.0
    %5799 = vmatpush1.msra.mxu0 0.0
    %5800 = vmatprep.subr.mxu0 0.0
    %5801 = vmatpush1.msra.mxu0 0.0
    %5802 = vmatprep.subr.mxu0 0.0
    %5803 = vmatpush1.msra.mxu0 0.0
    %5804 = vmatprep.subr.mxu0 0.0
    %5805 = vmatpush1.msra.mxu0 0.0
    %5806 = vmatprep.subr.mxu0 0.0
    %5807 = vmatpush1.msra.mxu0 0.0
    %5808 = vmatprep.subr.mxu0 0.0
    %5809 = vmatpush1.msra.mxu0 0.0
    %5810 = vmatprep.subr.mxu0 0.0
    %5811 = vmatpush1.msra.mxu0 0.0
    %5812 = vmatprep.subr.mxu0 0.0
    %5813 = vmatpush1.msra.mxu0 0.0
    %5814 = vmatprep.subr.mxu0 0.0
    %5815 = vmatpush1.msra.mxu0 0.0
    %5816 = vmatprep.subr.mxu0 0.0
    %5817 = vmatpush1.msra.mxu0 0.0
    %5818 = vmatprep.subr.mxu0 0.0
    %5819 = vmatpush1.msra.mxu0 0.0
    %5820 = vmatprep.subr.mxu0 0.0
    %5821 = vmatpush1.msra.mxu0 0.0
    %5822 = vmatprep.subr.mxu0 0.0
    %5823 = vmatpush1.msra.mxu0 0.0
    %5824 = vmatprep.subr.mxu0 0.0
    %5825 = vmatpush1.msra.mxu0 0.0
    %5826 = vmatprep.subr.mxu0 0.0
    %5827 = vmatpush1.msra.mxu0 0.0
    %5828 = vmatprep.subr.mxu0 0.0
    %5829 = vmatpush1.msra.mxu0 0.0
    %5830 = vmatprep.subr.mxu0 0.0
    %5831 = vmatpush1.msra.mxu0 0.0
    %5832 = vmatprep.subr.mxu0 0.0
    %5833 = vmatpush1.msra.mxu0 0.0
    %5834 = vmatprep.subr.mxu0 0.0
    %5835 = vmatpush1.msra.mxu0 0.0
    %5836 = vmatprep.mubr.f32.mxu0 0.0
    %5837 = vmatmul.mubr.f32.gmra.mrb[0].mxu0 %v2240
    %v5838 = vpop.f32.mrb[0].mxu0
    %v5839 = vadd.f32 %v5770, %v5838
    %v5840 = vpop.f32.mrb[0].mxu0
    %5841 = vmatprep.mubr.f32.mxu0 0.0
    %5842 = vmatmul.mubr.f32.gmra.mrb[0].mxu0 %v2243
    %v5843 = vpop.f32.mrb[0].mxu0
    %v5844 = vadd.f32 %v5770, %v5843
    %v5845 = vpop.f32.mrb[0].mxu0
    %5846 = vdwg.mxu0
    %v5848 = vsel %vm643, %v5758, 0
    %v5851 = vsel %vm643, %v5839, 0
    %5853 = vmatprep.subr.mxu0 0.0
    %5854 = vmatpush1.xpose.msra.mxu0 %v5851
    %5855 = vmatprep.subr.mxu0 0.0
    %5856 = vmatpush1.xpose.msra.mxu0 0.0
    %5857 = vmatprep.subr.mxu0 0.0
    %5858 = vmatpush1.xpose.msra.mxu0 0.0
    %5859 = vmatprep.subr.mxu0 0.0
    %5860 = vmatpush1.xpose.msra.mxu0 0.0
    %5861 = vmatprep.subr.mxu0 0.0
    %5862 = vmatpush1.xpose.msra.mxu0 0.0
    %5863 = vmatprep.subr.mxu0 0.0
    %5864 = vmatpush1.xpose.msra.mxu0 0.0
    %5865 = vmatprep.subr.mxu0 0.0
    %5866 = vmatpush1.xpose.msra.mxu0 0.0
    %5867 = vmatprep.subr.mxu0 0.0
    %5868 = vmatpush1.xpose.msra.mxu0 0.0
    %5869 = vmatprep.subr.mxu0 0.0
    %5870 = vmatpush1.xpose.msra.mxu0 0.0
    %5871 = vmatprep.subr.mxu0 0.0
    %5872 = vmatpush1.xpose.msra.mxu0 0.0
    %5873 = vmatprep.subr.mxu0 0.0
    %5874 = vmatpush1.xpose.msra.mxu0 0.0
    %5875 = vmatprep.subr.mxu0 0.0
    %5876 = vmatpush1.xpose.msra.mxu0 0.0
    %5877 = vmatprep.subr.mxu0 0.0
    %5878 = vmatpush1.xpose.msra.mxu0 0.0
    %5879 = vmatprep.subr.mxu0 0.0
    %5880 = vmatpush1.xpose.msra.mxu0 0.0
    %5881 = vmatprep.subr.mxu0 0.0
    %5882 = vmatpush1.xpose.msra.mxu0 0.0
    %5883 = vmatprep.subr.mxu0 0.0
    %5884 = vmatpush1.xpose.msra.mxu0 0.0
    %5885 = vmatprep.subr.mxu0 0.0
    %5886 = vmatpush1.xpose.msra.mxu0 0.0
    %5887 = vmatprep.subr.mxu0 0.0
    %5888 = vmatpush1.xpose.msra.mxu0 0.0
    %5889 = vmatprep.subr.mxu0 0.0
    %5890 = vmatpush1.xpose.msra.mxu0 0.0
    %5891 = vmatprep.subr.mxu0 0.0
    %5892 = vmatpush1.xpose.msra.mxu0 0.0
    %5893 = vmatprep.subr.mxu0 0.0
    %5894 = vmatpush1.xpose.msra.mxu0 0.0
    %5895 = vmatprep.subr.mxu0 0.0
    %5896 = vmatpush1.xpose.msra.mxu0 0.0
    %5897 = vmatprep.subr.mxu0 0.0
    %5898 = vmatpush1.xpose.msra.mxu0 0.0
    %5899 = vmatprep.subr.mxu0 0.0
    %5900 = vmatpush1.xpose.msra.mxu0 0.0
    %5901 = vmatprep.subr.mxu0 0.0
    %5902 = vmatpush1.xpose.msra.mxu0 0.0
    %5903 = vmatprep.subr.mxu0 0.0
    %5904 = vmatpush1.xpose.msra.mxu0 0.0
    %5905 = vmatprep.subr.mxu0 0.0
    %5906 = vmatpush1.xpose.msra.mxu0 0.0
    %5907 = vmatprep.subr.mxu0 0.0
    %5908 = vmatpush1.xpose.msra.mxu0 0.0
    %5909 = vmatprep.subr.mxu0 0.0
    %5910 = vmatpush1.xpose.msra.mxu0 0.0
    %5911 = vmatprep.subr.mxu0 0.0
    %5912 = vmatpush1.xpose.msra.mxu0 0.0
    %5913 = vmatprep.subr.mxu0 0.0
    %5914 = vmatpush1.xpose.msra.mxu0 0.0
    %5915 = vmatprep.subr.mxu0 0.0
    %5916 = vmatpush1.xpose.msra.mxu0 0.0
    %5917 = vmatprep.mubr.f32.mxu0 0.0
    %5918 = vmatmul.mubr.f32.gmra.mrb[0].mxu0 %v5848
    %v5919 = vpop.f32.mrb[0].mxu0
    %v5920 = vadd.f32 0.0, %v5919
    %v5921 = vpop.f32.mrb[0].mxu0
    %5922 = vdwg.mxu0
    %v5923 = vsel %vm643, %v5920, -inf
    %5924 = vmax.xlane.f32.xlu0 %v5923
    %v5925 = vpop.xlane.xlu0 %5924
    %v5926 = vsub.f32 %v5920, %v5925
    %v5927 = vmul.f32 %v5926, 1.442695
    %v5928 = vpow.pop %v5927
    %v5929 = vsel %vm643, %v5928, 0.0
    %5930 = vadd.xlane.f32.xlu0 %v5929
    %v5931 = vpop.xlane.xlu0 %5930
    %v5932 = vrcp.pop %v5931
    %v5933 = vmul.f32 %v5928, %v5932
    %5934 = vrot.lane.b32.xlu0 %v5839, 96
    %v5935 = vpop.permute.xlu0 %5934
    %v5938 = vsel %vm643, %v5933, 0
    %5940 = vmatprep.subr.mxu0 0.0
    %5941 = vmatpush1.msra.mxu0 %v5935
    %5942 = vmatprep.subr.mxu0 0.0
    %5943 = vmatpush1.msra.mxu0 0.0
    %5944 = vmatprep.subr.mxu0 0.0
    %5945 = vmatpush1.msra.mxu0 0.0
    %5946 = vmatprep.subr.mxu0 0.0
    %5947 = vmatpush1.msra.mxu0 0.0
    %5948 = vmatprep.subr.mxu0 0.0
    %5949 = vmatpush1.msra.mxu0 0.0
    %5950 = vmatprep.subr.mxu0 0.0
    %5951 = vmatpush1.msra.mxu0 0.0
    %5952 = vmatprep.subr.mxu0 0.0
    %5953 = vmatpush1.msra.mxu0 0.0
    %5954 = vmatprep.subr.mxu0 0.0
    %5955 = vmatpush1.msra.mxu0 0.0
    %5956 = vmatprep.subr.mxu0 0.0
    %5957 = vmatpush1.msra.mxu0 0.0
    %5958 = vmatprep.subr.mxu0 0.0
    %5959 = vmatpush1.msra.mxu0 0.0
    %5960 = vmatprep.subr.mxu0 0.0
    %5961 = vmatpush1.msra.mxu0 0.0
    %5962 = vmatprep.subr.mxu0 0.0
    %5963 = vmatpush1.msra.mxu0 0.0
    %5964 = vmatprep.subr.mxu0 0.0
    %5965 = vmatpush1.msra.mxu0 0.0
    %5966 = vmatprep.subr.mxu0 0.0
    %5967 = vmatpush1.msra.mxu0 0.0
    %5968 = vmatprep.subr.mxu0 0.0
    %5969 = vmatpush1.msra.mxu0 0.0
    %5970 = vmatprep.subr.mxu0 0.0
    %5971 = vmatpush1.msra.mxu0 0.0
    %5972 = vmatprep.subr.mxu0 0.0
    %5973 = vmatpush1.msra.mxu0 0.0
    %5974 = vmatprep.subr.mxu0 0.0
    %5975 = vmatpush1.msra.mxu0 0.0
    %5976 = vmatprep.subr.mxu0 0.0
    %5977 = vmatpush1.msra.mxu0 0.0
    %5978 = vmatprep.subr.mxu0 0.0
    %5979 = vmatpush1.msra.mxu0 0.0
    %5980 = vmatprep.subr.mxu0 0.0
    %5981 = vmatpush1.msra.mxu0 0.0
    %5982 = vmatprep.subr.mxu0 0.0
    %5983 = vmatpush1.msra.mxu0 0.0
    %5984 = vmatprep.subr.mxu0 0.0
    %5985 = vmatpush1.msra.mxu0 0.0
    %5986 = vmatprep.subr.mxu0 0.0
    %5987 = vmatpush1.msra.mxu0 0.0
    %5988 = vmatprep.subr.mxu0 0.0
    %5989 = vmatpush1.msra.mxu0 0.0
    %5990 = vmatprep.subr.mxu0 0.0
    %5991 = vmatpush1.msra.mxu0 0.0
    %5992 = vmatprep.subr.mxu0 0.0
    %5993 = vmatpush1.msra.mxu0 0.0
    %5994 = vmatprep.subr.mxu0 0.0
    %5995 = vmatpush1.msra.mxu0 0.0
    %5996 = vmatprep.subr.mxu0 0.0
    %5997 = vmatpush1.msra.mxu0 0.0
    %5998 = vmatprep.subr.mxu0 0.0
    %5999 = vmatpush1.msra.mxu0 0.0
    %6000 = vmatprep.subr.mxu0 0.0
    %6001 = vmatpush1.msra.mxu0 0.0
    %6002 = vmatprep.subr.mxu0 0.0
    %6003 = vmatpush1.msra.mxu0 0.0
    %6004 = vmatprep.mubr.f32.mxu0 0.0
    %6005 = vmatmul.mubr.f32.gmra.mrb[0].mxu0 %v5938
    %v6006 = vpop.f32.mrb[0].mxu0
    %v6007 = vadd.f32 0.0, %v6006
    %v6008 = vpop.f32.mrb[0].mxu0
    %6009 = vdwg.mxu0
    %6010 = vrot.lane.b32.xlu0 %v5758, 120
    %v6011 = vpop.permute.xlu0 %6010
    %6012 = vrot.lane.b32.xlu0 %v5839, 120
    %v6013 = vpop.permute.xlu0 %6012
    %v6014 = vsel %vm643, %v6011, 0
    %v6016 = vsel %vm643, %v6013, 0
    %6018 = vmatprep.subr.mxu0 0.0
    %6019 = vmatpush1.xpose.msra.mxu0 %v6016
    %6020 = vmatprep.subr.mxu0 0.0
    %6021 = vmatpush1.xpose.msra.mxu0 0.0
    %6022 = vmatprep.subr.mxu0 0.0
    %6023 = vmatpush1.xpose.msra.mxu0 0.0
    %6024 = vmatprep.subr.mxu0 0.0
    %6025 = vmatpush1.xpose.msra.mxu0 0.0
    %6026 = vmatprep.subr.mxu0 0.0
    %6027 = vmatpush1.xpose.msra.mxu0 0.0
    %6028 = vmatprep.subr.mxu0 0.0
    %6029 = vmatpush1.xpose.msra.mxu0 0.0
    %6030 = vmatprep.subr.mxu0 0.0
    %6031 = vmatpush1.xpose.msra.mxu0 0.0
    %6032 = vmatprep.subr.mxu0 0.0
    %6033 = vmatpush1.xpose.msra.mxu0 0.0
    %6034 = vmatprep.subr.mxu0 0.0
    %6035 = vmatpush1.xpose.msra.mxu0 0.0
    %6036 = vmatprep.subr.mxu0 0.0
    %6037 = vmatpush1.xpose.msra.mxu0 0.0
    %6038 = vmatprep.subr.mxu0 0.0
    %6039 = vmatpush1.xpose.msra.mxu0 0.0
    %6040 = vmatprep.subr.mxu0 0.0
    %6041 = vmatpush1.xpose.msra.mxu0 0.0
    %6042 = vmatprep.subr.mxu0 0.0
    %6043 = vmatpush1.xpose.msra.mxu0 0.0
    %6044 = vmatprep.subr.mxu0 0.0
    %6045 = vmatpush1.xpose.msra.mxu0 0.0
    %6046 = vmatprep.subr.mxu0 0.0
    %6047 = vmatpush1.xpose.msra.mxu0 0.0
    %6048 = vmatprep.subr.mxu0 0.0
    %6049 = vmatpush1.xpose.msra.mxu0 0.0
    %6050 = vmatprep.subr.mxu0 0.0
    %6051 = vmatpush1.xpose.msra.mxu0 0.0
    %6052 = vmatprep.subr.mxu0 0.0
    %6053 = vmatpush1.xpose.msra.mxu0 0.0
    %6054 = vmatprep.subr.mxu0 0.0
    %6055 = vmatpush1.xpose.msra.mxu0 0.0
    %6056 = vmatprep.subr.mxu0 0.0
    %6057 = vmatpush1.xpose.msra.mxu0 0.0
    %6058 = vmatprep.subr.mxu0 0.0
    %6059 = vmatpush1.xpose.msra.mxu0 0.0
    %6060 = vmatprep.subr.mxu0 0.0
    %6061 = vmatpush1.xpose.msra.mxu0 0.0
    %6062 = vmatprep.subr.mxu0 0.0
    %6063 = vmatpush1.xpose.msra.mxu0 0.0
    %6064 = vmatprep.subr.mxu0 0.0
    %6065 = vmatpush1.xpose.msra.mxu0 0.0
    %6066 = vmatprep.subr.mxu0 0.0
    %6067 = vmatpush1.xpose.msra.mxu0 0.0
    %6068 = vmatprep.subr.mxu0 0.0
    %6069 = vmatpush1.xpose.msra.mxu0 0.0
    %6070 = vmatprep.subr.mxu0 0.0
    %6071 = vmatpush1.xpose.msra.mxu0 0.0
    %6072 = vmatprep.subr.mxu0 0.0
    %6073 = vmatpush1.xpose.msra.mxu0 0.0
    %6074 = vmatprep.subr.mxu0 0.0
    %6075 = vmatpush1.xpose.msra.mxu0 0.0
    %6076 = vmatprep.subr.mxu0 0.0
    %6077 = vmatpush1.xpose.msra.mxu0 0.0
    %6078 = vmatprep.subr.mxu0 0.0
    %6079 = vmatpush1.xpose.msra.mxu0 0.0
    %6080 = vmatprep.subr.mxu0 0.0
    %6081 = vmatpush1.xpose.msra.mxu0 0.0
    %6082 = vmatprep.mubr.f32.mxu0 0.0
    %6083 = vmatmul.mubr.f32.gmra.mrb[0].mxu0 %v6014
    %v6084 = vpop.f32.mrb[0].mxu0
    %v6085 = vadd.f32 0.0, %v6084
    %v6086 = vpop.f32.mrb[0].mxu0
    %6087 = vdwg.mxu0
    %v6088 = vsel %vm643, %v6085, -inf
    %6089 = vmax.xlane.f32.xlu0 %v6088
    %v6090 = vpop.xlane.xlu0 %6089
    %v6091 = vsub.f32 %v6085, %v6090
    %v6092 = vmul.f32 %v6091, 1.442695
    %v6093 = vpow.pop %v6092
    %v6094 = vsel %vm643, %v6093, 0.0
    %6095 = vadd.xlane.f32.xlu0 %v6094
    %v6096 = vpop.xlane.xlu0 %6095
    %v6097 = vrcp.pop %v6096
    %v6098 = vmul.f32 %v6093, %v6097
    %6099 = vrot.lane.b32.xlu0 %v5839, 88
    %v6100 = vpop.permute.xlu0 %6099
    %v6103 = vsel %vm643, %v6098, 0
    %6105 = vmatprep.subr.mxu0 0.0
    %6106 = vmatpush1.msra.mxu0 %v6100
    %6107 = vmatprep.subr.mxu0 0.0
    %6108 = vmatpush1.msra.mxu0 0.0
    %6109 = vmatprep.subr.mxu0 0.0
    %6110 = vmatpush1.msra.mxu0 0.0
    %6111 = vmatprep.subr.mxu0 0.0
    %6112 = vmatpush1.msra.mxu0 0.0
    %6113 = vmatprep.subr.mxu0 0.0
    %6114 = vmatpush1.msra.mxu0 0.0
    %6115 = vmatprep.subr.mxu0 0.0
    %6116 = vmatpush1.msra.mxu0 0.0
    %6117 = vmatprep.subr.mxu0 0.0
    %6118 = vmatpush1.msra.mxu0 0.0
    %6119 = vmatprep.subr.mxu0 0.0
    %6120 = vmatpush1.msra.mxu0 0.0
    %6121 = vmatprep.subr.mxu0 0.0
    %6122 = vmatpush1.msra.mxu0 0.0
    %6123 = vmatprep.subr.mxu0 0.0
    %6124 = vmatpush1.msra.mxu0 0.0
    %6125 = vmatprep.subr.mxu0 0.0
    %6126 = vmatpush1.msra.mxu0 0.0
    %6127 = vmatprep.subr.mxu0 0.0
    %6128 = vmatpush1.msra.mxu0 0.0
    %6129 = vmatprep.subr.mxu0 0.0
    %6130 = vmatpush1.msra.mxu0 0.0
    %6131 = vmatprep.subr.mxu0 0.0
    %6132 = vmatpush1.msra.mxu0 0.0
    %6133 = vmatprep.subr.mxu0 0.0
    %6134 = vmatpush1.msra.mxu0 0.0
    %6135 = vmatprep.subr.mxu0 0.0
    %6136 = vmatpush1.msra.mxu0 0.0
    %6137 = vmatprep.subr.mxu0 0.0
    %6138 = vmatpush1.msra.mxu0 0.0
    %6139 = vmatprep.subr.mxu0 0.0
    %6140 = vmatpush1.msra.mxu0 0.0
    %6141 = vmatprep.subr.mxu0 0.0
    %6142 = vmatpush1.msra.mxu0 0.0
    %6143 = vmatprep.subr.mxu0 0.0
    %6144 = vmatpush1.msra.mxu0 0.0
    %6145 = vmatprep.subr.mxu0 0.0
    %6146 = vmatpush1.msra.mxu0 0.0
    %6147 = vmatprep.subr.mxu0 0.0
    %6148 = vmatpush1.msra.mxu0 0.0
    %6149 = vmatprep.subr.mxu0 0.0
    %6150 = vmatpush1.msra.mxu0 0.0
    %6151 = vmatprep.subr.mxu0 0.0
    %6152 = vmatpush1.msra.mxu0 0.0
    %6153 = vmatprep.subr.mxu0 0.0
    %6154 = vmatpush1.msra.mxu0 0.0
    %6155 = vmatprep.subr.mxu0 0.0
    %6156 = vmatpush1.msra.mxu0 0.0
    %6157 = vmatprep.subr.mxu0 0.0
    %6158 = vmatpush1.msra.mxu0 0.0
    %6159 = vmatprep.subr.mxu0 0.0
    %6160 = vmatpush1.msra.mxu0 0.0
    %6161 = vmatprep.subr.mxu0 0.0
    %6162 = vmatpush1.msra.mxu0 0.0
    %6163 = vmatprep.subr.mxu0 0.0
    %6164 = vmatpush1.msra.mxu0 0.0
    %6165 = vmatprep.subr.mxu0 0.0
    %6166 = vmatpush1.msra.mxu0 0.0
    %6167 = vmatprep.subr.mxu0 0.0
    %6168 = vmatpush1.msra.mxu0 0.0
    %6169 = vmatprep.mubr.f32.mxu0 0.0
    %6170 = vmatmul.mubr.f32.gmra.mrb[0].mxu0 %v6103
    %v6171 = vpop.f32.mrb[0].mxu0
    %v6172 = vadd.f32 0.0, %v6171
    %v6173 = vpop.f32.mrb[0].mxu0
    %6174 = vdwg.mxu0
    %6175 = vrot.lane.b32.xlu0 %v5758, 112
    %v6176 = vpop.permute.xlu0 %6175
    %6177 = vrot.lane.b32.xlu0 %v5839, 112
    %v6178 = vpop.permute.xlu0 %6177
    %v6179 = vsel %vm643, %v6176, 0
    %v6181 = vsel %vm643, %v6178, 0
    %6183 = vmatprep.subr.mxu0 0.0
    %6184 = vmatpush1.xpose.msra.mxu0 %v6181
    %6185 = vmatprep.subr.mxu0 0.0
    %6186 = vmatpush1.xpose.msra.mxu0 0.0
    %6187 = vmatprep.subr.mxu0 0.0
    %6188 = vmatpush1.xpose.msra.mxu0 0.0
    %6189 = vmatprep.subr.mxu0 0.0
    %6190 = vmatpush1.xpose.msra.mxu0 0.0
    %6191 = vmatprep.subr.mxu0 0.0
    %6192 = vmatpush1.xpose.msra.mxu0 0.0
    %6193 = vmatprep.subr.mxu0 0.0
    %6194 = vmatpush1.xpose.msra.mxu0 0.0
    %6195 = vmatprep.subr.mxu0 0.0
    %6196 = vmatpush1.xpose.msra.mxu0 0.0
    %6197 = vmatprep.subr.mxu0 0.0
    %6198 = vmatpush1.xpose.msra.mxu0 0.0
    %6199 = vmatprep.subr.mxu0 0.0
    %6200 = vmatpush1.xpose.msra.mxu0 0.0
    %6201 = vmatprep.subr.mxu0 0.0
    %6202 = vmatpush1.xpose.msra.mxu0 0.0
    %6203 = vmatprep.subr.mxu0 0.0
    %6204 = vmatpush1.xpose.msra.mxu0 0.0
    %6205 = vmatprep.subr.mxu0 0.0
    %6206 = vmatpush1.xpose.msra.mxu0 0.0
    %6207 = vmatprep.subr.mxu0 0.0
    %6208 = vmatpush1.xpose.msra.mxu0 0.0
    %6209 = vmatprep.subr.mxu0 0.0
    %6210 = vmatpush1.xpose.msra.mxu0 0.0
    %6211 = vmatprep.subr.mxu0 0.0
    %6212 = vmatpush1.xpose.msra.mxu0 0.0
    %6213 = vmatprep.subr.mxu0 0.0
    %6214 = vmatpush1.xpose.msra.mxu0 0.0
    %6215 = vmatprep.subr.mxu0 0.0
    %6216 = vmatpush1.xpose.msra.mxu0 0.0
    %6217 = vmatprep.subr.mxu0 0.0
    %6218 = vmatpush1.xpose.msra.mxu0 0.0
    %6219 = vmatprep.subr.mxu0 0.0
    %6220 = vmatpush1.xpose.msra.mxu0 0.0
    %6221 = vmatprep.subr.mxu0 0.0
    %6222 = vmatpush1.xpose.msra.mxu0 0.0
    %6223 = vmatprep.subr.mxu0 0.0
    %6224 = vmatpush1.xpose.msra.mxu0 0.0
    %6225 = vmatprep.subr.mxu0 0.0
    %6226 = vmatpush1.xpose.msra.mxu0 0.0
    %6227 = vmatprep.subr.mxu0 0.0
    %6228 = vmatpush1.xpose.msra.mxu0 0.0
    %6229 = vmatprep.subr.mxu0 0.0
    %6230 = vmatpush1.xpose.msra.mxu0 0.0
    %6231 = vmatprep.subr.mxu0 0.0
    %6232 = vmatpush1.xpose.msra.mxu0 0.0
    %6233 = vmatprep.subr.mxu0 0.0
    %6234 = vmatpush1.xpose.msra.mxu0 0.0
    %6235 = vmatprep.subr.mxu0 0.0
    %6236 = vmatpush1.xpose.msra.mxu0 0.0
    %6237 = vmatprep.subr.mxu0 0.0
    %6238 = vmatpush1.xpose.msra.mxu0 0.0
    %6239 = vmatprep.subr.mxu0 0.0
    %6240 = vmatpush1.xpose.msra.mxu0 0.0
    %6241 = vmatprep.subr.mxu0 0.0
    %6242 = vmatpush1.xpose.msra.mxu0 0.0
    %6243 = vmatprep.subr.mxu0 0.0
    %6244 = vmatpush1.xpose.msra.mxu0 0.0
    %6245 = vmatprep.subr.mxu0 0.0
    %6246 = vmatpush1.xpose.msra.mxu0 0.0
    %6247 = vmatprep.mubr.f32.mxu0 0.0
    %6248 = vmatmul.mubr.f32.gmra.mrb[0].mxu0 %v6179
    %v6249 = vpop.f32.mrb[0].mxu0
    %v6250 = vadd.f32 0.0, %v6249
    %v6251 = vpop.f32.mrb[0].mxu0
    %6252 = vdwg.mxu0
    %v6253 = vsel %vm643, %v6250, -inf
    %6254 = vmax.xlane.f32.xlu0 %v6253
    %v6255 = vpop.xlane.xlu0 %6254
    %v6256 = vsub.f32 %v6250, %v6255
    %v6257 = vmul.f32 %v6256, 1.442695
    %v6258 = vpow.pop %v6257
    %v6259 = vsel %vm643, %v6258, 0.0
    %6260 = vadd.xlane.f32.xlu0 %v6259
    %v6261 = vpop.xlane.xlu0 %6260
    %v6262 = vrcp.pop %v6261
    %v6263 = vmul.f32 %v6258, %v6262
    %6264 = vrot.lane.b32.xlu0 %v5839, 80
    %v6265 = vpop.permute.xlu0 %6264
    %v6268 = vsel %vm643, %v6263, 0
    %6270 = vmatprep.subr.mxu0 0.0
    %6271 = vmatpush1.msra.mxu0 %v6265
    %6272 = vmatprep.subr.mxu0 0.0
    %6273 = vmatpush1.msra.mxu0 0.0
    %6274 = vmatprep.subr.mxu0 0.0
    %6275 = vmatpush1.msra.mxu0 0.0
    %6276 = vmatprep.subr.mxu0 0.0
    %6277 = vmatpush1.msra.mxu0 0.0
    %6278 = vmatprep.subr.mxu0 0.0
    %6279 = vmatpush1.msra.mxu0 0.0
    %6280 = vmatprep.subr.mxu0 0.0
    %6281 = vmatpush1.msra.mxu0 0.0
    %6282 = vmatprep.subr.mxu0 0.0
    %6283 = vmatpush1.msra.mxu0 0.0
    %6284 = vmatprep.subr.mxu0 0.0
    %6285 = vmatpush1.msra.mxu0 0.0
    %6286 = vmatprep.subr.mxu0 0.0
    %6287 = vmatpush1.msra.mxu0 0.0
    %6288 = vmatprep.subr.mxu0 0.0
    %6289 = vmatpush1.msra.mxu0 0.0
    %6290 = vmatprep.subr.mxu0 0.0
    %6291 = vmatpush1.msra.mxu0 0.0
    %6292 = vmatprep.subr.mxu0 0.0
    %6293 = vmatpush1.msra.mxu0 0.0
    %6294 = vmatprep.subr.mxu0 0.0
    %6295 = vmatpush1.msra.mxu0 0.0
    %6296 = vmatprep.subr.mxu0 0.0
    %6297 = vmatpush1.msra.mxu0 0.0
    %6298 = vmatprep.subr.mxu0 0.0
    %6299 = vmatpush1.msra.mxu0 0.0
    %6300 = vmatprep.subr.mxu0 0.0
    %6301 = vmatpush1.msra.mxu0 0.0
    %6302 = vmatprep.subr.mxu0 0.0
    %6303 = vmatpush1.msra.mxu0 0.0
    %6304 = vmatprep.subr.mxu0 0.0
    %6305 = vmatpush1.msra.mxu0 0.0
    %6306 = vmatprep.subr.mxu0 0.0
    %6307 = vmatpush1.msra.mxu0 0.0
    %6308 = vmatprep.subr.mxu0 0.0
    %6309 = vmatpush1.msra.mxu0 0.0
    %6310 = vmatprep.subr.mxu0 0.0
    %6311 = vmatpush1.msra.mxu0 0.0
    %6312 = vmatprep.subr.mxu0 0.0
    %6313 = vmatpush1.msra.mxu0 0.0
    %6314 = vmatprep.subr.mxu0 0.0
    %6315 = vmatpush1.msra.mxu0 0.0
    %6316 = vmatprep.subr.mxu0 0.0
    %6317 = vmatpush1.msra.mxu0 0.0
    %6318 = vmatprep.subr.mxu0 0.0
    %6319 = vmatpush1.msra.mxu0 0.0
    %6320 = vmatprep.subr.mxu0 0.0
    %6321 = vmatpush1.msra.mxu0 0.0
    %6322 = vmatprep.subr.mxu0 0.0
    %6323 = vmatpush1.msra.mxu0 0.0
    %6324 = vmatprep.subr.mxu0 0.0
    %6325 = vmatpush1.msra.mxu0 0.0
    %6326 = vmatprep.subr.mxu0 0.0
    %6327 = vmatpush1.msra.mxu0 0.0
    %6328 = vmatprep.subr.mxu0 0.0
    %6329 = vmatpush1.msra.mxu0 0.0
    %6330 = vmatprep.subr.mxu0 0.0
    %6331 = vmatpush1.msra.mxu0 0.0
    %6332 = vmatprep.subr.mxu0 0.0
    %6333 = vmatpush1.msra.mxu0 0.0
    %6334 = vmatprep.mubr.f32.mxu0 0.0
    %6335 = vmatmul.mubr.f32.gmra.mrb[0].mxu0 %v6268
    %v6336 = vpop.f32.mrb[0].mxu0
    %v6337 = vadd.f32 0.0, %v6336
    %v6338 = vpop.f32.mrb[0].mxu0
    %6339 = vdwg.mxu0
    %6340 = vrot.lane.b32.xlu0 %v5758, 104
    %v6341 = vpop.permute.xlu0 %6340
    %6342 = vrot.lane.b32.xlu0 %v5839, 104
    %v6343 = vpop.permute.xlu0 %6342
    %v6344 = vsel %vm643, %v6341, 0
    %v6346 = vsel %vm643, %v6343, 0
    %6348 = vmatprep.subr.mxu0 0.0
    %6349 = vmatpush1.xpose.msra.mxu0 %v6346
    %6350 = vmatprep.subr.mxu0 0.0
    %6351 = vmatpush1.xpose.msra.mxu0 0.0
    %6352 = vmatprep.subr.mxu0 0.0
    %6353 = vmatpush1.xpose.msra.mxu0 0.0
    %6354 = vmatprep.subr.mxu0 0.0
    %6355 = vmatpush1.xpose.msra.mxu0 0.0
    %6356 = vmatprep.subr.mxu0 0.0
    %6357 = vmatpush1.xpose.msra.mxu0 0.0
    %6358 = vmatprep.subr.mxu0 0.0
    %6359 = vmatpush1.xpose.msra.mxu0 0.0
    %6360 = vmatprep.subr.mxu0 0.0
    %6361 = vmatpush1.xpose.msra.mxu0 0.0
    %6362 = vmatprep.subr.mxu0 0.0
    %6363 = vmatpush1.xpose.msra.mxu0 0.0
    %6364 = vmatprep.subr.mxu0 0.0
    %6365 = vmatpush1.xpose.msra.mxu0 0.0
    %6366 = vmatprep.subr.mxu0 0.0
    %6367 = vmatpush1.xpose.msra.mxu0 0.0
    %6368 = vmatprep.subr.mxu0 0.0
    %6369 = vmatpush1.xpose.msra.mxu0 0.0
    %6370 = vmatprep.subr.mxu0 0.0
    %6371 = vmatpush1.xpose.msra.mxu0 0.0
    %6372 = vmatprep.subr.mxu0 0.0
    %6373 = vmatpush1.xpose.msra.mxu0 0.0
    %6374 = vmatprep.subr.mxu0 0.0
    %6375 = vmatpush1.xpose.msra.mxu0 0.0
    %6376 = vmatprep.subr.mxu0 0.0
    %6377 = vmatpush1.xpose.msra.mxu0 0.0
    %6378 = vmatprep.subr.mxu0 0.0
    %6379 = vmatpush1.xpose.msra.mxu0 0.0
    %6380 = vmatprep.subr.mxu0 0.0
    %6381 = vmatpush1.xpose.msra.mxu0 0.0
    %6382 = vmatprep.subr.mxu0 0.0
    %6383 = vmatpush1.xpose.msra.mxu0 0.0
    %6384 = vmatprep.subr.mxu0 0.0
    %6385 = vmatpush1.xpose.msra.mxu0 0.0
    %6386 = vmatprep.subr.mxu0 0.0
    %6387 = vmatpush1.xpose.msra.mxu0 0.0
    %6388 = vmatprep.subr.mxu0 0.0
    %6389 = vmatpush1.xpose.msra.mxu0 0.0
    %6390 = vmatprep.subr.mxu0 0.0
    %6391 = vmatpush1.xpose.msra.mxu0 0.0
    %6392 = vmatprep.subr.mxu0 0.0
    %6393 = vmatpush1.xpose.msra.mxu0 0.0
    %6394 = vmatprep.subr.mxu0 0.0
    %6395 = vmatpush1.xpose.msra.mxu0 0.0
    %6396 = vmatprep.subr.mxu0 0.0
    %6397 = vmatpush1.xpose.msra.mxu0 0.0
    %6398 = vmatprep.subr.mxu0 0.0
    %6399 = vmatpush1.xpose.msra.mxu0 0.0
    %6400 = vmatprep.subr.mxu0 0.0
    %6401 = vmatpush1.xpose.msra.mxu0 0.0
    %6402 = vmatprep.subr.mxu0 0.0
    %6403 = vmatpush1.xpose.msra.mxu0 0.0
    %6404 = vmatprep.subr.mxu0 0.0
    %6405 = vmatpush1.xpose.msra.mxu0 0.0
    %6406 = vmatprep.subr.mxu0 0.0
    %6407 = vmatpush1.xpose.msra.mxu0 0.0
    %6408 = vmatprep.subr.mxu0 0.0
    %6409 = vmatpush1.xpose.msra.mxu0 0.0
    %6410 = vmatprep.subr.mxu0 0.0
    %6411 = vmatpush1.xpose.msra.mxu0 0.0
    %6412 = vmatprep.mubr.f32.mxu0 0.0
    %6413 = vmatmul.mubr.f32.gmra.mrb[0].mxu0 %v6344
    %v6414 = vpop.f32.mrb[0].mxu0
    %v6415 = vadd.f32 0.0, %v6414
    %v6416 = vpop.f32.mrb[0].mxu0
    %6417 = vdwg.mxu0
    %v6418 = vsel %vm643, %v6415, -inf
    %6419 = vmax.xlane.f32.xlu0 %v6418
    %v6420 = vpop.xlane.xlu0 %6419
    %v6421 = vsub.f32 %v6415, %v6420
    %v6422 = vmul.f32 %v6421, 1.442695
    %v6423 = vpow.pop %v6422
    %v6424 = vsel %vm643, %v6423, 0.0
    %6425 = vadd.xlane.f32.xlu0 %v6424
    %v6426 = vpop.xlane.xlu0 %6425
    %v6427 = vrcp.pop %v6426
    %v6428 = vmul.f32 %v6423, %v6427
    %6429 = vrot.lane.b32.xlu0 %v5839, 72
    %v6430 = vpop.permute.xlu0 %6429
    %v6433 = vsel %vm643, %v6428, 0
    %6435 = vmatprep.subr.mxu0 0.0
    %6436 = vmatpush1.msra.mxu0 %v6430
    %6437 = vmatprep.subr.mxu0 0.0
    %6438 = vmatpush1.msra.mxu0 0.0
    %6439 = vmatprep.subr.mxu0 0.0
    %6440 = vmatpush1.msra.mxu0 0.0
    %6441 = vmatprep.subr.mxu0 0.0
    %6442 = vmatpush1.msra.mxu0 0.0
    %6443 = vmatprep.subr.mxu0 0.0
    %6444 = vmatpush1.msra.mxu0 0.0
    %6445 = vmatprep.subr.mxu0 0.0
    %6446 = vmatpush1.msra.mxu0 0.0
    %6447 = vmatprep.subr.mxu0 0.0
    %6448 = vmatpush1.msra.mxu0 0.0
    %6449 = vmatprep.subr.mxu0 0.0
    %6450 = vmatpush1.msra.mxu0 0.0
    %6451 = vmatprep.subr.mxu0 0.0
    %6452 = vmatpush1.msra.mxu0 0.0
    %6453 = vmatprep.subr.mxu0 0.0
    %6454 = vmatpush1.msra.mxu0 0.0
    %6455 = vmatprep.subr.mxu0 0.0
    %6456 = vmatpush1.msra.mxu0 0.0
    %6457 = vmatprep.subr.mxu0 0.0
    %6458 = vmatpush1.msra.mxu0 0.0
    %6459 = vmatprep.subr.mxu0 0.0
    %6460 = vmatpush1.msra.mxu0 0.0
    %6461 = vmatprep.subr.mxu0 0.0
    %6462 = vmatpush1.msra.mxu0 0.0
    %6463 = vmatprep.subr.mxu0 0.0
    %6464 = vmatpush1.msra.mxu0 0.0
    %6465 = vmatprep.subr.mxu0 0.0
    %6466 = vmatpush1.msra.mxu0 0.0
    %6467 = vmatprep.subr.mxu0 0.0
    %6468 = vmatpush1.msra.mxu0 0.0
    %6469 = vmatprep.subr.mxu0 0.0
    %6470 = vmatpush1.msra.mxu0 0.0
    %6471 = vmatprep.subr.mxu0 0.0
    %6472 = vmatpush1.msra.mxu0 0.0
    %6473 = vmatprep.subr.mxu0 0.0
    %6474 = vmatpush1.msra.mxu0 0.0
    %6475 = vmatprep.subr.mxu0 0.0
    %6476 = vmatpush1.msra.mxu0 0.0
    %6477 = vmatprep.subr.mxu0 0.0
    %6478 = vmatpush1.msra.mxu0 0.0
    %6479 = vmatprep.subr.mxu0 0.0
    %6480 = vmatpush1.msra.mxu0 0.0
    %6481 = vmatprep.subr.mxu0 0.0
    %6482 = vmatpush1.msra.mxu0 0.0
    %6483 = vmatprep.subr.mxu0 0.0
    %6484 = vmatpush1.msra.mxu0 0.0
    %6485 = vmatprep.subr.mxu0 0.0
    %6486 = vmatpush1.msra.mxu0 0.0
    %6487 = vmatprep.subr.mxu0 0.0
    %6488 = vmatpush1.msra.mxu0 0.0
    %6489 = vmatprep.subr.mxu0 0.0
    %6490 = vmatpush1.msra.mxu0 0.0
    %6491 = vmatprep.subr.mxu0 0.0
    %6492 = vmatpush1.msra.mxu0 0.0
    %6493 = vmatprep.subr.mxu0 0.0
    %6494 = vmatpush1.msra.mxu0 0.0
    %6495 = vmatprep.subr.mxu0 0.0
    %6496 = vmatpush1.msra.mxu0 0.0
    %6497 = vmatprep.subr.mxu0 0.0
    %6498 = vmatpush1.msra.mxu0 0.0
    %6499 = vmatprep.mubr.f32.mxu0 0.0
    %6500 = vmatmul.mubr.f32.gmra.mrb[0].mxu0 %v6433
    %v6501 = vpop.f32.mrb[0].mxu0
    %v6502 = vadd.f32 0.0, %v6501
    %v6503 = vpop.f32.mrb[0].mxu0
    %6504 = vdwg.mxu0
    %6506 = vrot.lane.b32.xlu0 %v6172, 8
    %v6507 = vpop.permute.xlu0 %6506
    %6510 = vrot.lane.b32.xlu0 %v6337, 16
    %v6511 = vpop.permute.xlu0 %6510
    %6514 = vrot.lane.b32.xlu0 %v6502, 24
    %v6515 = vpop.permute.xlu0 %6514
    %v6517 = vsel %vm643, %v6007, %v6507
    %v6518 = vsel %vm1317, %v6517, %v6511
    %v6519 = vsel %vm1319, %v6518, %v6515
    %v6521 = vsel %vm643, %v5763, 0
    %v6524 = vsel %vm643, %v5844, 0
    %6526 = vmatprep.subr.mxu0 0.0
    %6527 = vmatpush1.xpose.msra.mxu0 %v6524
    %6528 = vmatprep.subr.mxu0 0.0
    %6529 = vmatpush1.xpose.msra.mxu0 0.0
    %6530 = vmatprep.subr.mxu0 0.0
    %6531 = vmatpush1.xpose.msra.mxu0 0.0
    %6532 = vmatprep.subr.mxu0 0.0
    %6533 = vmatpush1.xpose.msra.mxu0 0.0
    %6534 = vmatprep.subr.mxu0 0.0
    %6535 = vmatpush1.xpose.msra.mxu0 0.0
    %6536 = vmatprep.subr.mxu0 0.0
    %6537 = vmatpush1.xpose.msra.mxu0 0.0
    %6538 = vmatprep.subr.mxu0 0.0
    %6539 = vmatpush1.xpose.msra.mxu0 0.0
    %6540 = vmatprep.subr.mxu0 0.0
    %6541 = vmatpush1.xpose.msra.mxu0 0.0
    %6542 = vmatprep.subr.mxu0 0.0
    %6543 = vmatpush1.xpose.msra.mxu0 0.0
    %6544 = vmatprep.subr.mxu0 0.0
    %6545 = vmatpush1.xpose.msra.mxu0 0.0
    %6546 = vmatprep.subr.mxu0 0.0
    %6547 = vmatpush1.xpose.msra.mxu0 0.0
    %6548 = vmatprep.subr.mxu0 0.0
    %6549 = vmatpush1.xpose.msra.mxu0 0.0
    %6550 = vmatprep.subr.mxu0 0.0
    %6551 = vmatpush1.xpose.msra.mxu0 0.0
    %6552 = vmatprep.subr.mxu0 0.0
    %6553 = vmatpush1.xpose.msra.mxu0 0.0
    %6554 = vmatprep.subr.mxu0 0.0
    %6555 = vmatpush1.xpose.msra.mxu0 0.0
    %6556 = vmatprep.subr.mxu0 0.0
    %6557 = vmatpush1.xpose.msra.mxu0 0.0
    %6558 = vmatprep.subr.mxu0 0.0
    %6559 = vmatpush1.xpose.msra.mxu0 0.0
    %6560 = vmatprep.subr.mxu0 0.0
    %6561 = vmatpush1.xpose.msra.mxu0 0.0
    %6562 = vmatprep.subr.mxu0 0.0
    %6563 = vmatpush1.xpose.msra.mxu0 0.0
    %6564 = vmatprep.subr.mxu0 0.0
    %6565 = vmatpush1.xpose.msra.mxu0 0.0
    %6566 = vmatprep.subr.mxu0 0.0
    %6567 = vmatpush1.xpose.msra.mxu0 0.0
    %6568 = vmatprep.subr.mxu0 0.0
    %6569 = vmatpush1.xpose.msra.mxu0 0.0
    %6570 = vmatprep.subr.mxu0 0.0
    %6571 = vmatpush1.xpose.msra.mxu0 0.0
    %6572 = vmatprep.subr.mxu0 0.0
    %6573 = vmatpush1.xpose.msra.mxu0 0.0
    %6574 = vmatprep.subr.mxu0 0.0
    %6575 = vmatpush1.xpose.msra.mxu0 0.0
    %6576 = vmatprep.subr.mxu0 0.0
    %6577 = vmatpush1.xpose.msra.mxu0 0.0
    %6578 = vmatprep.subr.mxu0 0.0
    %6579 = vmatpush1.xpose.msra.mxu0 0.0
    %6580 = vmatprep.subr.mxu0 0.0
    %6581 = vmatpush1.xpose.msra.mxu0 0.0
    %6582 = vmatprep.subr.mxu0 0.0
    %6583 = vmatpush1.xpose.msra.mxu0 0.0
    %6584 = vmatprep.subr.mxu0 0.0
    %6585 = vmatpush1.xpose.msra.mxu0 0.0
    %6586 = vmatprep.subr.mxu0 0.0
    %6587 = vmatpush1.xpose.msra.mxu0 0.0
    %6588 = vmatprep.subr.mxu0 0.0
    %6589 = vmatpush1.xpose.msra.mxu0 0.0
    %6590 = vmatprep.mubr.f32.mxu0 0.0
    %6591 = vmatmul.mubr.f32.gmra.mrb[0].mxu0 %v6521
    %v6592 = vpop.f32.mrb[0].mxu0
    %v6593 = vadd.f32 0.0, %v6592
    %v6594 = vpop.f32.mrb[0].mxu0
    %6595 = vdwg.mxu0
    %v6596 = vsel %vm643, %v6593, -inf
    %6597 = vmax.xlane.f32.xlu0 %v6596
    %v6598 = vpop.xlane.xlu0 %6597
    %v6599 = vsub.f32 %v6593, %v6598
    %v6600 = vmul.f32 %v6599, 1.442695
    %v6601 = vpow.pop %v6600
    %v6602 = vsel %vm643, %v6601, 0.0
    %6603 = vadd.xlane.f32.xlu0 %v6602
    %v6604 = vpop.xlane.xlu0 %6603
    %v6605 = vrcp.pop %v6604
    %v6606 = vmul.f32 %v6601, %v6605
    %6607 = vrot.lane.b32.xlu0 %v5844, 96
    %v6608 = vpop.permute.xlu0 %6607
    %v6611 = vsel %vm643, %v6606, 0
    %6613 = vmatprep.subr.mxu0 0.0
    %6614 = vmatpush1.msra.mxu0 %v6608
    %6615 = vmatprep.subr.mxu0 0.0
    %6616 = vmatpush1.msra.mxu0 0.0
    %6617 = vmatprep.subr.mxu0 0.0
    %6618 = vmatpush1.msra.mxu0 0.0
    %6619 = vmatprep.subr.mxu0 0.0
    %6620 = vmatpush1.msra.mxu0 0.0
    %6621 = vmatprep.subr.mxu0 0.0
    %6622 = vmatpush1.msra.mxu0 0.0
    %6623 = vmatprep.subr.mxu0 0.0
    %6624 = vmatpush1.msra.mxu0 0.0
    %6625 = vmatprep.subr.mxu0 0.0
    %6626 = vmatpush1.msra.mxu0 0.0
    %6627 = vmatprep.subr.mxu0 0.0
    %6628 = vmatpush1.msra.mxu0 0.0
    %6629 = vmatprep.subr.mxu0 0.0
    %6630 = vmatpush1.msra.mxu0 0.0
    %6631 = vmatprep.subr.mxu0 0.0
    %6632 = vmatpush1.msra.mxu0 0.0
    %6633 = vmatprep.subr.mxu0 0.0
    %6634 = vmatpush1.msra.mxu0 0.0
    %6635 = vmatprep.subr.mxu0 0.0
    %6636 = vmatpush1.msra.mxu0 0.0
    %6637 = vmatprep.subr.mxu0 0.0
    %6638 = vmatpush1.msra.mxu0 0.0
    %6639 = vmatprep.subr.mxu0 0.0
    %6640 = vmatpush1.msra.mxu0 0.0
    %6641 = vmatprep.subr.mxu0 0.0
    %6642 = vmatpush1.msra.mxu0 0.0
    %6643 = vmatprep.subr.mxu0 0.0
    %6644 = vmatpush1.msra.mxu0 0.0
    %6645 = vmatprep.subr.mxu0 0.0
    %6646 = vmatpush1.msra.mxu0 0.0
    %6647 = vmatprep.subr.mxu0 0.0
    %6648 = vmatpush1.msra.mxu0 0.0
    %6649 = vmatprep.subr.mxu0 0.0
    %6650 = vmatpush1.msra.mxu0 0.0
    %6651 = vmatprep.subr.mxu0 0.0
    %6652 = vmatpush1.msra.mxu0 0.0
    %6653 = vmatprep.subr.mxu0 0.0
    %6654 = vmatpush1.msra.mxu0 0.0
    %6655 = vmatprep.subr.mxu0 0.0
    %6656 = vmatpush1.msra.mxu0 0.0
    %6657 = vmatprep.subr.mxu0 0.0
    %6658 = vmatpush1.msra.mxu0 0.0
    %6659 = vmatprep.subr.mxu0 0.0
    %6660 = vmatpush1.msra.mxu0 0.0
    %6661 = vmatprep.subr.mxu0 0.0
    %6662 = vmatpush1.msra.mxu0 0.0
    %6663 = vmatprep.subr.mxu0 0.0
    %6664 = vmatpush1.msra.mxu0 0.0
    %6665 = vmatprep.subr.mxu0 0.0
    %6666 = vmatpush1.msra.mxu0 0.0
    %6667 = vmatprep.subr.mxu0 0.0
    %6668 = vmatpush1.msra.mxu0 0.0
    %6669 = vmatprep.subr.mxu0 0.0
    %6670 = vmatpush1.msra.mxu0 0.0
    %6671 = vmatprep.subr.mxu0 0.0
    %6672 = vmatpush1.msra.mxu0 0.0
    %6673 = vmatprep.subr.mxu0 0.0
    %6674 = vmatpush1.msra.mxu0 0.0
    %6675 = vmatprep.subr.mxu0 0.0
    %6676 = vmatpush1.msra.mxu0 0.0
    %6677 = vmatprep.mubr.f32.mxu0 0.0
    %6678 = vmatmul.mubr.f32.gmra.mrb[0].mxu0 %v6611
    %v6679 = vpop.f32.mrb[0].mxu0
    %v6680 = vadd.f32 0.0, %v6679
    %v6681 = vpop.f32.mrb[0].mxu0
    %6682 = vdwg.mxu0
    %6683 = vrot.lane.b32.xlu0 %v5763, 120
    %v6684 = vpop.permute.xlu0 %6683
    %6685 = vrot.lane.b32.xlu0 %v5844, 120
    %v6686 = vpop.permute.xlu0 %6685
    %v6687 = vsel %vm643, %v6684, 0
    %v6689 = vsel %vm643, %v6686, 0
    %6691 = vmatprep.subr.mxu0 0.0
    %6692 = vmatpush1.xpose.msra.mxu0 %v6689
    %6693 = vmatprep.subr.mxu0 0.0
    %6694 = vmatpush1.xpose.msra.mxu0 0.0
    %6695 = vmatprep.subr.mxu0 0.0
    %6696 = vmatpush1.xpose.msra.mxu0 0.0
    %6697 = vmatprep.subr.mxu0 0.0
    %6698 = vmatpush1.xpose.msra.mxu0 0.0
    %6699 = vmatprep.subr.mxu0 0.0
    %6700 = vmatpush1.xpose.msra.mxu0 0.0
    %6701 = vmatprep.subr.mxu0 0.0
    %6702 = vmatpush1.xpose.msra.mxu0 0.0
    %6703 = vmatprep.subr.mxu0 0.0
    %6704 = vmatpush1.xpose.msra.mxu0 0.0
    %6705 = vmatprep.subr.mxu0 0.0
    %6706 = vmatpush1.xpose.msra.mxu0 0.0
    %6707 = vmatprep.subr.mxu0 0.0
    %6708 = vmatpush1.xpose.msra.mxu0 0.0
    %6709 = vmatprep.subr.mxu0 0.0
    %6710 = vmatpush1.xpose.msra.mxu0 0.0
    %6711 = vmatprep.subr.mxu0 0.0
    %6712 = vmatpush1.xpose.msra.mxu0 0.0
    %6713 = vmatprep.subr.mxu0 0.0
    %6714 = vmatpush1.xpose.msra.mxu0 0.0
    %6715 = vmatprep.subr.mxu0 0.0
    %6716 = vmatpush1.xpose.msra.mxu0 0.0
    %6717 = vmatprep.subr.mxu0 0.0
    %6718 = vmatpush1.xpose.msra.mxu0 0.0
    %6719 = vmatprep.subr.mxu0 0.0
    %6720 = vmatpush1.xpose.msra.mxu0 0.0
    %6721 = vmatprep.subr.mxu0 0.0
    %6722 = vmatpush1.xpose.msra.mxu0 0.0
    %6723 = vmatprep.subr.mxu0 0.0
    %6724 = vmatpush1.xpose.msra.mxu0 0.0
    %6725 = vmatprep.subr.mxu0 0.0
    %6726 = vmatpush1.xpose.msra.mxu0 0.0
    %6727 = vmatprep.subr.mxu0 0.0
    %6728 = vmatpush1.xpose.msra.mxu0 0.0
    %6729 = vmatprep.subr.mxu0 0.0
    %6730 = vmatpush1.xpose.msra.mxu0 0.0
    %6731 = vmatprep.subr.mxu0 0.0
    %6732 = vmatpush1.xpose.msra.mxu0 0.0
    %6733 = vmatprep.subr.mxu0 0.0
    %6734 = vmatpush1.xpose.msra.mxu0 0.0
    %6735 = vmatprep.subr.mxu0 0.0
    %6736 = vmatpush1.xpose.msra.mxu0 0.0
    %6737 = vmatprep.subr.mxu0 0.0
    %6738 = vmatpush1.xpose.msra.mxu0 0.0
    %6739 = vmatprep.subr.mxu0 0.0
    %6740 = vmatpush1.xpose.msra.mxu0 0.0
    %6741 = vmatprep.subr.mxu0 0.0
    %6742 = vmatpush1.xpose.msra.mxu0 0.0
    %6743 = vmatprep.subr.mxu0 0.0
    %6744 = vmatpush1.xpose.msra.mxu0 0.0
    %6745 = vmatprep.subr.mxu0 0.0
    %6746 = vmatpush1.xpose.msra.mxu0 0.0
    %6747 = vmatprep.subr.mxu0 0.0
    %6748 = vmatpush1.xpose.msra.mxu0 0.0
    %6749 = vmatprep.subr.mxu0 0.0
    %6750 = vmatpush1.xpose.msra.mxu0 0.0
    %6751 = vmatprep.subr.mxu0 0.0
    %6752 = vmatpush1.xpose.msra.mxu0 0.0
    %6753 = vmatprep.subr.mxu0 0.0
    %6754 = vmatpush1.xpose.msra.mxu0 0.0
    %6755 = vmatprep.mubr.f32.mxu0 0.0
    %6756 = vmatmul.mubr.f32.gmra.mrb[0].mxu0 %v6687
    %v6757 = vpop.f32.mrb[0].mxu0
    %v6758 = vadd.f32 0.0, %v6757
    %v6759 = vpop.f32.mrb[0].mxu0
    %6760 = vdwg.mxu0
    %v6761 = vsel %vm643, %v6758, -inf
    %6762 = vmax.xlane.f32.xlu0 %v6761
    %v6763 = vpop.xlane.xlu0 %6762
    %v6764 = vsub.f32 %v6758, %v6763
    %v6765 = vmul.f32 %v6764, 1.442695
    %v6766 = vpow.pop %v6765
    %v6767 = vsel %vm643, %v6766, 0.0
    %6768 = vadd.xlane.f32.xlu0 %v6767
    %v6769 = vpop.xlane.xlu0 %6768
    %v6770 = vrcp.pop %v6769
    %v6771 = vmul.f32 %v6766, %v6770
    %6772 = vrot.lane.b32.xlu0 %v5844, 88
    %v6773 = vpop.permute.xlu0 %6772
    %v6776 = vsel %vm643, %v6771, 0
    %6778 = vmatprep.subr.mxu0 0.0
    %6779 = vmatpush1.msra.mxu0 %v6773
    %6780 = vmatprep.subr.mxu0 0.0
    %6781 = vmatpush1.msra.mxu0 0.0
    %6782 = vmatprep.subr.mxu0 0.0
    %6783 = vmatpush1.msra.mxu0 0.0
    %6784 = vmatprep.subr.mxu0 0.0
    %6785 = vmatpush1.msra.mxu0 0.0
    %6786 = vmatprep.subr.mxu0 0.0
    %6787 = vmatpush1.msra.mxu0 0.0
    %6788 = vmatprep.subr.mxu0 0.0
    %6789 = vmatpush1.msra.mxu0 0.0
    %6790 = vmatprep.subr.mxu0 0.0
    %6791 = vmatpush1.msra.mxu0 0.0
    %6792 = vmatprep.subr.mxu0 0.0
    %6793 = vmatpush1.msra.mxu0 0.0
    %6794 = vmatprep.subr.mxu0 0.0
    %6795 = vmatpush1.msra.mxu0 0.0
    %6796 = vmatprep.subr.mxu0 0.0
    %6797 = vmatpush1.msra.mxu0 0.0
    %6798 = vmatprep.subr.mxu0 0.0
    %6799 = vmatpush1.msra.mxu0 0.0
    %6800 = vmatprep.subr.mxu0 0.0
    %6801 = vmatpush1.msra.mxu0 0.0
    %6802 = vmatprep.subr.mxu0 0.0
    %6803 = vmatpush1.msra.mxu0 0.0
    %6804 = vmatprep.subr.mxu0 0.0
    %6805 = vmatpush1.msra.mxu0 0.0
    %6806 = vmatprep.subr.mxu0 0.0
    %6807 = vmatpush1.msra.mxu0 0.0
    %6808 = vmatprep.subr.mxu0 0.0
    %6809 = vmatpush1.msra.mxu0 0.0
    %6810 = vmatprep.subr.mxu0 0.0
    %6811 = vmatpush1.msra.mxu0 0.0
    %6812 = vmatprep.subr.mxu0 0.0
    %6813 = vmatpush1.msra.mxu0 0.0
    %6814 = vmatprep.subr.mxu0 0.0
    %6815 = vmatpush1.msra.mxu0 0.0
    %6816 = vmatprep.subr.mxu0 0.0
    %6817 = vmatpush1.msra.mxu0 0.0
    %6818 = vmatprep.subr.mxu0 0.0
    %6819 = vmatpush1.msra.mxu0 0.0
    %6820 = vmatprep.subr.mxu0 0.0
    %6821 = vmatpush1.msra.mxu0 0.0
    %6822 = vmatprep.subr.mxu0 0.0
    %6823 = vmatpush1.msra.mxu0 0.0
    %6824 = vmatprep.subr.mxu0 0.0
    %6825 = vmatpush1.msra.mxu0 0.0
    %6826 = vmatprep.subr.mxu0 0.0
    %6827 = vmatpush1.msra.mxu0 0.0
    %6828 = vmatprep.subr.mxu0 0.0
    %6829 = vmatpush1.msra.mxu0 0.0
    %6830 = vmatprep.subr.mxu0 0.0
    %6831 = vmatpush1.msra.mxu0 0.0
    %6832 = vmatprep.subr.mxu0 0.0
    %6833 = vmatpush1.msra.mxu0 0.0
    %6834 = vmatprep.subr.mxu0 0.0
    %6835 = vmatpush1.msra.mxu0 0.0
    %6836 = vmatprep.subr.mxu0 0.0
    %6837 = vmatpush1.msra.mxu0 0.0
    %6838 = vmatprep.subr.mxu0 0.0
    %6839 = vmatpush1.msra.mxu0 0.0
    %6840 = vmatprep.subr.mxu0 0.0
    %6841 = vmatpush1.msra.mxu0 0.0
    %6842 = vmatprep.mubr.f32.mxu0 0.0
    %6843 = vmatmul.mubr.f32.gmra.mrb[0].mxu0 %v6776
    %v6844 = vpop.f32.mrb[0].mxu0
    %v6845 = vadd.f32 0.0, %v6844
    %v6846 = vpop.f32.mrb[0].mxu0
    %6847 = vdwg.mxu0
    %6848 = vrot.lane.b32.xlu0 %v5763, 112
    %v6849 = vpop.permute.xlu0 %6848
    %6850 = vrot.lane.b32.xlu0 %v5844, 112
    %v6851 = vpop.permute.xlu0 %6850
    %v6852 = vsel %vm643, %v6849, 0
    %v6854 = vsel %vm643, %v6851, 0
    %6856 = vmatprep.subr.mxu0 0.0
    %6857 = vmatpush1.xpose.msra.mxu0 %v6854
    %6858 = vmatprep.subr.mxu0 0.0
    %6859 = vmatpush1.xpose.msra.mxu0 0.0
    %6860 = vmatprep.subr.mxu0 0.0
    %6861 = vmatpush1.xpose.msra.mxu0 0.0
    %6862 = vmatprep.subr.mxu0 0.0
    %6863 = vmatpush1.xpose.msra.mxu0 0.0
    %6864 = vmatprep.subr.mxu0 0.0
    %6865 = vmatpush1.xpose.msra.mxu0 0.0
    %6866 = vmatprep.subr.mxu0 0.0
    %6867 = vmatpush1.xpose.msra.mxu0 0.0
    %6868 = vmatprep.subr.mxu0 0.0
    %6869 = vmatpush1.xpose.msra.mxu0 0.0
    %6870 = vmatprep.subr.mxu0 0.0
    %6871 = vmatpush1.xpose.msra.mxu0 0.0
    %6872 = vmatprep.subr.mxu0 0.0
    %6873 = vmatpush1.xpose.msra.mxu0 0.0
    %6874 = vmatprep.subr.mxu0 0.0
    %6875 = vmatpush1.xpose.msra.mxu0 0.0
    %6876 = vmatprep.subr.mxu0 0.0
    %6877 = vmatpush1.xpose.msra.mxu0 0.0
    %6878 = vmatprep.subr.mxu0 0.0
    %6879 = vmatpush1.xpose.msra.mxu0 0.0
    %6880 = vmatprep.subr.mxu0 0.0
    %6881 = vmatpush1.xpose.msra.mxu0 0.0
    %6882 = vmatprep.subr.mxu0 0.0
    %6883 = vmatpush1.xpose.msra.mxu0 0.0
    %6884 = vmatprep.subr.mxu0 0.0
    %6885 = vmatpush1.xpose.msra.mxu0 0.0
    %6886 = vmatprep.subr.mxu0 0.0
    %6887 = vmatpush1.xpose.msra.mxu0 0.0
    %6888 = vmatprep.subr.mxu0 0.0
    %6889 = vmatpush1.xpose.msra.mxu0 0.0
    %6890 = vmatprep.subr.mxu0 0.0
    %6891 = vmatpush1.xpose.msra.mxu0 0.0
    %6892 = vmatprep.subr.mxu0 0.0
    %6893 = vmatpush1.xpose.msra.mxu0 0.0
    %6894 = vmatprep.subr.mxu0 0.0
    %6895 = vmatpush1.xpose.msra.mxu0 0.0
    %6896 = vmatprep.subr.mxu0 0.0
    %6897 = vmatpush1.xpose.msra.mxu0 0.0
    %6898 = vmatprep.subr.mxu0 0.0
    %6899 = vmatpush1.xpose.msra.mxu0 0.0
    %6900 = vmatprep.subr.mxu0 0.0
    %6901 = vmatpush1.xpose.msra.mxu0 0.0
    %6902 = vmatprep.subr.mxu0 0.0
    %6903 = vmatpush1.xpose.msra.mxu0 0.0
    %6904 = vmatprep.subr.mxu0 0.0
    %6905 = vmatpush1.xpose.msra.mxu0 0.0
    %6906 = vmatprep.subr.mxu0 0.0
    %6907 = vmatpush1.xpose.msra.mxu0 0.0
    %6908 = vmatprep.subr.mxu0 0.0
    %6909 = vmatpush1.xpose.msra.mxu0 0.0
    %6910 = vmatprep.subr.mxu0 0.0
    %6911 = vmatpush1.xpose.msra.mxu0 0.0
    %6912 = vmatprep.subr.mxu0 0.0
    %6913 = vmatpush1.xpose.msra.mxu0 0.0
    %6914 = vmatprep.subr.mxu0 0.0
    %6915 = vmatpush1.xpose.msra.mxu0 0.0
    %6916 = vmatprep.subr.mxu0 0.0
    %6917 = vmatpush1.xpose.msra.mxu0 0.0
    %6918 = vmatprep.subr.mxu0 0.0
    %6919 = vmatpush1.xpose.msra.mxu0 0.0
    %6920 = vmatprep.mubr.f32.mxu0 0.0
    %6921 = vmatmul.mubr.f32.gmra.mrb[0].mxu0 %v6852
    %v6922 = vpop.f32.mrb[0].mxu0
    %v6923 = vadd.f32 0.0, %v6922
    %v6924 = vpop.f32.mrb[0].mxu0
    %6925 = vdwg.mxu0
    %v6926 = vsel %vm643, %v6923, -inf
    %6927 = vmax.xlane.f32.xlu0 %v6926
    %v6928 = vpop.xlane.xlu0 %6927
    %v6929 = vsub.f32 %v6923, %v6928
    %v6930 = vmul.f32 %v6929, 1.442695
    %v6931 = vpow.pop %v6930
    %v6932 = vsel %vm643, %v6931, 0.0
    %6933 = vadd.xlane.f32.xlu0 %v6932
    %v6934 = vpop.xlane.xlu0 %6933
    %v6935 = vrcp.pop %v6934
    %v6936 = vmul.f32 %v6931, %v6935
    %6937 = vrot.lane.b32.xlu0 %v5844, 80
    %v6938 = vpop.permute.xlu0 %6937
    %v6941 = vsel %vm643, %v6936, 0
    %6943 = vmatprep.subr.mxu0 0.0
    %6944 = vmatpush1.msra.mxu0 %v6938
    %6945 = vmatprep.subr.mxu0 0.0
    %6946 = vmatpush1.msra.mxu0 0.0
    %6947 = vmatprep.subr.mxu0 0.0
    %6948 = vmatpush1.msra.mxu0 0.0
    %6949 = vmatprep.subr.mxu0 0.0
    %6950 = vmatpush1.msra.mxu0 0.0
    %6951 = vmatprep.subr.mxu0 0.0
    %6952 = vmatpush1.msra.mxu0 0.0
    %6953 = vmatprep.subr.mxu0 0.0
    %6954 = vmatpush1.msra.mxu0 0.0
    %6955 = vmatprep.subr.mxu0 0.0
    %6956 = vmatpush1.msra.mxu0 0.0
    %6957 = vmatprep.subr.mxu0 0.0
    %6958 = vmatpush1.msra.mxu0 0.0
    %6959 = vmatprep.subr.mxu0 0.0
    %6960 = vmatpush1.msra.mxu0 0.0
    %6961 = vmatprep.subr.mxu0 0.0
    %6962 = vmatpush1.msra.mxu0 0.0
    %6963 = vmatprep.subr.mxu0 0.0
    %6964 = vmatpush1.msra.mxu0 0.0
    %6965 = vmatprep.subr.mxu0 0.0
    %6966 = vmatpush1.msra.mxu0 0.0
    %6967 = vmatprep.subr.mxu0 0.0
    %6968 = vmatpush1.msra.mxu0 0.0
    %6969 = vmatprep.subr.mxu0 0.0
    %6970 = vmatpush1.msra.mxu0 0.0
    %6971 = vmatprep.subr.mxu0 0.0
    %6972 = vmatpush1.msra.mxu0 0.0
    %6973 = vmatprep.subr.mxu0 0.0
    %6974 = vmatpush1.msra.mxu0 0.0
    %6975 = vmatprep.subr.mxu0 0.0
    %6976 = vmatpush1.msra.mxu0 0.0
    %6977 = vmatprep.subr.mxu0 0.0
    %6978 = vmatpush1.msra.mxu0 0.0
    %6979 = vmatprep.subr.mxu0 0.0
    %6980 = vmatpush1.msra.mxu0 0.0
    %6981 = vmatprep.subr.mxu0 0.0
    %6982 = vmatpush1.msra.mxu0 0.0
    %6983 = vmatprep.subr.mxu0 0.0
    %6984 = vmatpush1.msra.mxu0 0.0
    %6985 = vmatprep.subr.mxu0 0.0
    %6986 = vmatpush1.msra.mxu0 0.0
    %6987 = vmatprep.subr.mxu0 0.0
    %6988 = vmatpush1.msra.mxu0 0.0
    %6989 = vmatprep.subr.mxu0 0.0
    %6990 = vmatpush1.msra.mxu0 0.0
    %6991 = vmatprep.subr.mxu0 0.0
    %6992 = vmatpush1.msra.mxu0 0.0
    %6993 = vmatprep.subr.mxu0 0.0
    %6994 = vmatpush1.msra.mxu0 0.0
    %6995 = vmatprep.subr.mxu0 0.0
    %6996 = vmatpush1.msra.mxu0 0.0
    %6997 = vmatprep.subr.mxu0 0.0
    %6998 = vmatpush1.msra.mxu0 0.0
    %6999 = vmatprep.subr.mxu0 0.0
    %7000 = vmatpush1.msra.mxu0 0.0
    %7001 = vmatprep.subr.mxu0 0.0
    %7002 = vmatpush1.msra.mxu0 0.0
    %7003 = vmatprep.subr.mxu0 0.0
    %7004 = vmatpush1.msra.mxu0 0.0
    %7005 = vmatprep.subr.mxu0 0.0
    %7006 = vmatpush1.msra.mxu0 0.0
    %7007 = vmatprep.mubr.f32.mxu0 0.0
    %7008 = vmatmul.mubr.f32.gmra.mrb[0].mxu0 %v6941
    %v7009 = vpop.f32.mrb[0].mxu0
    %v7010 = vadd.f32 0.0, %v7009
    %v7011 = vpop.f32.mrb[0].mxu0
    %7012 = vdwg.mxu0
    %7013 = vrot.lane.b32.xlu0 %v5763, 104
    %v7014 = vpop.permute.xlu0 %7013
    %7015 = vrot.lane.b32.xlu0 %v5844, 104
    %v7016 = vpop.permute.xlu0 %7015
    %v7017 = vsel %vm643, %v7014, 0
    %v7019 = vsel %vm643, %v7016, 0
    %7021 = vmatprep.subr.mxu0 0.0
    %7022 = vmatpush1.xpose.msra.mxu0 %v7019
    %7023 = vmatprep.subr.mxu0 0.0
    %7024 = vmatpush1.xpose.msra.mxu0 0.0
    %7025 = vmatprep.subr.mxu0 0.0
    %7026 = vmatpush1.xpose.msra.mxu0 0.0
    %7027 = vmatprep.subr.mxu0 0.0
    %7028 = vmatpush1.xpose.msra.mxu0 0.0
    %7029 = vmatprep.subr.mxu0 0.0
    %7030 = vmatpush1.xpose.msra.mxu0 0.0
    %7031 = vmatprep.subr.mxu0 0.0
    %7032 = vmatpush1.xpose.msra.mxu0 0.0
    %7033 = vmatprep.subr.mxu0 0.0
    %7034 = vmatpush1.xpose.msra.mxu0 0.0
    %7035 = vmatprep.subr.mxu0 0.0
    %7036 = vmatpush1.xpose.msra.mxu0 0.0
    %7037 = vmatprep.subr.mxu0 0.0
    %7038 = vmatpush1.xpose.msra.mxu0 0.0
    %7039 = vmatprep.subr.mxu0 0.0
    %7040 = vmatpush1.xpose.msra.mxu0 0.0
    %7041 = vmatprep.subr.mxu0 0.0
    %7042 = vmatpush1.xpose.msra.mxu0 0.0
    %7043 = vmatprep.subr.mxu0 0.0
    %7044 = vmatpush1.xpose.msra.mxu0 0.0
    %7045 = vmatprep.subr.mxu0 0.0
    %7046 = vmatpush1.xpose.msra.mxu0 0.0
    %7047 = vmatprep.subr.mxu0 0.0
    %7048 = vmatpush1.xpose.msra.mxu0 0.0
    %7049 = vmatprep.subr.mxu0 0.0
    %7050 = vmatpush1.xpose.msra.mxu0 0.0
    %7051 = vmatprep.subr.mxu0 0.0
    %7052 = vmatpush1.xpose.msra.mxu0 0.0
    %7053 = vmatprep.subr.mxu0 0.0
    %7054 = vmatpush1.xpose.msra.mxu0 0.0
    %7055 = vmatprep.subr.mxu0 0.0
    %7056 = vmatpush1.xpose.msra.mxu0 0.0
    %7057 = vmatprep.subr.mxu0 0.0
    %7058 = vmatpush1.xpose.msra.mxu0 0.0
    %7059 = vmatprep.subr.mxu0 0.0
    %7060 = vmatpush1.xpose.msra.mxu0 0.0
    %7061 = vmatprep.subr.mxu0 0.0
    %7062 = vmatpush1.xpose.msra.mxu0 0.0
    %7063 = vmatprep.subr.mxu0 0.0
    %7064 = vmatpush1.xpose.msra.mxu0 0.0
    %7065 = vmatprep.subr.mxu0 0.0
    %7066 = vmatpush1.xpose.msra.mxu0 0.0
    %7067 = vmatprep.subr.mxu0 0.0
    %7068 = vmatpush1.xpose.msra.mxu0 0.0
    %7069 = vmatprep.subr.mxu0 0.0
    %7070 = vmatpush1.xpose.msra.mxu0 0.0
    %7071 = vmatprep.subr.mxu0 0.0
    %7072 = vmatpush1.xpose.msra.mxu0 0.0
    %7073 = vmatprep.subr.mxu0 0.0
    %7074 = vmatpush1.xpose.msra.mxu0 0.0
    %7075 = vmatprep.subr.mxu0 0.0
    %7076 = vmatpush1.xpose.msra.mxu0 0.0
    %7077 = vmatprep.subr.mxu0 0.0
    %7078 = vmatpush1.xpose.msra.mxu0 0.0
    %7079 = vmatprep.subr.mxu0 0.0
    %7080 = vmatpush1.xpose.msra.mxu0 0.0
    %7081 = vmatprep.subr.mxu0 0.0
    %7082 = vmatpush1.xpose.msra.mxu0 0.0
    %7083 = vmatprep.subr.mxu0 0.0
    %7084 = vmatpush1.xpose.msra.mxu0 0.0
    %7085 = vmatprep.mubr.f32.mxu0 0.0
    %7086 = vmatmul.mubr.f32.gmra.mrb[0].mxu0 %v7017
    %v7087 = vpop.f32.mrb[0].mxu0
    %v7088 = vadd.f32 0.0, %v7087
    %v7089 = vpop.f32.mrb[0].mxu0
    %7090 = vdwg.mxu0
    %v7091 = vsel %vm643, %v7088, -inf
    %7092 = vmax.xlane.f32.xlu0 %v7091
    %v7093 = vpop.xlane.xlu0 %7092
    %v7094 = vsub.f32 %v7088, %v7093
    %v7095 = vmul.f32 %v7094, 1.442695
    %v7096 = vpow.pop %v7095
    %v7097 = vsel %vm643, %v7096, 0.0
    %7098 = vadd.xlane.f32.xlu0 %v7097
    %v7099 = vpop.xlane.xlu0 %7098
    %v7100 = vrcp.pop %v7099
    %v7101 = vmul.f32 %v7096, %v7100
    %7102 = vrot.lane.b32.xlu0 %v5844, 72
    %v7103 = vpop.permute.xlu0 %7102
    %v7106 = vsel %vm643, %v7101, 0
    %7108 = vmatprep.subr.mxu0 0.0
    %7109 = vmatpush1.msra.mxu0 %v7103
    %7110 = vmatprep.subr.mxu0 0.0
    %7111 = vmatpush1.msra.mxu0 0.0
    %7112 = vmatprep.subr.mxu0 0.0
    %7113 = vmatpush1.msra.mxu0 0.0
    %7114 = vmatprep.subr.mxu0 0.0
    %7115 = vmatpush1.msra.mxu0 0.0
    %7116 = vmatprep.subr.mxu0 0.0
    %7117 = vmatpush1.msra.mxu0 0.0
    %7118 = vmatprep.subr.mxu0 0.0
    %7119 = vmatpush1.msra.mxu0 0.0
    %7120 = vmatprep.subr.mxu0 0.0
    %7121 = vmatpush1.msra.mxu0 0.0
    %7122 = vmatprep.subr.mxu0 0.0
    %7123 = vmatpush1.msra.mxu0 0.0
    %7124 = vmatprep.subr.mxu0 0.0
    %7125 = vmatpush1.msra.mxu0 0.0
    %7126 = vmatprep.subr.mxu0 0.0
    %7127 = vmatpush1.msra.mxu0 0.0
    %7128 = vmatprep.subr.mxu0 0.0
    %7129 = vmatpush1.msra.mxu0 0.0
    %7130 = vmatprep.subr.mxu0 0.0
    %7131 = vmatpush1.msra.mxu0 0.0
    %7132 = vmatprep.subr.mxu0 0.0
    %7133 = vmatpush1.msra.mxu0 0.0
    %7134 = vmatprep.subr.mxu0 0.0
    %7135 = vmatpush1.msra.mxu0 0.0
    %7136 = vmatprep.subr.mxu0 0.0
    %7137 = vmatpush1.msra.mxu0 0.0
    %7138 = vmatprep.subr.mxu0 0.0
    %7139 = vmatpush1.msra.mxu0 0.0
    %7140 = vmatprep.subr.mxu0 0.0
    %7141 = vmatpush1.msra.mxu0 0.0
    %7142 = vmatprep.subr.mxu0 0.0
    %7143 = vmatpush1.msra.mxu0 0.0
    %7144 = vmatprep.subr.mxu0 0.0
    %7145 = vmatpush1.msra.mxu0 0.0
    %7146 = vmatprep.subr.mxu0 0.0
    %7147 = vmatpush1.msra.mxu0 0.0
    %7148 = vmatprep.subr.mxu0 0.0
    %7149 = vmatpush1.msra.mxu0 0.0
    %7150 = vmatprep.subr.mxu0 0.0
    %7151 = vmatpush1.msra.mxu0 0.0
    %7152 = vmatprep.subr.mxu0 0.0
    %7153 = vmatpush1.msra.mxu0 0.0
    %7154 = vmatprep.subr.mxu0 0.0
    %7155 = vmatpush1.msra.mxu0 0.0
    %7156 = vmatprep.subr.mxu0 0.0
    %7157 = vmatpush1.msra.mxu0 0.0
    %7158 = vmatprep.subr.mxu0 0.0
    %7159 = vmatpush1.msra.mxu0 0.0
    %7160 = vmatprep.subr.mxu0 0.0
    %7161 = vmatpush1.msra.mxu0 0.0
    %7162 = vmatprep.subr.mxu0 0.0
    %7163 = vmatpush1.msra.mxu0 0.0
    %7164 = vmatprep.subr.mxu0 0.0
    %7165 = vmatpush1.msra.mxu0 0.0
    %7166 = vmatprep.subr.mxu0 0.0
    %7167 = vmatpush1.msra.mxu0 0.0
    %7168 = vmatprep.subr.mxu0 0.0
    %7169 = vmatpush1.msra.mxu0 0.0
    %7170 = vmatprep.subr.mxu0 0.0
    %7171 = vmatpush1.msra.mxu0 0.0
    %7172 = vmatprep.mubr.f32.mxu0 0.0
    %7173 = vmatmul.mubr.f32.gmra.mrb[0].mxu0 %v7106
    %v7174 = vpop.f32.mrb[0].mxu0
    %v7175 = vadd.f32 0.0, %v7174
    %v7176 = vpop.f32.mrb[0].mxu0
    %7177 = vdwg.mxu0
    %7179 = vrot.lane.b32.xlu0 %v6845, 8
    %v7180 = vpop.permute.xlu0 %7179
    %7183 = vrot.lane.b32.xlu0 %v7010, 16
    %v7184 = vpop.permute.xlu0 %7183
    %7187 = vrot.lane.b32.xlu0 %v7175, 24
    %v7188 = vpop.permute.xlu0 %7187
    %v7190 = vsel %vm643, %v6680, %v7180
    %v7191 = vsel %vm1317, %v7190, %v7184
    %v7192 = vsel %vm1319, %v7191, %v7188
    %v7194 = vlaneseq
    %v7195 = vshrl.u32 %v7194, 7
    %v7196 = vsub.s32 0, %v7195
    %v7197 = vrot.slane %v4072, %v7196
    %v7200 = vsel %vm558, %v6519, 0
    %v7203 = vsel %vm558, %v7192, 0
    %7205 = vmatprep.subr.mxu0 0.0
    %7206 = vmatpush1.msra.mxu0 %v4068
    %7207 = vmatprep.subr.mxu0 0.0
    %7208 = vmatpush1.msra.mxu0 %v4069
    %7209 = vmatprep.subr.mxu0 0.0
    %7210 = vmatpush1.msra.mxu0 %v4070
    %7211 = vmatprep.subr.mxu0 0.0
    %7212 = vmatpush1.msra.mxu0 %v4071
    %7213 = vmatprep.subr.mxu0 0.0
    %7214 = vmatpush1.msra.mxu0 0.0
    %7215 = vmatprep.subr.mxu0 0.0
    %7216 = vmatpush1.msra.mxu0 0.0
    %7217 = vmatprep.subr.mxu0 0.0
    %7218 = vmatpush1.msra.mxu0 0.0
    %7219 = vmatprep.subr.mxu0 0.0
    %7220 = vmatpush1.msra.mxu0 0.0
    %7221 = vmatprep.subr.mxu0 0.0
    %7222 = vmatpush1.msra.mxu0 0.0
    %7223 = vmatprep.subr.mxu0 0.0
    %7224 = vmatpush1.msra.mxu0 0.0
    %7225 = vmatprep.subr.mxu0 0.0
    %7226 = vmatpush1.msra.mxu0 0.0
    %7227 = vmatprep.subr.mxu0 0.0
    %7228 = vmatpush1.msra.mxu0 0.0
    %7229 = vmatprep.subr.mxu0 0.0
    %7230 = vmatpush1.msra.mxu0 0.0
    %7231 = vmatprep.subr.mxu0 0.0
    %7232 = vmatpush1.msra.mxu0 0.0
    %7233 = vmatprep.subr.mxu0 0.0
    %7234 = vmatpush1.msra.mxu0 0.0
    %7235 = vmatprep.subr.mxu0 0.0
    %7236 = vmatpush1.msra.mxu0 0.0
    %7237 = vmatprep.subr.mxu0 0.0
    %7238 = vmatpush1.msra.mxu0 0.0
    %7239 = vmatprep.subr.mxu0 0.0
    %7240 = vmatpush1.msra.mxu0 0.0
    %7241 = vmatprep.subr.mxu0 0.0
    %7242 = vmatpush1.msra.mxu0 0.0
    %7243 = vmatprep.subr.mxu0 0.0
    %7244 = vmatpush1.msra.mxu0 0.0
    %7245 = vmatprep.subr.mxu0 0.0
    %7246 = vmatpush1.msra.mxu0 0.0
    %7247 = vmatprep.subr.mxu0 0.0
    %7248 = vmatpush1.msra.mxu0 0.0
    %7249 = vmatprep.subr.mxu0 0.0
    %7250 = vmatpush1.msra.mxu0 0.0
    %7251 = vmatprep.subr.mxu0 0.0
    %7252 = vmatpush1.msra.mxu0 0.0
    %7253 = vmatprep.subr.mxu0 0.0
    %7254 = vmatpush1.msra.mxu0 0.0
    %7255 = vmatprep.subr.mxu0 0.0
    %7256 = vmatpush1.msra.mxu0 0.0
    %7257 = vmatprep.subr.mxu0 0.0
    %7258 = vmatpush1.msra.mxu0 0.0
    %7259 = vmatprep.subr.mxu0 0.0
    %7260 = vmatpush1.msra.mxu0 0.0
    %7261 = vmatprep.subr.mxu0 0.0
    %7262 = vmatpush1.msra.mxu0 0.0
    %7263 = vmatprep.subr.mxu0 0.0
    %7264 = vmatpush1.msra.mxu0 0.0
    %7265 = vmatprep.subr.mxu0 0.0
    %7266 = vmatpush1.msra.mxu0 0.0
    %7267 = vmatprep.subr.mxu0 0.0
    %7268 = vmatpush1.msra.mxu0 0.0
    %7269 = vmatprep.mubr.f32.mxu0 0.0
    %7270 = vmatmul.mubr.f32.gmra.mrb[0].mxu0 %v7200
    %v7271 = vpop.f32.mrb[0].mxu0
    %v7272 = vadd.f32 %v7197, %v7271
    %v7273 = vpop.f32.mrb[0].mxu0
    %7274 = vmatprep.mubr.f32.mxu0 0.0
    %7275 = vmatmul.mubr.f32.gmra.mrb[0].mxu0 %v7203
    %v7276 = vpop.f32.mrb[0].mxu0
    %v7277 = vadd.f32 %v7197, %v7276
    %v7278 = vpop.f32.mrb[0].mxu0
    %7279 = vdwg.mxu0
    %v7280 = vsel %vm558, %v7272, 0.0
    %7281 = vadd.xlane.f32.xlu0 %v7280
    %v7282 = vpop.xlane.xlu0 %7281
    %v7283 = vsel %vm558, %v7277, 0.0
    %7284 = vadd.xlane.f32.xlu0 %v7283
    %v7285 = vpop.xlane.xlu0 %7284
    %v7286 = vmul.f32 %v7282, %v2092
    %v7287 = vmul.f32 %v7285, %v2092
    %v7288 = vsub.f32 %v7272, %v7286
    %v7289 = vsub.f32 %v7277, %v7287
    %v7290 = vmul.f32 %v7288, %v7288
    %v7291 = vmul.f32 %v7289, %v7289
    %v7292 = vsel %vm558, %v7290, 0.0
    %7293 = vadd.xlane.f32.xlu0 %v7292
    %v7294 = vpop.xlane.xlu0 %7293
    %v7295 = vsel %vm558, %v7291, 0.0
    %7296 = vadd.xlane.f32.xlu0 %v7295
    %v7297 = vpop.xlane.xlu0 %7296
    %v7298 = vmul.f32 %v7294, %v2105
    %v7299 = vmul.f32 %v7297, %v2105
    %v7300 = vrsqrt.pop %v7298
    %v7301 = vmul.f32 %v7298, %v7300
    %vm7302 = vcmp.eq.f32.partialorder %v7298, inf
    %v7303 = vsel %vm7302, %v7298, %v7301
    %vm7304 = vcmp.eq.f32.partialorder %v7298, 0.0
    %v7305 = vand.u32 %v7298, 2147483648
    %v7306 = vsel %vm7304, %v7305, %v7303
    %v7307 = vrsqrt.pop %v7299
    %v7308 = vmul.f32 %v7299, %v7307
    %vm7309 = vcmp.eq.f32.partialorder %v7299, inf
    %v7310 = vsel %vm7309, %v7299, %v7308
    %vm7311 = vcmp.eq.f32.partialorder %v7299, 0.0
    %v7312 = vand.u32 %v7299, 2147483648
    %v7313 = vsel %vm7311, %v7312, %v7310
    %v7315 = vlaneseq
    %v7316 = vshrl.u32 %v7315, 7
    %v7317 = vsub.s32 0, %v7316
    %v7318 = vrot.slane %v4073, %v7317
    %v7320 = vmul.f32 %v7318, %v7288
    %v7321 = vmul.f32 %v7318, %v7289
    %v7322 = vadd.f32 %v7306, 1e-06
    %v7323 = vadd.f32 %v7313, 1e-06
    %v7324 = vrcp.pop %v7322
    %v7325 = vmul.f32 %v7320, %v7324
    %v7326 = vrcp.pop %v7323
    %v7327 = vmul.f32 %v7321, %v7326
    %v7328 = vadd.f32 %v5677, %v7325
    %v7329 = vadd.f32 %v5678, %v7327
    %v7331 = vlaneseq
    %v7332 = vshrl.u32 %v7331, 7
    %v7333 = vsub.s32 0, %v7332
    %v7334 = vrot.slane %v4074, %v7333
    %v7336 = vadd.f32 %v7328, %v7334
    %v7337 = vadd.f32 %v7329, %v7334
    %v7339 = vlaneseq
    %v7340 = vshrl.u32 %v7339, 7
    %v7341 = vsub.s32 0, %v7340
    %v7342 = vrot.slane %v4079, %v7341
    %v7345 = vsel %vm558, %v7336, 0
    %v7348 = vsel %vm558, %v7337, 0
    %7350 = vmatprep.subr.mxu0 0.0
    %7351 = vmatpush1.msra.mxu0 %v4075
    %7352 = vmatprep.subr.mxu0 0.0
    %7353 = vmatpush1.msra.mxu0 %v4076
    %7354 = vmatprep.subr.mxu0 0.0
    %7355 = vmatpush1.msra.mxu0 %v4077
    %7356 = vmatprep.subr.mxu0 0.0
    %7357 = vmatpush1.msra.mxu0 %v4078
    %7358 = vmatprep.subr.mxu0 0.0
    %7359 = vmatpush1.msra.mxu0 0.0
    %7360 = vmatprep.subr.mxu0 0.0
    %7361 = vmatpush1.msra.mxu0 0.0
    %7362 = vmatprep.subr.mxu0 0.0
    %7363 = vmatpush1.msra.mxu0 0.0
    %7364 = vmatprep.subr.mxu0 0.0
    %7365 = vmatpush1.msra.mxu0 0.0
    %7366 = vmatprep.subr.mxu0 0.0
    %7367 = vmatpush1.msra.mxu0 0.0
    %7368 = vmatprep.subr.mxu0 0.0
    %7369 = vmatpush1.msra.mxu0 0.0
    %7370 = vmatprep.subr.mxu0 0.0
    %7371 = vmatpush1.msra.mxu0 0.0
    %7372 = vmatprep.subr.mxu0 0.0
    %7373 = vmatpush1.msra.mxu0 0.0
    %7374 = vmatprep.subr.mxu0 0.0
    %7375 = vmatpush1.msra.mxu0 0.0
    %7376 = vmatprep.subr.mxu0 0.0
    %7377 = vmatpush1.msra.mxu0 0.0
    %7378 = vmatprep.subr.mxu0 0.0
    %7379 = vmatpush1.msra.mxu0 0.0
    %7380 = vmatprep.subr.mxu0 0.0
    %7381 = vmatpush1.msra.mxu0 0.0
    %7382 = vmatprep.subr.mxu0 0.0
    %7383 = vmatpush1.msra.mxu0 0.0
    %7384 = vmatprep.subr.mxu0 0.0
    %7385 = vmatpush1.msra.mxu0 0.0
    %7386 = vmatprep.subr.mxu0 0.0
    %7387 = vmatpush1.msra.mxu0 0.0
    %7388 = vmatprep.subr.mxu0 0.0
    %7389 = vmatpush1.msra.mxu0 0.0
    %7390 = vmatprep.subr.mxu0 0.0
    %7391 = vmatpush1.msra.mxu0 0.0
    %7392 = vmatprep.subr.mxu0 0.0
    %7393 = vmatpush1.msra.mxu0 0.0
    %7394 = vmatprep.subr.mxu0 0.0
    %7395 = vmatpush1.msra.mxu0 0.0
    %7396 = vmatprep.subr.mxu0 0.0
    %7397 = vmatpush1.msra.mxu0 0.0
    %7398 = vmatprep.subr.mxu0 0.0
    %7399 = vmatpush1.msra.mxu0 0.0
    %7400 = vmatprep.subr.mxu0 0.0
    %7401 = vmatpush1.msra.mxu0 0.0
    %7402 = vmatprep.subr.mxu0 0.0
    %7403 = vmatpush1.msra.mxu0 0.0
    %7404 = vmatprep.subr.mxu0 0.0
    %7405 = vmatpush1.msra.mxu0 0.0
    %7406 = vmatprep.subr.mxu0 0.0
    %7407 = vmatpush1.msra.mxu0 0.0
    %7408 = vmatprep.subr.mxu0 0.0
    %7409 = vmatpush1.msra.mxu0 0.0
    %7410 = vmatprep.subr.mxu0 0.0
    %7411 = vmatpush1.msra.mxu0 0.0
    %7412 = vmatprep.subr.mxu0 0.0
    %7413 = vmatpush1.msra.mxu0 0.0
    %7414 = vmatprep.mubr.f32.mxu0 0.0
    %7415 = vmatmul.mubr.f32.gmra.mrb[0].mxu0 %v7345
    %v7416 = vpop.f32.mrb[0].mxu0
    %v7417 = vadd.f32 %v7342, %v7416
    %v7418 = vpop.f32.mrb[0].mxu0
    %7419 = vmatprep.mubr.f32.mxu0 0.0
    %7420 = vmatmul.mubr.f32.gmra.mrb[0].mxu0 %v7348
    %v7421 = vpop.f32.mrb[0].mxu0
    %v7422 = vadd.f32 %v7342, %v7421
    %v7423 = vpop.f32.mrb[0].mxu0
    %7424 = vdwg.mxu0
    %v7425 = vmax.f32 %v7417, 0.0
    %v7426 = vmax.f32 %v7422, 0.0
    %v7428 = vlaneseq
    %v7429 = vshrl.u32 %v7428, 7
    %v7430 = vsub.s32 0, %v7429
    %v7431 = vrot.slane %v4088, %v7430
    %v7434 = vsel %vm3906, %v7425, 0
    %v7437 = vsel %vm3906, %v7426, 0
    %7439 = vmatprep.subr.mxu0 0.0
    %7440 = vmatpush1.msra.mxu0 %v4080
    %7441 = vmatprep.subr.mxu0 0.0
    %7442 = vmatpush1.msra.mxu0 %v4081
    %7443 = vmatprep.subr.mxu0 0.0
    %7444 = vmatpush1.msra.mxu0 %v4082
    %7445 = vmatprep.subr.mxu0 0.0
    %7446 = vmatpush1.msra.mxu0 %v4083
    %7447 = vmatprep.subr.mxu0 0.0
    %7448 = vmatpush1.msra.mxu0 %v4084
    %7449 = vmatprep.subr.mxu0 0.0
    %7450 = vmatpush1.msra.mxu0 %v4085
    %7451 = vmatprep.subr.mxu0 0.0
    %7452 = vmatpush1.msra.mxu0 %v4086
    %7453 = vmatprep.subr.mxu0 0.0
    %7454 = vmatpush1.msra.mxu0 %v4087
    %7455 = vmatprep.subr.mxu0 0.0
    %7456 = vmatpush1.msra.mxu0 0.0
    %7457 = vmatprep.subr.mxu0 0.0
    %7458 = vmatpush1.msra.mxu0 0.0
    %7459 = vmatprep.subr.mxu0 0.0
    %7460 = vmatpush1.msra.mxu0 0.0
    %7461 = vmatprep.subr.mxu0 0.0
    %7462 = vmatpush1.msra.mxu0 0.0
    %7463 = vmatprep.subr.mxu0 0.0
    %7464 = vmatpush1.msra.mxu0 0.0
    %7465 = vmatprep.subr.mxu0 0.0
    %7466 = vmatpush1.msra.mxu0 0.0
    %7467 = vmatprep.subr.mxu0 0.0
    %7468 = vmatpush1.msra.mxu0 0.0
    %7469 = vmatprep.subr.mxu0 0.0
    %7470 = vmatpush1.msra.mxu0 0.0
    %7471 = vmatprep.subr.mxu0 0.0
    %7472 = vmatpush1.msra.mxu0 0.0
    %7473 = vmatprep.subr.mxu0 0.0
    %7474 = vmatpush1.msra.mxu0 0.0
    %7475 = vmatprep.subr.mxu0 0.0
    %7476 = vmatpush1.msra.mxu0 0.0
    %7477 = vmatprep.subr.mxu0 0.0
    %7478 = vmatpush1.msra.mxu0 0.0
    %7479 = vmatprep.subr.mxu0 0.0
    %7480 = vmatpush1.msra.mxu0 0.0
    %7481 = vmatprep.subr.mxu0 0.0
    %7482 = vmatpush1.msra.mxu0 0.0
    %7483 = vmatprep.subr.mxu0 0.0
    %7484 = vmatpush1.msra.mxu0 0.0
    %7485 = vmatprep.subr.mxu0 0.0
    %7486 = vmatpush1.msra.mxu0 0.0
    %7487 = vmatprep.subr.mxu0 0.0
    %7488 = vmatpush1.msra.mxu0 0.0
    %7489 = vmatprep.subr.mxu0 0.0
    %7490 = vmatpush1.msra.mxu0 0.0
    %7491 = vmatprep.subr.mxu0 0.0
    %7492 = vmatpush1.msra.mxu0 0.0
    %7493 = vmatprep.subr.mxu0 0.0
    %7494 = vmatpush1.msra.mxu0 0.0
    %7495 = vmatprep.subr.mxu0 0.0
    %7496 = vmatpush1.msra.mxu0 0.0
    %7497 = vmatprep.subr.mxu0 0.0
    %7498 = vmatpush1.msra.mxu0 0.0
    %7499 = vmatprep.subr.mxu0 0.0
    %7500 = vmatpush1.msra.mxu0 0.0
    %7501 = vmatprep.subr.mxu0 0.0
    %7502 = vmatpush1.msra.mxu0 0.0
    %7503 = vmatprep.mubr.f32.mxu0 0.0
    %7504 = vmatmul.mubr.f32.gmra.mrb[0].mxu0 %v7434
    %v7505 = vpop.f32.mrb[0].mxu0
    %v7506 = vadd.f32 %v7431, %v7505
    %v7507 = vpop.f32.mrb[0].mxu0
    %7508 = vmatprep.mubr.f32.mxu0 0.0
    %7509 = vmatmul.mubr.f32.gmra.mrb[0].mxu0 %v7437
    %v7510 = vpop.f32.mrb[0].mxu0
    %v7511 = vadd.f32 %v7431, %v7510
    %v7512 = vpop.f32.mrb[0].mxu0
    %7513 = vdwg.mxu0
    %v7514 = vsel %vm558, %v7506, 0.0
    %7515 = vadd.xlane.f32.xlu0 %v7514
    %v7516 = vpop.xlane.xlu0 %7515
    %v7517 = vsel %vm558, %v7511, 0.0
    %7518 = vadd.xlane.f32.xlu0 %v7517
    %v7519 = vpop.xlane.xlu0 %7518
    %v7520 = vmul.f32 %v7516, %v2092
    %v7521 = vmul.f32 %v7519, %v2092
    %v7522 = vsub.f32 %v7506, %v7520
    %v7523 = vsub.f32 %v7511, %v7521
    %v7524 = vmul.f32 %v7522, %v7522
    %v7525 = vmul.f32 %v7523, %v7523
    %v7526 = vsel %vm558, %v7524, 0.0
    %7527 = vadd.xlane.f32.xlu0 %v7526
    %v7528 = vpop.xlane.xlu0 %7527
    %v7529 = vsel %vm558, %v7525, 0.0
    %7530 = vadd.xlane.f32.xlu0 %v7529
    %v7531 = vpop.xlane.xlu0 %7530
    %v7532 = vmul.f32 %v7528, %v2105
    %v7533 = vmul.f32 %v7531, %v2105
    %v7534 = vrsqrt.pop %v7532
    %v7535 = vmul.f32 %v7532, %v7534
    %vm7536 = vcmp.eq.f32.partialorder %v7532, inf
    %v7537 = vsel %vm7536, %v7532, %v7535
    %vm7538 = vcmp.eq.f32.partialorder %v7532, 0.0
    %v7539 = vand.u32 %v7532, 2147483648
    %v7540 = vsel %vm7538, %v7539, %v7537
    %v7541 = vrsqrt.pop %v7533
    %v7542 = vmul.f32 %v7533, %v7541
    %vm7543 = vcmp.eq.f32.partialorder %v7533, inf
    %v7544 = vsel %vm7543, %v7533, %v7542
    %vm7545 = vcmp.eq.f32.partialorder %v7533, 0.0
    %v7546 = vand.u32 %v7533, 2147483648
    %v7547 = vsel %vm7545, %v7546, %v7544
    %v7549 = vlaneseq
    %v7550 = vshrl.u32 %v7549, 7
    %v7551 = vsub.s32 0, %v7550
    %v7552 = vrot.slane %v4089, %v7551
    %v7554 = vmul.f32 %v7552, %v7522
    %v7555 = vmul.f32 %v7552, %v7523
    %v7556 = vadd.f32 %v7540, 1e-06
    %v7557 = vadd.f32 %v7547, 1e-06
    %v7558 = vrcp.pop %v7556
    %v7559 = vmul.f32 %v7554, %v7558
    %v7560 = vrcp.pop %v7557
    %v7561 = vmul.f32 %v7555, %v7560
    %v7562 = vadd.f32 %v7336, %v7559
    %v7563 = vadd.f32 %v7337, %v7561
    %v7565 = vlaneseq
    %v7566 = vshrl.u32 %v7565, 7
    %v7567 = vsub.s32 0, %v7566
    %v7568 = vrot.slane %v4090, %v7567
    %v7570 = vadd.f32 %v7562, %v7568
    %v7571 = vadd.f32 %v7563, %v7568
    %7572 = vst.msk [vmem:[#allocation44] sm:$0xff] %vm558, %v7570
    %7573 = vst.msk [vmem:[#allocation44 + $0x8] sm:$0xff] %vm558, %v7571
    // Predicated region
    $region278: #{tpu_custom_call.1} parent=1 // pred_check
      _
    $region279: #{tpu_custom_call.1} parent=1 // pred_check_branch
      %7575 = sbr.rel (0) target = $region281
    $region280: #{tpu_custom_call.1} parent=1 // pred_region
      %s7577 = ssub.s32 256, 256
      %7578 = vsyncadd [#allocation4], %s7577
      %s7579 = sshll.u32 [#allocation44], 4
      %s7580 = int_to_ptr.vmem [resolvable:$true] %s7579
      %7585 = dma.vmem_to_hbm [thread:$0]  %s7580, 256, %s85, [#allocation4], 128, 128, 8
    $region281: #{tpu_custom_call.1} parent=1 // pred_fallthru
      _
    // Predicated region
    $region282: #{tpu_custom_call.1} parent=1 // pred_check
      _
    $region283: #{tpu_custom_call.1} parent=1 // pred_check_branch
      %7587 = sbr.rel (0) target = $region285
    $region284: #{tpu_custom_call.1} parent=1 // pred_region
      %7588 = dma.done [#allocation4], 256
    $region285: #{tpu_custom_call.1} parent=1 // pred_fallthru
      _
    %7589 = vsyncpa [#allocation3], 1
    %7590 = vsyncpa [#allocation6], 1
    %7591 = vsyncpa [#allocation9], 1
    %7592 = vsyncpa [#allocation12], 1
    %7593 = vsyncpa [#allocation15], 1
    %7594 = vsyncpa [#allocation18], 1
    %7595 = vsyncpa [#allocation21], 1
    %7596 = vsyncpa [#allocation24], 1
    %7597 = vsyncpa [#allocation27], 1
    %7598 = vsyncpa [#allocation30], 1
    %7599 = vsyncpa [#allocation33], 1
    %7600 = vsyncpa [#allocation36], 1
    %7601 = vsyncpa [#allocation39], 1
    %7602 = vsyncpa [#allocation42], 1
    %7603 = vsyncpa [#allocation4], 1

</llo_original>
